<compile_context>
chip_gen: v7x
topology: tpu7x:2x2x1
jax: 0.10.0
libtpu: 0.0.40
codegen_flags: <defaults>
</compile_context>

<pallas_src>
import jax
import jax.numpy as jnp
from jax.experimental import pallas as pl
from jax.experimental.pallas import tpu as pltpu

IN_FEATURES = 22 * 518       # 11396
HIDDEN = 5 * 512             # 2560
OUT_FEATURES = 6

TK = 1664                                    # K tile (multiple of 128)
K_TILES = -(-IN_FEATURES // TK)              # 7
K1P = TK * K_TILES                           # 11648 (padded K)
N2P = 128                                    # padded final output width (lane-dense)
NC = 2                                       # HIDDEN split (megacore on v7x)
H2 = HIDDEN // NC                            # 1280


def _fused_mlp_kernel(x_ref, w1_ref, b1_ref, w2_ref, o_ref, acc_ref):
    """Grid = (c, k): c splits HIDDEN into halves ("parallel"), k is the
    reduction over the padded input features ("arbitrary").

    For each half c: accumulate x @ w1[:, c-half] into a f32 scratch; on the
    last K step apply bias + ReLU and the (tiny) second Linear, emitting a
    partial logit block.  Partials are summed (and b2 added) in the wrapper.
    """
    k = pl.program_id(1)

    @pl.when(k == 0)
    def _():
        acc_ref[...] = jnp.zeros_like(acc_ref)

    acc_ref[...] += jnp.dot(
        x_ref[...], w1_ref[...], preferred_element_type=jnp.float32
    )

    @pl.when(k == pl.num_programs(1) - 1)
    def _():
        h = jnp.maximum(acc_ref[...] + b1_ref[...], 0.0)
        y = jnp.dot(h, w2_ref[...], preferred_element_type=jnp.float32)
        o_ref[...] = y.astype(o_ref.dtype)


def fused_mlp(xp, w1p, b1p, w2p):
    """relu(x @ w1 + b1) @ w2 on pre-padded / pre-split operands.

    xp:  (Mp, K1P)        bf16
    w1p: (NC, K1P, H2)    bf16   (HIDDEN split into NC contiguous halves)
    b1p: (NC, 1, H2)      f32
    w2p: (NC, H2, N2P)    f32
    Returns (NC, Mp, N2P) f32 partial logits (sum over NC + b2 done outside).
    """
    Mp, K1p = xp.shape
    nc, _, h2 = w1p.shape
    _, _, n2p = w2p.shape
    assert K1p % TK == 0
    kt = K1p // TK

    bytes_accessed = (
        w1p.size * 2            # bf16 weight stream (dominant)
        + xp.size * 2 * nc      # x K-slabs, re-fetched per half
        + w2p.size * 4 + b1p.size * 4
        + nc * Mp * n2p * 4     # partial outputs
    )
    flops = 2 * Mp * K1p * (nc * h2) + 2 * Mp * (nc * h2) * n2p

    return pl.pallas_call(
        _fused_mlp_kernel,
        out_shape=jax.ShapeDtypeStruct((nc, Mp, n2p), jnp.float32),
        grid_spec=pltpu.PrefetchScalarGridSpec(
            num_scalar_prefetch=0,
            grid=(nc, kt),
            in_specs=[
                pl.BlockSpec((Mp, TK), lambda c, k: (0, k)),        # x K-slab (tiny)
                pl.BlockSpec((None, TK, h2), lambda c, k: (c, k, 0)),   # w1 slab (~4.3 MB bf16)
                pl.BlockSpec((None, 1, h2), lambda c, k: (c, 0, 0)),    # b1 half
                pl.BlockSpec((None, h2, n2p), lambda c, k: (c, 0, 0)),  # w2 half
            ],
            out_specs=pl.BlockSpec((None, Mp, n2p), lambda c, k: (c, 0, 0)),
            scratch_shapes=[pltpu.VMEM((Mp, h2), jnp.float32)],
        ),
        compiler_params=pltpu.CompilerParams(
            # c halves are independent (megacore-shardable on v7x);
            # k is the reduction axis.
            dimension_semantics=("parallel", "arbitrary"),
            vmem_limit_bytes=28 * 1024 * 1024,
        ),
        cost_estimate=pl.CostEstimate(
            flops=flops, transcendentals=0, bytes_accessed=bytes_accessed
        ),
    )(xp, w1p, b1p, w2p)


def init_params(key):
    """Deterministic synthetic parameters matching BaselineModel2 shapes."""
    k1, k2, k3, k4 = jax.random.split(key, 4)
    s1 = 1.0 / jnp.sqrt(jnp.float32(IN_FEATURES))
    s2 = 1.0 / jnp.sqrt(jnp.float32(HIDDEN))
    w1 = jax.random.uniform(k1, (IN_FEATURES, HIDDEN), jnp.float32, -s1, s1)
    b1 = jax.random.uniform(k2, (HIDDEN,), jnp.float32, -s1, s1)
    w2 = jax.random.uniform(k3, (HIDDEN, OUT_FEATURES), jnp.float32, -s2, s2)
    b2 = jax.random.uniform(k4, (OUT_FEATURES,), jnp.float32, -s2, s2)
    return w1, b1, w2, b2


def prepare_padded_params(w1, b1, w2, b2):
    """Pad / cast / split parameters ONCE (outside the forward path).

    * w1 is zero-padded along K to K1P, cast to bf16 and split into NC
      contiguous HIDDEN-halves: (NC, K1P, H2) so each half is a contiguous
      weight stream.
    * w2 is zero-padded along N to N2P (padded output columns stay zero) and
      split the same way along its input (HIDDEN) dim: (NC, H2, N2P).
    * b1 -> (NC, 1, H2) f32; b2 -> (1, N2P) f32 (added in the wrapper).
    """
    w1p = jnp.zeros((K1P, HIDDEN), jnp.float32).at[:IN_FEATURES, :].set(w1)
    w1p = w1p.astype(jnp.bfloat16).reshape(K1P, NC, H2).transpose(1, 0, 2)
    b1p = b1.astype(jnp.float32).reshape(NC, 1, H2)
    w2p = jnp.zeros((HIDDEN, N2P), jnp.float32).at[:, :OUT_FEATURES].set(w2)
    w2p = w2p.reshape(NC, H2, N2P)
    b2p = jnp.zeros((1, N2P), jnp.float32).at[0, :OUT_FEATURES].set(b2)
    return w1p, b1p, w2p, b2p


@jax.jit
def baseline_model2_forward(x, w1p, b1p, w2p, b2p):
    """x: (B, 22, 518) -> (B, 6). Parameters must already be padded/split."""
    B = x.shape[0]
    xf = x.reshape(B, -1)                       # nn.Flatten()
    Mp = max(16, ((B + 15) // 16) * 16)         # bf16 sublane packing
    # Only the tiny activation is padded/cast per call.
    xp = (jnp.zeros((Mp, K1P), jnp.bfloat16)
          .at[:B, :IN_FEATURES].set(xf.astype(jnp.bfloat16)))
    partials = fused_mlp(xp, w1p, b1p, w2p)     # (NC, Mp, N2P)
    y = partials[0] + partials[1] + b2p         # combine HIDDEN halves + bias
    return y[:B, :OUT_FEATURES]


if __name__ == "__main__":
    key = jax.random.PRNGKey(0)
    kp, kx = jax.random.split(key)

    w1, b1, w2, b2 = init_params(kp)
    w1p, b1p, w2p, b2p = prepare_padded_params(w1, b1, w2, b2)
    w1p, b1p, w2p, b2p = jax.block_until_ready((w1p, b1p, w2p, b2p))

    # Small batch; feature dims fixed by the module (22 x 518).
    x = jax.random.normal(kx, (2, 22, 518), jnp.float32)

    y = baseline_model2_forward(x, w1p, b1p, w2p, b2p)
    jax.block_until_ready(y)

    # Pure-JAX f32 reference of the same math (kernel uses bf16 weight
    # streaming with f32 accumulation -> loosened tolerance).
    xf = x.reshape(x.shape[0], -1)
    ref = jnp.maximum(xf @ w1 + b1, 0.0) @ w2 + b2
    assert y.shape == (2, 6), y.shape
    max_err = float(jnp.max(jnp.abs(y - ref)))
    assert jnp.allclose(y, ref, atol=5e-2, rtol=5e-2), f"mismatch: {max_err}"

    print("KERNEL_OK")
</pallas_src>

<mosaic_0001>
module attributes {stable_mosaic.version = 11 : i64} {
  func.func @_fused_mlp_kernel(%arg0: i32, %arg1: i32, %arg2: memref<16x1664xbf16, #tpu.memory_space<vmem>>, %arg3: memref<1x1664x1280xbf16, #tpu.memory_space<vmem>>, %arg4: memref<1x1x1280xf32, #tpu.memory_space<vmem>>, %arg5: memref<1x1280x128xf32, #tpu.memory_space<vmem>>, %arg6: memref<1x16x128xf32, #tpu.memory_space<vmem>>, %arg7: memref<16x1280xf32, #tpu.memory_space<vmem>>) attributes {dimension_semantics = [#tpu.dimension_semantics<parallel>, #tpu.dimension_semantics<arbitrary>], iteration_bounds = array<i64: 2, 7>, scalar_prefetch = 0 : i64, scratch_operands = 1 : i64, tpu.core_type = #tpu.core_type<tc>, window_params = [{transform_indices = @transform_0, window_bounds = array<i64: 16, 1664>}, {transform_indices = @transform_1, window_bounds = array<i64: 1, 1664, 1280>}, {transform_indices = @transform_2, window_bounds = array<i64: 1, 1, 1280>}, {transform_indices = @transform_3, window_bounds = array<i64: 1, 1280, 128>}, {transform_indices = @transform_4, window_bounds = array<i64: 1, 16, 128>}]} {
    %c0_i32 = arith.constant 0 : i32
    %0 = arith.cmpi eq, %arg1, %c0_i32 : i32
    %1 = arith.extui %0 : i1 to i32
    %c0_i32_0 = arith.constant 0 : i32
    %2 = arith.cmpi ne, %1, %c0_i32_0 : i32
    scf.if %2 {
      %cst_10 = arith.constant 0.000000e+00 : f32
      %13 = vector.broadcast %cst_10 : f32 to vector<16x1280xf32>
      %c0_11 = arith.constant 0 : index
      %c0_12 = arith.constant 0 : index
      %14 = vector.load %arg7[%c0_11, %c0_12] : memref<16x1280xf32, #tpu.memory_space<vmem>>, vector<16x1280xf32>
      tpu.vector_store %arg7[%c0_11, %c0_12], %13 {strides = array<i32>} : memref<16x1280xf32, #tpu.memory_space<vmem>>, vector<16x1280xf32>,
    } else {
    }
    %c0 = arith.constant 0 : index
    %c0_1 = arith.constant 0 : index
    %3 = vector.load %arg7[%c0, %c0_1] : memref<16x1280xf32, #tpu.memory_space<vmem>>, vector<16x1280xf32>
    %c0_2 = arith.constant 0 : index
    %c0_3 = arith.constant 0 : index
    %4 = vector.load %arg2[%c0_2, %c0_3] : memref<16x1664xbf16, #tpu.memory_space<vmem>>, vector<16x1664xbf16>
    %c0_4 = arith.constant 0 : index
    %c0_5 = arith.constant 0 : index
    %c0_6 = arith.constant 0 : index
    %5 = vector.load %arg3[%c0_4, %c0_5, %c0_6] : memref<1x1664x1280xbf16, #tpu.memory_space<vmem>>, vector<1x1664x1280xbf16>
    %6 = vector.shape_cast %5 : vector<1x1664x1280xbf16> to vector<1664x1280xbf16>
    %cst = arith.constant dense<0.000000e+00> : vector<16x1280xf32>
    %7 = tpu.matmul %4, %6, %cst {dimension_numbers = #tpu.dot_dimension_numbers<[1], [0], [0], [1], [0, 0, 1, 1], [], []>} : vector<16x1664xbf16>, vector<1664x1280xbf16>, vector<16x1280xf32> -> vector<16x1280xf32>
    %8 = arith.addf %3, %7 : vector<16x1280xf32>
    %c0_7 = arith.constant 0 : index
    %c0_8 = arith.constant 0 : index
    %9 = vector.load %arg7[%c0_7, %c0_8] : memref<16x1280xf32, #tpu.memory_space<vmem>>, vector<16x1280xf32>
    tpu.vector_store %arg7[%c0_7, %c0_8], %8 {strides = array<i32>} : memref<16x1280xf32, #tpu.memory_space<vmem>>, vector<16x1280xf32>,
    %c6_i32 = arith.constant 6 : i32
    %10 = arith.cmpi eq, %arg1, %c6_i32 : i32
    %11 = arith.extui %10 : i1 to i32
    %c0_i32_9 = arith.constant 0 : i32
    %12 = arith.cmpi ne, %11, %c0_i32_9 : i32
    scf.if %12 {
      %c0_10 = arith.constant 0 : index
      %c0_11 = arith.constant 0 : index
      %13 = vector.load %arg7[%c0_10, %c0_11] : memref<16x1280xf32, #tpu.memory_space<vmem>>, vector<16x1280xf32>
      %c0_12 = arith.constant 0 : index
      %c0_13 = arith.constant 0 : index
      %c0_14 = arith.constant 0 : index
      %14 = vector.load %arg4[%c0_12, %c0_13, %c0_14] : memref<1x1x1280xf32, #tpu.memory_space<vmem>>, vector<1x1x1280xf32>
      %15 = vector.shape_cast %14 : vector<1x1x1280xf32> to vector<1x1280xf32>
      %16 = vector.broadcast %15 : vector<1x1280xf32> to vector<16x1280xf32>
      %17 = arith.addf %13, %16 : vector<16x1280xf32>
      %cst_15 = arith.constant 0.000000e+00 : f32
      %18 = vector.broadcast %cst_15 : f32 to vector<16x1280xf32>
      %19 = arith.maximumf %17, %18 : vector<16x1280xf32>
      %c0_16 = arith.constant 0 : index
      %c0_17 = arith.constant 0 : index
      %c0_18 = arith.constant 0 : index
      %20 = vector.load %arg5[%c0_16, %c0_17, %c0_18] : memref<1x1280x128xf32, #tpu.memory_space<vmem>>, vector<1x1280x128xf32>
      %21 = vector.shape_cast %20 : vector<1x1280x128xf32> to vector<1280x128xf32>
      %cst_19 = arith.constant dense<0.000000e+00> : vector<16x128xf32>
      %22 = tpu.matmul %19, %21, %cst_19 {dimension_numbers = #tpu.dot_dimension_numbers<[1], [0], [0], [1], [0, 0, 1, 1], [], []>} : vector<16x1280xf32>, vector<1280x128xf32>, vector<16x128xf32> -> vector<16x128xf32>
      %c0_20 = arith.constant 0 : index
      %c0_21 = arith.constant 0 : index
      %c0_22 = arith.constant 0 : index
      %23 = vector.load %arg6[%c0_20, %c0_21, %c0_22] : memref<1x16x128xf32, #tpu.memory_space<vmem>>, vector<1x16x128xf32>
      %24 = vector.shape_cast %23 : vector<1x16x128xf32> to vector<16x128xf32>
      %25 = vector.shape_cast %22 : vector<16x128xf32> to vector<1x16x128xf32>
      tpu.vector_store %arg6[%c0_20, %c0_21, %c0_22], %25 {strides = array<i32>} : memref<1x16x128xf32, #tpu.memory_space<vmem>>, vector<1x16x128xf32>,
    } else {
    }
    return
  }
  func.func @transform_0(%arg0: i32, %arg1: i32) -> (i32, i32) {
    %c0_i32 = arith.constant 0 : i32
    %c0_i32_0 = arith.constant 0 : i32
    return %c0_i32, %arg1 : i32, i32
  }
  func.func @transform_1(%arg0: i32, %arg1: i32) -> (i32, i32, i32) {
    %c0_i32 = arith.constant 0 : i32
    %c0_i32_0 = arith.constant 0 : i32
    return %arg0, %arg1, %c0_i32 : i32, i32, i32
  }
  func.func @transform_2(%arg0: i32, %arg1: i32) -> (i32, i32, i32) {
    %c0_i32 = arith.constant 0 : i32
    %c0_i32_0 = arith.constant 0 : i32
    %c0_i32_1 = arith.constant 0 : i32
    return %arg0, %c0_i32, %c0_i32_0 : i32, i32, i32
  }
  func.func @transform_3(%arg0: i32, %arg1: i32) -> (i32, i32, i32) {
    %c0_i32 = arith.constant 0 : i32
    %c0_i32_0 = arith.constant 0 : i32
    %c0_i32_1 = arith.constant 0 : i32
    return %arg0, %c0_i32, %c0_i32_0 : i32, i32, i32
  }
  func.func @transform_4(%arg0: i32, %arg1: i32) -> (i32, i32, i32) {
    %c0_i32 = arith.constant 0 : i32
    %c0_i32_0 = arith.constant 0 : i32
    %c0_i32_1 = arith.constant 0 : i32
    return %arg0, %c0_i32, %c0_i32_0 : i32, i32, i32
  }
}

</mosaic_0001>

<llo_original>
// kernel: baseline_model2_forward.1
$region0: #{baseline_model2_forward.1}
  #allocation0 [shape = 'u32[]', space=smem, size = 0x4, offset = 0x4, fixed_abs, tag = 'smem constant byte address 0x4 - core index']
  #allocation1 [shape = 'u32[144,128]{1,0:T(1,128)}', space=vmem, size = 0x12000, scoped, tag = 'internal scratch']
  #allocation2 [shape = 'f32[16,1280]{1,0:T(8,128)}', space=vmem, size = 0x14000, scoped, tag = 'scratch operand']
  %s0 = inlined_call_operand.vmem [shape: bf16[16,11648], index: 0, kind: input, shape index: {}]
  %s1 = inlined_call_operand.hbm [shape: bf16[2,11648,1280], index: 1, kind: input, shape index: {}]
  %s2 = inlined_call_operand.hbm [shape: f32[2,1,1280], index: 2, kind: input, shape index: {}]
  %s3 = inlined_call_operand.hbm [shape: f32[2,1280,128], index: 3, kind: input, shape index: {}]
  %s4 = inlined_call_operand.vmem [shape: f32[2,16,128], index: 4, kind: output, shape index: {}]
  %s5 = sld [smem:[#allocation0]]
  $region95: #{baseline_model2_forward.1} parent=0
    _
  %s7 = ssub.s32 1, %s5
  %s8 = scalar_select 0, %s7, %s5
  $region1: #{baseline_model2_forward.1} parent=0
    #allocation3 [shape = 'u8[106496]{0}', space=vmem, size = 0x1a000, scoped, tag = 'input window, operand 0']
    #allocation4 [shape = 'u8[8519680]{0}', space=vmem, size = 0x820000, scoped, tag = 'input window, operand 1']
    #allocation5 [shape = 's32[2]{0}', space=sflag, size = 0x8, scoped, tag = 'scoped memory for baseline_model2_forward.1']
    #allocation6 [shape = 'u8[10240]{0}', space=vmem, size = 0x2800, scoped, tag = 'input window, operand 2']
    #allocation7 [shape = 's32[2]{0}', space=sflag, size = 0x8, scoped, tag = 'scoped memory for baseline_model2_forward.1']
    #allocation8 [shape = 'u8[1310720]{0}', space=vmem, size = 0x140000, scoped, tag = 'input window, operand 3']
    %9 = vsyncpa [#allocation5], 0
    %s10 = scalar_lea.sflag [#allocation5], 1
    %11 = vsyncpa %s10, 0
    %12 = vsyncpa [#allocation7], 0
    %s13 = scalar_lea.sflag [#allocation7], 1
    %14 = vsyncpa %s13, 0
    loop: start=0, step=1, limit=16
    $region2: #{baseline_model2_forward.1} parent=1 // loop_pre_header
      _
    $region3: #{baseline_model2_forward.1} parent=1 // loop_header
      %s16 = sphi 0, %s20
      %p17 = scmp.ge.s32.totalorder %s16, 16
      %s23 = sphi 0, %s35
      %s24 = sphi 0, %s31
      %s25 = sphi 0, %s23
      %s26 = sphi 0, %s24
      %s27 = sphi 0, %s25
      %s28 = sphi 0, %s26
      %s38 = sphi 0, %s40
      %s41 = sphi 0, %s38
      %s42 = sphi 0, %s41
      %s58 = sphi 0, %s42
      %s66 = sphi 0, %s68
      %s69 = sphi 0, %s66
      %s70 = sphi 0, %s69
      %s86 = sphi 0, %s70
      %s92 = sphi 0, %s94
      %s95 = sphi 0, %s92
      %s96 = sphi 0, %s95
      %s112 = sphi 0, %s96
      %s118 = sphi 0, %s120
      %s121 = sphi 0, %s118
      %s122 = sphi 0, %s121
      %s138 = sphi 0, %s122
      %s144 = sphi 0, %s146
      %s147 = sphi 0, %s144
      %s148 = sphi 0, %s147
      %s164 = sphi 0, %s148
    $region4: #{baseline_model2_forward.1} parent=1 // loop_header_branch
      %19 = sbr.rel (%p17) target = $region8
    $region5: #{baseline_model2_forward.1} parent=1 // loop_body
      %s21 = ssub.s32 %s16, 1
      %s22 = ssub.s32 %s16, 2
      %s29 = sadd.s32 1, %s24
      %p30 = scmp.ge.s32.totalorder %s29, 7
      %s31 = scalar_select %p30, 0, %s29
      %s32 = sadd.s32 1, %s23
      %s33 = scalar_select %p30, %s32, %s23
      %p34 = scmp.ge.s32.totalorder %s33, 2
      %s35 = scalar_select %p34, 0, %s33
      %s36 = ssub.s32 %s24, %s31
      %p37 = scmp.eq.s32.totalorder %s36, 0
      %s39 = sadd.s32 %s38, 1
      %s40 = scalar_select %p37, %s38, %s39
      %p43 = pneg %p37
      %p44 = scmp.eq.s32.totalorder %s16, 13
      %p45 = por %p43, %p44
      %p46 = scmp.ne.s32.totalorder %s38, %s41
      %p47 = scmp.eq.s32.totalorder %s16, 0
      %p48 = por %p46, %p47
      %p49 = scmp.ne.s32.totalorder %s38, %s41
      %p50 = scmp.eq.s32.totalorder %s21, 13
      %p51 = por %p49, %p50
      %p52 = scmp.ne.s32.totalorder %s41, %s42
      %p53 = scmp.eq.s32.totalorder %s21, 0
      %p54 = por %p52, %p53
      %p55 = scmp.ne.s32.totalorder %s41, %s42
      %p56 = scmp.eq.s32.totalorder %s22, 13
      %p57 = por %p55, %p56
      %p59 = scmp.ne.s32.totalorder %s42, %s58
      %p60 = scmp.eq.s32.totalorder %s22, 0
      %p61 = por %p59, %p60
      %s62 = ssub.s32 %s23, %s35
      %s63 = ssub.s32 %s24, %s31
      %s64 = sor.u32 %s62, %s63
      %p65 = scmp.eq.s32.totalorder %s64, 0
      %s67 = sadd.s32 %s66, 1
      %s68 = scalar_select %p65, %s66, %s67
      %p71 = pneg %p65
      %p72 = scmp.eq.s32.totalorder %s16, 13
      %p73 = por %p71, %p72
      %p74 = scmp.ne.s32.totalorder %s66, %s69
      %p75 = scmp.eq.s32.totalorder %s16, 0
      %p76 = por %p74, %p75
      %p77 = scmp.ne.s32.totalorder %s66, %s69
      %p78 = scmp.eq.s32.totalorder %s21, 13
      %p79 = por %p77, %p78
      %p80 = scmp.ne.s32.totalorder %s69, %s70
      %p81 = scmp.eq.s32.totalorder %s21, 0
      %p82 = por %p80, %p81
      %p83 = scmp.ne.s32.totalorder %s69, %s70
      %p84 = scmp.eq.s32.totalorder %s22, 13
      %p85 = por %p83, %p84
      %p87 = scmp.ne.s32.totalorder %s70, %s86
      %p88 = scmp.eq.s32.totalorder %s22, 0
      %p89 = por %p87, %p88
      %s90 = ssub.s32 %s23, %s35
      %p91 = scmp.eq.s32.totalorder %s90, 0
      %s93 = sadd.s32 %s92, 1
      %s94 = scalar_select %p91, %s92, %s93
      %p97 = pneg %p91
      %p98 = scmp.eq.s32.totalorder %s16, 13
      %p99 = por %p97, %p98
      %p100 = scmp.ne.s32.totalorder %s92, %s95
      %p101 = scmp.eq.s32.totalorder %s16, 0
      %p102 = por %p100, %p101
      %p103 = scmp.ne.s32.totalorder %s92, %s95
      %p104 = scmp.eq.s32.totalorder %s21, 13
      %p105 = por %p103, %p104
      %p106 = scmp.ne.s32.totalorder %s95, %s96
      %p107 = scmp.eq.s32.totalorder %s21, 0
      %p108 = por %p106, %p107
      %p109 = scmp.ne.s32.totalorder %s95, %s96
      %p110 = scmp.eq.s32.totalorder %s22, 13
      %p111 = por %p109, %p110
      %p113 = scmp.ne.s32.totalorder %s96, %s112
      %p114 = scmp.eq.s32.totalorder %s22, 0
      %p115 = por %p113, %p114
      %s116 = ssub.s32 %s23, %s35
      %p117 = scmp.eq.s32.totalorder %s116, 0
      %s119 = sadd.s32 %s118, 1
      %s120 = scalar_select %p117, %s118, %s119
      %p123 = pneg %p117
      %p124 = scmp.eq.s32.totalorder %s16, 13
      %p125 = por %p123, %p124
      %p126 = scmp.ne.s32.totalorder %s118, %s121
      %p127 = scmp.eq.s32.totalorder %s16, 0
      %p128 = por %p126, %p127
      %p129 = scmp.ne.s32.totalorder %s118, %s121
      %p130 = scmp.eq.s32.totalorder %s21, 13
      %p131 = por %p129, %p130
      %p132 = scmp.ne.s32.totalorder %s121, %s122
      %p133 = scmp.eq.s32.totalorder %s21, 0
      %p134 = por %p132, %p133
      %p135 = scmp.ne.s32.totalorder %s121, %s122
      %p136 = scmp.eq.s32.totalorder %s22, 13
      %p137 = por %p135, %p136
      %p139 = scmp.ne.s32.totalorder %s122, %s138
      %p140 = scmp.eq.s32.totalorder %s22, 0
      %p141 = por %p139, %p140
      %s142 = ssub.s32 %s23, %s35
      %p143 = scmp.eq.s32.totalorder %s142, 0
      %s145 = sadd.s32 %s144, 1
      %s146 = scalar_select %p143, %s144, %s145
      %p149 = pneg %p143
      %p150 = scmp.eq.s32.totalorder %s16, 13
      %p151 = por %p149, %p150
      %p152 = scmp.ne.s32.totalorder %s144, %s147
      %p153 = scmp.eq.s32.totalorder %s16, 0
      %p154 = por %p152, %p153
      %p155 = scmp.ne.s32.totalorder %s144, %s147
      %p156 = scmp.eq.s32.totalorder %s21, 13
      %p157 = por %p155, %p156
      %p158 = scmp.ne.s32.totalorder %s147, %s148
      %p159 = scmp.eq.s32.totalorder %s21, 0
      %p160 = por %p158, %p159
      %p161 = scmp.ne.s32.totalorder %s147, %s148
      %p162 = scmp.eq.s32.totalorder %s22, 13
      %p163 = por %p161, %p162
      %p165 = scmp.ne.s32.totalorder %s148, %s164
      %p166 = scmp.eq.s32.totalorder %s22, 0
      %p167 = por %p165, %p166
      %p168 = scmp.le.s32.totalorder 1, %s16
      %p169 = scmp.lt.s32.totalorder %s16, 15
      %p170 = pnand %p168, %p169
      %p171 = pneg %p170
      // Predicated region
      $region9: #{baseline_model2_forward.1} parent=5 // pred_check
        _
      $region10: #{baseline_model2_forward.1} parent=5 // pred_check_branch
        %173 = sbr.rel (%p170) target = $region12
      $region11: #{baseline_model2_forward.1} parent=5 // pred_region
        %s174 = ssub.s32 %s16, 1
      $region12: #{baseline_model2_forward.1} parent=5 // pred_fallthru
        _
      %p175 = scmp.lt.s32.totalorder %s16, 14
      // Predicated region
      $region13: #{baseline_model2_forward.1} parent=5 // pred_check
        %p176 = pneg %p175
      $region14: #{baseline_model2_forward.1} parent=5 // pred_check_branch
        %178 = sbr.rel (%p176) target = $region16
      $region15: #{baseline_model2_forward.1} parent=5 // pred_region
        // Predicated region
        $region17: #{baseline_model2_forward.1} parent=15 // pred_check
          %p179 = pneg %p48
        $region18: #{baseline_model2_forward.1} parent=15 // pred_check_branch
          %181 = sbr.rel (%p179) target = $region20
        $region19: #{baseline_model2_forward.1} parent=15 // pred_region
          %s182 = sand.u32 %s38, 1
          %s183 = sand.u32 %s38, 1
          %s184 = smul.addr %s183, 104
          %s185 = scalar_lea.vmem [#allocation3], %s184
          %s186 = smul.u32 13, %s24
          %s187 = smul.addr %s186, 4
          %s188 = scalar_lea.vmem %s0, %s187
          // Predicated region
          $region21: #{baseline_model2_forward.1} parent=19 // pred_check
            _
          $region22: #{baseline_model2_forward.1} parent=19 // pred_check_branch
            %190 = sbr.rel (0) target = $region24
          $region23: #{baseline_model2_forward.1} parent=19 // pred_region
            // Predicated region
            $region25: #{baseline_model2_forward.1} parent=23 // pred_check
              _
            $region26: #{baseline_model2_forward.1} parent=23 // pred_check_branch
              %192 = sbr.rel (0) target = $region28
            $region27: #{baseline_model2_forward.1} parent=23 // pred_region
              %s193 = scalar_lea.vmem %s188, 48
              %s194 = scalar_lea.vmem %s185, 48 [#allocation3]
              loop: start=0, step=1, limit=1
              $region29: #{baseline_model2_forward.1} parent=27 // loop_pre_header
                _
              $region30: #{baseline_model2_forward.1} parent=27 // loop_header
                %s196 = sphi 0, %s200
                %p197 = scmp.ge.s32.totalorder %s196, 1
                %s201 = sphi %s188, %s188
                %s202 = sphi %s185, %s185
              $region31: #{baseline_model2_forward.1} parent=27 // loop_header_branch
                %199 = sbr.rel (%p197) target = $region35
              $region32: #{baseline_model2_forward.1} parent=27 // loop_body
                %v203 = vld [vmem:[%s201] sm:$0xff]
                %204 = vst [vmem:[%s202] sm:$0xff] %v203
                %v205 = vld [vmem:[%s201 + $0x8] sm:$0xff]
                %206 = vst [vmem:[%s202 + $0x8] sm:$0xff] %v205
                %v207 = vld [vmem:[%s201 + $0x10] sm:$0xff]
                %208 = vst [vmem:[%s202 + $0x10] sm:$0xff] %v207
                %v209 = vld [vmem:[%s201 + $0x18] sm:$0xff]
                %210 = vst [vmem:[%s202 + $0x18] sm:$0xff] %v209
                %v211 = vld [vmem:[%s201 + $0x20] sm:$0xff]
                %212 = vst [vmem:[%s202 + $0x20] sm:$0xff] %v211
                %v213 = vld [vmem:[%s201 + $0x28] sm:$0xff]
                %214 = vst [vmem:[%s202 + $0x28] sm:$0xff] %v213
                %v215 = vld [vmem:[%s201 + $0x16c] sm:$0xff]
                %216 = vst [vmem:[%s202 + $0x34] sm:$0xff] %v215
                %v217 = vld [vmem:[%s201 + $0x174] sm:$0xff]
                %218 = vst [vmem:[%s202 + $0x3c] sm:$0xff] %v217
                %v219 = vld [vmem:[%s201 + $0x17c] sm:$0xff]
                %220 = vst [vmem:[%s202 + $0x44] sm:$0xff] %v219
                %v221 = vld [vmem:[%s201 + $0x184] sm:$0xff]
                %222 = vst [vmem:[%s202 + $0x4c] sm:$0xff] %v221
                %v223 = vld [vmem:[%s201 + $0x18c] sm:$0xff]
                %224 = vst [vmem:[%s202 + $0x54] sm:$0xff] %v223
                %v225 = vld [vmem:[%s201 + $0x194] sm:$0xff]
                %226 = vst [vmem:[%s202 + $0x5c] sm:$0xff] %v225
              $region33: #{baseline_model2_forward.1} parent=27 // loop_footer
                %s200 = sadd.s32 1, %s196
              $region34: #{baseline_model2_forward.1} parent=27 // loop_footer_branch
                %195 = sbr.rel target = $region30
              $region35: #{baseline_model2_forward.1} parent=27 // loop_exit
                _
              loop: start=0, step=1, limit=1
              $region36: #{baseline_model2_forward.1} parent=27 // loop_pre_header
                _
              $region37: #{baseline_model2_forward.1} parent=27 // loop_header
                %s229 = sphi 0, %s233
                %p230 = scmp.ge.s32.totalorder %s229, 1
                %s234 = sphi %s193, %s193
                %s235 = sphi %s194, %s194
              $region38: #{baseline_model2_forward.1} parent=27 // loop_header_branch
                %232 = sbr.rel (%p230) target = $region42
              $region39: #{baseline_model2_forward.1} parent=27 // loop_body
                %v236 = vld [vmem:[%s234] sm:$0xf]
                %237 = vst [vmem:[%s235] sm:$0xf] %v236
                %v238 = vld [vmem:[%s234 + $0x16c] sm:$0xf]
                %239 = vst [vmem:[%s235 + $0x34] sm:$0xf] %v238
              $region40: #{baseline_model2_forward.1} parent=27 // loop_footer
                %s233 = sadd.s32 1, %s229
              $region41: #{baseline_model2_forward.1} parent=27 // loop_footer_branch
                %228 = sbr.rel target = $region37
              $region42: #{baseline_model2_forward.1} parent=27 // loop_exit
                _
            $region28: #{baseline_model2_forward.1} parent=23 // pred_fallthru
              _
          $region24: #{baseline_model2_forward.1} parent=19 // pred_fallthru
            _
          %240 = vnop
        $region20: #{baseline_model2_forward.1} parent=15 // pred_fallthru
          _
        // Predicated region
        $region43: #{baseline_model2_forward.1} parent=15 // pred_check
          %p241 = pneg %p76
        $region44: #{baseline_model2_forward.1} parent=15 // pred_check_branch
          %243 = sbr.rel (%p241) target = $region46
        $region45: #{baseline_model2_forward.1} parent=15 // pred_region
          %s244 = sand.u32 %s66, 1
          %s245 = scalar_lea.sflag [#allocation5], %s244
          %s246 = sand.u32 %s66, 1
          %s247 = smul.addr %s246, 8320
          %s248 = scalar_lea.vmem [#allocation4], %s247
          %s249 = smul.u32 208, %s24
          %s251 = ssub.s32 133120, 133120
          %252 = vsyncadd %s245, %s251
          %s253 = smul.addr %s249, 10
          %s254 = smul.addr %s23, 14560
          %s255 = sadd.s32 %s253, %s254
          %s256 = smul.addr %s255, 64
          %s257 = scalar_lea.hbm %s1, %s256
          %s258 = sshll.u32 %s248, 4
          %s259 = int_to_ptr.vmem [resolvable:$true] %s258
          %264 = dma.hbm_to_vmem [thread:$0]  %s257, 133120, %s259, %s245, 640, 640, 40
        $region46: #{baseline_model2_forward.1} parent=15 // pred_fallthru
          _
        // Predicated region
        $region47: #{baseline_model2_forward.1} parent=15 // pred_check
          %p265 = pneg %p102
        $region48: #{baseline_model2_forward.1} parent=15 // pred_check_branch
          %267 = sbr.rel (%p265) target = $region50
        $region49: #{baseline_model2_forward.1} parent=15 // pred_region
          %s268 = sand.u32 %s16, 1
          %s269 = scalar_lea.sflag [#allocation7], %s268
          %s270 = sand.u32 %s92, 1
          %s271 = smul.addr %s270, 10
          %s272 = scalar_lea.vmem [#allocation6], %s271
          %s274 = ssub.s32 160, 160
          %275 = vsyncadd %s269, %s274
          %s276 = smul.addr %s23, 10
          %s277 = smul.addr %s276, 16
          %s278 = scalar_lea.hbm %s2, %s277
          %s280 = sshll.u32 %s272, 4
          %s281 = int_to_ptr.vmem [resolvable:$true] %s280
          %283 = dma.hbm_to_vmem [thread:$0]  %s278, 160, %s281, %s269
        $region50: #{baseline_model2_forward.1} parent=15 // pred_fallthru
          _
        // Predicated region
        $region51: #{baseline_model2_forward.1} parent=15 // pred_check
          %p284 = pneg %p128
        $region52: #{baseline_model2_forward.1} parent=15 // pred_check_branch
          %286 = sbr.rel (%p284) target = $region54
        $region53: #{baseline_model2_forward.1} parent=15 // pred_region
          %s287 = sand.u32 %s16, 1
          %s288 = scalar_lea.sflag [#allocation7], %s287
          %s289 = sand.u32 %s118, 1
          %s290 = smul.addr %s289, 1280
          %s291 = scalar_lea.vmem [#allocation8], %s290
          %s293 = ssub.s32 20480, 20480
          %294 = vsyncadd %s288, %s293
          %s295 = smul.addr %s23, 160
          %s296 = smul.addr %s295, 128
          %s297 = scalar_lea.hbm %s3, %s296
          %s298 = sshll.u32 %s291, 4
          %s299 = int_to_ptr.vmem [resolvable:$true] %s298
          %304 = dma.hbm_to_vmem [thread:$0]  %s297, 20480, %s299, %s288, 128, 128, 8
        $region54: #{baseline_model2_forward.1} parent=15 // pred_fallthru
          _
      $region16: #{baseline_model2_forward.1} parent=5 // pred_fallthru
        _
      %p305 = scmp.le.s32.totalorder 1, %s16
      %p306 = scmp.lt.s32.totalorder %s16, 15
      %p307 = pnand %p305, %p306
      %p308 = pneg %p307
      // Predicated region
      $region55: #{baseline_model2_forward.1} parent=5 // pred_check
        _
      $region56: #{baseline_model2_forward.1} parent=5 // pred_check_branch
        %310 = sbr.rel (%p307) target = $region58
      $region57: #{baseline_model2_forward.1} parent=5 // pred_region
        %s311 = ssub.s32 %s16, 1
        %s312 = sand.u32 %s41, 1
        %s313 = sand.u32 %s41, 1
        %s314 = smul.addr %s313, 104
        %s315 = scalar_lea.vmem [#allocation3], %s314
        // Predicated region
        $region59: #{baseline_model2_forward.1} parent=57 // pred_check
          %p316 = pneg %p54
        $region60: #{baseline_model2_forward.1} parent=57 // pred_check_branch
          %318 = sbr.rel (%p316) target = $region62
        $region61: #{baseline_model2_forward.1} parent=57 // pred_region
          _
        $region62: #{baseline_model2_forward.1} parent=57 // pred_fallthru
          _
        %s319 = sand.u32 %s69, 1
        %s320 = scalar_lea.sflag [#allocation5], %s319
        %s321 = sand.u32 %s69, 1
        %s322 = smul.addr %s321, 8320
        %s323 = scalar_lea.vmem [#allocation4], %s322
        // Predicated region
        $region63: #{baseline_model2_forward.1} parent=57 // pred_check
          %p324 = pneg %p82
        $region64: #{baseline_model2_forward.1} parent=57 // pred_check_branch
          %326 = sbr.rel (%p324) target = $region66
        $region65: #{baseline_model2_forward.1} parent=57 // pred_region
          %327 = dma.done %s320, 133120
        $region66: #{baseline_model2_forward.1} parent=57 // pred_fallthru
          _
        %s328 = sand.u32 %s21, 1
        %s329 = scalar_lea.sflag [#allocation7], %s328
        %s330 = sand.u32 %s95, 1
        %s331 = smul.addr %s330, 10
        %s332 = scalar_lea.vmem [#allocation6], %s331
        // Predicated region
        $region67: #{baseline_model2_forward.1} parent=57 // pred_check
          %p333 = pneg %p108
        $region68: #{baseline_model2_forward.1} parent=57 // pred_check_branch
          %335 = sbr.rel (%p333) target = $region70
        $region69: #{baseline_model2_forward.1} parent=57 // pred_region
          %336 = dma.done %s329, 160
        $region70: #{baseline_model2_forward.1} parent=57 // pred_fallthru
          _
        %s337 = sand.u32 %s21, 1
        %s338 = scalar_lea.sflag [#allocation7], %s337
        %s339 = sand.u32 %s121, 1
        %s340 = smul.addr %s339, 1280
        %s341 = scalar_lea.vmem [#allocation8], %s340
        // Predicated region
        $region71: #{baseline_model2_forward.1} parent=57 // pred_check
          %p342 = pneg %p134
        $region72: #{baseline_model2_forward.1} parent=57 // pred_check_branch
          %344 = sbr.rel (%p342) target = $region74
        $region73: #{baseline_model2_forward.1} parent=57 // pred_region
          %345 = dma.done %s338, 20480
        $region74: #{baseline_model2_forward.1} parent=57 // pred_fallthru
          _
        %s346 = sand.u32 %s41, 1
        %s347 = sand.u32 %s41, 1
        %s348 = smul.addr %s347, 104
        %s349 = scalar_lea.vmem [#allocation3], %s348
        %p350 = pneg %p54
        %p351 = pneg %p51
        %s352 = sand.u32 %s69, 1
        %s353 = scalar_lea.sflag [#allocation5], %s352
        %s354 = sand.u32 %s69, 1
        %s355 = smul.addr %s354, 8320
        %s356 = scalar_lea.vmem [#allocation4], %s355
        %p357 = pneg %p82
        %p358 = pneg %p79
        %s359 = sand.u32 %s21, 1
        %s360 = scalar_lea.sflag [#allocation7], %s359
        %s361 = sand.u32 %s95, 1
        %s362 = smul.addr %s361, 10
        %s363 = scalar_lea.vmem [#allocation6], %s362
        %p364 = pneg %p108
        %p365 = pneg %p105
        %s366 = sand.u32 %s21, 1
        %s367 = scalar_lea.sflag [#allocation7], %s366
        %s368 = sand.u32 %s121, 1
        %s369 = smul.addr %s368, 1280
        %s370 = scalar_lea.vmem [#allocation8], %s369
        %p371 = pneg %p134
        %p372 = pneg %p131
        %p373 = pneg %p160
        %p374 = pneg %p157
        %p375 = scmp.lt.s32.totalorder %s25, 1
        %s376 = scalar_select %p375, %s25, 1
        %s377 = smul.addr %s376, 2
        %s378 = smul.addr %s377, 8
        %s379 = scalar_lea.vmem %s4, %s378
        %s380 = smul.u32 13, %s26
        %s381 = smul.u32 208, %s26
        %p382 = scmp.lt.s32.totalorder %s25, 1
        %s383 = scalar_select %p382, %s25, 1
        %s384 = smul.addr %s383, 2
        %s385 = smul.addr %s384, 8
        %s386 = scalar_lea.vmem %s4, %s385
        %p388 = scmp.eq.s32.totalorder %s26, 0
        // Predicated region
        $region75: #{baseline_model2_forward.1} parent=57 // pred_check
          %p389 = pneg %p388
        $region76: #{baseline_model2_forward.1} parent=57 // pred_check_branch
          %391 = sbr.rel (%p389) target = $region78
        $region77: #{baseline_model2_forward.1} parent=57 // pred_region
          %392 = vst [vmem:[#allocation2] sm:$0xff] 0.0
          %393 = vst [vmem:[#allocation2 + $0x8] sm:$0xff] 0.0
          %394 = vst [vmem:[#allocation2 + $0x10] sm:$0xff] 0.0
          %395 = vst [vmem:[#allocation2 + $0x18] sm:$0xff] 0.0
          %396 = vst [vmem:[#allocation2 + $0x20] sm:$0xff] 0.0
          %397 = vst [vmem:[#allocation2 + $0x28] sm:$0xff] 0.0
          %398 = vst [vmem:[#allocation2 + $0x30] sm:$0xff] 0.0
          %399 = vst [vmem:[#allocation2 + $0x38] sm:$0xff] 0.0
          %400 = vst [vmem:[#allocation2 + $0x40] sm:$0xff] 0.0
          %401 = vst [vmem:[#allocation2 + $0x48] sm:$0xff] 0.0
          %402 = vst [vmem:[#allocation2 + $0x50] sm:$0xff] 0.0
          %403 = vst [vmem:[#allocation2 + $0x58] sm:$0xff] 0.0
          %404 = vst [vmem:[#allocation2 + $0x60] sm:$0xff] 0.0
          %405 = vst [vmem:[#allocation2 + $0x68] sm:$0xff] 0.0
          %406 = vst [vmem:[#allocation2 + $0x70] sm:$0xff] 0.0
          %407 = vst [vmem:[#allocation2 + $0x78] sm:$0xff] 0.0
          %408 = vst [vmem:[#allocation2 + $0x80] sm:$0xff] 0.0
          %409 = vst [vmem:[#allocation2 + $0x88] sm:$0xff] 0.0
          %410 = vst [vmem:[#allocation2 + $0x90] sm:$0xff] 0.0
          %411 = vst [vmem:[#allocation2 + $0x98] sm:$0xff] 0.0
        $region78: #{baseline_model2_forward.1} parent=57 // pred_fallthru
          _
        %v412 = vld [vmem:[#allocation2] sm:$0xff]
        %v413 = vld [vmem:[#allocation2 + $0x8] sm:$0xff]
        %v414 = vld [vmem:[#allocation2 + $0x10] sm:$0xff]
        %v415 = vld [vmem:[#allocation2 + $0x18] sm:$0xff]
        %v416 = vld [vmem:[#allocation2 + $0x20] sm:$0xff]
        %v417 = vld [vmem:[#allocation2 + $0x28] sm:$0xff]
        %v418 = vld [vmem:[#allocation2 + $0x30] sm:$0xff]
        %v419 = vld [vmem:[#allocation2 + $0x38] sm:$0xff]
        %v420 = vld [vmem:[#allocation2 + $0x40] sm:$0xff]
        %v421 = vld [vmem:[#allocation2 + $0x48] sm:$0xff]
        %v422 = vld [vmem:[#allocation2 + $0x50] sm:$0xff]
        %v423 = vld [vmem:[#allocation2 + $0x58] sm:$0xff]
        %v424 = vld [vmem:[#allocation2 + $0x60] sm:$0xff]
        %v425 = vld [vmem:[#allocation2 + $0x68] sm:$0xff]
        %v426 = vld [vmem:[#allocation2 + $0x70] sm:$0xff]
        %v427 = vld [vmem:[#allocation2 + $0x78] sm:$0xff]
        %v428 = vld [vmem:[#allocation2 + $0x80] sm:$0xff]
        %v429 = vld [vmem:[#allocation2 + $0x88] sm:$0xff]
        %v430 = vld [vmem:[#allocation2 + $0x90] sm:$0xff]
        %v431 = vld [vmem:[#allocation2 + $0x98] sm:$0xff]
        %v432 = vld [vmem:[%s315] sm:$0xff]
        %v433 = vld [vmem:[%s315 + $0x8] sm:$0xff]
        %v434 = vld [vmem:[%s315 + $0x10] sm:$0xff]
        %v435 = vld [vmem:[%s315 + $0x18] sm:$0xff]
        %v436 = vld [vmem:[%s315 + $0x20] sm:$0xff]
        %v437 = vld [vmem:[%s315 + $0x28] sm:$0xff]
        %v438 = vld [vmem:[%s315 + $0x30] sm:$0xf]
        %v439 = vld [vmem:[%s315 + $0x34] sm:$0xff]
        %v440 = vld [vmem:[%s315 + $0x3c] sm:$0xff]
        %v441 = vld [vmem:[%s315 + $0x44] sm:$0xff]
        %v442 = vld [vmem:[%s315 + $0x4c] sm:$0xff]
        %v443 = vld [vmem:[%s315 + $0x54] sm:$0xff]
        %v444 = vld [vmem:[%s315 + $0x5c] sm:$0xff]
        %v445 = vld [vmem:[%s315 + $0x64] sm:$0xf]
        %v446 = vld [vmem:[%s323] sm:$0xff]
        %v447 = vld [vmem:[%s323 + $0x8] sm:$0xff]
        %v448 = vld [vmem:[%s323 + $0x10] sm:$0xff]
        %v449 = vld [vmem:[%s323 + $0x18] sm:$0xff]
        %v450 = vld [vmem:[%s323 + $0x20] sm:$0xff]
        %v451 = vld [vmem:[%s323 + $0x28] sm:$0xff]
        %v452 = vld [vmem:[%s323 + $0x30] sm:$0xff]
        %v453 = vld [vmem:[%s323 + $0x38] sm:$0xff]
        %v454 = vld [vmem:[%s323 + $0x40] sm:$0xff]
        %v455 = vld [vmem:[%s323 + $0x48] sm:$0xff]
        %v456 = vld [vmem:[%s323 + $0x50] sm:$0xff]
        %v457 = vld [vmem:[%s323 + $0x58] sm:$0xff]
        %v458 = vld [vmem:[%s323 + $0x60] sm:$0xff]
        %v459 = vld [vmem:[%s323 + $0x68] sm:$0xff]
        %v460 = vld [vmem:[%s323 + $0x70] sm:$0xff]
        %v461 = vld [vmem:[%s323 + $0x78] sm:$0xff]
        %v462 = vld [vmem:[%s323 + $0x80] sm:$0xff]
        %v463 = vld [vmem:[%s323 + $0x88] sm:$0xff]
        %v464 = vld [vmem:[%s323 + $0x90] sm:$0xff]
        %v465 = vld [vmem:[%s323 + $0x98] sm:$0xff]
        %v466 = vld [vmem:[%s323 + $0xa0] sm:$0xff]
        %v467 = vld [vmem:[%s323 + $0xa8] sm:$0xff]
        %v468 = vld [vmem:[%s323 + $0xb0] sm:$0xff]
        %v469 = vld [vmem:[%s323 + $0xb8] sm:$0xff]
        %v470 = vld [vmem:[%s323 + $0xc0] sm:$0xff]
        %v471 = vld [vmem:[%s323 + $0xc8] sm:$0xff]
        %v472 = vld [vmem:[%s323 + $0xd0] sm:$0xff]
        %v473 = vld [vmem:[%s323 + $0xd8] sm:$0xff]
        %v474 = vld [vmem:[%s323 + $0xe0] sm:$0xff]
        %v475 = vld [vmem:[%s323 + $0xe8] sm:$0xff]
        %v476 = vld [vmem:[%s323 + $0xf0] sm:$0xff]
        %v477 = vld [vmem:[%s323 + $0xf8] sm:$0xff]
        %v478 = vld [vmem:[%s323 + $0x100] sm:$0xff]
        %v479 = vld [vmem:[%s323 + $0x108] sm:$0xff]
        %v480 = vld [vmem:[%s323 + $0x110] sm:$0xff]
        %v481 = vld [vmem:[%s323 + $0x118] sm:$0xff]
        %v482 = vld [vmem:[%s323 + $0x120] sm:$0xff]
        %v483 = vld [vmem:[%s323 + $0x128] sm:$0xff]
        %v484 = vld [vmem:[%s323 + $0x130] sm:$0xff]
        %v485 = vld [vmem:[%s323 + $0x138] sm:$0xff]
        %v486 = vld [vmem:[%s323 + $0x140] sm:$0xff]
        %v487 = vld [vmem:[%s323 + $0x148] sm:$0xff]
        %v488 = vld [vmem:[%s323 + $0x150] sm:$0xff]
        %v489 = vld [vmem:[%s323 + $0x158] sm:$0xff]
        %v490 = vld [vmem:[%s323 + $0x160] sm:$0xff]
        %v491 = vld [vmem:[%s323 + $0x168] sm:$0xff]
        %v492 = vld [vmem:[%s323 + $0x170] sm:$0xff]
        %v493 = vld [vmem:[%s323 + $0x178] sm:$0xff]
        %v494 = vld [vmem:[%s323 + $0x180] sm:$0xff]
        %v495 = vld [vmem:[%s323 + $0x188] sm:$0xff]
        %v496 = vld [vmem:[%s323 + $0x190] sm:$0xff]
        %v497 = vld [vmem:[%s323 + $0x198] sm:$0xff]
        %v498 = vld [vmem:[%s323 + $0x1a0] sm:$0xff]
        %v499 = vld [vmem:[%s323 + $0x1a8] sm:$0xff]
        %v500 = vld [vmem:[%s323 + $0x1b0] sm:$0xff]
        %v501 = vld [vmem:[%s323 + $0x1b8] sm:$0xff]
        %v502 = vld [vmem:[%s323 + $0x1c0] sm:$0xff]
        %v503 = vld [vmem:[%s323 + $0x1c8] sm:$0xff]
        %v504 = vld [vmem:[%s323 + $0x1d0] sm:$0xff]
        %v505 = vld [vmem:[%s323 + $0x1d8] sm:$0xff]
        %v506 = vld [vmem:[%s323 + $0x1e0] sm:$0xff]
        %v507 = vld [vmem:[%s323 + $0x1e8] sm:$0xff]
        %v508 = vld [vmem:[%s323 + $0x1f0] sm:$0xff]
        %v509 = vld [vmem:[%s323 + $0x1f8] sm:$0xff]
        %v510 = vld [vmem:[%s323 + $0x200] sm:$0xff]
        %v511 = vld [vmem:[%s323 + $0x208] sm:$0xff]
        %v512 = vld [vmem:[%s323 + $0x210] sm:$0xff]
        %v513 = vld [vmem:[%s323 + $0x218] sm:$0xff]
        %v514 = vld [vmem:[%s323 + $0x220] sm:$0xff]
        %v515 = vld [vmem:[%s323 + $0x228] sm:$0xff]
        %v516 = vld [vmem:[%s323 + $0x230] sm:$0xff]
        %v517 = vld [vmem:[%s323 + $0x238] sm:$0xff]
        %v518 = vld [vmem:[%s323 + $0x240] sm:$0xff]
        %v519 = vld [vmem:[%s323 + $0x248] sm:$0xff]
        %v520 = vld [vmem:[%s323 + $0x250] sm:$0xff]
        %v521 = vld [vmem:[%s323 + $0x258] sm:$0xff]
        %v522 = vld [vmem:[%s323 + $0x260] sm:$0xff]
        %v523 = vld [vmem:[%s323 + $0x268] sm:$0xff]
        %v524 = vld [vmem:[%s323 + $0x270] sm:$0xff]
        %v525 = vld [vmem:[%s323 + $0x278] sm:$0xff]
        %v526 = vld [vmem:[%s323 + $0x280] sm:$0xff]
        %v527 = vld [vmem:[%s323 + $0x288] sm:$0xff]
        %v528 = vld [vmem:[%s323 + $0x290] sm:$0xff]
        %v529 = vld [vmem:[%s323 + $0x298] sm:$0xff]
        %v530 = vld [vmem:[%s323 + $0x2a0] sm:$0xff]
        %v531 = vld [vmem:[%s323 + $0x2a8] sm:$0xff]
        %v532 = vld [vmem:[%s323 + $0x2b0] sm:$0xff]
        %v533 = vld [vmem:[%s323 + $0x2b8] sm:$0xff]
        %v534 = vld [vmem:[%s323 + $0x2c0] sm:$0xff]
        %v535 = vld [vmem:[%s323 + $0x2c8] sm:$0xff]
        %v536 = vld [vmem:[%s323 + $0x2d0] sm:$0xff]
        %v537 = vld [vmem:[%s323 + $0x2d8] sm:$0xff]
        %v538 = vld [vmem:[%s323 + $0x2e0] sm:$0xff]
        %v539 = vld [vmem:[%s323 + $0x2e8] sm:$0xff]
        %v540 = vld [vmem:[%s323 + $0x2f0] sm:$0xff]
        %v541 = vld [vmem:[%s323 + $0x2f8] sm:$0xff]
        %v542 = vld [vmem:[%s323 + $0x300] sm:$0xff]
        %v543 = vld [vmem:[%s323 + $0x308] sm:$0xff]
        %v544 = vld [vmem:[%s323 + $0x310] sm:$0xff]
        %v545 = vld [vmem:[%s323 + $0x318] sm:$0xff]
        %v546 = vld [vmem:[%s323 + $0x320] sm:$0xff]
        %v547 = vld [vmem:[%s323 + $0x328] sm:$0xff]
        %v548 = vld [vmem:[%s323 + $0x330] sm:$0xff]
        %v549 = vld [vmem:[%s323 + $0x338] sm:$0xff]
        %v550 = vld [vmem:[%s323 + $0x340] sm:$0xff]
        %v551 = vld [vmem:[%s323 + $0x348] sm:$0xff]
        %v552 = vld [vmem:[%s323 + $0x350] sm:$0xff]
        %v553 = vld [vmem:[%s323 + $0x358] sm:$0xff]
        %v554 = vld [vmem:[%s323 + $0x360] sm:$0xff]
        %v555 = vld [vmem:[%s323 + $0x368] sm:$0xff]
        %v556 = vld [vmem:[%s323 + $0x370] sm:$0xff]
        %v557 = vld [vmem:[%s323 + $0x378] sm:$0xff]
        %v558 = vld [vmem:[%s323 + $0x380] sm:$0xff]
        %v559 = vld [vmem:[%s323 + $0x388] sm:$0xff]
        %v560 = vld [vmem:[%s323 + $0x390] sm:$0xff]
        %v561 = vld [vmem:[%s323 + $0x398] sm:$0xff]
        %v562 = vld [vmem:[%s323 + $0x3a0] sm:$0xff]
        %v563 = vld [vmem:[%s323 + $0x3a8] sm:$0xff]
        %v564 = vld [vmem:[%s323 + $0x3b0] sm:$0xff]
        %v565 = vld [vmem:[%s323 + $0x3b8] sm:$0xff]
        %v566 = vld [vmem:[%s323 + $0x3c0] sm:$0xff]
        %v567 = vld [vmem:[%s323 + $0x3c8] sm:$0xff]
        %v568 = vld [vmem:[%s323 + $0x3d0] sm:$0xff]
        %v569 = vld [vmem:[%s323 + $0x3d8] sm:$0xff]
        %v570 = vld [vmem:[%s323 + $0x3e0] sm:$0xff]
        %v571 = vld [vmem:[%s323 + $0x3e8] sm:$0xff]
        %v572 = vld [vmem:[%s323 + $0x3f0] sm:$0xff]
        %v573 = vld [vmem:[%s323 + $0x3f8] sm:$0xff]
        %v574 = vld [vmem:[%s323 + $0x400] sm:$0xff]
        %v575 = vld [vmem:[%s323 + $0x408] sm:$0xff]
        %v576 = vld [vmem:[%s323 + $0x410] sm:$0xff]
        %v577 = vld [vmem:[%s323 + $0x418] sm:$0xff]
        %v578 = vld [vmem:[%s323 + $0x420] sm:$0xff]
        %v579 = vld [vmem:[%s323 + $0x428] sm:$0xff]
        %v580 = vld [vmem:[%s323 + $0x430] sm:$0xff]
        %v581 = vld [vmem:[%s323 + $0x438] sm:$0xff]
        %v582 = vld [vmem:[%s323 + $0x440] sm:$0xff]
        %v583 = vld [vmem:[%s323 + $0x448] sm:$0xff]
        %v584 = vld [vmem:[%s323 + $0x450] sm:$0xff]
        %v585 = vld [vmem:[%s323 + $0x458] sm:$0xff]
        %v586 = vld [vmem:[%s323 + $0x460] sm:$0xff]
        %v587 = vld [vmem:[%s323 + $0x468] sm:$0xff]
        %v588 = vld [vmem:[%s323 + $0x470] sm:$0xff]
        %v589 = vld [vmem:[%s323 + $0x478] sm:$0xff]
        %v590 = vld [vmem:[%s323 + $0x480] sm:$0xff]
        %v591 = vld [vmem:[%s323 + $0x488] sm:$0xff]
        %v592 = vld [vmem:[%s323 + $0x490] sm:$0xff]
        %v593 = vld [vmem:[%s323 + $0x498] sm:$0xff]
        %v594 = vld [vmem:[%s323 + $0x4a0] sm:$0xff]
        %v595 = vld [vmem:[%s323 + $0x4a8] sm:$0xff]
        %v596 = vld [vmem:[%s323 + $0x4b0] sm:$0xff]
        %v597 = vld [vmem:[%s323 + $0x4b8] sm:$0xff]
        %v598 = vld [vmem:[%s323 + $0x4c0] sm:$0xff]
        %v599 = vld [vmem:[%s323 + $0x4c8] sm:$0xff]
        %v600 = vld [vmem:[%s323 + $0x4d0] sm:$0xff]
        %v601 = vld [vmem:[%s323 + $0x4d8] sm:$0xff]
        %v602 = vld [vmem:[%s323 + $0x4e0] sm:$0xff]
        %v603 = vld [vmem:[%s323 + $0x4e8] sm:$0xff]
        %v604 = vld [vmem:[%s323 + $0x4f0] sm:$0xff]
        %v605 = vld [vmem:[%s323 + $0x4f8] sm:$0xff]
        %v606 = vld [vmem:[%s323 + $0x500] sm:$0xff]
        %v607 = vld [vmem:[%s323 + $0x508] sm:$0xff]
        %v608 = vld [vmem:[%s323 + $0x510] sm:$0xff]
        %v609 = vld [vmem:[%s323 + $0x518] sm:$0xff]
        %v610 = vld [vmem:[%s323 + $0x520] sm:$0xff]
        %v611 = vld [vmem:[%s323 + $0x528] sm:$0xff]
        %v612 = vld [vmem:[%s323 + $0x530] sm:$0xff]
        %v613 = vld [vmem:[%s323 + $0x538] sm:$0xff]
        %v614 = vld [vmem:[%s323 + $0x540] sm:$0xff]
        %v615 = vld [vmem:[%s323 + $0x548] sm:$0xff]
        %v616 = vld [vmem:[%s323 + $0x550] sm:$0xff]
        %v617 = vld [vmem:[%s323 + $0x558] sm:$0xff]
        %v618 = vld [vmem:[%s323 + $0x560] sm:$0xff]
        %v619 = vld [vmem:[%s323 + $0x568] sm:$0xff]
        %v620 = vld [vmem:[%s323 + $0x570] sm:$0xff]
        %v621 = vld [vmem:[%s323 + $0x578] sm:$0xff]
        %v622 = vld [vmem:[%s323 + $0x580] sm:$0xff]
        %v623 = vld [vmem:[%s323 + $0x588] sm:$0xff]
        %v624 = vld [vmem:[%s323 + $0x590] sm:$0xff]
        %v625 = vld [vmem:[%s323 + $0x598] sm:$0xff]
        %v626 = vld [vmem:[%s323 + $0x5a0] sm:$0xff]
        %v627 = vld [vmem:[%s323 + $0x5a8] sm:$0xff]
        %v628 = vld [vmem:[%s323 + $0x5b0] sm:$0xff]
        %v629 = vld [vmem:[%s323 + $0x5b8] sm:$0xff]
        %v630 = vld [vmem:[%s323 + $0x5c0] sm:$0xff]
        %v631 = vld [vmem:[%s323 + $0x5c8] sm:$0xff]
        %v632 = vld [vmem:[%s323 + $0x5d0] sm:$0xff]
        %v633 = vld [vmem:[%s323 + $0x5d8] sm:$0xff]
        %v634 = vld [vmem:[%s323 + $0x5e0] sm:$0xff]
        %v635 = vld [vmem:[%s323 + $0x5e8] sm:$0xff]
        %v636 = vld [vmem:[%s323 + $0x5f0] sm:$0xff]
        %v637 = vld [vmem:[%s323 + $0x5f8] sm:$0xff]
        %v638 = vld [vmem:[%s323 + $0x600] sm:$0xff]
        %v639 = vld [vmem:[%s323 + $0x608] sm:$0xff]
        %v640 = vld [vmem:[%s323 + $0x610] sm:$0xff]
        %v641 = vld [vmem:[%s323 + $0x618] sm:$0xff]
        %v642 = vld [vmem:[%s323 + $0x620] sm:$0xff]
        %v643 = vld [vmem:[%s323 + $0x628] sm:$0xff]
        %v644 = vld [vmem:[%s323 + $0x630] sm:$0xff]
        %v645 = vld [vmem:[%s323 + $0x638] sm:$0xff]
        %v646 = vld [vmem:[%s323 + $0x640] sm:$0xff]
        %v647 = vld [vmem:[%s323 + $0x648] sm:$0xff]
        %v648 = vld [vmem:[%s323 + $0x650] sm:$0xff]
        %v649 = vld [vmem:[%s323 + $0x658] sm:$0xff]
        %v650 = vld [vmem:[%s323 + $0x660] sm:$0xff]
        %v651 = vld [vmem:[%s323 + $0x668] sm:$0xff]
        %v652 = vld [vmem:[%s323 + $0x670] sm:$0xff]
        %v653 = vld [vmem:[%s323 + $0x678] sm:$0xff]
        %v654 = vld [vmem:[%s323 + $0x680] sm:$0xff]
        %v655 = vld [vmem:[%s323 + $0x688] sm:$0xff]
        %v656 = vld [vmem:[%s323 + $0x690] sm:$0xff]
        %v657 = vld [vmem:[%s323 + $0x698] sm:$0xff]
        %v658 = vld [vmem:[%s323 + $0x6a0] sm:$0xff]
        %v659 = vld [vmem:[%s323 + $0x6a8] sm:$0xff]
        %v660 = vld [vmem:[%s323 + $0x6b0] sm:$0xff]
        %v661 = vld [vmem:[%s323 + $0x6b8] sm:$0xff]
        %v662 = vld [vmem:[%s323 + $0x6c0] sm:$0xff]
        %v663 = vld [vmem:[%s323 + $0x6c8] sm:$0xff]
        %v664 = vld [vmem:[%s323 + $0x6d0] sm:$0xff]
        %v665 = vld [vmem:[%s323 + $0x6d8] sm:$0xff]
        %v666 = vld [vmem:[%s323 + $0x6e0] sm:$0xff]
        %v667 = vld [vmem:[%s323 + $0x6e8] sm:$0xff]
        %v668 = vld [vmem:[%s323 + $0x6f0] sm:$0xff]
        %v669 = vld [vmem:[%s323 + $0x6f8] sm:$0xff]
        %v670 = vld [vmem:[%s323 + $0x700] sm:$0xff]
        %v671 = vld [vmem:[%s323 + $0x708] sm:$0xff]
        %v672 = vld [vmem:[%s323 + $0x710] sm:$0xff]
        %v673 = vld [vmem:[%s323 + $0x718] sm:$0xff]
        %v674 = vld [vmem:[%s323 + $0x720] sm:$0xff]
        %v675 = vld [vmem:[%s323 + $0x728] sm:$0xff]
        %v676 = vld [vmem:[%s323 + $0x730] sm:$0xff]
        %v677 = vld [vmem:[%s323 + $0x738] sm:$0xff]
        %v678 = vld [vmem:[%s323 + $0x740] sm:$0xff]
        %v679 = vld [vmem:[%s323 + $0x748] sm:$0xff]
        %v680 = vld [vmem:[%s323 + $0x750] sm:$0xff]
        %v681 = vld [vmem:[%s323 + $0x758] sm:$0xff]
        %v682 = vld [vmem:[%s323 + $0x760] sm:$0xff]
        %v683 = vld [vmem:[%s323 + $0x768] sm:$0xff]
        %v684 = vld [vmem:[%s323 + $0x770] sm:$0xff]
        %v685 = vld [vmem:[%s323 + $0x778] sm:$0xff]
        %v686 = vld [vmem:[%s323 + $0x780] sm:$0xff]
        %v687 = vld [vmem:[%s323 + $0x788] sm:$0xff]
        %v688 = vld [vmem:[%s323 + $0x790] sm:$0xff]
        %v689 = vld [vmem:[%s323 + $0x798] sm:$0xff]
        %v690 = vld [vmem:[%s323 + $0x7a0] sm:$0xff]
        %v691 = vld [vmem:[%s323 + $0x7a8] sm:$0xff]
        %v692 = vld [vmem:[%s323 + $0x7b0] sm:$0xff]
        %v693 = vld [vmem:[%s323 + $0x7b8] sm:$0xff]
        %v694 = vld [vmem:[%s323 + $0x7c0] sm:$0xff]
        %v695 = vld [vmem:[%s323 + $0x7c8] sm:$0xff]
        %v696 = vld [vmem:[%s323 + $0x7d0] sm:$0xff]
        %v697 = vld [vmem:[%s323 + $0x7d8] sm:$0xff]
        %v698 = vld [vmem:[%s323 + $0x7e0] sm:$0xff]
        %v699 = vld [vmem:[%s323 + $0x7e8] sm:$0xff]
        %v700 = vld [vmem:[%s323 + $0x7f0] sm:$0xff]
        %v701 = vld [vmem:[%s323 + $0x7f8] sm:$0xff]
        %v702 = vld [vmem:[%s323 + $0x800] sm:$0xff]
        %v703 = vld [vmem:[%s323 + $0x808] sm:$0xff]
        %v704 = vld [vmem:[%s323 + $0x810] sm:$0xff]
        %v705 = vld [vmem:[%s323 + $0x818] sm:$0xff]
        %v706 = vld [vmem:[%s323 + $0x820] sm:$0xff]
        %v707 = vld [vmem:[%s323 + $0x828] sm:$0xff]
        %v708 = vld [vmem:[%s323 + $0x830] sm:$0xff]
        %v709 = vld [vmem:[%s323 + $0x838] sm:$0xff]
        %v710 = vld [vmem:[%s323 + $0x840] sm:$0xff]
        %v711 = vld [vmem:[%s323 + $0x848] sm:$0xff]
        %v712 = vld [vmem:[%s323 + $0x850] sm:$0xff]
        %v713 = vld [vmem:[%s323 + $0x858] sm:$0xff]
        %v714 = vld [vmem:[%s323 + $0x860] sm:$0xff]
        %v715 = vld [vmem:[%s323 + $0x868] sm:$0xff]
        %v716 = vld [vmem:[%s323 + $0x870] sm:$0xff]
        %v717 = vld [vmem:[%s323 + $0x878] sm:$0xff]
        %v718 = vld [vmem:[%s323 + $0x880] sm:$0xff]
        %v719 = vld [vmem:[%s323 + $0x888] sm:$0xff]
        %v720 = vld [vmem:[%s323 + $0x890] sm:$0xff]
        %v721 = vld [vmem:[%s323 + $0x898] sm:$0xff]
        %v722 = vld [vmem:[%s323 + $0x8a0] sm:$0xff]
        %v723 = vld [vmem:[%s323 + $0x8a8] sm:$0xff]
        %v724 = vld [vmem:[%s323 + $0x8b0] sm:$0xff]
        %v725 = vld [vmem:[%s323 + $0x8b8] sm:$0xff]
        %v726 = vld [vmem:[%s323 + $0x8c0] sm:$0xff]
        %v727 = vld [vmem:[%s323 + $0x8c8] sm:$0xff]
        %v728 = vld [vmem:[%s323 + $0x8d0] sm:$0xff]
        %v729 = vld [vmem:[%s323 + $0x8d8] sm:$0xff]
        %v730 = vld [vmem:[%s323 + $0x8e0] sm:$0xff]
        %v731 = vld [vmem:[%s323 + $0x8e8] sm:$0xff]
        %v732 = vld [vmem:[%s323 + $0x8f0] sm:$0xff]
        %v733 = vld [vmem:[%s323 + $0x8f8] sm:$0xff]
        %v734 = vld [vmem:[%s323 + $0x900] sm:$0xff]
        %v735 = vld [vmem:[%s323 + $0x908] sm:$0xff]
        %v736 = vld [vmem:[%s323 + $0x910] sm:$0xff]
        %v737 = vld [vmem:[%s323 + $0x918] sm:$0xff]
        %v738 = vld [vmem:[%s323 + $0x920] sm:$0xff]
        %v739 = vld [vmem:[%s323 + $0x928] sm:$0xff]
        %v740 = vld [vmem:[%s323 + $0x930] sm:$0xff]
        %v741 = vld [vmem:[%s323 + $0x938] sm:$0xff]
        %v742 = vld [vmem:[%s323 + $0x940] sm:$0xff]
        %v743 = vld [vmem:[%s323 + $0x948] sm:$0xff]
        %v744 = vld [vmem:[%s323 + $0x950] sm:$0xff]
        %v745 = vld [vmem:[%s323 + $0x958] sm:$0xff]
        %v746 = vld [vmem:[%s323 + $0x960] sm:$0xff]
        %v747 = vld [vmem:[%s323 + $0x968] sm:$0xff]
        %v748 = vld [vmem:[%s323 + $0x970] sm:$0xff]
        %v749 = vld [vmem:[%s323 + $0x978] sm:$0xff]
        %v750 = vld [vmem:[%s323 + $0x980] sm:$0xff]
        %v751 = vld [vmem:[%s323 + $0x988] sm:$0xff]
        %v752 = vld [vmem:[%s323 + $0x990] sm:$0xff]
        %v753 = vld [vmem:[%s323 + $0x998] sm:$0xff]
        %v754 = vld [vmem:[%s323 + $0x9a0] sm:$0xff]
        %v755 = vld [vmem:[%s323 + $0x9a8] sm:$0xff]
        %v756 = vld [vmem:[%s323 + $0x9b0] sm:$0xff]
        %v757 = vld [vmem:[%s323 + $0x9b8] sm:$0xff]
        %v758 = vld [vmem:[%s323 + $0x9c0] sm:$0xff]
        %v759 = vld [vmem:[%s323 + $0x9c8] sm:$0xff]
        %v760 = vld [vmem:[%s323 + $0x9d0] sm:$0xff]
        %v761 = vld [vmem:[%s323 + $0x9d8] sm:$0xff]
        %v762 = vld [vmem:[%s323 + $0x9e0] sm:$0xff]
        %v763 = vld [vmem:[%s323 + $0x9e8] sm:$0xff]
        %v764 = vld [vmem:[%s323 + $0x9f0] sm:$0xff]
        %v765 = vld [vmem:[%s323 + $0x9f8] sm:$0xff]
        %v766 = vld [vmem:[%s323 + $0xa00] sm:$0xff]
        %v767 = vld [vmem:[%s323 + $0xa08] sm:$0xff]
        %v768 = vld [vmem:[%s323 + $0xa10] sm:$0xff]
        %v769 = vld [vmem:[%s323 + $0xa18] sm:$0xff]
        %v770 = vld [vmem:[%s323 + $0xa20] sm:$0xff]
        %v771 = vld [vmem:[%s323 + $0xa28] sm:$0xff]
        %v772 = vld [vmem:[%s323 + $0xa30] sm:$0xff]
        %v773 = vld [vmem:[%s323 + $0xa38] sm:$0xff]
        %v774 = vld [vmem:[%s323 + $0xa40] sm:$0xff]
        %v775 = vld [vmem:[%s323 + $0xa48] sm:$0xff]
        %v776 = vld [vmem:[%s323 + $0xa50] sm:$0xff]
        %v777 = vld [vmem:[%s323 + $0xa58] sm:$0xff]
        %v778 = vld [vmem:[%s323 + $0xa60] sm:$0xff]
        %v779 = vld [vmem:[%s323 + $0xa68] sm:$0xff]
        %v780 = vld [vmem:[%s323 + $0xa70] sm:$0xff]
        %v781 = vld [vmem:[%s323 + $0xa78] sm:$0xff]
        %v782 = vld [vmem:[%s323 + $0xa80] sm:$0xff]
        %v783 = vld [vmem:[%s323 + $0xa88] sm:$0xff]
        %v784 = vld [vmem:[%s323 + $0xa90] sm:$0xff]
        %v785 = vld [vmem:[%s323 + $0xa98] sm:$0xff]
        %v786 = vld [vmem:[%s323 + $0xaa0] sm:$0xff]
        %v787 = vld [vmem:[%s323 + $0xaa8] sm:$0xff]
        %v788 = vld [vmem:[%s323 + $0xab0] sm:$0xff]
        %v789 = vld [vmem:[%s323 + $0xab8] sm:$0xff]
        %v790 = vld [vmem:[%s323 + $0xac0] sm:$0xff]
        %v791 = vld [vmem:[%s323 + $0xac8] sm:$0xff]
        %v792 = vld [vmem:[%s323 + $0xad0] sm:$0xff]
        %v793 = vld [vmem:[%s323 + $0xad8] sm:$0xff]
        %v794 = vld [vmem:[%s323 + $0xae0] sm:$0xff]
        %v795 = vld [vmem:[%s323 + $0xae8] sm:$0xff]
        %v796 = vld [vmem:[%s323 + $0xaf0] sm:$0xff]
        %v797 = vld [vmem:[%s323 + $0xaf8] sm:$0xff]
        %v798 = vld [vmem:[%s323 + $0xb00] sm:$0xff]
        %v799 = vld [vmem:[%s323 + $0xb08] sm:$0xff]
        %v800 = vld [vmem:[%s323 + $0xb10] sm:$0xff]
        %v801 = vld [vmem:[%s323 + $0xb18] sm:$0xff]
        %v802 = vld [vmem:[%s323 + $0xb20] sm:$0xff]
        %v803 = vld [vmem:[%s323 + $0xb28] sm:$0xff]
        %v804 = vld [vmem:[%s323 + $0xb30] sm:$0xff]
        %v805 = vld [vmem:[%s323 + $0xb38] sm:$0xff]
        %v806 = vld [vmem:[%s323 + $0xb40] sm:$0xff]
        %v807 = vld [vmem:[%s323 + $0xb48] sm:$0xff]
        %v808 = vld [vmem:[%s323 + $0xb50] sm:$0xff]
        %v809 = vld [vmem:[%s323 + $0xb58] sm:$0xff]
        %v810 = vld [vmem:[%s323 + $0xb60] sm:$0xff]
        %v811 = vld [vmem:[%s323 + $0xb68] sm:$0xff]
        %v812 = vld [vmem:[%s323 + $0xb70] sm:$0xff]
        %v813 = vld [vmem:[%s323 + $0xb78] sm:$0xff]
        %v814 = vld [vmem:[%s323 + $0xb80] sm:$0xff]
        %v815 = vld [vmem:[%s323 + $0xb88] sm:$0xff]
        %v816 = vld [vmem:[%s323 + $0xb90] sm:$0xff]
        %v817 = vld [vmem:[%s323 + $0xb98] sm:$0xff]
        %v818 = vld [vmem:[%s323 + $0xba0] sm:$0xff]
        %v819 = vld [vmem:[%s323 + $0xba8] sm:$0xff]
        %v820 = vld [vmem:[%s323 + $0xbb0] sm:$0xff]
        %v821 = vld [vmem:[%s323 + $0xbb8] sm:$0xff]
        %v822 = vld [vmem:[%s323 + $0xbc0] sm:$0xff]
        %v823 = vld [vmem:[%s323 + $0xbc8] sm:$0xff]
        %v824 = vld [vmem:[%s323 + $0xbd0] sm:$0xff]
        %v825 = vld [vmem:[%s323 + $0xbd8] sm:$0xff]
        %v826 = vld [vmem:[%s323 + $0xbe0] sm:$0xff]
        %v827 = vld [vmem:[%s323 + $0xbe8] sm:$0xff]
        %v828 = vld [vmem:[%s323 + $0xbf0] sm:$0xff]
        %v829 = vld [vmem:[%s323 + $0xbf8] sm:$0xff]
        %v830 = vld [vmem:[%s323 + $0xc00] sm:$0xff]
        %v831 = vld [vmem:[%s323 + $0xc08] sm:$0xff]
        %v832 = vld [vmem:[%s323 + $0xc10] sm:$0xff]
        %v833 = vld [vmem:[%s323 + $0xc18] sm:$0xff]
        %v834 = vld [vmem:[%s323 + $0xc20] sm:$0xff]
        %v835 = vld [vmem:[%s323 + $0xc28] sm:$0xff]
        %v836 = vld [vmem:[%s323 + $0xc30] sm:$0xff]
        %v837 = vld [vmem:[%s323 + $0xc38] sm:$0xff]
        %v838 = vld [vmem:[%s323 + $0xc40] sm:$0xff]
        %v839 = vld [vmem:[%s323 + $0xc48] sm:$0xff]
        %v840 = vld [vmem:[%s323 + $0xc50] sm:$0xff]
        %v841 = vld [vmem:[%s323 + $0xc58] sm:$0xff]
        %v842 = vld [vmem:[%s323 + $0xc60] sm:$0xff]
        %v843 = vld [vmem:[%s323 + $0xc68] sm:$0xff]
        %v844 = vld [vmem:[%s323 + $0xc70] sm:$0xff]
        %v845 = vld [vmem:[%s323 + $0xc78] sm:$0xff]
        %v846 = vld [vmem:[%s323 + $0xc80] sm:$0xff]
        %v847 = vld [vmem:[%s323 + $0xc88] sm:$0xff]
        %v848 = vld [vmem:[%s323 + $0xc90] sm:$0xff]
        %v849 = vld [vmem:[%s323 + $0xc98] sm:$0xff]
        %v850 = vld [vmem:[%s323 + $0xca0] sm:$0xff]
        %v851 = vld [vmem:[%s323 + $0xca8] sm:$0xff]
        %v852 = vld [vmem:[%s323 + $0xcb0] sm:$0xff]
        %v853 = vld [vmem:[%s323 + $0xcb8] sm:$0xff]
        %v854 = vld [vmem:[%s323 + $0xcc0] sm:$0xff]
        %v855 = vld [vmem:[%s323 + $0xcc8] sm:$0xff]
        %v856 = vld [vmem:[%s323 + $0xcd0] sm:$0xff]
        %v857 = vld [vmem:[%s323 + $0xcd8] sm:$0xff]
        %v858 = vld [vmem:[%s323 + $0xce0] sm:$0xff]
        %v859 = vld [vmem:[%s323 + $0xce8] sm:$0xff]
        %v860 = vld [vmem:[%s323 + $0xcf0] sm:$0xff]
        %v861 = vld [vmem:[%s323 + $0xcf8] sm:$0xff]
        %v862 = vld [vmem:[%s323 + $0xd00] sm:$0xff]
        %v863 = vld [vmem:[%s323 + $0xd08] sm:$0xff]
        %v864 = vld [vmem:[%s323 + $0xd10] sm:$0xff]
        %v865 = vld [vmem:[%s323 + $0xd18] sm:$0xff]
        %v866 = vld [vmem:[%s323 + $0xd20] sm:$0xff]
        %v867 = vld [vmem:[%s323 + $0xd28] sm:$0xff]
        %v868 = vld [vmem:[%s323 + $0xd30] sm:$0xff]
        %v869 = vld [vmem:[%s323 + $0xd38] sm:$0xff]
        %v870 = vld [vmem:[%s323 + $0xd40] sm:$0xff]
        %v871 = vld [vmem:[%s323 + $0xd48] sm:$0xff]
        %v872 = vld [vmem:[%s323 + $0xd50] sm:$0xff]
        %v873 = vld [vmem:[%s323 + $0xd58] sm:$0xff]
        %v874 = vld [vmem:[%s323 + $0xd60] sm:$0xff]
        %v875 = vld [vmem:[%s323 + $0xd68] sm:$0xff]
        %v876 = vld [vmem:[%s323 + $0xd70] sm:$0xff]
        %v877 = vld [vmem:[%s323 + $0xd78] sm:$0xff]
        %v878 = vld [vmem:[%s323 + $0xd80] sm:$0xff]
        %v879 = vld [vmem:[%s323 + $0xd88] sm:$0xff]
        %v880 = vld [vmem:[%s323 + $0xd90] sm:$0xff]
        %v881 = vld [vmem:[%s323 + $0xd98] sm:$0xff]
        %v882 = vld [vmem:[%s323 + $0xda0] sm:$0xff]
        %v883 = vld [vmem:[%s323 + $0xda8] sm:$0xff]
        %v884 = vld [vmem:[%s323 + $0xdb0] sm:$0xff]
        %v885 = vld [vmem:[%s323 + $0xdb8] sm:$0xff]
        %v886 = vld [vmem:[%s323 + $0xdc0] sm:$0xff]
        %v887 = vld [vmem:[%s323 + $0xdc8] sm:$0xff]
        %v888 = vld [vmem:[%s323 + $0xdd0] sm:$0xff]
        %v889 = vld [vmem:[%s323 + $0xdd8] sm:$0xff]
        %v890 = vld [vmem:[%s323 + $0xde0] sm:$0xff]
        %v891 = vld [vmem:[%s323 + $0xde8] sm:$0xff]
        %v892 = vld [vmem:[%s323 + $0xdf0] sm:$0xff]
        %v893 = vld [vmem:[%s323 + $0xdf8] sm:$0xff]
        %v894 = vld [vmem:[%s323 + $0xe00] sm:$0xff]
        %v895 = vld [vmem:[%s323 + $0xe08] sm:$0xff]
        %v896 = vld [vmem:[%s323 + $0xe10] sm:$0xff]
        %v897 = vld [vmem:[%s323 + $0xe18] sm:$0xff]
        %v898 = vld [vmem:[%s323 + $0xe20] sm:$0xff]
        %v899 = vld [vmem:[%s323 + $0xe28] sm:$0xff]
        %v900 = vld [vmem:[%s323 + $0xe30] sm:$0xff]
        %v901 = vld [vmem:[%s323 + $0xe38] sm:$0xff]
        %v902 = vld [vmem:[%s323 + $0xe40] sm:$0xff]
        %v903 = vld [vmem:[%s323 + $0xe48] sm:$0xff]
        %v904 = vld [vmem:[%s323 + $0xe50] sm:$0xff]
        %v905 = vld [vmem:[%s323 + $0xe58] sm:$0xff]
        %v906 = vld [vmem:[%s323 + $0xe60] sm:$0xff]
        %v907 = vld [vmem:[%s323 + $0xe68] sm:$0xff]
        %v908 = vld [vmem:[%s323 + $0xe70] sm:$0xff]
        %v909 = vld [vmem:[%s323 + $0xe78] sm:$0xff]
        %v910 = vld [vmem:[%s323 + $0xe80] sm:$0xff]
        %v911 = vld [vmem:[%s323 + $0xe88] sm:$0xff]
        %v912 = vld [vmem:[%s323 + $0xe90] sm:$0xff]
        %v913 = vld [vmem:[%s323 + $0xe98] sm:$0xff]
        %v914 = vld [vmem:[%s323 + $0xea0] sm:$0xff]
        %v915 = vld [vmem:[%s323 + $0xea8] sm:$0xff]
        %v916 = vld [vmem:[%s323 + $0xeb0] sm:$0xff]
        %v917 = vld [vmem:[%s323 + $0xeb8] sm:$0xff]
        %v918 = vld [vmem:[%s323 + $0xec0] sm:$0xff]
        %v919 = vld [vmem:[%s323 + $0xec8] sm:$0xff]
        %v920 = vld [vmem:[%s323 + $0xed0] sm:$0xff]
        %v921 = vld [vmem:[%s323 + $0xed8] sm:$0xff]
        %v922 = vld [vmem:[%s323 + $0xee0] sm:$0xff]
        %v923 = vld [vmem:[%s323 + $0xee8] sm:$0xff]
        %v924 = vld [vmem:[%s323 + $0xef0] sm:$0xff]
        %v925 = vld [vmem:[%s323 + $0xef8] sm:$0xff]
        %v926 = vld [vmem:[%s323 + $0xf00] sm:$0xff]
        %v927 = vld [vmem:[%s323 + $0xf08] sm:$0xff]
        %v928 = vld [vmem:[%s323 + $0xf10] sm:$0xff]
        %v929 = vld [vmem:[%s323 + $0xf18] sm:$0xff]
        %v930 = vld [vmem:[%s323 + $0xf20] sm:$0xff]
        %v931 = vld [vmem:[%s323 + $0xf28] sm:$0xff]
        %v932 = vld [vmem:[%s323 + $0xf30] sm:$0xff]
        %v933 = vld [vmem:[%s323 + $0xf38] sm:$0xff]
        %v934 = vld [vmem:[%s323 + $0xf40] sm:$0xff]
        %v935 = vld [vmem:[%s323 + $0xf48] sm:$0xff]
        %v936 = vld [vmem:[%s323 + $0xf50] sm:$0xff]
        %v937 = vld [vmem:[%s323 + $0xf58] sm:$0xff]
        %v938 = vld [vmem:[%s323 + $0xf60] sm:$0xff]
        %v939 = vld [vmem:[%s323 + $0xf68] sm:$0xff]
        %v940 = vld [vmem:[%s323 + $0xf70] sm:$0xff]
        %v941 = vld [vmem:[%s323 + $0xf78] sm:$0xff]
        %v942 = vld [vmem:[%s323 + $0xf80] sm:$0xff]
        %v943 = vld [vmem:[%s323 + $0xf88] sm:$0xff]
        %v944 = vld [vmem:[%s323 + $0xf90] sm:$0xff]
        %v945 = vld [vmem:[%s323 + $0xf98] sm:$0xff]
        %v946 = vld [vmem:[%s323 + $0xfa0] sm:$0xff]
        %v947 = vld [vmem:[%s323 + $0xfa8] sm:$0xff]
        %v948 = vld [vmem:[%s323 + $0xfb0] sm:$0xff]
        %v949 = vld [vmem:[%s323 + $0xfb8] sm:$0xff]
        %v950 = vld [vmem:[%s323 + $0xfc0] sm:$0xff]
        %v951 = vld [vmem:[%s323 + $0xfc8] sm:$0xff]
        %v952 = vld [vmem:[%s323 + $0xfd0] sm:$0xff]
        %v953 = vld [vmem:[%s323 + $0xfd8] sm:$0xff]
        %v954 = vld [vmem:[%s323 + $0xfe0] sm:$0xff]
        %v955 = vld [vmem:[%s323 + $0xfe8] sm:$0xff]
        %v956 = vld [vmem:[%s323 + $0xff0] sm:$0xff]
        %v957 = vld [vmem:[%s323 + $0xff8] sm:$0xff]
        %v958 = vld [vmem:[%s323 + $0x1000] sm:$0xff]
        %v959 = vld [vmem:[%s323 + $0x1008] sm:$0xff]
        %v960 = vld [vmem:[%s323 + $0x1010] sm:$0xff]
        %v961 = vld [vmem:[%s323 + $0x1018] sm:$0xff]
        %v962 = vld [vmem:[%s323 + $0x1020] sm:$0xff]
        %v963 = vld [vmem:[%s323 + $0x1028] sm:$0xff]
        %v964 = vld [vmem:[%s323 + $0x1030] sm:$0xff]
        %v965 = vld [vmem:[%s323 + $0x1038] sm:$0xff]
        %v966 = vld [vmem:[%s323 + $0x1040] sm:$0xff]
        %v967 = vld [vmem:[%s323 + $0x1048] sm:$0xff]
        %v968 = vld [vmem:[%s323 + $0x1050] sm:$0xff]
        %v969 = vld [vmem:[%s323 + $0x1058] sm:$0xff]
        %v970 = vld [vmem:[%s323 + $0x1060] sm:$0xff]
        %v971 = vld [vmem:[%s323 + $0x1068] sm:$0xff]
        %v972 = vld [vmem:[%s323 + $0x1070] sm:$0xff]
        %v973 = vld [vmem:[%s323 + $0x1078] sm:$0xff]
        %v974 = vld [vmem:[%s323 + $0x1080] sm:$0xff]
        %v975 = vld [vmem:[%s323 + $0x1088] sm:$0xff]
        %v976 = vld [vmem:[%s323 + $0x1090] sm:$0xff]
        %v977 = vld [vmem:[%s323 + $0x1098] sm:$0xff]
        %v978 = vld [vmem:[%s323 + $0x10a0] sm:$0xff]
        %v979 = vld [vmem:[%s323 + $0x10a8] sm:$0xff]
        %v980 = vld [vmem:[%s323 + $0x10b0] sm:$0xff]
        %v981 = vld [vmem:[%s323 + $0x10b8] sm:$0xff]
        %v982 = vld [vmem:[%s323 + $0x10c0] sm:$0xff]
        %v983 = vld [vmem:[%s323 + $0x10c8] sm:$0xff]
        %v984 = vld [vmem:[%s323 + $0x10d0] sm:$0xff]
        %v985 = vld [vmem:[%s323 + $0x10d8] sm:$0xff]
        %v986 = vld [vmem:[%s323 + $0x10e0] sm:$0xff]
        %v987 = vld [vmem:[%s323 + $0x10e8] sm:$0xff]
        %v988 = vld [vmem:[%s323 + $0x10f0] sm:$0xff]
        %v989 = vld [vmem:[%s323 + $0x10f8] sm:$0xff]
        %v990 = vld [vmem:[%s323 + $0x1100] sm:$0xff]
        %v991 = vld [vmem:[%s323 + $0x1108] sm:$0xff]
        %v992 = vld [vmem:[%s323 + $0x1110] sm:$0xff]
        %v993 = vld [vmem:[%s323 + $0x1118] sm:$0xff]
        %v994 = vld [vmem:[%s323 + $0x1120] sm:$0xff]
        %v995 = vld [vmem:[%s323 + $0x1128] sm:$0xff]
        %v996 = vld [vmem:[%s323 + $0x1130] sm:$0xff]
        %v997 = vld [vmem:[%s323 + $0x1138] sm:$0xff]
        %v998 = vld [vmem:[%s323 + $0x1140] sm:$0xff]
        %v999 = vld [vmem:[%s323 + $0x1148] sm:$0xff]
        %v1000 = vld [vmem:[%s323 + $0x1150] sm:$0xff]
        %v1001 = vld [vmem:[%s323 + $0x1158] sm:$0xff]
        %v1002 = vld [vmem:[%s323 + $0x1160] sm:$0xff]
        %v1003 = vld [vmem:[%s323 + $0x1168] sm:$0xff]
        %v1004 = vld [vmem:[%s323 + $0x1170] sm:$0xff]
        %v1005 = vld [vmem:[%s323 + $0x1178] sm:$0xff]
        %v1006 = vld [vmem:[%s323 + $0x1180] sm:$0xff]
        %v1007 = vld [vmem:[%s323 + $0x1188] sm:$0xff]
        %v1008 = vld [vmem:[%s323 + $0x1190] sm:$0xff]
        %v1009 = vld [vmem:[%s323 + $0x1198] sm:$0xff]
        %v1010 = vld [vmem:[%s323 + $0x11a0] sm:$0xff]
        %v1011 = vld [vmem:[%s323 + $0x11a8] sm:$0xff]
        %v1012 = vld [vmem:[%s323 + $0x11b0] sm:$0xff]
        %v1013 = vld [vmem:[%s323 + $0x11b8] sm:$0xff]
        %v1014 = vld [vmem:[%s323 + $0x11c0] sm:$0xff]
        %v1015 = vld [vmem:[%s323 + $0x11c8] sm:$0xff]
        %v1016 = vld [vmem:[%s323 + $0x11d0] sm:$0xff]
        %v1017 = vld [vmem:[%s323 + $0x11d8] sm:$0xff]
        %v1018 = vld [vmem:[%s323 + $0x11e0] sm:$0xff]
        %v1019 = vld [vmem:[%s323 + $0x11e8] sm:$0xff]
        %v1020 = vld [vmem:[%s323 + $0x11f0] sm:$0xff]
        %v1021 = vld [vmem:[%s323 + $0x11f8] sm:$0xff]
        %v1022 = vld [vmem:[%s323 + $0x1200] sm:$0xff]
        %v1023 = vld [vmem:[%s323 + $0x1208] sm:$0xff]
        %v1024 = vld [vmem:[%s323 + $0x1210] sm:$0xff]
        %v1025 = vld [vmem:[%s323 + $0x1218] sm:$0xff]
        %v1026 = vld [vmem:[%s323 + $0x1220] sm:$0xff]
        %v1027 = vld [vmem:[%s323 + $0x1228] sm:$0xff]
        %v1028 = vld [vmem:[%s323 + $0x1230] sm:$0xff]
        %v1029 = vld [vmem:[%s323 + $0x1238] sm:$0xff]
        %v1030 = vld [vmem:[%s323 + $0x1240] sm:$0xff]
        %v1031 = vld [vmem:[%s323 + $0x1248] sm:$0xff]
        %v1032 = vld [vmem:[%s323 + $0x1250] sm:$0xff]
        %v1033 = vld [vmem:[%s323 + $0x1258] sm:$0xff]
        %v1034 = vld [vmem:[%s323 + $0x1260] sm:$0xff]
        %v1035 = vld [vmem:[%s323 + $0x1268] sm:$0xff]
        %v1036 = vld [vmem:[%s323 + $0x1270] sm:$0xff]
        %v1037 = vld [vmem:[%s323 + $0x1278] sm:$0xff]
        %v1038 = vld [vmem:[%s323 + $0x1280] sm:$0xff]
        %v1039 = vld [vmem:[%s323 + $0x1288] sm:$0xff]
        %v1040 = vld [vmem:[%s323 + $0x1290] sm:$0xff]
        %v1041 = vld [vmem:[%s323 + $0x1298] sm:$0xff]
        %v1042 = vld [vmem:[%s323 + $0x12a0] sm:$0xff]
        %v1043 = vld [vmem:[%s323 + $0x12a8] sm:$0xff]
        %v1044 = vld [vmem:[%s323 + $0x12b0] sm:$0xff]
        %v1045 = vld [vmem:[%s323 + $0x12b8] sm:$0xff]
        %v1046 = vld [vmem:[%s323 + $0x12c0] sm:$0xff]
        %v1047 = vld [vmem:[%s323 + $0x12c8] sm:$0xff]
        %v1048 = vld [vmem:[%s323 + $0x12d0] sm:$0xff]
        %v1049 = vld [vmem:[%s323 + $0x12d8] sm:$0xff]
        %v1050 = vld [vmem:[%s323 + $0x12e0] sm:$0xff]
        %v1051 = vld [vmem:[%s323 + $0x12e8] sm:$0xff]
        %v1052 = vld [vmem:[%s323 + $0x12f0] sm:$0xff]
        %v1053 = vld [vmem:[%s323 + $0x12f8] sm:$0xff]
        %v1054 = vld [vmem:[%s323 + $0x1300] sm:$0xff]
        %v1055 = vld [vmem:[%s323 + $0x1308] sm:$0xff]
        %v1056 = vld [vmem:[%s323 + $0x1310] sm:$0xff]
        %v1057 = vld [vmem:[%s323 + $0x1318] sm:$0xff]
        %v1058 = vld [vmem:[%s323 + $0x1320] sm:$0xff]
        %v1059 = vld [vmem:[%s323 + $0x1328] sm:$0xff]
        %v1060 = vld [vmem:[%s323 + $0x1330] sm:$0xff]
        %v1061 = vld [vmem:[%s323 + $0x1338] sm:$0xff]
        %v1062 = vld [vmem:[%s323 + $0x1340] sm:$0xff]
        %v1063 = vld [vmem:[%s323 + $0x1348] sm:$0xff]
        %v1064 = vld [vmem:[%s323 + $0x1350] sm:$0xff]
        %v1065 = vld [vmem:[%s323 + $0x1358] sm:$0xff]
        %v1066 = vld [vmem:[%s323 + $0x1360] sm:$0xff]
        %v1067 = vld [vmem:[%s323 + $0x1368] sm:$0xff]
        %v1068 = vld [vmem:[%s323 + $0x1370] sm:$0xff]
        %v1069 = vld [vmem:[%s323 + $0x1378] sm:$0xff]
        %v1070 = vld [vmem:[%s323 + $0x1380] sm:$0xff]
        %v1071 = vld [vmem:[%s323 + $0x1388] sm:$0xff]
        %v1072 = vld [vmem:[%s323 + $0x1390] sm:$0xff]
        %v1073 = vld [vmem:[%s323 + $0x1398] sm:$0xff]
        %v1074 = vld [vmem:[%s323 + $0x13a0] sm:$0xff]
        %v1075 = vld [vmem:[%s323 + $0x13a8] sm:$0xff]
        %v1076 = vld [vmem:[%s323 + $0x13b0] sm:$0xff]
        %v1077 = vld [vmem:[%s323 + $0x13b8] sm:$0xff]
        %v1078 = vld [vmem:[%s323 + $0x13c0] sm:$0xff]
        %v1079 = vld [vmem:[%s323 + $0x13c8] sm:$0xff]
        %v1080 = vld [vmem:[%s323 + $0x13d0] sm:$0xff]
        %v1081 = vld [vmem:[%s323 + $0x13d8] sm:$0xff]
        %v1082 = vld [vmem:[%s323 + $0x13e0] sm:$0xff]
        %v1083 = vld [vmem:[%s323 + $0x13e8] sm:$0xff]
        %v1084 = vld [vmem:[%s323 + $0x13f0] sm:$0xff]
        %v1085 = vld [vmem:[%s323 + $0x13f8] sm:$0xff]
        %v1086 = vld [vmem:[%s323 + $0x1400] sm:$0xff]
        %v1087 = vld [vmem:[%s323 + $0x1408] sm:$0xff]
        %v1088 = vld [vmem:[%s323 + $0x1410] sm:$0xff]
        %v1089 = vld [vmem:[%s323 + $0x1418] sm:$0xff]
        %v1090 = vld [vmem:[%s323 + $0x1420] sm:$0xff]
        %v1091 = vld [vmem:[%s323 + $0x1428] sm:$0xff]
        %v1092 = vld [vmem:[%s323 + $0x1430] sm:$0xff]
        %v1093 = vld [vmem:[%s323 + $0x1438] sm:$0xff]
        %v1094 = vld [vmem:[%s323 + $0x1440] sm:$0xff]
        %v1095 = vld [vmem:[%s323 + $0x1448] sm:$0xff]
        %v1096 = vld [vmem:[%s323 + $0x1450] sm:$0xff]
        %v1097 = vld [vmem:[%s323 + $0x1458] sm:$0xff]
        %v1098 = vld [vmem:[%s323 + $0x1460] sm:$0xff]
        %v1099 = vld [vmem:[%s323 + $0x1468] sm:$0xff]
        %v1100 = vld [vmem:[%s323 + $0x1470] sm:$0xff]
        %v1101 = vld [vmem:[%s323 + $0x1478] sm:$0xff]
        %v1102 = vld [vmem:[%s323 + $0x1480] sm:$0xff]
        %v1103 = vld [vmem:[%s323 + $0x1488] sm:$0xff]
        %v1104 = vld [vmem:[%s323 + $0x1490] sm:$0xff]
        %v1105 = vld [vmem:[%s323 + $0x1498] sm:$0xff]
        %v1106 = vld [vmem:[%s323 + $0x14a0] sm:$0xff]
        %v1107 = vld [vmem:[%s323 + $0x14a8] sm:$0xff]
        %v1108 = vld [vmem:[%s323 + $0x14b0] sm:$0xff]
        %v1109 = vld [vmem:[%s323 + $0x14b8] sm:$0xff]
        %v1110 = vld [vmem:[%s323 + $0x14c0] sm:$0xff]
        %v1111 = vld [vmem:[%s323 + $0x14c8] sm:$0xff]
        %v1112 = vld [vmem:[%s323 + $0x14d0] sm:$0xff]
        %v1113 = vld [vmem:[%s323 + $0x14d8] sm:$0xff]
        %v1114 = vld [vmem:[%s323 + $0x14e0] sm:$0xff]
        %v1115 = vld [vmem:[%s323 + $0x14e8] sm:$0xff]
        %v1116 = vld [vmem:[%s323 + $0x14f0] sm:$0xff]
        %v1117 = vld [vmem:[%s323 + $0x14f8] sm:$0xff]
        %v1118 = vld [vmem:[%s323 + $0x1500] sm:$0xff]
        %v1119 = vld [vmem:[%s323 + $0x1508] sm:$0xff]
        %v1120 = vld [vmem:[%s323 + $0x1510] sm:$0xff]
        %v1121 = vld [vmem:[%s323 + $0x1518] sm:$0xff]
        %v1122 = vld [vmem:[%s323 + $0x1520] sm:$0xff]
        %v1123 = vld [vmem:[%s323 + $0x1528] sm:$0xff]
        %v1124 = vld [vmem:[%s323 + $0x1530] sm:$0xff]
        %v1125 = vld [vmem:[%s323 + $0x1538] sm:$0xff]
        %v1126 = vld [vmem:[%s323 + $0x1540] sm:$0xff]
        %v1127 = vld [vmem:[%s323 + $0x1548] sm:$0xff]
        %v1128 = vld [vmem:[%s323 + $0x1550] sm:$0xff]
        %v1129 = vld [vmem:[%s323 + $0x1558] sm:$0xff]
        %v1130 = vld [vmem:[%s323 + $0x1560] sm:$0xff]
        %v1131 = vld [vmem:[%s323 + $0x1568] sm:$0xff]
        %v1132 = vld [vmem:[%s323 + $0x1570] sm:$0xff]
        %v1133 = vld [vmem:[%s323 + $0x1578] sm:$0xff]
        %v1134 = vld [vmem:[%s323 + $0x1580] sm:$0xff]
        %v1135 = vld [vmem:[%s323 + $0x1588] sm:$0xff]
        %v1136 = vld [vmem:[%s323 + $0x1590] sm:$0xff]
        %v1137 = vld [vmem:[%s323 + $0x1598] sm:$0xff]
        %v1138 = vld [vmem:[%s323 + $0x15a0] sm:$0xff]
        %v1139 = vld [vmem:[%s323 + $0x15a8] sm:$0xff]
        %v1140 = vld [vmem:[%s323 + $0x15b0] sm:$0xff]
        %v1141 = vld [vmem:[%s323 + $0x15b8] sm:$0xff]
        %v1142 = vld [vmem:[%s323 + $0x15c0] sm:$0xff]
        %v1143 = vld [vmem:[%s323 + $0x15c8] sm:$0xff]
        %v1144 = vld [vmem:[%s323 + $0x15d0] sm:$0xff]
        %v1145 = vld [vmem:[%s323 + $0x15d8] sm:$0xff]
        %v1146 = vld [vmem:[%s323 + $0x15e0] sm:$0xff]
        %v1147 = vld [vmem:[%s323 + $0x15e8] sm:$0xff]
        %v1148 = vld [vmem:[%s323 + $0x15f0] sm:$0xff]
        %v1149 = vld [vmem:[%s323 + $0x15f8] sm:$0xff]
        %v1150 = vld [vmem:[%s323 + $0x1600] sm:$0xff]
        %v1151 = vld [vmem:[%s323 + $0x1608] sm:$0xff]
        %v1152 = vld [vmem:[%s323 + $0x1610] sm:$0xff]
        %v1153 = vld [vmem:[%s323 + $0x1618] sm:$0xff]
        %v1154 = vld [vmem:[%s323 + $0x1620] sm:$0xff]
        %v1155 = vld [vmem:[%s323 + $0x1628] sm:$0xff]
        %v1156 = vld [vmem:[%s323 + $0x1630] sm:$0xff]
        %v1157 = vld [vmem:[%s323 + $0x1638] sm:$0xff]
        %v1158 = vld [vmem:[%s323 + $0x1640] sm:$0xff]
        %v1159 = vld [vmem:[%s323 + $0x1648] sm:$0xff]
        %v1160 = vld [vmem:[%s323 + $0x1650] sm:$0xff]
        %v1161 = vld [vmem:[%s323 + $0x1658] sm:$0xff]
        %v1162 = vld [vmem:[%s323 + $0x1660] sm:$0xff]
        %v1163 = vld [vmem:[%s323 + $0x1668] sm:$0xff]
        %v1164 = vld [vmem:[%s323 + $0x1670] sm:$0xff]
        %v1165 = vld [vmem:[%s323 + $0x1678] sm:$0xff]
        %v1166 = vld [vmem:[%s323 + $0x1680] sm:$0xff]
        %v1167 = vld [vmem:[%s323 + $0x1688] sm:$0xff]
        %v1168 = vld [vmem:[%s323 + $0x1690] sm:$0xff]
        %v1169 = vld [vmem:[%s323 + $0x1698] sm:$0xff]
        %v1170 = vld [vmem:[%s323 + $0x16a0] sm:$0xff]
        %v1171 = vld [vmem:[%s323 + $0x16a8] sm:$0xff]
        %v1172 = vld [vmem:[%s323 + $0x16b0] sm:$0xff]
        %v1173 = vld [vmem:[%s323 + $0x16b8] sm:$0xff]
        %v1174 = vld [vmem:[%s323 + $0x16c0] sm:$0xff]
        %v1175 = vld [vmem:[%s323 + $0x16c8] sm:$0xff]
        %v1176 = vld [vmem:[%s323 + $0x16d0] sm:$0xff]
        %v1177 = vld [vmem:[%s323 + $0x16d8] sm:$0xff]
        %v1178 = vld [vmem:[%s323 + $0x16e0] sm:$0xff]
        %v1179 = vld [vmem:[%s323 + $0x16e8] sm:$0xff]
        %v1180 = vld [vmem:[%s323 + $0x16f0] sm:$0xff]
        %v1181 = vld [vmem:[%s323 + $0x16f8] sm:$0xff]
        %v1182 = vld [vmem:[%s323 + $0x1700] sm:$0xff]
        %v1183 = vld [vmem:[%s323 + $0x1708] sm:$0xff]
        %v1184 = vld [vmem:[%s323 + $0x1710] sm:$0xff]
        %v1185 = vld [vmem:[%s323 + $0x1718] sm:$0xff]
        %v1186 = vld [vmem:[%s323 + $0x1720] sm:$0xff]
        %v1187 = vld [vmem:[%s323 + $0x1728] sm:$0xff]
        %v1188 = vld [vmem:[%s323 + $0x1730] sm:$0xff]
        %v1189 = vld [vmem:[%s323 + $0x1738] sm:$0xff]
        %v1190 = vld [vmem:[%s323 + $0x1740] sm:$0xff]
        %v1191 = vld [vmem:[%s323 + $0x1748] sm:$0xff]
        %v1192 = vld [vmem:[%s323 + $0x1750] sm:$0xff]
        %v1193 = vld [vmem:[%s323 + $0x1758] sm:$0xff]
        %v1194 = vld [vmem:[%s323 + $0x1760] sm:$0xff]
        %v1195 = vld [vmem:[%s323 + $0x1768] sm:$0xff]
        %v1196 = vld [vmem:[%s323 + $0x1770] sm:$0xff]
        %v1197 = vld [vmem:[%s323 + $0x1778] sm:$0xff]
        %v1198 = vld [vmem:[%s323 + $0x1780] sm:$0xff]
        %v1199 = vld [vmem:[%s323 + $0x1788] sm:$0xff]
        %v1200 = vld [vmem:[%s323 + $0x1790] sm:$0xff]
        %v1201 = vld [vmem:[%s323 + $0x1798] sm:$0xff]
        %v1202 = vld [vmem:[%s323 + $0x17a0] sm:$0xff]
        %v1203 = vld [vmem:[%s323 + $0x17a8] sm:$0xff]
        %v1204 = vld [vmem:[%s323 + $0x17b0] sm:$0xff]
        %v1205 = vld [vmem:[%s323 + $0x17b8] sm:$0xff]
        %v1206 = vld [vmem:[%s323 + $0x17c0] sm:$0xff]
        %v1207 = vld [vmem:[%s323 + $0x17c8] sm:$0xff]
        %v1208 = vld [vmem:[%s323 + $0x17d0] sm:$0xff]
        %v1209 = vld [vmem:[%s323 + $0x17d8] sm:$0xff]
        %v1210 = vld [vmem:[%s323 + $0x17e0] sm:$0xff]
        %v1211 = vld [vmem:[%s323 + $0x17e8] sm:$0xff]
        %v1212 = vld [vmem:[%s323 + $0x17f0] sm:$0xff]
        %v1213 = vld [vmem:[%s323 + $0x17f8] sm:$0xff]
        %v1214 = vld [vmem:[%s323 + $0x1800] sm:$0xff]
        %v1215 = vld [vmem:[%s323 + $0x1808] sm:$0xff]
        %v1216 = vld [vmem:[%s323 + $0x1810] sm:$0xff]
        %v1217 = vld [vmem:[%s323 + $0x1818] sm:$0xff]
        %v1218 = vld [vmem:[%s323 + $0x1820] sm:$0xff]
        %v1219 = vld [vmem:[%s323 + $0x1828] sm:$0xff]
        %v1220 = vld [vmem:[%s323 + $0x1830] sm:$0xff]
        %v1221 = vld [vmem:[%s323 + $0x1838] sm:$0xff]
        %v1222 = vld [vmem:[%s323 + $0x1840] sm:$0xff]
        %v1223 = vld [vmem:[%s323 + $0x1848] sm:$0xff]
        %v1224 = vld [vmem:[%s323 + $0x1850] sm:$0xff]
        %v1225 = vld [vmem:[%s323 + $0x1858] sm:$0xff]
        %v1226 = vld [vmem:[%s323 + $0x1860] sm:$0xff]
        %v1227 = vld [vmem:[%s323 + $0x1868] sm:$0xff]
        %v1228 = vld [vmem:[%s323 + $0x1870] sm:$0xff]
        %v1229 = vld [vmem:[%s323 + $0x1878] sm:$0xff]
        %v1230 = vld [vmem:[%s323 + $0x1880] sm:$0xff]
        %v1231 = vld [vmem:[%s323 + $0x1888] sm:$0xff]
        %v1232 = vld [vmem:[%s323 + $0x1890] sm:$0xff]
        %v1233 = vld [vmem:[%s323 + $0x1898] sm:$0xff]
        %v1234 = vld [vmem:[%s323 + $0x18a0] sm:$0xff]
        %v1235 = vld [vmem:[%s323 + $0x18a8] sm:$0xff]
        %v1236 = vld [vmem:[%s323 + $0x18b0] sm:$0xff]
        %v1237 = vld [vmem:[%s323 + $0x18b8] sm:$0xff]
        %v1238 = vld [vmem:[%s323 + $0x18c0] sm:$0xff]
        %v1239 = vld [vmem:[%s323 + $0x18c8] sm:$0xff]
        %v1240 = vld [vmem:[%s323 + $0x18d0] sm:$0xff]
        %v1241 = vld [vmem:[%s323 + $0x18d8] sm:$0xff]
        %v1242 = vld [vmem:[%s323 + $0x18e0] sm:$0xff]
        %v1243 = vld [vmem:[%s323 + $0x18e8] sm:$0xff]
        %v1244 = vld [vmem:[%s323 + $0x18f0] sm:$0xff]
        %v1245 = vld [vmem:[%s323 + $0x18f8] sm:$0xff]
        %v1246 = vld [vmem:[%s323 + $0x1900] sm:$0xff]
        %v1247 = vld [vmem:[%s323 + $0x1908] sm:$0xff]
        %v1248 = vld [vmem:[%s323 + $0x1910] sm:$0xff]
        %v1249 = vld [vmem:[%s323 + $0x1918] sm:$0xff]
        %v1250 = vld [vmem:[%s323 + $0x1920] sm:$0xff]
        %v1251 = vld [vmem:[%s323 + $0x1928] sm:$0xff]
        %v1252 = vld [vmem:[%s323 + $0x1930] sm:$0xff]
        %v1253 = vld [vmem:[%s323 + $0x1938] sm:$0xff]
        %v1254 = vld [vmem:[%s323 + $0x1940] sm:$0xff]
        %v1255 = vld [vmem:[%s323 + $0x1948] sm:$0xff]
        %v1256 = vld [vmem:[%s323 + $0x1950] sm:$0xff]
        %v1257 = vld [vmem:[%s323 + $0x1958] sm:$0xff]
        %v1258 = vld [vmem:[%s323 + $0x1960] sm:$0xff]
        %v1259 = vld [vmem:[%s323 + $0x1968] sm:$0xff]
        %v1260 = vld [vmem:[%s323 + $0x1970] sm:$0xff]
        %v1261 = vld [vmem:[%s323 + $0x1978] sm:$0xff]
        %v1262 = vld [vmem:[%s323 + $0x1980] sm:$0xff]
        %v1263 = vld [vmem:[%s323 + $0x1988] sm:$0xff]
        %v1264 = vld [vmem:[%s323 + $0x1990] sm:$0xff]
        %v1265 = vld [vmem:[%s323 + $0x1998] sm:$0xff]
        %v1266 = vld [vmem:[%s323 + $0x19a0] sm:$0xff]
        %v1267 = vld [vmem:[%s323 + $0x19a8] sm:$0xff]
        %v1268 = vld [vmem:[%s323 + $0x19b0] sm:$0xff]
        %v1269 = vld [vmem:[%s323 + $0x19b8] sm:$0xff]
        %v1270 = vld [vmem:[%s323 + $0x19c0] sm:$0xff]
        %v1271 = vld [vmem:[%s323 + $0x19c8] sm:$0xff]
        %v1272 = vld [vmem:[%s323 + $0x19d0] sm:$0xff]
        %v1273 = vld [vmem:[%s323 + $0x19d8] sm:$0xff]
        %v1274 = vld [vmem:[%s323 + $0x19e0] sm:$0xff]
        %v1275 = vld [vmem:[%s323 + $0x19e8] sm:$0xff]
        %v1276 = vld [vmem:[%s323 + $0x19f0] sm:$0xff]
        %v1277 = vld [vmem:[%s323 + $0x19f8] sm:$0xff]
        %v1278 = vld [vmem:[%s323 + $0x1a00] sm:$0xff]
        %v1279 = vld [vmem:[%s323 + $0x1a08] sm:$0xff]
        %v1280 = vld [vmem:[%s323 + $0x1a10] sm:$0xff]
        %v1281 = vld [vmem:[%s323 + $0x1a18] sm:$0xff]
        %v1282 = vld [vmem:[%s323 + $0x1a20] sm:$0xff]
        %v1283 = vld [vmem:[%s323 + $0x1a28] sm:$0xff]
        %v1284 = vld [vmem:[%s323 + $0x1a30] sm:$0xff]
        %v1285 = vld [vmem:[%s323 + $0x1a38] sm:$0xff]
        %v1286 = vld [vmem:[%s323 + $0x1a40] sm:$0xff]
        %v1287 = vld [vmem:[%s323 + $0x1a48] sm:$0xff]
        %v1288 = vld [vmem:[%s323 + $0x1a50] sm:$0xff]
        %v1289 = vld [vmem:[%s323 + $0x1a58] sm:$0xff]
        %v1290 = vld [vmem:[%s323 + $0x1a60] sm:$0xff]
        %v1291 = vld [vmem:[%s323 + $0x1a68] sm:$0xff]
        %v1292 = vld [vmem:[%s323 + $0x1a70] sm:$0xff]
        %v1293 = vld [vmem:[%s323 + $0x1a78] sm:$0xff]
        %v1294 = vld [vmem:[%s323 + $0x1a80] sm:$0xff]
        %v1295 = vld [vmem:[%s323 + $0x1a88] sm:$0xff]
        %v1296 = vld [vmem:[%s323 + $0x1a90] sm:$0xff]
        %v1297 = vld [vmem:[%s323 + $0x1a98] sm:$0xff]
        %v1298 = vld [vmem:[%s323 + $0x1aa0] sm:$0xff]
        %v1299 = vld [vmem:[%s323 + $0x1aa8] sm:$0xff]
        %v1300 = vld [vmem:[%s323 + $0x1ab0] sm:$0xff]
        %v1301 = vld [vmem:[%s323 + $0x1ab8] sm:$0xff]
        %v1302 = vld [vmem:[%s323 + $0x1ac0] sm:$0xff]
        %v1303 = vld [vmem:[%s323 + $0x1ac8] sm:$0xff]
        %v1304 = vld [vmem:[%s323 + $0x1ad0] sm:$0xff]
        %v1305 = vld [vmem:[%s323 + $0x1ad8] sm:$0xff]
        %v1306 = vld [vmem:[%s323 + $0x1ae0] sm:$0xff]
        %v1307 = vld [vmem:[%s323 + $0x1ae8] sm:$0xff]
        %v1308 = vld [vmem:[%s323 + $0x1af0] sm:$0xff]
        %v1309 = vld [vmem:[%s323 + $0x1af8] sm:$0xff]
        %v1310 = vld [vmem:[%s323 + $0x1b00] sm:$0xff]
        %v1311 = vld [vmem:[%s323 + $0x1b08] sm:$0xff]
        %v1312 = vld [vmem:[%s323 + $0x1b10] sm:$0xff]
        %v1313 = vld [vmem:[%s323 + $0x1b18] sm:$0xff]
        %v1314 = vld [vmem:[%s323 + $0x1b20] sm:$0xff]
        %v1315 = vld [vmem:[%s323 + $0x1b28] sm:$0xff]
        %v1316 = vld [vmem:[%s323 + $0x1b30] sm:$0xff]
        %v1317 = vld [vmem:[%s323 + $0x1b38] sm:$0xff]
        %v1318 = vld [vmem:[%s323 + $0x1b40] sm:$0xff]
        %v1319 = vld [vmem:[%s323 + $0x1b48] sm:$0xff]
        %v1320 = vld [vmem:[%s323 + $0x1b50] sm:$0xff]
        %v1321 = vld [vmem:[%s323 + $0x1b58] sm:$0xff]
        %v1322 = vld [vmem:[%s323 + $0x1b60] sm:$0xff]
        %v1323 = vld [vmem:[%s323 + $0x1b68] sm:$0xff]
        %v1324 = vld [vmem:[%s323 + $0x1b70] sm:$0xff]
        %v1325 = vld [vmem:[%s323 + $0x1b78] sm:$0xff]
        %v1326 = vld [vmem:[%s323 + $0x1b80] sm:$0xff]
        %v1327 = vld [vmem:[%s323 + $0x1b88] sm:$0xff]
        %v1328 = vld [vmem:[%s323 + $0x1b90] sm:$0xff]
        %v1329 = vld [vmem:[%s323 + $0x1b98] sm:$0xff]
        %v1330 = vld [vmem:[%s323 + $0x1ba0] sm:$0xff]
        %v1331 = vld [vmem:[%s323 + $0x1ba8] sm:$0xff]
        %v1332 = vld [vmem:[%s323 + $0x1bb0] sm:$0xff]
        %v1333 = vld [vmem:[%s323 + $0x1bb8] sm:$0xff]
        %v1334 = vld [vmem:[%s323 + $0x1bc0] sm:$0xff]
        %v1335 = vld [vmem:[%s323 + $0x1bc8] sm:$0xff]
        %v1336 = vld [vmem:[%s323 + $0x1bd0] sm:$0xff]
        %v1337 = vld [vmem:[%s323 + $0x1bd8] sm:$0xff]
        %v1338 = vld [vmem:[%s323 + $0x1be0] sm:$0xff]
        %v1339 = vld [vmem:[%s323 + $0x1be8] sm:$0xff]
        %v1340 = vld [vmem:[%s323 + $0x1bf0] sm:$0xff]
        %v1341 = vld [vmem:[%s323 + $0x1bf8] sm:$0xff]
        %v1342 = vld [vmem:[%s323 + $0x1c00] sm:$0xff]
        %v1343 = vld [vmem:[%s323 + $0x1c08] sm:$0xff]
        %v1344 = vld [vmem:[%s323 + $0x1c10] sm:$0xff]
        %v1345 = vld [vmem:[%s323 + $0x1c18] sm:$0xff]
        %v1346 = vld [vmem:[%s323 + $0x1c20] sm:$0xff]
        %v1347 = vld [vmem:[%s323 + $0x1c28] sm:$0xff]
        %v1348 = vld [vmem:[%s323 + $0x1c30] sm:$0xff]
        %v1349 = vld [vmem:[%s323 + $0x1c38] sm:$0xff]
        %v1350 = vld [vmem:[%s323 + $0x1c40] sm:$0xff]
        %v1351 = vld [vmem:[%s323 + $0x1c48] sm:$0xff]
        %v1352 = vld [vmem:[%s323 + $0x1c50] sm:$0xff]
        %v1353 = vld [vmem:[%s323 + $0x1c58] sm:$0xff]
        %v1354 = vld [vmem:[%s323 + $0x1c60] sm:$0xff]
        %v1355 = vld [vmem:[%s323 + $0x1c68] sm:$0xff]
        %v1356 = vld [vmem:[%s323 + $0x1c70] sm:$0xff]
        %v1357 = vld [vmem:[%s323 + $0x1c78] sm:$0xff]
        %v1358 = vld [vmem:[%s323 + $0x1c80] sm:$0xff]
        %v1359 = vld [vmem:[%s323 + $0x1c88] sm:$0xff]
        %v1360 = vld [vmem:[%s323 + $0x1c90] sm:$0xff]
        %v1361 = vld [vmem:[%s323 + $0x1c98] sm:$0xff]
        %v1362 = vld [vmem:[%s323 + $0x1ca0] sm:$0xff]
        %v1363 = vld [vmem:[%s323 + $0x1ca8] sm:$0xff]
        %v1364 = vld [vmem:[%s323 + $0x1cb0] sm:$0xff]
        %v1365 = vld [vmem:[%s323 + $0x1cb8] sm:$0xff]
        %v1366 = vld [vmem:[%s323 + $0x1cc0] sm:$0xff]
        %v1367 = vld [vmem:[%s323 + $0x1cc8] sm:$0xff]
        %v1368 = vld [vmem:[%s323 + $0x1cd0] sm:$0xff]
        %v1369 = vld [vmem:[%s323 + $0x1cd8] sm:$0xff]
        %v1370 = vld [vmem:[%s323 + $0x1ce0] sm:$0xff]
        %v1371 = vld [vmem:[%s323 + $0x1ce8] sm:$0xff]
        %v1372 = vld [vmem:[%s323 + $0x1cf0] sm:$0xff]
        %v1373 = vld [vmem:[%s323 + $0x1cf8] sm:$0xff]
        %v1374 = vld [vmem:[%s323 + $0x1d00] sm:$0xff]
        %v1375 = vld [vmem:[%s323 + $0x1d08] sm:$0xff]
        %v1376 = vld [vmem:[%s323 + $0x1d10] sm:$0xff]
        %v1377 = vld [vmem:[%s323 + $0x1d18] sm:$0xff]
        %v1378 = vld [vmem:[%s323 + $0x1d20] sm:$0xff]
        %v1379 = vld [vmem:[%s323 + $0x1d28] sm:$0xff]
        %v1380 = vld [vmem:[%s323 + $0x1d30] sm:$0xff]
        %v1381 = vld [vmem:[%s323 + $0x1d38] sm:$0xff]
        %v1382 = vld [vmem:[%s323 + $0x1d40] sm:$0xff]
        %v1383 = vld [vmem:[%s323 + $0x1d48] sm:$0xff]
        %v1384 = vld [vmem:[%s323 + $0x1d50] sm:$0xff]
        %v1385 = vld [vmem:[%s323 + $0x1d58] sm:$0xff]
        %v1386 = vld [vmem:[%s323 + $0x1d60] sm:$0xff]
        %v1387 = vld [vmem:[%s323 + $0x1d68] sm:$0xff]
        %v1388 = vld [vmem:[%s323 + $0x1d70] sm:$0xff]
        %v1389 = vld [vmem:[%s323 + $0x1d78] sm:$0xff]
        %v1390 = vld [vmem:[%s323 + $0x1d80] sm:$0xff]
        %v1391 = vld [vmem:[%s323 + $0x1d88] sm:$0xff]
        %v1392 = vld [vmem:[%s323 + $0x1d90] sm:$0xff]
        %v1393 = vld [vmem:[%s323 + $0x1d98] sm:$0xff]
        %v1394 = vld [vmem:[%s323 + $0x1da0] sm:$0xff]
        %v1395 = vld [vmem:[%s323 + $0x1da8] sm:$0xff]
        %v1396 = vld [vmem:[%s323 + $0x1db0] sm:$0xff]
        %v1397 = vld [vmem:[%s323 + $0x1db8] sm:$0xff]
        %v1398 = vld [vmem:[%s323 + $0x1dc0] sm:$0xff]
        %v1399 = vld [vmem:[%s323 + $0x1dc8] sm:$0xff]
        %v1400 = vld [vmem:[%s323 + $0x1dd0] sm:$0xff]
        %v1401 = vld [vmem:[%s323 + $0x1dd8] sm:$0xff]
        %v1402 = vld [vmem:[%s323 + $0x1de0] sm:$0xff]
        %v1403 = vld [vmem:[%s323 + $0x1de8] sm:$0xff]
        %v1404 = vld [vmem:[%s323 + $0x1df0] sm:$0xff]
        %v1405 = vld [vmem:[%s323 + $0x1df8] sm:$0xff]
        %v1406 = vld [vmem:[%s323 + $0x1e00] sm:$0xff]
        %v1407 = vld [vmem:[%s323 + $0x1e08] sm:$0xff]
        %v1408 = vld [vmem:[%s323 + $0x1e10] sm:$0xff]
        %v1409 = vld [vmem:[%s323 + $0x1e18] sm:$0xff]
        %v1410 = vld [vmem:[%s323 + $0x1e20] sm:$0xff]
        %v1411 = vld [vmem:[%s323 + $0x1e28] sm:$0xff]
        %v1412 = vld [vmem:[%s323 + $0x1e30] sm:$0xff]
        %v1413 = vld [vmem:[%s323 + $0x1e38] sm:$0xff]
        %v1414 = vld [vmem:[%s323 + $0x1e40] sm:$0xff]
        %v1415 = vld [vmem:[%s323 + $0x1e48] sm:$0xff]
        %v1416 = vld [vmem:[%s323 + $0x1e50] sm:$0xff]
        %v1417 = vld [vmem:[%s323 + $0x1e58] sm:$0xff]
        %v1418 = vld [vmem:[%s323 + $0x1e60] sm:$0xff]
        %v1419 = vld [vmem:[%s323 + $0x1e68] sm:$0xff]
        %v1420 = vld [vmem:[%s323 + $0x1e70] sm:$0xff]
        %v1421 = vld [vmem:[%s323 + $0x1e78] sm:$0xff]
        %v1422 = vld [vmem:[%s323 + $0x1e80] sm:$0xff]
        %v1423 = vld [vmem:[%s323 + $0x1e88] sm:$0xff]
        %v1424 = vld [vmem:[%s323 + $0x1e90] sm:$0xff]
        %v1425 = vld [vmem:[%s323 + $0x1e98] sm:$0xff]
        %v1426 = vld [vmem:[%s323 + $0x1ea0] sm:$0xff]
        %v1427 = vld [vmem:[%s323 + $0x1ea8] sm:$0xff]
        %v1428 = vld [vmem:[%s323 + $0x1eb0] sm:$0xff]
        %v1429 = vld [vmem:[%s323 + $0x1eb8] sm:$0xff]
        %v1430 = vld [vmem:[%s323 + $0x1ec0] sm:$0xff]
        %v1431 = vld [vmem:[%s323 + $0x1ec8] sm:$0xff]
        %v1432 = vld [vmem:[%s323 + $0x1ed0] sm:$0xff]
        %v1433 = vld [vmem:[%s323 + $0x1ed8] sm:$0xff]
        %v1434 = vld [vmem:[%s323 + $0x1ee0] sm:$0xff]
        %v1435 = vld [vmem:[%s323 + $0x1ee8] sm:$0xff]
        %v1436 = vld [vmem:[%s323 + $0x1ef0] sm:$0xff]
        %v1437 = vld [vmem:[%s323 + $0x1ef8] sm:$0xff]
        %v1438 = vld [vmem:[%s323 + $0x1f00] sm:$0xff]
        %v1439 = vld [vmem:[%s323 + $0x1f08] sm:$0xff]
        %v1440 = vld [vmem:[%s323 + $0x1f10] sm:$0xff]
        %v1441 = vld [vmem:[%s323 + $0x1f18] sm:$0xff]
        %v1442 = vld [vmem:[%s323 + $0x1f20] sm:$0xff]
        %v1443 = vld [vmem:[%s323 + $0x1f28] sm:$0xff]
        %v1444 = vld [vmem:[%s323 + $0x1f30] sm:$0xff]
        %v1445 = vld [vmem:[%s323 + $0x1f38] sm:$0xff]
        %v1446 = vld [vmem:[%s323 + $0x1f40] sm:$0xff]
        %v1447 = vld [vmem:[%s323 + $0x1f48] sm:$0xff]
        %v1448 = vld [vmem:[%s323 + $0x1f50] sm:$0xff]
        %v1449 = vld [vmem:[%s323 + $0x1f58] sm:$0xff]
        %v1450 = vld [vmem:[%s323 + $0x1f60] sm:$0xff]
        %v1451 = vld [vmem:[%s323 + $0x1f68] sm:$0xff]
        %v1452 = vld [vmem:[%s323 + $0x1f70] sm:$0xff]
        %v1453 = vld [vmem:[%s323 + $0x1f78] sm:$0xff]
        %v1454 = vld [vmem:[%s323 + $0x1f80] sm:$0xff]
        %v1455 = vld [vmem:[%s323 + $0x1f88] sm:$0xff]
        %v1456 = vld [vmem:[%s323 + $0x1f90] sm:$0xff]
        %v1457 = vld [vmem:[%s323 + $0x1f98] sm:$0xff]
        %v1458 = vld [vmem:[%s323 + $0x1fa0] sm:$0xff]
        %v1459 = vld [vmem:[%s323 + $0x1fa8] sm:$0xff]
        %v1460 = vld [vmem:[%s323 + $0x1fb0] sm:$0xff]
        %v1461 = vld [vmem:[%s323 + $0x1fb8] sm:$0xff]
        %v1462 = vld [vmem:[%s323 + $0x1fc0] sm:$0xff]
        %v1463 = vld [vmem:[%s323 + $0x1fc8] sm:$0xff]
        %v1464 = vld [vmem:[%s323 + $0x1fd0] sm:$0xff]
        %v1465 = vld [vmem:[%s323 + $0x1fd8] sm:$0xff]
        %v1466 = vld [vmem:[%s323 + $0x1fe0] sm:$0xff]
        %v1467 = vld [vmem:[%s323 + $0x1fe8] sm:$0xff]
        %v1468 = vld [vmem:[%s323 + $0x1ff0] sm:$0xff]
        %v1469 = vld [vmem:[%s323 + $0x1ff8] sm:$0xff]
        %v1470 = vld [vmem:[%s323 + $0x2000] sm:$0xff]
        %v1471 = vld [vmem:[%s323 + $0x2008] sm:$0xff]
        %v1472 = vld [vmem:[%s323 + $0x2010] sm:$0xff]
        %v1473 = vld [vmem:[%s323 + $0x2018] sm:$0xff]
        %v1474 = vld [vmem:[%s323 + $0x2020] sm:$0xff]
        %v1475 = vld [vmem:[%s323 + $0x2028] sm:$0xff]
        %v1476 = vld [vmem:[%s323 + $0x2030] sm:$0xff]
        %v1477 = vld [vmem:[%s323 + $0x2038] sm:$0xff]
        %v1478 = vld [vmem:[%s323 + $0x2040] sm:$0xff]
        %v1479 = vld [vmem:[%s323 + $0x2048] sm:$0xff]
        %v1480 = vld [vmem:[%s323 + $0x2050] sm:$0xff]
        %v1481 = vld [vmem:[%s323 + $0x2058] sm:$0xff]
        %v1482 = vld [vmem:[%s323 + $0x2060] sm:$0xff]
        %v1483 = vld [vmem:[%s323 + $0x2068] sm:$0xff]
        %v1484 = vld [vmem:[%s323 + $0x2070] sm:$0xff]
        %v1485 = vld [vmem:[%s323 + $0x2078] sm:$0xff]
        %v1500 = vunpack.c.l.b16 %v432
        %v1501 = vunpack.c.h.b16 %v432
        %v1502 = vunpack.c.l.b16 %v433
        %v1503 = vunpack.c.h.b16 %v433
        %v1504 = vunpack.c.l.b16 %v434
        %v1505 = vunpack.c.h.b16 %v434
        %v1506 = vunpack.c.l.b16 %v435
        %v1507 = vunpack.c.h.b16 %v435
        %v1508 = vunpack.c.l.b16 %v436
        %v1509 = vunpack.c.h.b16 %v436
        %v1510 = vunpack.c.l.b16 %v437
        %v1511 = vunpack.c.h.b16 %v437
        %v1512 = vunpack.c.l.b16 %v438
        %v1513 = vunpack.c.l.b16 %v439
        %v1514 = vunpack.c.h.b16 %v439
        %v1515 = vunpack.c.l.b16 %v440
        %v1516 = vunpack.c.h.b16 %v440
        %v1517 = vunpack.c.l.b16 %v441
        %v1518 = vunpack.c.h.b16 %v441
        %v1519 = vunpack.c.l.b16 %v442
        %v1520 = vunpack.c.h.b16 %v442
        %v1521 = vunpack.c.l.b16 %v443
        %v1522 = vunpack.c.h.b16 %v443
        %v1523 = vunpack.c.l.b16 %v444
        %v1524 = vunpack.c.h.b16 %v444
        %v1525 = vunpack.c.l.b16 %v445
        %v1526 = vpack.c.b16 %v1513, %v1500
        %v1527 = vpack.c.b16 %v1514, %v1501
        %v1528 = vpack.c.b16 %v1515, %v1502
        %v1529 = vpack.c.b16 %v1516, %v1503
        %v1530 = vpack.c.b16 %v1517, %v1504
        %v1531 = vpack.c.b16 %v1518, %v1505
        %v1532 = vpack.c.b16 %v1519, %v1506
        %v1533 = vpack.c.b16 %v1520, %v1507
        %v1534 = vpack.c.b16 %v1521, %v1508
        %v1535 = vpack.c.b16 %v1522, %v1509
        %v1536 = vpack.c.b16 %v1523, %v1510
        %v1537 = vpack.c.b16 %v1524, %v1511
        %v1538 = vpack.c.b16 %v1525, %v1512
        %v2592 = vunpack.c.l.b16 %v446
        %v2593 = vunpack.c.h.b16 %v446
        %v2594 = vunpack.c.l.b16 %v447
        %v2595 = vunpack.c.h.b16 %v447
        %v2596 = vunpack.c.l.b16 %v448
        %v2597 = vunpack.c.h.b16 %v448
        %v2598 = vunpack.c.l.b16 %v449
        %v2599 = vunpack.c.h.b16 %v449
        %v2600 = vunpack.c.l.b16 %v450
        %v2601 = vunpack.c.h.b16 %v450
        %v2602 = vunpack.c.l.b16 %v451
        %v2603 = vunpack.c.h.b16 %v451
        %v2604 = vunpack.c.l.b16 %v452
        %v2605 = vunpack.c.h.b16 %v452
        %v2606 = vunpack.c.l.b16 %v453
        %v2607 = vunpack.c.h.b16 %v453
        %v2608 = vunpack.c.l.b16 %v454
        %v2609 = vunpack.c.h.b16 %v454
        %v2610 = vunpack.c.l.b16 %v455
        %v2611 = vunpack.c.h.b16 %v455
        %v2612 = vunpack.c.l.b16 %v456
        %v2613 = vunpack.c.h.b16 %v456
        %v2614 = vunpack.c.l.b16 %v457
        %v2615 = vunpack.c.h.b16 %v457
        %v2616 = vunpack.c.l.b16 %v458
        %v2617 = vunpack.c.h.b16 %v458
        %v2618 = vunpack.c.l.b16 %v459
        %v2619 = vunpack.c.h.b16 %v459
        %v2620 = vunpack.c.l.b16 %v460
        %v2621 = vunpack.c.h.b16 %v460
        %v2622 = vunpack.c.l.b16 %v461
        %v2623 = vunpack.c.h.b16 %v461
        %v2624 = vunpack.c.l.b16 %v462
        %v2625 = vunpack.c.h.b16 %v462
        %v2626 = vunpack.c.l.b16 %v463
        %v2627 = vunpack.c.h.b16 %v463
        %v2628 = vunpack.c.l.b16 %v464
        %v2629 = vunpack.c.h.b16 %v464
        %v2630 = vunpack.c.l.b16 %v465
        %v2631 = vunpack.c.h.b16 %v465
        %v2632 = vunpack.c.l.b16 %v466
        %v2633 = vunpack.c.h.b16 %v466
        %v2634 = vunpack.c.l.b16 %v467
        %v2635 = vunpack.c.h.b16 %v467
        %v2636 = vunpack.c.l.b16 %v468
        %v2637 = vunpack.c.h.b16 %v468
        %v2638 = vunpack.c.l.b16 %v469
        %v2639 = vunpack.c.h.b16 %v469
        %v2640 = vunpack.c.l.b16 %v470
        %v2641 = vunpack.c.h.b16 %v470
        %v2642 = vunpack.c.l.b16 %v471
        %v2643 = vunpack.c.h.b16 %v471
        %v2644 = vunpack.c.l.b16 %v472
        %v2645 = vunpack.c.h.b16 %v472
        %v2646 = vunpack.c.l.b16 %v473
        %v2647 = vunpack.c.h.b16 %v473
        %v2648 = vunpack.c.l.b16 %v474
        %v2649 = vunpack.c.h.b16 %v474
        %v2650 = vunpack.c.l.b16 %v475
        %v2651 = vunpack.c.h.b16 %v475
        %v2652 = vunpack.c.l.b16 %v476
        %v2653 = vunpack.c.h.b16 %v476
        %v2654 = vunpack.c.l.b16 %v477
        %v2655 = vunpack.c.h.b16 %v477
        %v2656 = vunpack.c.l.b16 %v478
        %v2657 = vunpack.c.h.b16 %v478
        %v2658 = vunpack.c.l.b16 %v479
        %v2659 = vunpack.c.h.b16 %v479
        %v2660 = vunpack.c.l.b16 %v480
        %v2661 = vunpack.c.h.b16 %v480
        %v2662 = vunpack.c.l.b16 %v481
        %v2663 = vunpack.c.h.b16 %v481
        %v2664 = vunpack.c.l.b16 %v482
        %v2665 = vunpack.c.h.b16 %v482
        %v2666 = vunpack.c.l.b16 %v483
        %v2667 = vunpack.c.h.b16 %v483
        %v2668 = vunpack.c.l.b16 %v484
        %v2669 = vunpack.c.h.b16 %v484
        %v2670 = vunpack.c.l.b16 %v485
        %v2671 = vunpack.c.h.b16 %v485
        %v2672 = vunpack.c.l.b16 %v486
        %v2673 = vunpack.c.h.b16 %v486
        %v2674 = vunpack.c.l.b16 %v487
        %v2675 = vunpack.c.h.b16 %v487
        %v2676 = vunpack.c.l.b16 %v488
        %v2677 = vunpack.c.h.b16 %v488
        %v2678 = vunpack.c.l.b16 %v489
        %v2679 = vunpack.c.h.b16 %v489
        %v2680 = vunpack.c.l.b16 %v490
        %v2681 = vunpack.c.h.b16 %v490
        %v2682 = vunpack.c.l.b16 %v491
        %v2683 = vunpack.c.h.b16 %v491
        %v2684 = vunpack.c.l.b16 %v492
        %v2685 = vunpack.c.h.b16 %v492
        %v2686 = vunpack.c.l.b16 %v493
        %v2687 = vunpack.c.h.b16 %v493
        %v2688 = vunpack.c.l.b16 %v494
        %v2689 = vunpack.c.h.b16 %v494
        %v2690 = vunpack.c.l.b16 %v495
        %v2691 = vunpack.c.h.b16 %v495
        %v2692 = vunpack.c.l.b16 %v496
        %v2693 = vunpack.c.h.b16 %v496
        %v2694 = vunpack.c.l.b16 %v497
        %v2695 = vunpack.c.h.b16 %v497
        %v2696 = vunpack.c.l.b16 %v498
        %v2697 = vunpack.c.h.b16 %v498
        %v2698 = vunpack.c.l.b16 %v499
        %v2699 = vunpack.c.h.b16 %v499
        %v2700 = vunpack.c.l.b16 %v500
        %v2701 = vunpack.c.h.b16 %v500
        %v2702 = vunpack.c.l.b16 %v501
        %v2703 = vunpack.c.h.b16 %v501
        %v2704 = vunpack.c.l.b16 %v502
        %v2705 = vunpack.c.h.b16 %v502
        %v2706 = vunpack.c.l.b16 %v503
        %v2707 = vunpack.c.h.b16 %v503
        %v2708 = vunpack.c.l.b16 %v504
        %v2709 = vunpack.c.h.b16 %v504
        %v2710 = vunpack.c.l.b16 %v505
        %v2711 = vunpack.c.h.b16 %v505
        %v2712 = vunpack.c.l.b16 %v506
        %v2713 = vunpack.c.h.b16 %v506
        %v2714 = vunpack.c.l.b16 %v507
        %v2715 = vunpack.c.h.b16 %v507
        %v2716 = vunpack.c.l.b16 %v508
        %v2717 = vunpack.c.h.b16 %v508
        %v2718 = vunpack.c.l.b16 %v509
        %v2719 = vunpack.c.h.b16 %v509
        %v2720 = vunpack.c.l.b16 %v510
        %v2721 = vunpack.c.h.b16 %v510
        %v2722 = vunpack.c.l.b16 %v511
        %v2723 = vunpack.c.h.b16 %v511
        %v2724 = vunpack.c.l.b16 %v512
        %v2725 = vunpack.c.h.b16 %v512
        %v2726 = vunpack.c.l.b16 %v513
        %v2727 = vunpack.c.h.b16 %v513
        %v2728 = vunpack.c.l.b16 %v514
        %v2729 = vunpack.c.h.b16 %v514
        %v2730 = vunpack.c.l.b16 %v515
        %v2731 = vunpack.c.h.b16 %v515
        %v2732 = vunpack.c.l.b16 %v516
        %v2733 = vunpack.c.h.b16 %v516
        %v2734 = vunpack.c.l.b16 %v517
        %v2735 = vunpack.c.h.b16 %v517
        %v2736 = vunpack.c.l.b16 %v518
        %v2737 = vunpack.c.h.b16 %v518
        %v2738 = vunpack.c.l.b16 %v519
        %v2739 = vunpack.c.h.b16 %v519
        %v2740 = vunpack.c.l.b16 %v520
        %v2741 = vunpack.c.h.b16 %v520
        %v2742 = vunpack.c.l.b16 %v521
        %v2743 = vunpack.c.h.b16 %v521
        %v2744 = vunpack.c.l.b16 %v522
        %v2745 = vunpack.c.h.b16 %v522
        %v2746 = vunpack.c.l.b16 %v523
        %v2747 = vunpack.c.h.b16 %v523
        %v2748 = vunpack.c.l.b16 %v524
        %v2749 = vunpack.c.h.b16 %v524
        %v2750 = vunpack.c.l.b16 %v525
        %v2751 = vunpack.c.h.b16 %v525
        %v2752 = vunpack.c.l.b16 %v526
        %v2753 = vunpack.c.h.b16 %v526
        %v2754 = vunpack.c.l.b16 %v527
        %v2755 = vunpack.c.h.b16 %v527
        %v2756 = vunpack.c.l.b16 %v528
        %v2757 = vunpack.c.h.b16 %v528
        %v2758 = vunpack.c.l.b16 %v529
        %v2759 = vunpack.c.h.b16 %v529
        %v2760 = vunpack.c.l.b16 %v530
        %v2761 = vunpack.c.h.b16 %v530
        %v2762 = vunpack.c.l.b16 %v531
        %v2763 = vunpack.c.h.b16 %v531
        %v2764 = vunpack.c.l.b16 %v532
        %v2765 = vunpack.c.h.b16 %v532
        %v2766 = vunpack.c.l.b16 %v533
        %v2767 = vunpack.c.h.b16 %v533
        %v2768 = vunpack.c.l.b16 %v534
        %v2769 = vunpack.c.h.b16 %v534
        %v2770 = vunpack.c.l.b16 %v535
        %v2771 = vunpack.c.h.b16 %v535
        %v2772 = vunpack.c.l.b16 %v536
        %v2773 = vunpack.c.h.b16 %v536
        %v2774 = vunpack.c.l.b16 %v537
        %v2775 = vunpack.c.h.b16 %v537
        %v2776 = vunpack.c.l.b16 %v538
        %v2777 = vunpack.c.h.b16 %v538
        %v2778 = vunpack.c.l.b16 %v539
        %v2779 = vunpack.c.h.b16 %v539
        %v2780 = vunpack.c.l.b16 %v540
        %v2781 = vunpack.c.h.b16 %v540
        %v2782 = vunpack.c.l.b16 %v541
        %v2783 = vunpack.c.h.b16 %v541
        %v2784 = vunpack.c.l.b16 %v542
        %v2785 = vunpack.c.h.b16 %v542
        %v2786 = vunpack.c.l.b16 %v543
        %v2787 = vunpack.c.h.b16 %v543
        %v2788 = vunpack.c.l.b16 %v544
        %v2789 = vunpack.c.h.b16 %v544
        %v2790 = vunpack.c.l.b16 %v545
        %v2791 = vunpack.c.h.b16 %v545
        %v2792 = vunpack.c.l.b16 %v546
        %v2793 = vunpack.c.h.b16 %v546
        %v2794 = vunpack.c.l.b16 %v547
        %v2795 = vunpack.c.h.b16 %v547
        %v2796 = vunpack.c.l.b16 %v548
        %v2797 = vunpack.c.h.b16 %v548
        %v2798 = vunpack.c.l.b16 %v549
        %v2799 = vunpack.c.h.b16 %v549
        %v2800 = vunpack.c.l.b16 %v550
        %v2801 = vunpack.c.h.b16 %v550
        %v2802 = vunpack.c.l.b16 %v551
        %v2803 = vunpack.c.h.b16 %v551
        %v2804 = vunpack.c.l.b16 %v552
        %v2805 = vunpack.c.h.b16 %v552
        %v2806 = vunpack.c.l.b16 %v553
        %v2807 = vunpack.c.h.b16 %v553
        %v2808 = vunpack.c.l.b16 %v554
        %v2809 = vunpack.c.h.b16 %v554
        %v2810 = vunpack.c.l.b16 %v555
        %v2811 = vunpack.c.h.b16 %v555
        %v2812 = vunpack.c.l.b16 %v556
        %v2813 = vunpack.c.h.b16 %v556
        %v2814 = vunpack.c.l.b16 %v557
        %v2815 = vunpack.c.h.b16 %v557
        %v2816 = vunpack.c.l.b16 %v558
        %v2817 = vunpack.c.h.b16 %v558
        %v2818 = vunpack.c.l.b16 %v559
        %v2819 = vunpack.c.h.b16 %v559
        %v2820 = vunpack.c.l.b16 %v560
        %v2821 = vunpack.c.h.b16 %v560
        %v2822 = vunpack.c.l.b16 %v561
        %v2823 = vunpack.c.h.b16 %v561
        %v2824 = vunpack.c.l.b16 %v562
        %v2825 = vunpack.c.h.b16 %v562
        %v2826 = vunpack.c.l.b16 %v563
        %v2827 = vunpack.c.h.b16 %v563
        %v2828 = vunpack.c.l.b16 %v564
        %v2829 = vunpack.c.h.b16 %v564
        %v2830 = vunpack.c.l.b16 %v565
        %v2831 = vunpack.c.h.b16 %v565
        %v2832 = vunpack.c.l.b16 %v566
        %v2833 = vunpack.c.h.b16 %v566
        %v2834 = vunpack.c.l.b16 %v567
        %v2835 = vunpack.c.h.b16 %v567
        %v2836 = vunpack.c.l.b16 %v568
        %v2837 = vunpack.c.h.b16 %v568
        %v2838 = vunpack.c.l.b16 %v569
        %v2839 = vunpack.c.h.b16 %v569
        %v2840 = vunpack.c.l.b16 %v570
        %v2841 = vunpack.c.h.b16 %v570
        %v2842 = vunpack.c.l.b16 %v571
        %v2843 = vunpack.c.h.b16 %v571
        %v2844 = vunpack.c.l.b16 %v572
        %v2845 = vunpack.c.h.b16 %v572
        %v2846 = vunpack.c.l.b16 %v573
        %v2847 = vunpack.c.h.b16 %v573
        %v2848 = vunpack.c.l.b16 %v574
        %v2849 = vunpack.c.h.b16 %v574
        %v2850 = vunpack.c.l.b16 %v575
        %v2851 = vunpack.c.h.b16 %v575
        %v2852 = vunpack.c.l.b16 %v576
        %v2853 = vunpack.c.h.b16 %v576
        %v2854 = vunpack.c.l.b16 %v577
        %v2855 = vunpack.c.h.b16 %v577
        %v2856 = vunpack.c.l.b16 %v578
        %v2857 = vunpack.c.h.b16 %v578
        %v2858 = vunpack.c.l.b16 %v579
        %v2859 = vunpack.c.h.b16 %v579
        %v2860 = vunpack.c.l.b16 %v580
        %v2861 = vunpack.c.h.b16 %v580
        %v2862 = vunpack.c.l.b16 %v581
        %v2863 = vunpack.c.h.b16 %v581
        %v2864 = vunpack.c.l.b16 %v582
        %v2865 = vunpack.c.h.b16 %v582
        %v2866 = vunpack.c.l.b16 %v583
        %v2867 = vunpack.c.h.b16 %v583
        %v2868 = vunpack.c.l.b16 %v584
        %v2869 = vunpack.c.h.b16 %v584
        %v2870 = vunpack.c.l.b16 %v585
        %v2871 = vunpack.c.h.b16 %v585
        %v2872 = vunpack.c.l.b16 %v586
        %v2873 = vunpack.c.h.b16 %v586
        %v2874 = vunpack.c.l.b16 %v587
        %v2875 = vunpack.c.h.b16 %v587
        %v2876 = vunpack.c.l.b16 %v588
        %v2877 = vunpack.c.h.b16 %v588
        %v2878 = vunpack.c.l.b16 %v589
        %v2879 = vunpack.c.h.b16 %v589
        %v2880 = vunpack.c.l.b16 %v590
        %v2881 = vunpack.c.h.b16 %v590
        %v2882 = vunpack.c.l.b16 %v591
        %v2883 = vunpack.c.h.b16 %v591
        %v2884 = vunpack.c.l.b16 %v592
        %v2885 = vunpack.c.h.b16 %v592
        %v2886 = vunpack.c.l.b16 %v593
        %v2887 = vunpack.c.h.b16 %v593
        %v2888 = vunpack.c.l.b16 %v594
        %v2889 = vunpack.c.h.b16 %v594
        %v2890 = vunpack.c.l.b16 %v595
        %v2891 = vunpack.c.h.b16 %v595
        %v2892 = vunpack.c.l.b16 %v596
        %v2893 = vunpack.c.h.b16 %v596
        %v2894 = vunpack.c.l.b16 %v597
        %v2895 = vunpack.c.h.b16 %v597
        %v2896 = vunpack.c.l.b16 %v598
        %v2897 = vunpack.c.h.b16 %v598
        %v2898 = vunpack.c.l.b16 %v599
        %v2899 = vunpack.c.h.b16 %v599
        %v2900 = vunpack.c.l.b16 %v600
        %v2901 = vunpack.c.h.b16 %v600
        %v2902 = vunpack.c.l.b16 %v601
        %v2903 = vunpack.c.h.b16 %v601
        %v2904 = vunpack.c.l.b16 %v602
        %v2905 = vunpack.c.h.b16 %v602
        %v2906 = vunpack.c.l.b16 %v603
        %v2907 = vunpack.c.h.b16 %v603
        %v2908 = vunpack.c.l.b16 %v604
        %v2909 = vunpack.c.h.b16 %v604
        %v2910 = vunpack.c.l.b16 %v605
        %v2911 = vunpack.c.h.b16 %v605
        %v2912 = vunpack.c.l.b16 %v606
        %v2913 = vunpack.c.h.b16 %v606
        %v2914 = vunpack.c.l.b16 %v607
        %v2915 = vunpack.c.h.b16 %v607
        %v2916 = vunpack.c.l.b16 %v608
        %v2917 = vunpack.c.h.b16 %v608
        %v2918 = vunpack.c.l.b16 %v609
        %v2919 = vunpack.c.h.b16 %v609
        %v2920 = vunpack.c.l.b16 %v610
        %v2921 = vunpack.c.h.b16 %v610
        %v2922 = vunpack.c.l.b16 %v611
        %v2923 = vunpack.c.h.b16 %v611
        %v2924 = vunpack.c.l.b16 %v612
        %v2925 = vunpack.c.h.b16 %v612
        %v2926 = vunpack.c.l.b16 %v613
        %v2927 = vunpack.c.h.b16 %v613
        %v2928 = vunpack.c.l.b16 %v614
        %v2929 = vunpack.c.h.b16 %v614
        %v2930 = vunpack.c.l.b16 %v615
        %v2931 = vunpack.c.h.b16 %v615
        %v2932 = vunpack.c.l.b16 %v616
        %v2933 = vunpack.c.h.b16 %v616
        %v2934 = vunpack.c.l.b16 %v617
        %v2935 = vunpack.c.h.b16 %v617
        %v2936 = vunpack.c.l.b16 %v618
        %v2937 = vunpack.c.h.b16 %v618
        %v2938 = vunpack.c.l.b16 %v619
        %v2939 = vunpack.c.h.b16 %v619
        %v2940 = vunpack.c.l.b16 %v620
        %v2941 = vunpack.c.h.b16 %v620
        %v2942 = vunpack.c.l.b16 %v621
        %v2943 = vunpack.c.h.b16 %v621
        %v2944 = vunpack.c.l.b16 %v622
        %v2945 = vunpack.c.h.b16 %v622
        %v2946 = vunpack.c.l.b16 %v623
        %v2947 = vunpack.c.h.b16 %v623
        %v2948 = vunpack.c.l.b16 %v624
        %v2949 = vunpack.c.h.b16 %v624
        %v2950 = vunpack.c.l.b16 %v625
        %v2951 = vunpack.c.h.b16 %v625
        %v2952 = vunpack.c.l.b16 %v626
        %v2953 = vunpack.c.h.b16 %v626
        %v2954 = vunpack.c.l.b16 %v627
        %v2955 = vunpack.c.h.b16 %v627
        %v2956 = vunpack.c.l.b16 %v628
        %v2957 = vunpack.c.h.b16 %v628
        %v2958 = vunpack.c.l.b16 %v629
        %v2959 = vunpack.c.h.b16 %v629
        %v2960 = vunpack.c.l.b16 %v630
        %v2961 = vunpack.c.h.b16 %v630
        %v2962 = vunpack.c.l.b16 %v631
        %v2963 = vunpack.c.h.b16 %v631
        %v2964 = vunpack.c.l.b16 %v632
        %v2965 = vunpack.c.h.b16 %v632
        %v2966 = vunpack.c.l.b16 %v633
        %v2967 = vunpack.c.h.b16 %v633
        %v2968 = vunpack.c.l.b16 %v634
        %v2969 = vunpack.c.h.b16 %v634
        %v2970 = vunpack.c.l.b16 %v635
        %v2971 = vunpack.c.h.b16 %v635
        %v2972 = vunpack.c.l.b16 %v636
        %v2973 = vunpack.c.h.b16 %v636
        %v2974 = vunpack.c.l.b16 %v637
        %v2975 = vunpack.c.h.b16 %v637
        %v2976 = vunpack.c.l.b16 %v638
        %v2977 = vunpack.c.h.b16 %v638
        %v2978 = vunpack.c.l.b16 %v639
        %v2979 = vunpack.c.h.b16 %v639
        %v2980 = vunpack.c.l.b16 %v640
        %v2981 = vunpack.c.h.b16 %v640
        %v2982 = vunpack.c.l.b16 %v641
        %v2983 = vunpack.c.h.b16 %v641
        %v2984 = vunpack.c.l.b16 %v642
        %v2985 = vunpack.c.h.b16 %v642
        %v2986 = vunpack.c.l.b16 %v643
        %v2987 = vunpack.c.h.b16 %v643
        %v2988 = vunpack.c.l.b16 %v644
        %v2989 = vunpack.c.h.b16 %v644
        %v2990 = vunpack.c.l.b16 %v645
        %v2991 = vunpack.c.h.b16 %v645
        %v2992 = vunpack.c.l.b16 %v646
        %v2993 = vunpack.c.h.b16 %v646
        %v2994 = vunpack.c.l.b16 %v647
        %v2995 = vunpack.c.h.b16 %v647
        %v2996 = vunpack.c.l.b16 %v648
        %v2997 = vunpack.c.h.b16 %v648
        %v2998 = vunpack.c.l.b16 %v649
        %v2999 = vunpack.c.h.b16 %v649
        %v3000 = vunpack.c.l.b16 %v650
        %v3001 = vunpack.c.h.b16 %v650
        %v3002 = vunpack.c.l.b16 %v651
        %v3003 = vunpack.c.h.b16 %v651
        %v3004 = vunpack.c.l.b16 %v652
        %v3005 = vunpack.c.h.b16 %v652
        %v3006 = vunpack.c.l.b16 %v653
        %v3007 = vunpack.c.h.b16 %v653
        %v3008 = vunpack.c.l.b16 %v654
        %v3009 = vunpack.c.h.b16 %v654
        %v3010 = vunpack.c.l.b16 %v655
        %v3011 = vunpack.c.h.b16 %v655
        %v3012 = vunpack.c.l.b16 %v656
        %v3013 = vunpack.c.h.b16 %v656
        %v3014 = vunpack.c.l.b16 %v657
        %v3015 = vunpack.c.h.b16 %v657
        %v3016 = vunpack.c.l.b16 %v658
        %v3017 = vunpack.c.h.b16 %v658
        %v3018 = vunpack.c.l.b16 %v659
        %v3019 = vunpack.c.h.b16 %v659
        %v3020 = vunpack.c.l.b16 %v660
        %v3021 = vunpack.c.h.b16 %v660
        %v3022 = vunpack.c.l.b16 %v661
        %v3023 = vunpack.c.h.b16 %v661
        %v3024 = vunpack.c.l.b16 %v662
        %v3025 = vunpack.c.h.b16 %v662
        %v3026 = vunpack.c.l.b16 %v663
        %v3027 = vunpack.c.h.b16 %v663
        %v3028 = vunpack.c.l.b16 %v664
        %v3029 = vunpack.c.h.b16 %v664
        %v3030 = vunpack.c.l.b16 %v665
        %v3031 = vunpack.c.h.b16 %v665
        %v3032 = vunpack.c.l.b16 %v666
        %v3033 = vunpack.c.h.b16 %v666
        %v3034 = vunpack.c.l.b16 %v667
        %v3035 = vunpack.c.h.b16 %v667
        %v3036 = vunpack.c.l.b16 %v668
        %v3037 = vunpack.c.h.b16 %v668
        %v3038 = vunpack.c.l.b16 %v669
        %v3039 = vunpack.c.h.b16 %v669
        %v3040 = vunpack.c.l.b16 %v670
        %v3041 = vunpack.c.h.b16 %v670
        %v3042 = vunpack.c.l.b16 %v671
        %v3043 = vunpack.c.h.b16 %v671
        %v3044 = vunpack.c.l.b16 %v672
        %v3045 = vunpack.c.h.b16 %v672
        %v3046 = vunpack.c.l.b16 %v673
        %v3047 = vunpack.c.h.b16 %v673
        %v3048 = vunpack.c.l.b16 %v674
        %v3049 = vunpack.c.h.b16 %v674
        %v3050 = vunpack.c.l.b16 %v675
        %v3051 = vunpack.c.h.b16 %v675
        %v3052 = vunpack.c.l.b16 %v676
        %v3053 = vunpack.c.h.b16 %v676
        %v3054 = vunpack.c.l.b16 %v677
        %v3055 = vunpack.c.h.b16 %v677
        %v3056 = vunpack.c.l.b16 %v678
        %v3057 = vunpack.c.h.b16 %v678
        %v3058 = vunpack.c.l.b16 %v679
        %v3059 = vunpack.c.h.b16 %v679
        %v3060 = vunpack.c.l.b16 %v680
        %v3061 = vunpack.c.h.b16 %v680
        %v3062 = vunpack.c.l.b16 %v681
        %v3063 = vunpack.c.h.b16 %v681
        %v3064 = vunpack.c.l.b16 %v682
        %v3065 = vunpack.c.h.b16 %v682
        %v3066 = vunpack.c.l.b16 %v683
        %v3067 = vunpack.c.h.b16 %v683
        %v3068 = vunpack.c.l.b16 %v684
        %v3069 = vunpack.c.h.b16 %v684
        %v3070 = vunpack.c.l.b16 %v685
        %v3071 = vunpack.c.h.b16 %v685
        %v3072 = vunpack.c.l.b16 %v686
        %v3073 = vunpack.c.h.b16 %v686
        %v3074 = vunpack.c.l.b16 %v687
        %v3075 = vunpack.c.h.b16 %v687
        %v3076 = vunpack.c.l.b16 %v688
        %v3077 = vunpack.c.h.b16 %v688
        %v3078 = vunpack.c.l.b16 %v689
        %v3079 = vunpack.c.h.b16 %v689
        %v3080 = vunpack.c.l.b16 %v690
        %v3081 = vunpack.c.h.b16 %v690
        %v3082 = vunpack.c.l.b16 %v691
        %v3083 = vunpack.c.h.b16 %v691
        %v3084 = vunpack.c.l.b16 %v692
        %v3085 = vunpack.c.h.b16 %v692
        %v3086 = vunpack.c.l.b16 %v693
        %v3087 = vunpack.c.h.b16 %v693
        %v3088 = vunpack.c.l.b16 %v694
        %v3089 = vunpack.c.h.b16 %v694
        %v3090 = vunpack.c.l.b16 %v695
        %v3091 = vunpack.c.h.b16 %v695
        %v3092 = vunpack.c.l.b16 %v696
        %v3093 = vunpack.c.h.b16 %v696
        %v3094 = vunpack.c.l.b16 %v697
        %v3095 = vunpack.c.h.b16 %v697
        %v3096 = vunpack.c.l.b16 %v698
        %v3097 = vunpack.c.h.b16 %v698
        %v3098 = vunpack.c.l.b16 %v699
        %v3099 = vunpack.c.h.b16 %v699
        %v3100 = vunpack.c.l.b16 %v700
        %v3101 = vunpack.c.h.b16 %v700
        %v3102 = vunpack.c.l.b16 %v701
        %v3103 = vunpack.c.h.b16 %v701
        %v3104 = vunpack.c.l.b16 %v702
        %v3105 = vunpack.c.h.b16 %v702
        %v3106 = vunpack.c.l.b16 %v703
        %v3107 = vunpack.c.h.b16 %v703
        %v3108 = vunpack.c.l.b16 %v704
        %v3109 = vunpack.c.h.b16 %v704
        %v3110 = vunpack.c.l.b16 %v705
        %v3111 = vunpack.c.h.b16 %v705
        %v3112 = vunpack.c.l.b16 %v706
        %v3113 = vunpack.c.h.b16 %v706
        %v3114 = vunpack.c.l.b16 %v707
        %v3115 = vunpack.c.h.b16 %v707
        %v3116 = vunpack.c.l.b16 %v708
        %v3117 = vunpack.c.h.b16 %v708
        %v3118 = vunpack.c.l.b16 %v709
        %v3119 = vunpack.c.h.b16 %v709
        %v3120 = vunpack.c.l.b16 %v710
        %v3121 = vunpack.c.h.b16 %v710
        %v3122 = vunpack.c.l.b16 %v711
        %v3123 = vunpack.c.h.b16 %v711
        %v3124 = vunpack.c.l.b16 %v712
        %v3125 = vunpack.c.h.b16 %v712
        %v3126 = vunpack.c.l.b16 %v713
        %v3127 = vunpack.c.h.b16 %v713
        %v3128 = vunpack.c.l.b16 %v714
        %v3129 = vunpack.c.h.b16 %v714
        %v3130 = vunpack.c.l.b16 %v715
        %v3131 = vunpack.c.h.b16 %v715
        %v3132 = vunpack.c.l.b16 %v716
        %v3133 = vunpack.c.h.b16 %v716
        %v3134 = vunpack.c.l.b16 %v717
        %v3135 = vunpack.c.h.b16 %v717
        %v3136 = vunpack.c.l.b16 %v718
        %v3137 = vunpack.c.h.b16 %v718
        %v3138 = vunpack.c.l.b16 %v719
        %v3139 = vunpack.c.h.b16 %v719
        %v3140 = vunpack.c.l.b16 %v720
        %v3141 = vunpack.c.h.b16 %v720
        %v3142 = vunpack.c.l.b16 %v721
        %v3143 = vunpack.c.h.b16 %v721
        %v3144 = vunpack.c.l.b16 %v722
        %v3145 = vunpack.c.h.b16 %v722
        %v3146 = vunpack.c.l.b16 %v723
        %v3147 = vunpack.c.h.b16 %v723
        %v3148 = vunpack.c.l.b16 %v724
        %v3149 = vunpack.c.h.b16 %v724
        %v3150 = vunpack.c.l.b16 %v725
        %v3151 = vunpack.c.h.b16 %v725
        %v3152 = vunpack.c.l.b16 %v726
        %v3153 = vunpack.c.h.b16 %v726
        %v3154 = vunpack.c.l.b16 %v727
        %v3155 = vunpack.c.h.b16 %v727
        %v3156 = vunpack.c.l.b16 %v728
        %v3157 = vunpack.c.h.b16 %v728
        %v3158 = vunpack.c.l.b16 %v729
        %v3159 = vunpack.c.h.b16 %v729
        %v3160 = vunpack.c.l.b16 %v730
        %v3161 = vunpack.c.h.b16 %v730
        %v3162 = vunpack.c.l.b16 %v731
        %v3163 = vunpack.c.h.b16 %v731
        %v3164 = vunpack.c.l.b16 %v732
        %v3165 = vunpack.c.h.b16 %v732
        %v3166 = vunpack.c.l.b16 %v733
        %v3167 = vunpack.c.h.b16 %v733
        %v3168 = vunpack.c.l.b16 %v734
        %v3169 = vunpack.c.h.b16 %v734
        %v3170 = vunpack.c.l.b16 %v735
        %v3171 = vunpack.c.h.b16 %v735
        %v3172 = vunpack.c.l.b16 %v736
        %v3173 = vunpack.c.h.b16 %v736
        %v3174 = vunpack.c.l.b16 %v737
        %v3175 = vunpack.c.h.b16 %v737
        %v3176 = vunpack.c.l.b16 %v738
        %v3177 = vunpack.c.h.b16 %v738
        %v3178 = vunpack.c.l.b16 %v739
        %v3179 = vunpack.c.h.b16 %v739
        %v3180 = vunpack.c.l.b16 %v740
        %v3181 = vunpack.c.h.b16 %v740
        %v3182 = vunpack.c.l.b16 %v741
        %v3183 = vunpack.c.h.b16 %v741
        %v3184 = vunpack.c.l.b16 %v742
        %v3185 = vunpack.c.h.b16 %v742
        %v3186 = vunpack.c.l.b16 %v743
        %v3187 = vunpack.c.h.b16 %v743
        %v3188 = vunpack.c.l.b16 %v744
        %v3189 = vunpack.c.h.b16 %v744
        %v3190 = vunpack.c.l.b16 %v745
        %v3191 = vunpack.c.h.b16 %v745
        %v3192 = vunpack.c.l.b16 %v746
        %v3193 = vunpack.c.h.b16 %v746
        %v3194 = vunpack.c.l.b16 %v747
        %v3195 = vunpack.c.h.b16 %v747
        %v3196 = vunpack.c.l.b16 %v748
        %v3197 = vunpack.c.h.b16 %v748
        %v3198 = vunpack.c.l.b16 %v749
        %v3199 = vunpack.c.h.b16 %v749
        %v3200 = vunpack.c.l.b16 %v750
        %v3201 = vunpack.c.h.b16 %v750
        %v3202 = vunpack.c.l.b16 %v751
        %v3203 = vunpack.c.h.b16 %v751
        %v3204 = vunpack.c.l.b16 %v752
        %v3205 = vunpack.c.h.b16 %v752
        %v3206 = vunpack.c.l.b16 %v753
        %v3207 = vunpack.c.h.b16 %v753
        %v3208 = vunpack.c.l.b16 %v754
        %v3209 = vunpack.c.h.b16 %v754
        %v3210 = vunpack.c.l.b16 %v755
        %v3211 = vunpack.c.h.b16 %v755
        %v3212 = vunpack.c.l.b16 %v756
        %v3213 = vunpack.c.h.b16 %v756
        %v3214 = vunpack.c.l.b16 %v757
        %v3215 = vunpack.c.h.b16 %v757
        %v3216 = vunpack.c.l.b16 %v758
        %v3217 = vunpack.c.h.b16 %v758
        %v3218 = vunpack.c.l.b16 %v759
        %v3219 = vunpack.c.h.b16 %v759
        %v3220 = vunpack.c.l.b16 %v760
        %v3221 = vunpack.c.h.b16 %v760
        %v3222 = vunpack.c.l.b16 %v761
        %v3223 = vunpack.c.h.b16 %v761
        %v3224 = vunpack.c.l.b16 %v762
        %v3225 = vunpack.c.h.b16 %v762
        %v3226 = vunpack.c.l.b16 %v763
        %v3227 = vunpack.c.h.b16 %v763
        %v3228 = vunpack.c.l.b16 %v764
        %v3229 = vunpack.c.h.b16 %v764
        %v3230 = vunpack.c.l.b16 %v765
        %v3231 = vunpack.c.h.b16 %v765
        %v3232 = vunpack.c.l.b16 %v766
        %v3233 = vunpack.c.h.b16 %v766
        %v3234 = vunpack.c.l.b16 %v767
        %v3235 = vunpack.c.h.b16 %v767
        %v3236 = vunpack.c.l.b16 %v768
        %v3237 = vunpack.c.h.b16 %v768
        %v3238 = vunpack.c.l.b16 %v769
        %v3239 = vunpack.c.h.b16 %v769
        %v3240 = vunpack.c.l.b16 %v770
        %v3241 = vunpack.c.h.b16 %v770
        %v3242 = vunpack.c.l.b16 %v771
        %v3243 = vunpack.c.h.b16 %v771
        %v3244 = vunpack.c.l.b16 %v772
        %v3245 = vunpack.c.h.b16 %v772
        %v3246 = vunpack.c.l.b16 %v773
        %v3247 = vunpack.c.h.b16 %v773
        %v3248 = vunpack.c.l.b16 %v774
        %v3249 = vunpack.c.h.b16 %v774
        %v3250 = vunpack.c.l.b16 %v775
        %v3251 = vunpack.c.h.b16 %v775
        %v3252 = vunpack.c.l.b16 %v776
        %v3253 = vunpack.c.h.b16 %v776
        %v3254 = vunpack.c.l.b16 %v777
        %v3255 = vunpack.c.h.b16 %v777
        %v3256 = vunpack.c.l.b16 %v778
        %v3257 = vunpack.c.h.b16 %v778
        %v3258 = vunpack.c.l.b16 %v779
        %v3259 = vunpack.c.h.b16 %v779
        %v3260 = vunpack.c.l.b16 %v780
        %v3261 = vunpack.c.h.b16 %v780
        %v3262 = vunpack.c.l.b16 %v781
        %v3263 = vunpack.c.h.b16 %v781
        %v3264 = vunpack.c.l.b16 %v782
        %v3265 = vunpack.c.h.b16 %v782
        %v3266 = vunpack.c.l.b16 %v783
        %v3267 = vunpack.c.h.b16 %v783
        %v3268 = vunpack.c.l.b16 %v784
        %v3269 = vunpack.c.h.b16 %v784
        %v3270 = vunpack.c.l.b16 %v785
        %v3271 = vunpack.c.h.b16 %v785
        %v3272 = vunpack.c.l.b16 %v786
        %v3273 = vunpack.c.h.b16 %v786
        %v3274 = vunpack.c.l.b16 %v787
        %v3275 = vunpack.c.h.b16 %v787
        %v3276 = vunpack.c.l.b16 %v788
        %v3277 = vunpack.c.h.b16 %v788
        %v3278 = vunpack.c.l.b16 %v789
        %v3279 = vunpack.c.h.b16 %v789
        %v3280 = vunpack.c.l.b16 %v790
        %v3281 = vunpack.c.h.b16 %v790
        %v3282 = vunpack.c.l.b16 %v791
        %v3283 = vunpack.c.h.b16 %v791
        %v3284 = vunpack.c.l.b16 %v792
        %v3285 = vunpack.c.h.b16 %v792
        %v3286 = vunpack.c.l.b16 %v793
        %v3287 = vunpack.c.h.b16 %v793
        %v3288 = vunpack.c.l.b16 %v794
        %v3289 = vunpack.c.h.b16 %v794
        %v3290 = vunpack.c.l.b16 %v795
        %v3291 = vunpack.c.h.b16 %v795
        %v3292 = vunpack.c.l.b16 %v796
        %v3293 = vunpack.c.h.b16 %v796
        %v3294 = vunpack.c.l.b16 %v797
        %v3295 = vunpack.c.h.b16 %v797
        %v3296 = vunpack.c.l.b16 %v798
        %v3297 = vunpack.c.h.b16 %v798
        %v3298 = vunpack.c.l.b16 %v799
        %v3299 = vunpack.c.h.b16 %v799
        %v3300 = vunpack.c.l.b16 %v800
        %v3301 = vunpack.c.h.b16 %v800
        %v3302 = vunpack.c.l.b16 %v801
        %v3303 = vunpack.c.h.b16 %v801
        %v3304 = vunpack.c.l.b16 %v802
        %v3305 = vunpack.c.h.b16 %v802
        %v3306 = vunpack.c.l.b16 %v803
        %v3307 = vunpack.c.h.b16 %v803
        %v3308 = vunpack.c.l.b16 %v804
        %v3309 = vunpack.c.h.b16 %v804
        %v3310 = vunpack.c.l.b16 %v805
        %v3311 = vunpack.c.h.b16 %v805
        %v3312 = vunpack.c.l.b16 %v806
        %v3313 = vunpack.c.h.b16 %v806
        %v3314 = vunpack.c.l.b16 %v807
        %v3315 = vunpack.c.h.b16 %v807
        %v3316 = vunpack.c.l.b16 %v808
        %v3317 = vunpack.c.h.b16 %v808
        %v3318 = vunpack.c.l.b16 %v809
        %v3319 = vunpack.c.h.b16 %v809
        %v3320 = vunpack.c.l.b16 %v810
        %v3321 = vunpack.c.h.b16 %v810
        %v3322 = vunpack.c.l.b16 %v811
        %v3323 = vunpack.c.h.b16 %v811
        %v3324 = vunpack.c.l.b16 %v812
        %v3325 = vunpack.c.h.b16 %v812
        %v3326 = vunpack.c.l.b16 %v813
        %v3327 = vunpack.c.h.b16 %v813
        %v3328 = vunpack.c.l.b16 %v814
        %v3329 = vunpack.c.h.b16 %v814
        %v3330 = vunpack.c.l.b16 %v815
        %v3331 = vunpack.c.h.b16 %v815
        %v3332 = vunpack.c.l.b16 %v816
        %v3333 = vunpack.c.h.b16 %v816
        %v3334 = vunpack.c.l.b16 %v817
        %v3335 = vunpack.c.h.b16 %v817
        %v3336 = vunpack.c.l.b16 %v818
        %v3337 = vunpack.c.h.b16 %v818
        %v3338 = vunpack.c.l.b16 %v819
        %v3339 = vunpack.c.h.b16 %v819
        %v3340 = vunpack.c.l.b16 %v820
        %v3341 = vunpack.c.h.b16 %v820
        %v3342 = vunpack.c.l.b16 %v821
        %v3343 = vunpack.c.h.b16 %v821
        %v3344 = vunpack.c.l.b16 %v822
        %v3345 = vunpack.c.h.b16 %v822
        %v3346 = vunpack.c.l.b16 %v823
        %v3347 = vunpack.c.h.b16 %v823
        %v3348 = vunpack.c.l.b16 %v824
        %v3349 = vunpack.c.h.b16 %v824
        %v3350 = vunpack.c.l.b16 %v825
        %v3351 = vunpack.c.h.b16 %v825
        %v3352 = vunpack.c.l.b16 %v826
        %v3353 = vunpack.c.h.b16 %v826
        %v3354 = vunpack.c.l.b16 %v827
        %v3355 = vunpack.c.h.b16 %v827
        %v3356 = vunpack.c.l.b16 %v828
        %v3357 = vunpack.c.h.b16 %v828
        %v3358 = vunpack.c.l.b16 %v829
        %v3359 = vunpack.c.h.b16 %v829
        %v3360 = vunpack.c.l.b16 %v830
        %v3361 = vunpack.c.h.b16 %v830
        %v3362 = vunpack.c.l.b16 %v831
        %v3363 = vunpack.c.h.b16 %v831
        %v3364 = vunpack.c.l.b16 %v832
        %v3365 = vunpack.c.h.b16 %v832
        %v3366 = vunpack.c.l.b16 %v833
        %v3367 = vunpack.c.h.b16 %v833
        %v3368 = vunpack.c.l.b16 %v834
        %v3369 = vunpack.c.h.b16 %v834
        %v3370 = vunpack.c.l.b16 %v835
        %v3371 = vunpack.c.h.b16 %v835
        %v3372 = vunpack.c.l.b16 %v836
        %v3373 = vunpack.c.h.b16 %v836
        %v3374 = vunpack.c.l.b16 %v837
        %v3375 = vunpack.c.h.b16 %v837
        %v3376 = vunpack.c.l.b16 %v838
        %v3377 = vunpack.c.h.b16 %v838
        %v3378 = vunpack.c.l.b16 %v839
        %v3379 = vunpack.c.h.b16 %v839
        %v3380 = vunpack.c.l.b16 %v840
        %v3381 = vunpack.c.h.b16 %v840
        %v3382 = vunpack.c.l.b16 %v841
        %v3383 = vunpack.c.h.b16 %v841
        %v3384 = vunpack.c.l.b16 %v842
        %v3385 = vunpack.c.h.b16 %v842
        %v3386 = vunpack.c.l.b16 %v843
        %v3387 = vunpack.c.h.b16 %v843
        %v3388 = vunpack.c.l.b16 %v844
        %v3389 = vunpack.c.h.b16 %v844
        %v3390 = vunpack.c.l.b16 %v845
        %v3391 = vunpack.c.h.b16 %v845
        %v3392 = vunpack.c.l.b16 %v846
        %v3393 = vunpack.c.h.b16 %v846
        %v3394 = vunpack.c.l.b16 %v847
        %v3395 = vunpack.c.h.b16 %v847
        %v3396 = vunpack.c.l.b16 %v848
        %v3397 = vunpack.c.h.b16 %v848
        %v3398 = vunpack.c.l.b16 %v849
        %v3399 = vunpack.c.h.b16 %v849
        %v3400 = vunpack.c.l.b16 %v850
        %v3401 = vunpack.c.h.b16 %v850
        %v3402 = vunpack.c.l.b16 %v851
        %v3403 = vunpack.c.h.b16 %v851
        %v3404 = vunpack.c.l.b16 %v852
        %v3405 = vunpack.c.h.b16 %v852
        %v3406 = vunpack.c.l.b16 %v853
        %v3407 = vunpack.c.h.b16 %v853
        %v3408 = vunpack.c.l.b16 %v854
        %v3409 = vunpack.c.h.b16 %v854
        %v3410 = vunpack.c.l.b16 %v855
        %v3411 = vunpack.c.h.b16 %v855
        %v3412 = vunpack.c.l.b16 %v856
        %v3413 = vunpack.c.h.b16 %v856
        %v3414 = vunpack.c.l.b16 %v857
        %v3415 = vunpack.c.h.b16 %v857
        %v3416 = vunpack.c.l.b16 %v858
        %v3417 = vunpack.c.h.b16 %v858
        %v3418 = vunpack.c.l.b16 %v859
        %v3419 = vunpack.c.h.b16 %v859
        %v3420 = vunpack.c.l.b16 %v860
        %v3421 = vunpack.c.h.b16 %v860
        %v3422 = vunpack.c.l.b16 %v861
        %v3423 = vunpack.c.h.b16 %v861
        %v3424 = vunpack.c.l.b16 %v862
        %v3425 = vunpack.c.h.b16 %v862
        %v3426 = vunpack.c.l.b16 %v863
        %v3427 = vunpack.c.h.b16 %v863
        %v3428 = vunpack.c.l.b16 %v864
        %v3429 = vunpack.c.h.b16 %v864
        %v3430 = vunpack.c.l.b16 %v865
        %v3431 = vunpack.c.h.b16 %v865
        %v3432 = vunpack.c.l.b16 %v866
        %v3433 = vunpack.c.h.b16 %v866
        %v3434 = vunpack.c.l.b16 %v867
        %v3435 = vunpack.c.h.b16 %v867
        %v3436 = vunpack.c.l.b16 %v868
        %v3437 = vunpack.c.h.b16 %v868
        %v3438 = vunpack.c.l.b16 %v869
        %v3439 = vunpack.c.h.b16 %v869
        %v3440 = vunpack.c.l.b16 %v870
        %v3441 = vunpack.c.h.b16 %v870
        %v3442 = vunpack.c.l.b16 %v871
        %v3443 = vunpack.c.h.b16 %v871
        %v3444 = vunpack.c.l.b16 %v872
        %v3445 = vunpack.c.h.b16 %v872
        %v3446 = vunpack.c.l.b16 %v873
        %v3447 = vunpack.c.h.b16 %v873
        %v3448 = vunpack.c.l.b16 %v874
        %v3449 = vunpack.c.h.b16 %v874
        %v3450 = vunpack.c.l.b16 %v875
        %v3451 = vunpack.c.h.b16 %v875
        %v3452 = vunpack.c.l.b16 %v876
        %v3453 = vunpack.c.h.b16 %v876
        %v3454 = vunpack.c.l.b16 %v877
        %v3455 = vunpack.c.h.b16 %v877
        %v3456 = vunpack.c.l.b16 %v878
        %v3457 = vunpack.c.h.b16 %v878
        %v3458 = vunpack.c.l.b16 %v879
        %v3459 = vunpack.c.h.b16 %v879
        %v3460 = vunpack.c.l.b16 %v880
        %v3461 = vunpack.c.h.b16 %v880
        %v3462 = vunpack.c.l.b16 %v881
        %v3463 = vunpack.c.h.b16 %v881
        %v3464 = vunpack.c.l.b16 %v882
        %v3465 = vunpack.c.h.b16 %v882
        %v3466 = vunpack.c.l.b16 %v883
        %v3467 = vunpack.c.h.b16 %v883
        %v3468 = vunpack.c.l.b16 %v884
        %v3469 = vunpack.c.h.b16 %v884
        %v3470 = vunpack.c.l.b16 %v885
        %v3471 = vunpack.c.h.b16 %v885
        %v3472 = vunpack.c.l.b16 %v886
        %v3473 = vunpack.c.h.b16 %v886
        %v3474 = vunpack.c.l.b16 %v887
        %v3475 = vunpack.c.h.b16 %v887
        %v3476 = vunpack.c.l.b16 %v888
        %v3477 = vunpack.c.h.b16 %v888
        %v3478 = vunpack.c.l.b16 %v889
        %v3479 = vunpack.c.h.b16 %v889
        %v3480 = vunpack.c.l.b16 %v890
        %v3481 = vunpack.c.h.b16 %v890
        %v3482 = vunpack.c.l.b16 %v891
        %v3483 = vunpack.c.h.b16 %v891
        %v3484 = vunpack.c.l.b16 %v892
        %v3485 = vunpack.c.h.b16 %v892
        %v3486 = vunpack.c.l.b16 %v893
        %v3487 = vunpack.c.h.b16 %v893
        %v3488 = vunpack.c.l.b16 %v894
        %v3489 = vunpack.c.h.b16 %v894
        %v3490 = vunpack.c.l.b16 %v895
        %v3491 = vunpack.c.h.b16 %v895
        %v3492 = vunpack.c.l.b16 %v896
        %v3493 = vunpack.c.h.b16 %v896
        %v3494 = vunpack.c.l.b16 %v897
        %v3495 = vunpack.c.h.b16 %v897
        %v3496 = vunpack.c.l.b16 %v898
        %v3497 = vunpack.c.h.b16 %v898
        %v3498 = vunpack.c.l.b16 %v899
        %v3499 = vunpack.c.h.b16 %v899
        %v3500 = vunpack.c.l.b16 %v900
        %v3501 = vunpack.c.h.b16 %v900
        %v3502 = vunpack.c.l.b16 %v901
        %v3503 = vunpack.c.h.b16 %v901
        %v3504 = vunpack.c.l.b16 %v902
        %v3505 = vunpack.c.h.b16 %v902
        %v3506 = vunpack.c.l.b16 %v903
        %v3507 = vunpack.c.h.b16 %v903
        %v3508 = vunpack.c.l.b16 %v904
        %v3509 = vunpack.c.h.b16 %v904
        %v3510 = vunpack.c.l.b16 %v905
        %v3511 = vunpack.c.h.b16 %v905
        %v3512 = vunpack.c.l.b16 %v906
        %v3513 = vunpack.c.h.b16 %v906
        %v3514 = vunpack.c.l.b16 %v907
        %v3515 = vunpack.c.h.b16 %v907
        %v3516 = vunpack.c.l.b16 %v908
        %v3517 = vunpack.c.h.b16 %v908
        %v3518 = vunpack.c.l.b16 %v909
        %v3519 = vunpack.c.h.b16 %v909
        %v3520 = vunpack.c.l.b16 %v910
        %v3521 = vunpack.c.h.b16 %v910
        %v3522 = vunpack.c.l.b16 %v911
        %v3523 = vunpack.c.h.b16 %v911
        %v3524 = vunpack.c.l.b16 %v912
        %v3525 = vunpack.c.h.b16 %v912
        %v3526 = vunpack.c.l.b16 %v913
        %v3527 = vunpack.c.h.b16 %v913
        %v3528 = vunpack.c.l.b16 %v914
        %v3529 = vunpack.c.h.b16 %v914
        %v3530 = vunpack.c.l.b16 %v915
        %v3531 = vunpack.c.h.b16 %v915
        %v3532 = vunpack.c.l.b16 %v916
        %v3533 = vunpack.c.h.b16 %v916
        %v3534 = vunpack.c.l.b16 %v917
        %v3535 = vunpack.c.h.b16 %v917
        %v3536 = vunpack.c.l.b16 %v918
        %v3537 = vunpack.c.h.b16 %v918
        %v3538 = vunpack.c.l.b16 %v919
        %v3539 = vunpack.c.h.b16 %v919
        %v3540 = vunpack.c.l.b16 %v920
        %v3541 = vunpack.c.h.b16 %v920
        %v3542 = vunpack.c.l.b16 %v921
        %v3543 = vunpack.c.h.b16 %v921
        %v3544 = vunpack.c.l.b16 %v922
        %v3545 = vunpack.c.h.b16 %v922
        %v3546 = vunpack.c.l.b16 %v923
        %v3547 = vunpack.c.h.b16 %v923
        %v3548 = vunpack.c.l.b16 %v924
        %v3549 = vunpack.c.h.b16 %v924
        %v3550 = vunpack.c.l.b16 %v925
        %v3551 = vunpack.c.h.b16 %v925
        %v3552 = vunpack.c.l.b16 %v926
        %v3553 = vunpack.c.h.b16 %v926
        %v3554 = vunpack.c.l.b16 %v927
        %v3555 = vunpack.c.h.b16 %v927
        %v3556 = vunpack.c.l.b16 %v928
        %v3557 = vunpack.c.h.b16 %v928
        %v3558 = vunpack.c.l.b16 %v929
        %v3559 = vunpack.c.h.b16 %v929
        %v3560 = vunpack.c.l.b16 %v930
        %v3561 = vunpack.c.h.b16 %v930
        %v3562 = vunpack.c.l.b16 %v931
        %v3563 = vunpack.c.h.b16 %v931
        %v3564 = vunpack.c.l.b16 %v932
        %v3565 = vunpack.c.h.b16 %v932
        %v3566 = vunpack.c.l.b16 %v933
        %v3567 = vunpack.c.h.b16 %v933
        %v3568 = vunpack.c.l.b16 %v934
        %v3569 = vunpack.c.h.b16 %v934
        %v3570 = vunpack.c.l.b16 %v935
        %v3571 = vunpack.c.h.b16 %v935
        %v3572 = vunpack.c.l.b16 %v936
        %v3573 = vunpack.c.h.b16 %v936
        %v3574 = vunpack.c.l.b16 %v937
        %v3575 = vunpack.c.h.b16 %v937
        %v3576 = vunpack.c.l.b16 %v938
        %v3577 = vunpack.c.h.b16 %v938
        %v3578 = vunpack.c.l.b16 %v939
        %v3579 = vunpack.c.h.b16 %v939
        %v3580 = vunpack.c.l.b16 %v940
        %v3581 = vunpack.c.h.b16 %v940
        %v3582 = vunpack.c.l.b16 %v941
        %v3583 = vunpack.c.h.b16 %v941
        %v3584 = vunpack.c.l.b16 %v942
        %v3585 = vunpack.c.h.b16 %v942
        %v3586 = vunpack.c.l.b16 %v943
        %v3587 = vunpack.c.h.b16 %v943
        %v3588 = vunpack.c.l.b16 %v944
        %v3589 = vunpack.c.h.b16 %v944
        %v3590 = vunpack.c.l.b16 %v945
        %v3591 = vunpack.c.h.b16 %v945
        %v3592 = vunpack.c.l.b16 %v946
        %v3593 = vunpack.c.h.b16 %v946
        %v3594 = vunpack.c.l.b16 %v947
        %v3595 = vunpack.c.h.b16 %v947
        %v3596 = vunpack.c.l.b16 %v948
        %v3597 = vunpack.c.h.b16 %v948
        %v3598 = vunpack.c.l.b16 %v949
        %v3599 = vunpack.c.h.b16 %v949
        %v3600 = vunpack.c.l.b16 %v950
        %v3601 = vunpack.c.h.b16 %v950
        %v3602 = vunpack.c.l.b16 %v951
        %v3603 = vunpack.c.h.b16 %v951
        %v3604 = vunpack.c.l.b16 %v952
        %v3605 = vunpack.c.h.b16 %v952
        %v3606 = vunpack.c.l.b16 %v953
        %v3607 = vunpack.c.h.b16 %v953
        %v3608 = vunpack.c.l.b16 %v954
        %v3609 = vunpack.c.h.b16 %v954
        %v3610 = vunpack.c.l.b16 %v955
        %v3611 = vunpack.c.h.b16 %v955
        %v3612 = vunpack.c.l.b16 %v956
        %v3613 = vunpack.c.h.b16 %v956
        %v3614 = vunpack.c.l.b16 %v957
        %v3615 = vunpack.c.h.b16 %v957
        %v3616 = vunpack.c.l.b16 %v958
        %v3617 = vunpack.c.h.b16 %v958
        %v3618 = vunpack.c.l.b16 %v959
        %v3619 = vunpack.c.h.b16 %v959
        %v3620 = vunpack.c.l.b16 %v960
        %v3621 = vunpack.c.h.b16 %v960
        %v3622 = vunpack.c.l.b16 %v961
        %v3623 = vunpack.c.h.b16 %v961
        %v3624 = vunpack.c.l.b16 %v962
        %v3625 = vunpack.c.h.b16 %v962
        %v3626 = vunpack.c.l.b16 %v963
        %v3627 = vunpack.c.h.b16 %v963
        %v3628 = vunpack.c.l.b16 %v964
        %v3629 = vunpack.c.h.b16 %v964
        %v3630 = vunpack.c.l.b16 %v965
        %v3631 = vunpack.c.h.b16 %v965
        %v3632 = vunpack.c.l.b16 %v966
        %v3633 = vunpack.c.h.b16 %v966
        %v3634 = vunpack.c.l.b16 %v967
        %v3635 = vunpack.c.h.b16 %v967
        %v3636 = vunpack.c.l.b16 %v968
        %v3637 = vunpack.c.h.b16 %v968
        %v3638 = vunpack.c.l.b16 %v969
        %v3639 = vunpack.c.h.b16 %v969
        %v3640 = vunpack.c.l.b16 %v970
        %v3641 = vunpack.c.h.b16 %v970
        %v3642 = vunpack.c.l.b16 %v971
        %v3643 = vunpack.c.h.b16 %v971
        %v3644 = vunpack.c.l.b16 %v972
        %v3645 = vunpack.c.h.b16 %v972
        %v3646 = vunpack.c.l.b16 %v973
        %v3647 = vunpack.c.h.b16 %v973
        %v3648 = vunpack.c.l.b16 %v974
        %v3649 = vunpack.c.h.b16 %v974
        %v3650 = vunpack.c.l.b16 %v975
        %v3651 = vunpack.c.h.b16 %v975
        %v3652 = vunpack.c.l.b16 %v976
        %v3653 = vunpack.c.h.b16 %v976
        %v3654 = vunpack.c.l.b16 %v977
        %v3655 = vunpack.c.h.b16 %v977
        %v3656 = vunpack.c.l.b16 %v978
        %v3657 = vunpack.c.h.b16 %v978
        %v3658 = vunpack.c.l.b16 %v979
        %v3659 = vunpack.c.h.b16 %v979
        %v3660 = vunpack.c.l.b16 %v980
        %v3661 = vunpack.c.h.b16 %v980
        %v3662 = vunpack.c.l.b16 %v981
        %v3663 = vunpack.c.h.b16 %v981
        %v3664 = vunpack.c.l.b16 %v982
        %v3665 = vunpack.c.h.b16 %v982
        %v3666 = vunpack.c.l.b16 %v983
        %v3667 = vunpack.c.h.b16 %v983
        %v3668 = vunpack.c.l.b16 %v984
        %v3669 = vunpack.c.h.b16 %v984
        %v3670 = vunpack.c.l.b16 %v985
        %v3671 = vunpack.c.h.b16 %v985
        %v3672 = vunpack.c.l.b16 %v986
        %v3673 = vunpack.c.h.b16 %v986
        %v3674 = vunpack.c.l.b16 %v987
        %v3675 = vunpack.c.h.b16 %v987
        %v3676 = vunpack.c.l.b16 %v988
        %v3677 = vunpack.c.h.b16 %v988
        %v3678 = vunpack.c.l.b16 %v989
        %v3679 = vunpack.c.h.b16 %v989
        %v3680 = vunpack.c.l.b16 %v990
        %v3681 = vunpack.c.h.b16 %v990
        %v3682 = vunpack.c.l.b16 %v991
        %v3683 = vunpack.c.h.b16 %v991
        %v3684 = vunpack.c.l.b16 %v992
        %v3685 = vunpack.c.h.b16 %v992
        %v3686 = vunpack.c.l.b16 %v993
        %v3687 = vunpack.c.h.b16 %v993
        %v3688 = vunpack.c.l.b16 %v994
        %v3689 = vunpack.c.h.b16 %v994
        %v3690 = vunpack.c.l.b16 %v995
        %v3691 = vunpack.c.h.b16 %v995
        %v3692 = vunpack.c.l.b16 %v996
        %v3693 = vunpack.c.h.b16 %v996
        %v3694 = vunpack.c.l.b16 %v997
        %v3695 = vunpack.c.h.b16 %v997
        %v3696 = vunpack.c.l.b16 %v998
        %v3697 = vunpack.c.h.b16 %v998
        %v3698 = vunpack.c.l.b16 %v999
        %v3699 = vunpack.c.h.b16 %v999
        %v3700 = vunpack.c.l.b16 %v1000
        %v3701 = vunpack.c.h.b16 %v1000
        %v3702 = vunpack.c.l.b16 %v1001
        %v3703 = vunpack.c.h.b16 %v1001
        %v3704 = vunpack.c.l.b16 %v1002
        %v3705 = vunpack.c.h.b16 %v1002
        %v3706 = vunpack.c.l.b16 %v1003
        %v3707 = vunpack.c.h.b16 %v1003
        %v3708 = vunpack.c.l.b16 %v1004
        %v3709 = vunpack.c.h.b16 %v1004
        %v3710 = vunpack.c.l.b16 %v1005
        %v3711 = vunpack.c.h.b16 %v1005
        %v3712 = vunpack.c.l.b16 %v1006
        %v3713 = vunpack.c.h.b16 %v1006
        %v3714 = vunpack.c.l.b16 %v1007
        %v3715 = vunpack.c.h.b16 %v1007
        %v3716 = vunpack.c.l.b16 %v1008
        %v3717 = vunpack.c.h.b16 %v1008
        %v3718 = vunpack.c.l.b16 %v1009
        %v3719 = vunpack.c.h.b16 %v1009
        %v3720 = vunpack.c.l.b16 %v1010
        %v3721 = vunpack.c.h.b16 %v1010
        %v3722 = vunpack.c.l.b16 %v1011
        %v3723 = vunpack.c.h.b16 %v1011
        %v3724 = vunpack.c.l.b16 %v1012
        %v3725 = vunpack.c.h.b16 %v1012
        %v3726 = vunpack.c.l.b16 %v1013
        %v3727 = vunpack.c.h.b16 %v1013
        %v3728 = vunpack.c.l.b16 %v1014
        %v3729 = vunpack.c.h.b16 %v1014
        %v3730 = vunpack.c.l.b16 %v1015
        %v3731 = vunpack.c.h.b16 %v1015
        %v3732 = vunpack.c.l.b16 %v1016
        %v3733 = vunpack.c.h.b16 %v1016
        %v3734 = vunpack.c.l.b16 %v1017
        %v3735 = vunpack.c.h.b16 %v1017
        %v3736 = vunpack.c.l.b16 %v1018
        %v3737 = vunpack.c.h.b16 %v1018
        %v3738 = vunpack.c.l.b16 %v1019
        %v3739 = vunpack.c.h.b16 %v1019
        %v3740 = vunpack.c.l.b16 %v1020
        %v3741 = vunpack.c.h.b16 %v1020
        %v3742 = vunpack.c.l.b16 %v1021
        %v3743 = vunpack.c.h.b16 %v1021
        %v3744 = vunpack.c.l.b16 %v1022
        %v3745 = vunpack.c.h.b16 %v1022
        %v3746 = vunpack.c.l.b16 %v1023
        %v3747 = vunpack.c.h.b16 %v1023
        %v3748 = vunpack.c.l.b16 %v1024
        %v3749 = vunpack.c.h.b16 %v1024
        %v3750 = vunpack.c.l.b16 %v1025
        %v3751 = vunpack.c.h.b16 %v1025
        %v3752 = vunpack.c.l.b16 %v1026
        %v3753 = vunpack.c.h.b16 %v1026
        %v3754 = vunpack.c.l.b16 %v1027
        %v3755 = vunpack.c.h.b16 %v1027
        %v3756 = vunpack.c.l.b16 %v1028
        %v3757 = vunpack.c.h.b16 %v1028
        %v3758 = vunpack.c.l.b16 %v1029
        %v3759 = vunpack.c.h.b16 %v1029
        %v3760 = vunpack.c.l.b16 %v1030
        %v3761 = vunpack.c.h.b16 %v1030
        %v3762 = vunpack.c.l.b16 %v1031
        %v3763 = vunpack.c.h.b16 %v1031
        %v3764 = vunpack.c.l.b16 %v1032
        %v3765 = vunpack.c.h.b16 %v1032
        %v3766 = vunpack.c.l.b16 %v1033
        %v3767 = vunpack.c.h.b16 %v1033
        %v3768 = vunpack.c.l.b16 %v1034
        %v3769 = vunpack.c.h.b16 %v1034
        %v3770 = vunpack.c.l.b16 %v1035
        %v3771 = vunpack.c.h.b16 %v1035
        %v3772 = vunpack.c.l.b16 %v1036
        %v3773 = vunpack.c.h.b16 %v1036
        %v3774 = vunpack.c.l.b16 %v1037
        %v3775 = vunpack.c.h.b16 %v1037
        %v3776 = vunpack.c.l.b16 %v1038
        %v3777 = vunpack.c.h.b16 %v1038
        %v3778 = vunpack.c.l.b16 %v1039
        %v3779 = vunpack.c.h.b16 %v1039
        %v3780 = vunpack.c.l.b16 %v1040
        %v3781 = vunpack.c.h.b16 %v1040
        %v3782 = vunpack.c.l.b16 %v1041
        %v3783 = vunpack.c.h.b16 %v1041
        %v3784 = vunpack.c.l.b16 %v1042
        %v3785 = vunpack.c.h.b16 %v1042
        %v3786 = vunpack.c.l.b16 %v1043
        %v3787 = vunpack.c.h.b16 %v1043
        %v3788 = vunpack.c.l.b16 %v1044
        %v3789 = vunpack.c.h.b16 %v1044
        %v3790 = vunpack.c.l.b16 %v1045
        %v3791 = vunpack.c.h.b16 %v1045
        %v3792 = vunpack.c.l.b16 %v1046
        %v3793 = vunpack.c.h.b16 %v1046
        %v3794 = vunpack.c.l.b16 %v1047
        %v3795 = vunpack.c.h.b16 %v1047
        %v3796 = vunpack.c.l.b16 %v1048
        %v3797 = vunpack.c.h.b16 %v1048
        %v3798 = vunpack.c.l.b16 %v1049
        %v3799 = vunpack.c.h.b16 %v1049
        %v3800 = vunpack.c.l.b16 %v1050
        %v3801 = vunpack.c.h.b16 %v1050
        %v3802 = vunpack.c.l.b16 %v1051
        %v3803 = vunpack.c.h.b16 %v1051
        %v3804 = vunpack.c.l.b16 %v1052
        %v3805 = vunpack.c.h.b16 %v1052
        %v3806 = vunpack.c.l.b16 %v1053
        %v3807 = vunpack.c.h.b16 %v1053
        %v3808 = vunpack.c.l.b16 %v1054
        %v3809 = vunpack.c.h.b16 %v1054
        %v3810 = vunpack.c.l.b16 %v1055
        %v3811 = vunpack.c.h.b16 %v1055
        %v3812 = vunpack.c.l.b16 %v1056
        %v3813 = vunpack.c.h.b16 %v1056
        %v3814 = vunpack.c.l.b16 %v1057
        %v3815 = vunpack.c.h.b16 %v1057
        %v3816 = vunpack.c.l.b16 %v1058
        %v3817 = vunpack.c.h.b16 %v1058
        %v3818 = vunpack.c.l.b16 %v1059
        %v3819 = vunpack.c.h.b16 %v1059
        %v3820 = vunpack.c.l.b16 %v1060
        %v3821 = vunpack.c.h.b16 %v1060
        %v3822 = vunpack.c.l.b16 %v1061
        %v3823 = vunpack.c.h.b16 %v1061
        %v3824 = vunpack.c.l.b16 %v1062
        %v3825 = vunpack.c.h.b16 %v1062
        %v3826 = vunpack.c.l.b16 %v1063
        %v3827 = vunpack.c.h.b16 %v1063
        %v3828 = vunpack.c.l.b16 %v1064
        %v3829 = vunpack.c.h.b16 %v1064
        %v3830 = vunpack.c.l.b16 %v1065
        %v3831 = vunpack.c.h.b16 %v1065
        %v3832 = vunpack.c.l.b16 %v1066
        %v3833 = vunpack.c.h.b16 %v1066
        %v3834 = vunpack.c.l.b16 %v1067
        %v3835 = vunpack.c.h.b16 %v1067
        %v3836 = vunpack.c.l.b16 %v1068
        %v3837 = vunpack.c.h.b16 %v1068
        %v3838 = vunpack.c.l.b16 %v1069
        %v3839 = vunpack.c.h.b16 %v1069
        %v3840 = vunpack.c.l.b16 %v1070
        %v3841 = vunpack.c.h.b16 %v1070
        %v3842 = vunpack.c.l.b16 %v1071
        %v3843 = vunpack.c.h.b16 %v1071
        %v3844 = vunpack.c.l.b16 %v1072
        %v3845 = vunpack.c.h.b16 %v1072
        %v3846 = vunpack.c.l.b16 %v1073
        %v3847 = vunpack.c.h.b16 %v1073
        %v3848 = vunpack.c.l.b16 %v1074
        %v3849 = vunpack.c.h.b16 %v1074
        %v3850 = vunpack.c.l.b16 %v1075
        %v3851 = vunpack.c.h.b16 %v1075
        %v3852 = vunpack.c.l.b16 %v1076
        %v3853 = vunpack.c.h.b16 %v1076
        %v3854 = vunpack.c.l.b16 %v1077
        %v3855 = vunpack.c.h.b16 %v1077
        %v3856 = vunpack.c.l.b16 %v1078
        %v3857 = vunpack.c.h.b16 %v1078
        %v3858 = vunpack.c.l.b16 %v1079
        %v3859 = vunpack.c.h.b16 %v1079
        %v3860 = vunpack.c.l.b16 %v1080
        %v3861 = vunpack.c.h.b16 %v1080
        %v3862 = vunpack.c.l.b16 %v1081
        %v3863 = vunpack.c.h.b16 %v1081
        %v3864 = vunpack.c.l.b16 %v1082
        %v3865 = vunpack.c.h.b16 %v1082
        %v3866 = vunpack.c.l.b16 %v1083
        %v3867 = vunpack.c.h.b16 %v1083
        %v3868 = vunpack.c.l.b16 %v1084
        %v3869 = vunpack.c.h.b16 %v1084
        %v3870 = vunpack.c.l.b16 %v1085
        %v3871 = vunpack.c.h.b16 %v1085
        %v3872 = vunpack.c.l.b16 %v1086
        %v3873 = vunpack.c.h.b16 %v1086
        %v3874 = vunpack.c.l.b16 %v1087
        %v3875 = vunpack.c.h.b16 %v1087
        %v3876 = vunpack.c.l.b16 %v1088
        %v3877 = vunpack.c.h.b16 %v1088
        %v3878 = vunpack.c.l.b16 %v1089
        %v3879 = vunpack.c.h.b16 %v1089
        %v3880 = vunpack.c.l.b16 %v1090
        %v3881 = vunpack.c.h.b16 %v1090
        %v3882 = vunpack.c.l.b16 %v1091
        %v3883 = vunpack.c.h.b16 %v1091
        %v3884 = vunpack.c.l.b16 %v1092
        %v3885 = vunpack.c.h.b16 %v1092
        %v3886 = vunpack.c.l.b16 %v1093
        %v3887 = vunpack.c.h.b16 %v1093
        %v3888 = vunpack.c.l.b16 %v1094
        %v3889 = vunpack.c.h.b16 %v1094
        %v3890 = vunpack.c.l.b16 %v1095
        %v3891 = vunpack.c.h.b16 %v1095
        %v3892 = vunpack.c.l.b16 %v1096
        %v3893 = vunpack.c.h.b16 %v1096
        %v3894 = vunpack.c.l.b16 %v1097
        %v3895 = vunpack.c.h.b16 %v1097
        %v3896 = vunpack.c.l.b16 %v1098
        %v3897 = vunpack.c.h.b16 %v1098
        %v3898 = vunpack.c.l.b16 %v1099
        %v3899 = vunpack.c.h.b16 %v1099
        %v3900 = vunpack.c.l.b16 %v1100
        %v3901 = vunpack.c.h.b16 %v1100
        %v3902 = vunpack.c.l.b16 %v1101
        %v3903 = vunpack.c.h.b16 %v1101
        %v3904 = vunpack.c.l.b16 %v1102
        %v3905 = vunpack.c.h.b16 %v1102
        %v3906 = vunpack.c.l.b16 %v1103
        %v3907 = vunpack.c.h.b16 %v1103
        %v3908 = vunpack.c.l.b16 %v1104
        %v3909 = vunpack.c.h.b16 %v1104
        %v3910 = vunpack.c.l.b16 %v1105
        %v3911 = vunpack.c.h.b16 %v1105
        %v3912 = vunpack.c.l.b16 %v1106
        %v3913 = vunpack.c.h.b16 %v1106
        %v3914 = vunpack.c.l.b16 %v1107
        %v3915 = vunpack.c.h.b16 %v1107
        %v3916 = vunpack.c.l.b16 %v1108
        %v3917 = vunpack.c.h.b16 %v1108
        %v3918 = vunpack.c.l.b16 %v1109
        %v3919 = vunpack.c.h.b16 %v1109
        %v3920 = vunpack.c.l.b16 %v1110
        %v3921 = vunpack.c.h.b16 %v1110
        %v3922 = vunpack.c.l.b16 %v1111
        %v3923 = vunpack.c.h.b16 %v1111
        %v3924 = vunpack.c.l.b16 %v1112
        %v3925 = vunpack.c.h.b16 %v1112
        %v3926 = vunpack.c.l.b16 %v1113
        %v3927 = vunpack.c.h.b16 %v1113
        %v3928 = vunpack.c.l.b16 %v1114
        %v3929 = vunpack.c.h.b16 %v1114
        %v3930 = vunpack.c.l.b16 %v1115
        %v3931 = vunpack.c.h.b16 %v1115
        %v3932 = vunpack.c.l.b16 %v1116
        %v3933 = vunpack.c.h.b16 %v1116
        %v3934 = vunpack.c.l.b16 %v1117
        %v3935 = vunpack.c.h.b16 %v1117
        %v3936 = vunpack.c.l.b16 %v1118
        %v3937 = vunpack.c.h.b16 %v1118
        %v3938 = vunpack.c.l.b16 %v1119
        %v3939 = vunpack.c.h.b16 %v1119
        %v3940 = vunpack.c.l.b16 %v1120
        %v3941 = vunpack.c.h.b16 %v1120
        %v3942 = vunpack.c.l.b16 %v1121
        %v3943 = vunpack.c.h.b16 %v1121
        %v3944 = vunpack.c.l.b16 %v1122
        %v3945 = vunpack.c.h.b16 %v1122
        %v3946 = vunpack.c.l.b16 %v1123
        %v3947 = vunpack.c.h.b16 %v1123
        %v3948 = vunpack.c.l.b16 %v1124
        %v3949 = vunpack.c.h.b16 %v1124
        %v3950 = vunpack.c.l.b16 %v1125
        %v3951 = vunpack.c.h.b16 %v1125
        %v3952 = vunpack.c.l.b16 %v1126
        %v3953 = vunpack.c.h.b16 %v1126
        %v3954 = vunpack.c.l.b16 %v1127
        %v3955 = vunpack.c.h.b16 %v1127
        %v3956 = vunpack.c.l.b16 %v1128
        %v3957 = vunpack.c.h.b16 %v1128
        %v3958 = vunpack.c.l.b16 %v1129
        %v3959 = vunpack.c.h.b16 %v1129
        %v3960 = vunpack.c.l.b16 %v1130
        %v3961 = vunpack.c.h.b16 %v1130
        %v3962 = vunpack.c.l.b16 %v1131
        %v3963 = vunpack.c.h.b16 %v1131
        %v3964 = vunpack.c.l.b16 %v1132
        %v3965 = vunpack.c.h.b16 %v1132
        %v3966 = vunpack.c.l.b16 %v1133
        %v3967 = vunpack.c.h.b16 %v1133
        %v3968 = vunpack.c.l.b16 %v1134
        %v3969 = vunpack.c.h.b16 %v1134
        %v3970 = vunpack.c.l.b16 %v1135
        %v3971 = vunpack.c.h.b16 %v1135
        %v3972 = vunpack.c.l.b16 %v1136
        %v3973 = vunpack.c.h.b16 %v1136
        %v3974 = vunpack.c.l.b16 %v1137
        %v3975 = vunpack.c.h.b16 %v1137
        %v3976 = vunpack.c.l.b16 %v1138
        %v3977 = vunpack.c.h.b16 %v1138
        %v3978 = vunpack.c.l.b16 %v1139
        %v3979 = vunpack.c.h.b16 %v1139
        %v3980 = vunpack.c.l.b16 %v1140
        %v3981 = vunpack.c.h.b16 %v1140
        %v3982 = vunpack.c.l.b16 %v1141
        %v3983 = vunpack.c.h.b16 %v1141
        %v3984 = vunpack.c.l.b16 %v1142
        %v3985 = vunpack.c.h.b16 %v1142
        %v3986 = vunpack.c.l.b16 %v1143
        %v3987 = vunpack.c.h.b16 %v1143
        %v3988 = vunpack.c.l.b16 %v1144
        %v3989 = vunpack.c.h.b16 %v1144
        %v3990 = vunpack.c.l.b16 %v1145
        %v3991 = vunpack.c.h.b16 %v1145
        %v3992 = vunpack.c.l.b16 %v1146
        %v3993 = vunpack.c.h.b16 %v1146
        %v3994 = vunpack.c.l.b16 %v1147
        %v3995 = vunpack.c.h.b16 %v1147
        %v3996 = vunpack.c.l.b16 %v1148
        %v3997 = vunpack.c.h.b16 %v1148
        %v3998 = vunpack.c.l.b16 %v1149
        %v3999 = vunpack.c.h.b16 %v1149
        %v4000 = vunpack.c.l.b16 %v1150
        %v4001 = vunpack.c.h.b16 %v1150
        %v4002 = vunpack.c.l.b16 %v1151
        %v4003 = vunpack.c.h.b16 %v1151
        %v4004 = vunpack.c.l.b16 %v1152
        %v4005 = vunpack.c.h.b16 %v1152
        %v4006 = vunpack.c.l.b16 %v1153
        %v4007 = vunpack.c.h.b16 %v1153
        %v4008 = vunpack.c.l.b16 %v1154
        %v4009 = vunpack.c.h.b16 %v1154
        %v4010 = vunpack.c.l.b16 %v1155
        %v4011 = vunpack.c.h.b16 %v1155
        %v4012 = vunpack.c.l.b16 %v1156
        %v4013 = vunpack.c.h.b16 %v1156
        %v4014 = vunpack.c.l.b16 %v1157
        %v4015 = vunpack.c.h.b16 %v1157
        %v4016 = vunpack.c.l.b16 %v1158
        %v4017 = vunpack.c.h.b16 %v1158
        %v4018 = vunpack.c.l.b16 %v1159
        %v4019 = vunpack.c.h.b16 %v1159
        %v4020 = vunpack.c.l.b16 %v1160
        %v4021 = vunpack.c.h.b16 %v1160
        %v4022 = vunpack.c.l.b16 %v1161
        %v4023 = vunpack.c.h.b16 %v1161
        %v4024 = vunpack.c.l.b16 %v1162
        %v4025 = vunpack.c.h.b16 %v1162
        %v4026 = vunpack.c.l.b16 %v1163
        %v4027 = vunpack.c.h.b16 %v1163
        %v4028 = vunpack.c.l.b16 %v1164
        %v4029 = vunpack.c.h.b16 %v1164
        %v4030 = vunpack.c.l.b16 %v1165
        %v4031 = vunpack.c.h.b16 %v1165
        %v4032 = vunpack.c.l.b16 %v1166
        %v4033 = vunpack.c.h.b16 %v1166
        %v4034 = vunpack.c.l.b16 %v1167
        %v4035 = vunpack.c.h.b16 %v1167
        %v4036 = vunpack.c.l.b16 %v1168
        %v4037 = vunpack.c.h.b16 %v1168
        %v4038 = vunpack.c.l.b16 %v1169
        %v4039 = vunpack.c.h.b16 %v1169
        %v4040 = vunpack.c.l.b16 %v1170
        %v4041 = vunpack.c.h.b16 %v1170
        %v4042 = vunpack.c.l.b16 %v1171
        %v4043 = vunpack.c.h.b16 %v1171
        %v4044 = vunpack.c.l.b16 %v1172
        %v4045 = vunpack.c.h.b16 %v1172
        %v4046 = vunpack.c.l.b16 %v1173
        %v4047 = vunpack.c.h.b16 %v1173
        %v4048 = vunpack.c.l.b16 %v1174
        %v4049 = vunpack.c.h.b16 %v1174
        %v4050 = vunpack.c.l.b16 %v1175
        %v4051 = vunpack.c.h.b16 %v1175
        %v4052 = vunpack.c.l.b16 %v1176
        %v4053 = vunpack.c.h.b16 %v1176
        %v4054 = vunpack.c.l.b16 %v1177
        %v4055 = vunpack.c.h.b16 %v1177
        %v4056 = vunpack.c.l.b16 %v1178
        %v4057 = vunpack.c.h.b16 %v1178
        %v4058 = vunpack.c.l.b16 %v1179
        %v4059 = vunpack.c.h.b16 %v1179
        %v4060 = vunpack.c.l.b16 %v1180
        %v4061 = vunpack.c.h.b16 %v1180
        %v4062 = vunpack.c.l.b16 %v1181
        %v4063 = vunpack.c.h.b16 %v1181
        %v4064 = vunpack.c.l.b16 %v1182
        %v4065 = vunpack.c.h.b16 %v1182
        %v4066 = vunpack.c.l.b16 %v1183
        %v4067 = vunpack.c.h.b16 %v1183
        %v4068 = vunpack.c.l.b16 %v1184
        %v4069 = vunpack.c.h.b16 %v1184
        %v4070 = vunpack.c.l.b16 %v1185
        %v4071 = vunpack.c.h.b16 %v1185
        %v4072 = vunpack.c.l.b16 %v1186
        %v4073 = vunpack.c.h.b16 %v1186
        %v4074 = vunpack.c.l.b16 %v1187
        %v4075 = vunpack.c.h.b16 %v1187
        %v4076 = vunpack.c.l.b16 %v1188
        %v4077 = vunpack.c.h.b16 %v1188
        %v4078 = vunpack.c.l.b16 %v1189
        %v4079 = vunpack.c.h.b16 %v1189
        %v4080 = vunpack.c.l.b16 %v1190
        %v4081 = vunpack.c.h.b16 %v1190
        %v4082 = vunpack.c.l.b16 %v1191
        %v4083 = vunpack.c.h.b16 %v1191
        %v4084 = vunpack.c.l.b16 %v1192
        %v4085 = vunpack.c.h.b16 %v1192
        %v4086 = vunpack.c.l.b16 %v1193
        %v4087 = vunpack.c.h.b16 %v1193
        %v4088 = vunpack.c.l.b16 %v1194
        %v4089 = vunpack.c.h.b16 %v1194
        %v4090 = vunpack.c.l.b16 %v1195
        %v4091 = vunpack.c.h.b16 %v1195
        %v4092 = vunpack.c.l.b16 %v1196
        %v4093 = vunpack.c.h.b16 %v1196
        %v4094 = vunpack.c.l.b16 %v1197
        %v4095 = vunpack.c.h.b16 %v1197
        %v4096 = vunpack.c.l.b16 %v1198
        %v4097 = vunpack.c.h.b16 %v1198
        %v4098 = vunpack.c.l.b16 %v1199
        %v4099 = vunpack.c.h.b16 %v1199
        %v4100 = vunpack.c.l.b16 %v1200
        %v4101 = vunpack.c.h.b16 %v1200
        %v4102 = vunpack.c.l.b16 %v1201
        %v4103 = vunpack.c.h.b16 %v1201
        %v4104 = vunpack.c.l.b16 %v1202
        %v4105 = vunpack.c.h.b16 %v1202
        %v4106 = vunpack.c.l.b16 %v1203
        %v4107 = vunpack.c.h.b16 %v1203
        %v4108 = vunpack.c.l.b16 %v1204
        %v4109 = vunpack.c.h.b16 %v1204
        %v4110 = vunpack.c.l.b16 %v1205
        %v4111 = vunpack.c.h.b16 %v1205
        %v4112 = vunpack.c.l.b16 %v1206
        %v4113 = vunpack.c.h.b16 %v1206
        %v4114 = vunpack.c.l.b16 %v1207
        %v4115 = vunpack.c.h.b16 %v1207
        %v4116 = vunpack.c.l.b16 %v1208
        %v4117 = vunpack.c.h.b16 %v1208
        %v4118 = vunpack.c.l.b16 %v1209
        %v4119 = vunpack.c.h.b16 %v1209
        %v4120 = vunpack.c.l.b16 %v1210
        %v4121 = vunpack.c.h.b16 %v1210
        %v4122 = vunpack.c.l.b16 %v1211
        %v4123 = vunpack.c.h.b16 %v1211
        %v4124 = vunpack.c.l.b16 %v1212
        %v4125 = vunpack.c.h.b16 %v1212
        %v4126 = vunpack.c.l.b16 %v1213
        %v4127 = vunpack.c.h.b16 %v1213
        %v4128 = vunpack.c.l.b16 %v1214
        %v4129 = vunpack.c.h.b16 %v1214
        %v4130 = vunpack.c.l.b16 %v1215
        %v4131 = vunpack.c.h.b16 %v1215
        %v4132 = vunpack.c.l.b16 %v1216
        %v4133 = vunpack.c.h.b16 %v1216
        %v4134 = vunpack.c.l.b16 %v1217
        %v4135 = vunpack.c.h.b16 %v1217
        %v4136 = vunpack.c.l.b16 %v1218
        %v4137 = vunpack.c.h.b16 %v1218
        %v4138 = vunpack.c.l.b16 %v1219
        %v4139 = vunpack.c.h.b16 %v1219
        %v4140 = vunpack.c.l.b16 %v1220
        %v4141 = vunpack.c.h.b16 %v1220
        %v4142 = vunpack.c.l.b16 %v1221
        %v4143 = vunpack.c.h.b16 %v1221
        %v4144 = vunpack.c.l.b16 %v1222
        %v4145 = vunpack.c.h.b16 %v1222
        %v4146 = vunpack.c.l.b16 %v1223
        %v4147 = vunpack.c.h.b16 %v1223
        %v4148 = vunpack.c.l.b16 %v1224
        %v4149 = vunpack.c.h.b16 %v1224
        %v4150 = vunpack.c.l.b16 %v1225
        %v4151 = vunpack.c.h.b16 %v1225
        %v4152 = vunpack.c.l.b16 %v1226
        %v4153 = vunpack.c.h.b16 %v1226
        %v4154 = vunpack.c.l.b16 %v1227
        %v4155 = vunpack.c.h.b16 %v1227
        %v4156 = vunpack.c.l.b16 %v1228
        %v4157 = vunpack.c.h.b16 %v1228
        %v4158 = vunpack.c.l.b16 %v1229
        %v4159 = vunpack.c.h.b16 %v1229
        %v4160 = vunpack.c.l.b16 %v1230
        %v4161 = vunpack.c.h.b16 %v1230
        %v4162 = vunpack.c.l.b16 %v1231
        %v4163 = vunpack.c.h.b16 %v1231
        %v4164 = vunpack.c.l.b16 %v1232
        %v4165 = vunpack.c.h.b16 %v1232
        %v4166 = vunpack.c.l.b16 %v1233
        %v4167 = vunpack.c.h.b16 %v1233
        %v4168 = vunpack.c.l.b16 %v1234
        %v4169 = vunpack.c.h.b16 %v1234
        %v4170 = vunpack.c.l.b16 %v1235
        %v4171 = vunpack.c.h.b16 %v1235
        %v4172 = vunpack.c.l.b16 %v1236
        %v4173 = vunpack.c.h.b16 %v1236
        %v4174 = vunpack.c.l.b16 %v1237
        %v4175 = vunpack.c.h.b16 %v1237
        %v4176 = vunpack.c.l.b16 %v1238
        %v4177 = vunpack.c.h.b16 %v1238
        %v4178 = vunpack.c.l.b16 %v1239
        %v4179 = vunpack.c.h.b16 %v1239
        %v4180 = vunpack.c.l.b16 %v1240
        %v4181 = vunpack.c.h.b16 %v1240
        %v4182 = vunpack.c.l.b16 %v1241
        %v4183 = vunpack.c.h.b16 %v1241
        %v4184 = vunpack.c.l.b16 %v1242
        %v4185 = vunpack.c.h.b16 %v1242
        %v4186 = vunpack.c.l.b16 %v1243
        %v4187 = vunpack.c.h.b16 %v1243
        %v4188 = vunpack.c.l.b16 %v1244
        %v4189 = vunpack.c.h.b16 %v1244
        %v4190 = vunpack.c.l.b16 %v1245
        %v4191 = vunpack.c.h.b16 %v1245
        %v4192 = vunpack.c.l.b16 %v1246
        %v4193 = vunpack.c.h.b16 %v1246
        %v4194 = vunpack.c.l.b16 %v1247
        %v4195 = vunpack.c.h.b16 %v1247
        %v4196 = vunpack.c.l.b16 %v1248
        %v4197 = vunpack.c.h.b16 %v1248
        %v4198 = vunpack.c.l.b16 %v1249
        %v4199 = vunpack.c.h.b16 %v1249
        %v4200 = vunpack.c.l.b16 %v1250
        %v4201 = vunpack.c.h.b16 %v1250
        %v4202 = vunpack.c.l.b16 %v1251
        %v4203 = vunpack.c.h.b16 %v1251
        %v4204 = vunpack.c.l.b16 %v1252
        %v4205 = vunpack.c.h.b16 %v1252
        %v4206 = vunpack.c.l.b16 %v1253
        %v4207 = vunpack.c.h.b16 %v1253
        %v4208 = vunpack.c.l.b16 %v1254
        %v4209 = vunpack.c.h.b16 %v1254
        %v4210 = vunpack.c.l.b16 %v1255
        %v4211 = vunpack.c.h.b16 %v1255
        %v4212 = vunpack.c.l.b16 %v1256
        %v4213 = vunpack.c.h.b16 %v1256
        %v4214 = vunpack.c.l.b16 %v1257
        %v4215 = vunpack.c.h.b16 %v1257
        %v4216 = vunpack.c.l.b16 %v1258
        %v4217 = vunpack.c.h.b16 %v1258
        %v4218 = vunpack.c.l.b16 %v1259
        %v4219 = vunpack.c.h.b16 %v1259
        %v4220 = vunpack.c.l.b16 %v1260
        %v4221 = vunpack.c.h.b16 %v1260
        %v4222 = vunpack.c.l.b16 %v1261
        %v4223 = vunpack.c.h.b16 %v1261
        %v4224 = vunpack.c.l.b16 %v1262
        %v4225 = vunpack.c.h.b16 %v1262
        %v4226 = vunpack.c.l.b16 %v1263
        %v4227 = vunpack.c.h.b16 %v1263
        %v4228 = vunpack.c.l.b16 %v1264
        %v4229 = vunpack.c.h.b16 %v1264
        %v4230 = vunpack.c.l.b16 %v1265
        %v4231 = vunpack.c.h.b16 %v1265
        %v4232 = vunpack.c.l.b16 %v1266
        %v4233 = vunpack.c.h.b16 %v1266
        %v4234 = vunpack.c.l.b16 %v1267
        %v4235 = vunpack.c.h.b16 %v1267
        %v4236 = vunpack.c.l.b16 %v1268
        %v4237 = vunpack.c.h.b16 %v1268
        %v4238 = vunpack.c.l.b16 %v1269
        %v4239 = vunpack.c.h.b16 %v1269
        %v4240 = vunpack.c.l.b16 %v1270
        %v4241 = vunpack.c.h.b16 %v1270
        %v4242 = vunpack.c.l.b16 %v1271
        %v4243 = vunpack.c.h.b16 %v1271
        %v4244 = vunpack.c.l.b16 %v1272
        %v4245 = vunpack.c.h.b16 %v1272
        %v4246 = vunpack.c.l.b16 %v1273
        %v4247 = vunpack.c.h.b16 %v1273
        %v4248 = vunpack.c.l.b16 %v1274
        %v4249 = vunpack.c.h.b16 %v1274
        %v4250 = vunpack.c.l.b16 %v1275
        %v4251 = vunpack.c.h.b16 %v1275
        %v4252 = vunpack.c.l.b16 %v1276
        %v4253 = vunpack.c.h.b16 %v1276
        %v4254 = vunpack.c.l.b16 %v1277
        %v4255 = vunpack.c.h.b16 %v1277
        %v4256 = vunpack.c.l.b16 %v1278
        %v4257 = vunpack.c.h.b16 %v1278
        %v4258 = vunpack.c.l.b16 %v1279
        %v4259 = vunpack.c.h.b16 %v1279
        %v4260 = vunpack.c.l.b16 %v1280
        %v4261 = vunpack.c.h.b16 %v1280
        %v4262 = vunpack.c.l.b16 %v1281
        %v4263 = vunpack.c.h.b16 %v1281
        %v4264 = vunpack.c.l.b16 %v1282
        %v4265 = vunpack.c.h.b16 %v1282
        %v4266 = vunpack.c.l.b16 %v1283
        %v4267 = vunpack.c.h.b16 %v1283
        %v4268 = vunpack.c.l.b16 %v1284
        %v4269 = vunpack.c.h.b16 %v1284
        %v4270 = vunpack.c.l.b16 %v1285
        %v4271 = vunpack.c.h.b16 %v1285
        %v4272 = vunpack.c.l.b16 %v1286
        %v4273 = vunpack.c.h.b16 %v1286
        %v4274 = vunpack.c.l.b16 %v1287
        %v4275 = vunpack.c.h.b16 %v1287
        %v4276 = vunpack.c.l.b16 %v1288
        %v4277 = vunpack.c.h.b16 %v1288
        %v4278 = vunpack.c.l.b16 %v1289
        %v4279 = vunpack.c.h.b16 %v1289
        %v4280 = vunpack.c.l.b16 %v1290
        %v4281 = vunpack.c.h.b16 %v1290
        %v4282 = vunpack.c.l.b16 %v1291
        %v4283 = vunpack.c.h.b16 %v1291
        %v4284 = vunpack.c.l.b16 %v1292
        %v4285 = vunpack.c.h.b16 %v1292
        %v4286 = vunpack.c.l.b16 %v1293
        %v4287 = vunpack.c.h.b16 %v1293
        %v4288 = vunpack.c.l.b16 %v1294
        %v4289 = vunpack.c.h.b16 %v1294
        %v4290 = vunpack.c.l.b16 %v1295
        %v4291 = vunpack.c.h.b16 %v1295
        %v4292 = vunpack.c.l.b16 %v1296
        %v4293 = vunpack.c.h.b16 %v1296
        %v4294 = vunpack.c.l.b16 %v1297
        %v4295 = vunpack.c.h.b16 %v1297
        %v4296 = vunpack.c.l.b16 %v1298
        %v4297 = vunpack.c.h.b16 %v1298
        %v4298 = vunpack.c.l.b16 %v1299
        %v4299 = vunpack.c.h.b16 %v1299
        %v4300 = vunpack.c.l.b16 %v1300
        %v4301 = vunpack.c.h.b16 %v1300
        %v4302 = vunpack.c.l.b16 %v1301
        %v4303 = vunpack.c.h.b16 %v1301
        %v4304 = vunpack.c.l.b16 %v1302
        %v4305 = vunpack.c.h.b16 %v1302
        %v4306 = vunpack.c.l.b16 %v1303
        %v4307 = vunpack.c.h.b16 %v1303
        %v4308 = vunpack.c.l.b16 %v1304
        %v4309 = vunpack.c.h.b16 %v1304
        %v4310 = vunpack.c.l.b16 %v1305
        %v4311 = vunpack.c.h.b16 %v1305
        %v4312 = vunpack.c.l.b16 %v1306
        %v4313 = vunpack.c.h.b16 %v1306
        %v4314 = vunpack.c.l.b16 %v1307
        %v4315 = vunpack.c.h.b16 %v1307
        %v4316 = vunpack.c.l.b16 %v1308
        %v4317 = vunpack.c.h.b16 %v1308
        %v4318 = vunpack.c.l.b16 %v1309
        %v4319 = vunpack.c.h.b16 %v1309
        %v4320 = vunpack.c.l.b16 %v1310
        %v4321 = vunpack.c.h.b16 %v1310
        %v4322 = vunpack.c.l.b16 %v1311
        %v4323 = vunpack.c.h.b16 %v1311
        %v4324 = vunpack.c.l.b16 %v1312
        %v4325 = vunpack.c.h.b16 %v1312
        %v4326 = vunpack.c.l.b16 %v1313
        %v4327 = vunpack.c.h.b16 %v1313
        %v4328 = vunpack.c.l.b16 %v1314
        %v4329 = vunpack.c.h.b16 %v1314
        %v4330 = vunpack.c.l.b16 %v1315
        %v4331 = vunpack.c.h.b16 %v1315
        %v4332 = vunpack.c.l.b16 %v1316
        %v4333 = vunpack.c.h.b16 %v1316
        %v4334 = vunpack.c.l.b16 %v1317
        %v4335 = vunpack.c.h.b16 %v1317
        %v4336 = vunpack.c.l.b16 %v1318
        %v4337 = vunpack.c.h.b16 %v1318
        %v4338 = vunpack.c.l.b16 %v1319
        %v4339 = vunpack.c.h.b16 %v1319
        %v4340 = vunpack.c.l.b16 %v1320
        %v4341 = vunpack.c.h.b16 %v1320
        %v4342 = vunpack.c.l.b16 %v1321
        %v4343 = vunpack.c.h.b16 %v1321
        %v4344 = vunpack.c.l.b16 %v1322
        %v4345 = vunpack.c.h.b16 %v1322
        %v4346 = vunpack.c.l.b16 %v1323
        %v4347 = vunpack.c.h.b16 %v1323
        %v4348 = vunpack.c.l.b16 %v1324
        %v4349 = vunpack.c.h.b16 %v1324
        %v4350 = vunpack.c.l.b16 %v1325
        %v4351 = vunpack.c.h.b16 %v1325
        %v4352 = vunpack.c.l.b16 %v1326
        %v4353 = vunpack.c.h.b16 %v1326
        %v4354 = vunpack.c.l.b16 %v1327
        %v4355 = vunpack.c.h.b16 %v1327
        %v4356 = vunpack.c.l.b16 %v1328
        %v4357 = vunpack.c.h.b16 %v1328
        %v4358 = vunpack.c.l.b16 %v1329
        %v4359 = vunpack.c.h.b16 %v1329
        %v4360 = vunpack.c.l.b16 %v1330
        %v4361 = vunpack.c.h.b16 %v1330
        %v4362 = vunpack.c.l.b16 %v1331
        %v4363 = vunpack.c.h.b16 %v1331
        %v4364 = vunpack.c.l.b16 %v1332
        %v4365 = vunpack.c.h.b16 %v1332
        %v4366 = vunpack.c.l.b16 %v1333
        %v4367 = vunpack.c.h.b16 %v1333
        %v4368 = vunpack.c.l.b16 %v1334
        %v4369 = vunpack.c.h.b16 %v1334
        %v4370 = vunpack.c.l.b16 %v1335
        %v4371 = vunpack.c.h.b16 %v1335
        %v4372 = vunpack.c.l.b16 %v1336
        %v4373 = vunpack.c.h.b16 %v1336
        %v4374 = vunpack.c.l.b16 %v1337
        %v4375 = vunpack.c.h.b16 %v1337
        %v4376 = vunpack.c.l.b16 %v1338
        %v4377 = vunpack.c.h.b16 %v1338
        %v4378 = vunpack.c.l.b16 %v1339
        %v4379 = vunpack.c.h.b16 %v1339
        %v4380 = vunpack.c.l.b16 %v1340
        %v4381 = vunpack.c.h.b16 %v1340
        %v4382 = vunpack.c.l.b16 %v1341
        %v4383 = vunpack.c.h.b16 %v1341
        %v4384 = vunpack.c.l.b16 %v1342
        %v4385 = vunpack.c.h.b16 %v1342
        %v4386 = vunpack.c.l.b16 %v1343
        %v4387 = vunpack.c.h.b16 %v1343
        %v4388 = vunpack.c.l.b16 %v1344
        %v4389 = vunpack.c.h.b16 %v1344
        %v4390 = vunpack.c.l.b16 %v1345
        %v4391 = vunpack.c.h.b16 %v1345
        %v4392 = vunpack.c.l.b16 %v1346
        %v4393 = vunpack.c.h.b16 %v1346
        %v4394 = vunpack.c.l.b16 %v1347
        %v4395 = vunpack.c.h.b16 %v1347
        %v4396 = vunpack.c.l.b16 %v1348
        %v4397 = vunpack.c.h.b16 %v1348
        %v4398 = vunpack.c.l.b16 %v1349
        %v4399 = vunpack.c.h.b16 %v1349
        %v4400 = vunpack.c.l.b16 %v1350
        %v4401 = vunpack.c.h.b16 %v1350
        %v4402 = vunpack.c.l.b16 %v1351
        %v4403 = vunpack.c.h.b16 %v1351
        %v4404 = vunpack.c.l.b16 %v1352
        %v4405 = vunpack.c.h.b16 %v1352
        %v4406 = vunpack.c.l.b16 %v1353
        %v4407 = vunpack.c.h.b16 %v1353
        %v4408 = vunpack.c.l.b16 %v1354
        %v4409 = vunpack.c.h.b16 %v1354
        %v4410 = vunpack.c.l.b16 %v1355
        %v4411 = vunpack.c.h.b16 %v1355
        %v4412 = vunpack.c.l.b16 %v1356
        %v4413 = vunpack.c.h.b16 %v1356
        %v4414 = vunpack.c.l.b16 %v1357
        %v4415 = vunpack.c.h.b16 %v1357
        %v4416 = vunpack.c.l.b16 %v1358
        %v4417 = vunpack.c.h.b16 %v1358
        %v4418 = vunpack.c.l.b16 %v1359
        %v4419 = vunpack.c.h.b16 %v1359
        %v4420 = vunpack.c.l.b16 %v1360
        %v4421 = vunpack.c.h.b16 %v1360
        %v4422 = vunpack.c.l.b16 %v1361
        %v4423 = vunpack.c.h.b16 %v1361
        %v4424 = vunpack.c.l.b16 %v1362
        %v4425 = vunpack.c.h.b16 %v1362
        %v4426 = vunpack.c.l.b16 %v1363
        %v4427 = vunpack.c.h.b16 %v1363
        %v4428 = vunpack.c.l.b16 %v1364
        %v4429 = vunpack.c.h.b16 %v1364
        %v4430 = vunpack.c.l.b16 %v1365
        %v4431 = vunpack.c.h.b16 %v1365
        %v4432 = vunpack.c.l.b16 %v1366
        %v4433 = vunpack.c.h.b16 %v1366
        %v4434 = vunpack.c.l.b16 %v1367
        %v4435 = vunpack.c.h.b16 %v1367
        %v4436 = vunpack.c.l.b16 %v1368
        %v4437 = vunpack.c.h.b16 %v1368
        %v4438 = vunpack.c.l.b16 %v1369
        %v4439 = vunpack.c.h.b16 %v1369
        %v4440 = vunpack.c.l.b16 %v1370
        %v4441 = vunpack.c.h.b16 %v1370
        %v4442 = vunpack.c.l.b16 %v1371
        %v4443 = vunpack.c.h.b16 %v1371
        %v4444 = vunpack.c.l.b16 %v1372
        %v4445 = vunpack.c.h.b16 %v1372
        %v4446 = vunpack.c.l.b16 %v1373
        %v4447 = vunpack.c.h.b16 %v1373
        %v4448 = vunpack.c.l.b16 %v1374
        %v4449 = vunpack.c.h.b16 %v1374
        %v4450 = vunpack.c.l.b16 %v1375
        %v4451 = vunpack.c.h.b16 %v1375
        %v4452 = vunpack.c.l.b16 %v1376
        %v4453 = vunpack.c.h.b16 %v1376
        %v4454 = vunpack.c.l.b16 %v1377
        %v4455 = vunpack.c.h.b16 %v1377
        %v4456 = vunpack.c.l.b16 %v1378
        %v4457 = vunpack.c.h.b16 %v1378
        %v4458 = vunpack.c.l.b16 %v1379
        %v4459 = vunpack.c.h.b16 %v1379
        %v4460 = vunpack.c.l.b16 %v1380
        %v4461 = vunpack.c.h.b16 %v1380
        %v4462 = vunpack.c.l.b16 %v1381
        %v4463 = vunpack.c.h.b16 %v1381
        %v4464 = vunpack.c.l.b16 %v1382
        %v4465 = vunpack.c.h.b16 %v1382
        %v4466 = vunpack.c.l.b16 %v1383
        %v4467 = vunpack.c.h.b16 %v1383
        %v4468 = vunpack.c.l.b16 %v1384
        %v4469 = vunpack.c.h.b16 %v1384
        %v4470 = vunpack.c.l.b16 %v1385
        %v4471 = vunpack.c.h.b16 %v1385
        %v4472 = vunpack.c.l.b16 %v1386
        %v4473 = vunpack.c.h.b16 %v1386
        %v4474 = vunpack.c.l.b16 %v1387
        %v4475 = vunpack.c.h.b16 %v1387
        %v4476 = vunpack.c.l.b16 %v1388
        %v4477 = vunpack.c.h.b16 %v1388
        %v4478 = vunpack.c.l.b16 %v1389
        %v4479 = vunpack.c.h.b16 %v1389
        %v4480 = vunpack.c.l.b16 %v1390
        %v4481 = vunpack.c.h.b16 %v1390
        %v4482 = vunpack.c.l.b16 %v1391
        %v4483 = vunpack.c.h.b16 %v1391
        %v4484 = vunpack.c.l.b16 %v1392
        %v4485 = vunpack.c.h.b16 %v1392
        %v4486 = vunpack.c.l.b16 %v1393
        %v4487 = vunpack.c.h.b16 %v1393
        %v4488 = vunpack.c.l.b16 %v1394
        %v4489 = vunpack.c.h.b16 %v1394
        %v4490 = vunpack.c.l.b16 %v1395
        %v4491 = vunpack.c.h.b16 %v1395
        %v4492 = vunpack.c.l.b16 %v1396
        %v4493 = vunpack.c.h.b16 %v1396
        %v4494 = vunpack.c.l.b16 %v1397
        %v4495 = vunpack.c.h.b16 %v1397
        %v4496 = vunpack.c.l.b16 %v1398
        %v4497 = vunpack.c.h.b16 %v1398
        %v4498 = vunpack.c.l.b16 %v1399
        %v4499 = vunpack.c.h.b16 %v1399
        %v4500 = vunpack.c.l.b16 %v1400
        %v4501 = vunpack.c.h.b16 %v1400
        %v4502 = vunpack.c.l.b16 %v1401
        %v4503 = vunpack.c.h.b16 %v1401
        %v4504 = vunpack.c.l.b16 %v1402
        %v4505 = vunpack.c.h.b16 %v1402
        %v4506 = vunpack.c.l.b16 %v1403
        %v4507 = vunpack.c.h.b16 %v1403
        %v4508 = vunpack.c.l.b16 %v1404
        %v4509 = vunpack.c.h.b16 %v1404
        %v4510 = vunpack.c.l.b16 %v1405
        %v4511 = vunpack.c.h.b16 %v1405
        %v4512 = vunpack.c.l.b16 %v1406
        %v4513 = vunpack.c.h.b16 %v1406
        %v4514 = vunpack.c.l.b16 %v1407
        %v4515 = vunpack.c.h.b16 %v1407
        %v4516 = vunpack.c.l.b16 %v1408
        %v4517 = vunpack.c.h.b16 %v1408
        %v4518 = vunpack.c.l.b16 %v1409
        %v4519 = vunpack.c.h.b16 %v1409
        %v4520 = vunpack.c.l.b16 %v1410
        %v4521 = vunpack.c.h.b16 %v1410
        %v4522 = vunpack.c.l.b16 %v1411
        %v4523 = vunpack.c.h.b16 %v1411
        %v4524 = vunpack.c.l.b16 %v1412
        %v4525 = vunpack.c.h.b16 %v1412
        %v4526 = vunpack.c.l.b16 %v1413
        %v4527 = vunpack.c.h.b16 %v1413
        %v4528 = vunpack.c.l.b16 %v1414
        %v4529 = vunpack.c.h.b16 %v1414
        %v4530 = vunpack.c.l.b16 %v1415
        %v4531 = vunpack.c.h.b16 %v1415
        %v4532 = vunpack.c.l.b16 %v1416
        %v4533 = vunpack.c.h.b16 %v1416
        %v4534 = vunpack.c.l.b16 %v1417
        %v4535 = vunpack.c.h.b16 %v1417
        %v4536 = vunpack.c.l.b16 %v1418
        %v4537 = vunpack.c.h.b16 %v1418
        %v4538 = vunpack.c.l.b16 %v1419
        %v4539 = vunpack.c.h.b16 %v1419
        %v4540 = vunpack.c.l.b16 %v1420
        %v4541 = vunpack.c.h.b16 %v1420
        %v4542 = vunpack.c.l.b16 %v1421
        %v4543 = vunpack.c.h.b16 %v1421
        %v4544 = vunpack.c.l.b16 %v1422
        %v4545 = vunpack.c.h.b16 %v1422
        %v4546 = vunpack.c.l.b16 %v1423
        %v4547 = vunpack.c.h.b16 %v1423
        %v4548 = vunpack.c.l.b16 %v1424
        %v4549 = vunpack.c.h.b16 %v1424
        %v4550 = vunpack.c.l.b16 %v1425
        %v4551 = vunpack.c.h.b16 %v1425
        %v4552 = vunpack.c.l.b16 %v1426
        %v4553 = vunpack.c.h.b16 %v1426
        %v4554 = vunpack.c.l.b16 %v1427
        %v4555 = vunpack.c.h.b16 %v1427
        %v4556 = vunpack.c.l.b16 %v1428
        %v4557 = vunpack.c.h.b16 %v1428
        %v4558 = vunpack.c.l.b16 %v1429
        %v4559 = vunpack.c.h.b16 %v1429
        %v4560 = vunpack.c.l.b16 %v1430
        %v4561 = vunpack.c.h.b16 %v1430
        %v4562 = vunpack.c.l.b16 %v1431
        %v4563 = vunpack.c.h.b16 %v1431
        %v4564 = vunpack.c.l.b16 %v1432
        %v4565 = vunpack.c.h.b16 %v1432
        %v4566 = vunpack.c.l.b16 %v1433
        %v4567 = vunpack.c.h.b16 %v1433
        %v4568 = vunpack.c.l.b16 %v1434
        %v4569 = vunpack.c.h.b16 %v1434
        %v4570 = vunpack.c.l.b16 %v1435
        %v4571 = vunpack.c.h.b16 %v1435
        %v4572 = vunpack.c.l.b16 %v1436
        %v4573 = vunpack.c.h.b16 %v1436
        %v4574 = vunpack.c.l.b16 %v1437
        %v4575 = vunpack.c.h.b16 %v1437
        %v4576 = vunpack.c.l.b16 %v1438
        %v4577 = vunpack.c.h.b16 %v1438
        %v4578 = vunpack.c.l.b16 %v1439
        %v4579 = vunpack.c.h.b16 %v1439
        %v4580 = vunpack.c.l.b16 %v1440
        %v4581 = vunpack.c.h.b16 %v1440
        %v4582 = vunpack.c.l.b16 %v1441
        %v4583 = vunpack.c.h.b16 %v1441
        %v4584 = vunpack.c.l.b16 %v1442
        %v4585 = vunpack.c.h.b16 %v1442
        %v4586 = vunpack.c.l.b16 %v1443
        %v4587 = vunpack.c.h.b16 %v1443
        %v4588 = vunpack.c.l.b16 %v1444
        %v4589 = vunpack.c.h.b16 %v1444
        %v4590 = vunpack.c.l.b16 %v1445
        %v4591 = vunpack.c.h.b16 %v1445
        %v4592 = vunpack.c.l.b16 %v1446
        %v4593 = vunpack.c.h.b16 %v1446
        %v4594 = vunpack.c.l.b16 %v1447
        %v4595 = vunpack.c.h.b16 %v1447
        %v4596 = vunpack.c.l.b16 %v1448
        %v4597 = vunpack.c.h.b16 %v1448
        %v4598 = vunpack.c.l.b16 %v1449
        %v4599 = vunpack.c.h.b16 %v1449
        %v4600 = vunpack.c.l.b16 %v1450
        %v4601 = vunpack.c.h.b16 %v1450
        %v4602 = vunpack.c.l.b16 %v1451
        %v4603 = vunpack.c.h.b16 %v1451
        %v4604 = vunpack.c.l.b16 %v1452
        %v4605 = vunpack.c.h.b16 %v1452
        %v4606 = vunpack.c.l.b16 %v1453
        %v4607 = vunpack.c.h.b16 %v1453
        %v4608 = vunpack.c.l.b16 %v1454
        %v4609 = vunpack.c.h.b16 %v1454
        %v4610 = vunpack.c.l.b16 %v1455
        %v4611 = vunpack.c.h.b16 %v1455
        %v4612 = vunpack.c.l.b16 %v1456
        %v4613 = vunpack.c.h.b16 %v1456
        %v4614 = vunpack.c.l.b16 %v1457
        %v4615 = vunpack.c.h.b16 %v1457
        %v4616 = vunpack.c.l.b16 %v1458
        %v4617 = vunpack.c.h.b16 %v1458
        %v4618 = vunpack.c.l.b16 %v1459
        %v4619 = vunpack.c.h.b16 %v1459
        %v4620 = vunpack.c.l.b16 %v1460
        %v4621 = vunpack.c.h.b16 %v1460
        %v4622 = vunpack.c.l.b16 %v1461
        %v4623 = vunpack.c.h.b16 %v1461
        %v4624 = vunpack.c.l.b16 %v1462
        %v4625 = vunpack.c.h.b16 %v1462
        %v4626 = vunpack.c.l.b16 %v1463
        %v4627 = vunpack.c.h.b16 %v1463
        %v4628 = vunpack.c.l.b16 %v1464
        %v4629 = vunpack.c.h.b16 %v1464
        %v4630 = vunpack.c.l.b16 %v1465
        %v4631 = vunpack.c.h.b16 %v1465
        %v4632 = vunpack.c.l.b16 %v1466
        %v4633 = vunpack.c.h.b16 %v1466
        %v4634 = vunpack.c.l.b16 %v1467
        %v4635 = vunpack.c.h.b16 %v1467
        %v4636 = vunpack.c.l.b16 %v1468
        %v4637 = vunpack.c.h.b16 %v1468
        %v4638 = vunpack.c.l.b16 %v1469
        %v4639 = vunpack.c.h.b16 %v1469
        %v4640 = vunpack.c.l.b16 %v1470
        %v4641 = vunpack.c.h.b16 %v1470
        %v4642 = vunpack.c.l.b16 %v1471
        %v4643 = vunpack.c.h.b16 %v1471
        %v4644 = vunpack.c.l.b16 %v1472
        %v4645 = vunpack.c.h.b16 %v1472
        %v4646 = vunpack.c.l.b16 %v1473
        %v4647 = vunpack.c.h.b16 %v1473
        %v4648 = vunpack.c.l.b16 %v1474
        %v4649 = vunpack.c.h.b16 %v1474
        %v4650 = vunpack.c.l.b16 %v1475
        %v4651 = vunpack.c.h.b16 %v1475
        %v4652 = vunpack.c.l.b16 %v1476
        %v4653 = vunpack.c.h.b16 %v1476
        %v4654 = vunpack.c.l.b16 %v1477
        %v4655 = vunpack.c.h.b16 %v1477
        %v4656 = vunpack.c.l.b16 %v1478
        %v4657 = vunpack.c.h.b16 %v1478
        %v4658 = vunpack.c.l.b16 %v1479
        %v4659 = vunpack.c.h.b16 %v1479
        %v4660 = vunpack.c.l.b16 %v1480
        %v4661 = vunpack.c.h.b16 %v1480
        %v4662 = vunpack.c.l.b16 %v1481
        %v4663 = vunpack.c.h.b16 %v1481
        %v4664 = vunpack.c.l.b16 %v1482
        %v4665 = vunpack.c.h.b16 %v1482
        %v4666 = vunpack.c.l.b16 %v1483
        %v4667 = vunpack.c.h.b16 %v1483
        %v4668 = vunpack.c.l.b16 %v1484
        %v4669 = vunpack.c.h.b16 %v1484
        %v4670 = vunpack.c.l.b16 %v1485
        %v4671 = vunpack.c.h.b16 %v1485
        %v4672 = vpack.c.b16 %v2602, %v2592
        %v4673 = vpack.c.b16 %v2603, %v2593
        %v4674 = vpack.c.b16 %v2604, %v2594
        %v4675 = vpack.c.b16 %v2605, %v2595
        %v4676 = vpack.c.b16 %v2606, %v2596
        %v4677 = vpack.c.b16 %v2607, %v2597
        %v4678 = vpack.c.b16 %v2608, %v2598
        %v4679 = vpack.c.b16 %v2609, %v2599
        %v4680 = vpack.c.b16 %v2610, %v2600
        %v4681 = vpack.c.b16 %v2611, %v2601
        %v4682 = vpack.c.b16 %v2622, %v2612
        %v4683 = vpack.c.b16 %v2623, %v2613
        %v4684 = vpack.c.b16 %v2624, %v2614
        %v4685 = vpack.c.b16 %v2625, %v2615
        %v4686 = vpack.c.b16 %v2626, %v2616
        %v4687 = vpack.c.b16 %v2627, %v2617
        %v4688 = vpack.c.b16 %v2628, %v2618
        %v4689 = vpack.c.b16 %v2629, %v2619
        %v4690 = vpack.c.b16 %v2630, %v2620
        %v4691 = vpack.c.b16 %v2631, %v2621
        %v4692 = vpack.c.b16 %v2642, %v2632
        %v4693 = vpack.c.b16 %v2643, %v2633
        %v4694 = vpack.c.b16 %v2644, %v2634
        %v4695 = vpack.c.b16 %v2645, %v2635
        %v4696 = vpack.c.b16 %v2646, %v2636
        %v4697 = vpack.c.b16 %v2647, %v2637
        %v4698 = vpack.c.b16 %v2648, %v2638
        %v4699 = vpack.c.b16 %v2649, %v2639
        %v4700 = vpack.c.b16 %v2650, %v2640
        %v4701 = vpack.c.b16 %v2651, %v2641
        %v4702 = vpack.c.b16 %v2662, %v2652
        %v4703 = vpack.c.b16 %v2663, %v2653
        %v4704 = vpack.c.b16 %v2664, %v2654
        %v4705 = vpack.c.b16 %v2665, %v2655
        %v4706 = vpack.c.b16 %v2666, %v2656
        %v4707 = vpack.c.b16 %v2667, %v2657
        %v4708 = vpack.c.b16 %v2668, %v2658
        %v4709 = vpack.c.b16 %v2669, %v2659
        %v4710 = vpack.c.b16 %v2670, %v2660
        %v4711 = vpack.c.b16 %v2671, %v2661
        %v4712 = vpack.c.b16 %v2682, %v2672
        %v4713 = vpack.c.b16 %v2683, %v2673
        %v4714 = vpack.c.b16 %v2684, %v2674
        %v4715 = vpack.c.b16 %v2685, %v2675
        %v4716 = vpack.c.b16 %v2686, %v2676
        %v4717 = vpack.c.b16 %v2687, %v2677
        %v4718 = vpack.c.b16 %v2688, %v2678
        %v4719 = vpack.c.b16 %v2689, %v2679
        %v4720 = vpack.c.b16 %v2690, %v2680
        %v4721 = vpack.c.b16 %v2691, %v2681
        %v4722 = vpack.c.b16 %v2702, %v2692
        %v4723 = vpack.c.b16 %v2703, %v2693
        %v4724 = vpack.c.b16 %v2704, %v2694
        %v4725 = vpack.c.b16 %v2705, %v2695
        %v4726 = vpack.c.b16 %v2706, %v2696
        %v4727 = vpack.c.b16 %v2707, %v2697
        %v4728 = vpack.c.b16 %v2708, %v2698
        %v4729 = vpack.c.b16 %v2709, %v2699
        %v4730 = vpack.c.b16 %v2710, %v2700
        %v4731 = vpack.c.b16 %v2711, %v2701
        %v4732 = vpack.c.b16 %v2722, %v2712
        %v4733 = vpack.c.b16 %v2723, %v2713
        %v4734 = vpack.c.b16 %v2724, %v2714
        %v4735 = vpack.c.b16 %v2725, %v2715
        %v4736 = vpack.c.b16 %v2726, %v2716
        %v4737 = vpack.c.b16 %v2727, %v2717
        %v4738 = vpack.c.b16 %v2728, %v2718
        %v4739 = vpack.c.b16 %v2729, %v2719
        %v4740 = vpack.c.b16 %v2730, %v2720
        %v4741 = vpack.c.b16 %v2731, %v2721
        %v4742 = vpack.c.b16 %v2742, %v2732
        %v4743 = vpack.c.b16 %v2743, %v2733
        %v4744 = vpack.c.b16 %v2744, %v2734
        %v4745 = vpack.c.b16 %v2745, %v2735
        %v4746 = vpack.c.b16 %v2746, %v2736
        %v4747 = vpack.c.b16 %v2747, %v2737
        %v4748 = vpack.c.b16 %v2748, %v2738
        %v4749 = vpack.c.b16 %v2749, %v2739
        %v4750 = vpack.c.b16 %v2750, %v2740
        %v4751 = vpack.c.b16 %v2751, %v2741
        %v4752 = vpack.c.b16 %v2762, %v2752
        %v4753 = vpack.c.b16 %v2763, %v2753
        %v4754 = vpack.c.b16 %v2764, %v2754
        %v4755 = vpack.c.b16 %v2765, %v2755
        %v4756 = vpack.c.b16 %v2766, %v2756
        %v4757 = vpack.c.b16 %v2767, %v2757
        %v4758 = vpack.c.b16 %v2768, %v2758
        %v4759 = vpack.c.b16 %v2769, %v2759
        %v4760 = vpack.c.b16 %v2770, %v2760
        %v4761 = vpack.c.b16 %v2771, %v2761
        %v4762 = vpack.c.b16 %v2782, %v2772
        %v4763 = vpack.c.b16 %v2783, %v2773
        %v4764 = vpack.c.b16 %v2784, %v2774
        %v4765 = vpack.c.b16 %v2785, %v2775
        %v4766 = vpack.c.b16 %v2786, %v2776
        %v4767 = vpack.c.b16 %v2787, %v2777
        %v4768 = vpack.c.b16 %v2788, %v2778
        %v4769 = vpack.c.b16 %v2789, %v2779
        %v4770 = vpack.c.b16 %v2790, %v2780
        %v4771 = vpack.c.b16 %v2791, %v2781
        %v4772 = vpack.c.b16 %v2802, %v2792
        %v4773 = vpack.c.b16 %v2803, %v2793
        %v4774 = vpack.c.b16 %v2804, %v2794
        %v4775 = vpack.c.b16 %v2805, %v2795
        %v4776 = vpack.c.b16 %v2806, %v2796
        %v4777 = vpack.c.b16 %v2807, %v2797
        %v4778 = vpack.c.b16 %v2808, %v2798
        %v4779 = vpack.c.b16 %v2809, %v2799
        %v4780 = vpack.c.b16 %v2810, %v2800
        %v4781 = vpack.c.b16 %v2811, %v2801
        %v4782 = vpack.c.b16 %v2822, %v2812
        %v4783 = vpack.c.b16 %v2823, %v2813
        %v4784 = vpack.c.b16 %v2824, %v2814
        %v4785 = vpack.c.b16 %v2825, %v2815
        %v4786 = vpack.c.b16 %v2826, %v2816
        %v4787 = vpack.c.b16 %v2827, %v2817
        %v4788 = vpack.c.b16 %v2828, %v2818
        %v4789 = vpack.c.b16 %v2829, %v2819
        %v4790 = vpack.c.b16 %v2830, %v2820
        %v4791 = vpack.c.b16 %v2831, %v2821
        %v4792 = vpack.c.b16 %v2842, %v2832
        %v4793 = vpack.c.b16 %v2843, %v2833
        %v4794 = vpack.c.b16 %v2844, %v2834
        %v4795 = vpack.c.b16 %v2845, %v2835
        %v4796 = vpack.c.b16 %v2846, %v2836
        %v4797 = vpack.c.b16 %v2847, %v2837
        %v4798 = vpack.c.b16 %v2848, %v2838
        %v4799 = vpack.c.b16 %v2849, %v2839
        %v4800 = vpack.c.b16 %v2850, %v2840
        %v4801 = vpack.c.b16 %v2851, %v2841
        %v4802 = vpack.c.b16 %v2862, %v2852
        %v4803 = vpack.c.b16 %v2863, %v2853
        %v4804 = vpack.c.b16 %v2864, %v2854
        %v4805 = vpack.c.b16 %v2865, %v2855
        %v4806 = vpack.c.b16 %v2866, %v2856
        %v4807 = vpack.c.b16 %v2867, %v2857
        %v4808 = vpack.c.b16 %v2868, %v2858
        %v4809 = vpack.c.b16 %v2869, %v2859
        %v4810 = vpack.c.b16 %v2870, %v2860
        %v4811 = vpack.c.b16 %v2871, %v2861
        %v4812 = vpack.c.b16 %v2882, %v2872
        %v4813 = vpack.c.b16 %v2883, %v2873
        %v4814 = vpack.c.b16 %v2884, %v2874
        %v4815 = vpack.c.b16 %v2885, %v2875
        %v4816 = vpack.c.b16 %v2886, %v2876
        %v4817 = vpack.c.b16 %v2887, %v2877
        %v4818 = vpack.c.b16 %v2888, %v2878
        %v4819 = vpack.c.b16 %v2889, %v2879
        %v4820 = vpack.c.b16 %v2890, %v2880
        %v4821 = vpack.c.b16 %v2891, %v2881
        %v4822 = vpack.c.b16 %v2902, %v2892
        %v4823 = vpack.c.b16 %v2903, %v2893
        %v4824 = vpack.c.b16 %v2904, %v2894
        %v4825 = vpack.c.b16 %v2905, %v2895
        %v4826 = vpack.c.b16 %v2906, %v2896
        %v4827 = vpack.c.b16 %v2907, %v2897
        %v4828 = vpack.c.b16 %v2908, %v2898
        %v4829 = vpack.c.b16 %v2909, %v2899
        %v4830 = vpack.c.b16 %v2910, %v2900
        %v4831 = vpack.c.b16 %v2911, %v2901
        %v4832 = vpack.c.b16 %v2922, %v2912
        %v4833 = vpack.c.b16 %v2923, %v2913
        %v4834 = vpack.c.b16 %v2924, %v2914
        %v4835 = vpack.c.b16 %v2925, %v2915
        %v4836 = vpack.c.b16 %v2926, %v2916
        %v4837 = vpack.c.b16 %v2927, %v2917
        %v4838 = vpack.c.b16 %v2928, %v2918
        %v4839 = vpack.c.b16 %v2929, %v2919
        %v4840 = vpack.c.b16 %v2930, %v2920
        %v4841 = vpack.c.b16 %v2931, %v2921
        %v4842 = vpack.c.b16 %v2942, %v2932
        %v4843 = vpack.c.b16 %v2943, %v2933
        %v4844 = vpack.c.b16 %v2944, %v2934
        %v4845 = vpack.c.b16 %v2945, %v2935
        %v4846 = vpack.c.b16 %v2946, %v2936
        %v4847 = vpack.c.b16 %v2947, %v2937
        %v4848 = vpack.c.b16 %v2948, %v2938
        %v4849 = vpack.c.b16 %v2949, %v2939
        %v4850 = vpack.c.b16 %v2950, %v2940
        %v4851 = vpack.c.b16 %v2951, %v2941
        %v4852 = vpack.c.b16 %v2962, %v2952
        %v4853 = vpack.c.b16 %v2963, %v2953
        %v4854 = vpack.c.b16 %v2964, %v2954
        %v4855 = vpack.c.b16 %v2965, %v2955
        %v4856 = vpack.c.b16 %v2966, %v2956
        %v4857 = vpack.c.b16 %v2967, %v2957
        %v4858 = vpack.c.b16 %v2968, %v2958
        %v4859 = vpack.c.b16 %v2969, %v2959
        %v4860 = vpack.c.b16 %v2970, %v2960
        %v4861 = vpack.c.b16 %v2971, %v2961
        %v4862 = vpack.c.b16 %v2982, %v2972
        %v4863 = vpack.c.b16 %v2983, %v2973
        %v4864 = vpack.c.b16 %v2984, %v2974
        %v4865 = vpack.c.b16 %v2985, %v2975
        %v4866 = vpack.c.b16 %v2986, %v2976
        %v4867 = vpack.c.b16 %v2987, %v2977
        %v4868 = vpack.c.b16 %v2988, %v2978
        %v4869 = vpack.c.b16 %v2989, %v2979
        %v4870 = vpack.c.b16 %v2990, %v2980
        %v4871 = vpack.c.b16 %v2991, %v2981
        %v4872 = vpack.c.b16 %v3002, %v2992
        %v4873 = vpack.c.b16 %v3003, %v2993
        %v4874 = vpack.c.b16 %v3004, %v2994
        %v4875 = vpack.c.b16 %v3005, %v2995
        %v4876 = vpack.c.b16 %v3006, %v2996
        %v4877 = vpack.c.b16 %v3007, %v2997
        %v4878 = vpack.c.b16 %v3008, %v2998
        %v4879 = vpack.c.b16 %v3009, %v2999
        %v4880 = vpack.c.b16 %v3010, %v3000
        %v4881 = vpack.c.b16 %v3011, %v3001
        %v4882 = vpack.c.b16 %v3022, %v3012
        %v4883 = vpack.c.b16 %v3023, %v3013
        %v4884 = vpack.c.b16 %v3024, %v3014
        %v4885 = vpack.c.b16 %v3025, %v3015
        %v4886 = vpack.c.b16 %v3026, %v3016
        %v4887 = vpack.c.b16 %v3027, %v3017
        %v4888 = vpack.c.b16 %v3028, %v3018
        %v4889 = vpack.c.b16 %v3029, %v3019
        %v4890 = vpack.c.b16 %v3030, %v3020
        %v4891 = vpack.c.b16 %v3031, %v3021
        %v4892 = vpack.c.b16 %v3042, %v3032
        %v4893 = vpack.c.b16 %v3043, %v3033
        %v4894 = vpack.c.b16 %v3044, %v3034
        %v4895 = vpack.c.b16 %v3045, %v3035
        %v4896 = vpack.c.b16 %v3046, %v3036
        %v4897 = vpack.c.b16 %v3047, %v3037
        %v4898 = vpack.c.b16 %v3048, %v3038
        %v4899 = vpack.c.b16 %v3049, %v3039
        %v4900 = vpack.c.b16 %v3050, %v3040
        %v4901 = vpack.c.b16 %v3051, %v3041
        %v4902 = vpack.c.b16 %v3062, %v3052
        %v4903 = vpack.c.b16 %v3063, %v3053
        %v4904 = vpack.c.b16 %v3064, %v3054
        %v4905 = vpack.c.b16 %v3065, %v3055
        %v4906 = vpack.c.b16 %v3066, %v3056
        %v4907 = vpack.c.b16 %v3067, %v3057
        %v4908 = vpack.c.b16 %v3068, %v3058
        %v4909 = vpack.c.b16 %v3069, %v3059
        %v4910 = vpack.c.b16 %v3070, %v3060
        %v4911 = vpack.c.b16 %v3071, %v3061
        %v4912 = vpack.c.b16 %v3082, %v3072
        %v4913 = vpack.c.b16 %v3083, %v3073
        %v4914 = vpack.c.b16 %v3084, %v3074
        %v4915 = vpack.c.b16 %v3085, %v3075
        %v4916 = vpack.c.b16 %v3086, %v3076
        %v4917 = vpack.c.b16 %v3087, %v3077
        %v4918 = vpack.c.b16 %v3088, %v3078
        %v4919 = vpack.c.b16 %v3089, %v3079
        %v4920 = vpack.c.b16 %v3090, %v3080
        %v4921 = vpack.c.b16 %v3091, %v3081
        %v4922 = vpack.c.b16 %v3102, %v3092
        %v4923 = vpack.c.b16 %v3103, %v3093
        %v4924 = vpack.c.b16 %v3104, %v3094
        %v4925 = vpack.c.b16 %v3105, %v3095
        %v4926 = vpack.c.b16 %v3106, %v3096
        %v4927 = vpack.c.b16 %v3107, %v3097
        %v4928 = vpack.c.b16 %v3108, %v3098
        %v4929 = vpack.c.b16 %v3109, %v3099
        %v4930 = vpack.c.b16 %v3110, %v3100
        %v4931 = vpack.c.b16 %v3111, %v3101
        %v4932 = vpack.c.b16 %v3122, %v3112
        %v4933 = vpack.c.b16 %v3123, %v3113
        %v4934 = vpack.c.b16 %v3124, %v3114
        %v4935 = vpack.c.b16 %v3125, %v3115
        %v4936 = vpack.c.b16 %v3126, %v3116
        %v4937 = vpack.c.b16 %v3127, %v3117
        %v4938 = vpack.c.b16 %v3128, %v3118
        %v4939 = vpack.c.b16 %v3129, %v3119
        %v4940 = vpack.c.b16 %v3130, %v3120
        %v4941 = vpack.c.b16 %v3131, %v3121
        %v4942 = vpack.c.b16 %v3142, %v3132
        %v4943 = vpack.c.b16 %v3143, %v3133
        %v4944 = vpack.c.b16 %v3144, %v3134
        %v4945 = vpack.c.b16 %v3145, %v3135
        %v4946 = vpack.c.b16 %v3146, %v3136
        %v4947 = vpack.c.b16 %v3147, %v3137
        %v4948 = vpack.c.b16 %v3148, %v3138
        %v4949 = vpack.c.b16 %v3149, %v3139
        %v4950 = vpack.c.b16 %v3150, %v3140
        %v4951 = vpack.c.b16 %v3151, %v3141
        %v4952 = vpack.c.b16 %v3162, %v3152
        %v4953 = vpack.c.b16 %v3163, %v3153
        %v4954 = vpack.c.b16 %v3164, %v3154
        %v4955 = vpack.c.b16 %v3165, %v3155
        %v4956 = vpack.c.b16 %v3166, %v3156
        %v4957 = vpack.c.b16 %v3167, %v3157
        %v4958 = vpack.c.b16 %v3168, %v3158
        %v4959 = vpack.c.b16 %v3169, %v3159
        %v4960 = vpack.c.b16 %v3170, %v3160
        %v4961 = vpack.c.b16 %v3171, %v3161
        %v4962 = vpack.c.b16 %v3182, %v3172
        %v4963 = vpack.c.b16 %v3183, %v3173
        %v4964 = vpack.c.b16 %v3184, %v3174
        %v4965 = vpack.c.b16 %v3185, %v3175
        %v4966 = vpack.c.b16 %v3186, %v3176
        %v4967 = vpack.c.b16 %v3187, %v3177
        %v4968 = vpack.c.b16 %v3188, %v3178
        %v4969 = vpack.c.b16 %v3189, %v3179
        %v4970 = vpack.c.b16 %v3190, %v3180
        %v4971 = vpack.c.b16 %v3191, %v3181
        %v4972 = vpack.c.b16 %v3202, %v3192
        %v4973 = vpack.c.b16 %v3203, %v3193
        %v4974 = vpack.c.b16 %v3204, %v3194
        %v4975 = vpack.c.b16 %v3205, %v3195
        %v4976 = vpack.c.b16 %v3206, %v3196
        %v4977 = vpack.c.b16 %v3207, %v3197
        %v4978 = vpack.c.b16 %v3208, %v3198
        %v4979 = vpack.c.b16 %v3209, %v3199
        %v4980 = vpack.c.b16 %v3210, %v3200
        %v4981 = vpack.c.b16 %v3211, %v3201
        %v4982 = vpack.c.b16 %v3222, %v3212
        %v4983 = vpack.c.b16 %v3223, %v3213
        %v4984 = vpack.c.b16 %v3224, %v3214
        %v4985 = vpack.c.b16 %v3225, %v3215
        %v4986 = vpack.c.b16 %v3226, %v3216
        %v4987 = vpack.c.b16 %v3227, %v3217
        %v4988 = vpack.c.b16 %v3228, %v3218
        %v4989 = vpack.c.b16 %v3229, %v3219
        %v4990 = vpack.c.b16 %v3230, %v3220
        %v4991 = vpack.c.b16 %v3231, %v3221
        %v4992 = vpack.c.b16 %v3242, %v3232
        %v4993 = vpack.c.b16 %v3243, %v3233
        %v4994 = vpack.c.b16 %v3244, %v3234
        %v4995 = vpack.c.b16 %v3245, %v3235
        %v4996 = vpack.c.b16 %v3246, %v3236
        %v4997 = vpack.c.b16 %v3247, %v3237
        %v4998 = vpack.c.b16 %v3248, %v3238
        %v4999 = vpack.c.b16 %v3249, %v3239
        %v5000 = vpack.c.b16 %v3250, %v3240
        %v5001 = vpack.c.b16 %v3251, %v3241
        %v5002 = vpack.c.b16 %v3262, %v3252
        %v5003 = vpack.c.b16 %v3263, %v3253
        %v5004 = vpack.c.b16 %v3264, %v3254
        %v5005 = vpack.c.b16 %v3265, %v3255
        %v5006 = vpack.c.b16 %v3266, %v3256
        %v5007 = vpack.c.b16 %v3267, %v3257
        %v5008 = vpack.c.b16 %v3268, %v3258
        %v5009 = vpack.c.b16 %v3269, %v3259
        %v5010 = vpack.c.b16 %v3270, %v3260
        %v5011 = vpack.c.b16 %v3271, %v3261
        %v5012 = vpack.c.b16 %v3282, %v3272
        %v5013 = vpack.c.b16 %v3283, %v3273
        %v5014 = vpack.c.b16 %v3284, %v3274
        %v5015 = vpack.c.b16 %v3285, %v3275
        %v5016 = vpack.c.b16 %v3286, %v3276
        %v5017 = vpack.c.b16 %v3287, %v3277
        %v5018 = vpack.c.b16 %v3288, %v3278
        %v5019 = vpack.c.b16 %v3289, %v3279
        %v5020 = vpack.c.b16 %v3290, %v3280
        %v5021 = vpack.c.b16 %v3291, %v3281
        %v5022 = vpack.c.b16 %v3302, %v3292
        %v5023 = vpack.c.b16 %v3303, %v3293
        %v5024 = vpack.c.b16 %v3304, %v3294
        %v5025 = vpack.c.b16 %v3305, %v3295
        %v5026 = vpack.c.b16 %v3306, %v3296
        %v5027 = vpack.c.b16 %v3307, %v3297
        %v5028 = vpack.c.b16 %v3308, %v3298
        %v5029 = vpack.c.b16 %v3309, %v3299
        %v5030 = vpack.c.b16 %v3310, %v3300
        %v5031 = vpack.c.b16 %v3311, %v3301
        %v5032 = vpack.c.b16 %v3322, %v3312
        %v5033 = vpack.c.b16 %v3323, %v3313
        %v5034 = vpack.c.b16 %v3324, %v3314
        %v5035 = vpack.c.b16 %v3325, %v3315
        %v5036 = vpack.c.b16 %v3326, %v3316
        %v5037 = vpack.c.b16 %v3327, %v3317
        %v5038 = vpack.c.b16 %v3328, %v3318
        %v5039 = vpack.c.b16 %v3329, %v3319
        %v5040 = vpack.c.b16 %v3330, %v3320
        %v5041 = vpack.c.b16 %v3331, %v3321
        %v5042 = vpack.c.b16 %v3342, %v3332
        %v5043 = vpack.c.b16 %v3343, %v3333
        %v5044 = vpack.c.b16 %v3344, %v3334
        %v5045 = vpack.c.b16 %v3345, %v3335
        %v5046 = vpack.c.b16 %v3346, %v3336
        %v5047 = vpack.c.b16 %v3347, %v3337
        %v5048 = vpack.c.b16 %v3348, %v3338
        %v5049 = vpack.c.b16 %v3349, %v3339
        %v5050 = vpack.c.b16 %v3350, %v3340
        %v5051 = vpack.c.b16 %v3351, %v3341
        %v5052 = vpack.c.b16 %v3362, %v3352
        %v5053 = vpack.c.b16 %v3363, %v3353
        %v5054 = vpack.c.b16 %v3364, %v3354
        %v5055 = vpack.c.b16 %v3365, %v3355
        %v5056 = vpack.c.b16 %v3366, %v3356
        %v5057 = vpack.c.b16 %v3367, %v3357
        %v5058 = vpack.c.b16 %v3368, %v3358
        %v5059 = vpack.c.b16 %v3369, %v3359
        %v5060 = vpack.c.b16 %v3370, %v3360
        %v5061 = vpack.c.b16 %v3371, %v3361
        %v5062 = vpack.c.b16 %v3382, %v3372
        %v5063 = vpack.c.b16 %v3383, %v3373
        %v5064 = vpack.c.b16 %v3384, %v3374
        %v5065 = vpack.c.b16 %v3385, %v3375
        %v5066 = vpack.c.b16 %v3386, %v3376
        %v5067 = vpack.c.b16 %v3387, %v3377
        %v5068 = vpack.c.b16 %v3388, %v3378
        %v5069 = vpack.c.b16 %v3389, %v3379
        %v5070 = vpack.c.b16 %v3390, %v3380
        %v5071 = vpack.c.b16 %v3391, %v3381
        %v5072 = vpack.c.b16 %v3402, %v3392
        %v5073 = vpack.c.b16 %v3403, %v3393
        %v5074 = vpack.c.b16 %v3404, %v3394
        %v5075 = vpack.c.b16 %v3405, %v3395
        %v5076 = vpack.c.b16 %v3406, %v3396
        %v5077 = vpack.c.b16 %v3407, %v3397
        %v5078 = vpack.c.b16 %v3408, %v3398
        %v5079 = vpack.c.b16 %v3409, %v3399
        %v5080 = vpack.c.b16 %v3410, %v3400
        %v5081 = vpack.c.b16 %v3411, %v3401
        %v5082 = vpack.c.b16 %v3422, %v3412
        %v5083 = vpack.c.b16 %v3423, %v3413
        %v5084 = vpack.c.b16 %v3424, %v3414
        %v5085 = vpack.c.b16 %v3425, %v3415
        %v5086 = vpack.c.b16 %v3426, %v3416
        %v5087 = vpack.c.b16 %v3427, %v3417
        %v5088 = vpack.c.b16 %v3428, %v3418
        %v5089 = vpack.c.b16 %v3429, %v3419
        %v5090 = vpack.c.b16 %v3430, %v3420
        %v5091 = vpack.c.b16 %v3431, %v3421
        %v5092 = vpack.c.b16 %v3442, %v3432
        %v5093 = vpack.c.b16 %v3443, %v3433
        %v5094 = vpack.c.b16 %v3444, %v3434
        %v5095 = vpack.c.b16 %v3445, %v3435
        %v5096 = vpack.c.b16 %v3446, %v3436
        %v5097 = vpack.c.b16 %v3447, %v3437
        %v5098 = vpack.c.b16 %v3448, %v3438
        %v5099 = vpack.c.b16 %v3449, %v3439
        %v5100 = vpack.c.b16 %v3450, %v3440
        %v5101 = vpack.c.b16 %v3451, %v3441
        %v5102 = vpack.c.b16 %v3462, %v3452
        %v5103 = vpack.c.b16 %v3463, %v3453
        %v5104 = vpack.c.b16 %v3464, %v3454
        %v5105 = vpack.c.b16 %v3465, %v3455
        %v5106 = vpack.c.b16 %v3466, %v3456
        %v5107 = vpack.c.b16 %v3467, %v3457
        %v5108 = vpack.c.b16 %v3468, %v3458
        %v5109 = vpack.c.b16 %v3469, %v3459
        %v5110 = vpack.c.b16 %v3470, %v3460
        %v5111 = vpack.c.b16 %v3471, %v3461
        %v5112 = vpack.c.b16 %v3482, %v3472
        %v5113 = vpack.c.b16 %v3483, %v3473
        %v5114 = vpack.c.b16 %v3484, %v3474
        %v5115 = vpack.c.b16 %v3485, %v3475
        %v5116 = vpack.c.b16 %v3486, %v3476
        %v5117 = vpack.c.b16 %v3487, %v3477
        %v5118 = vpack.c.b16 %v3488, %v3478
        %v5119 = vpack.c.b16 %v3489, %v3479
        %v5120 = vpack.c.b16 %v3490, %v3480
        %v5121 = vpack.c.b16 %v3491, %v3481
        %v5122 = vpack.c.b16 %v3502, %v3492
        %v5123 = vpack.c.b16 %v3503, %v3493
        %v5124 = vpack.c.b16 %v3504, %v3494
        %v5125 = vpack.c.b16 %v3505, %v3495
        %v5126 = vpack.c.b16 %v3506, %v3496
        %v5127 = vpack.c.b16 %v3507, %v3497
        %v5128 = vpack.c.b16 %v3508, %v3498
        %v5129 = vpack.c.b16 %v3509, %v3499
        %v5130 = vpack.c.b16 %v3510, %v3500
        %v5131 = vpack.c.b16 %v3511, %v3501
        %v5132 = vpack.c.b16 %v3522, %v3512
        %v5133 = vpack.c.b16 %v3523, %v3513
        %v5134 = vpack.c.b16 %v3524, %v3514
        %v5135 = vpack.c.b16 %v3525, %v3515
        %v5136 = vpack.c.b16 %v3526, %v3516
        %v5137 = vpack.c.b16 %v3527, %v3517
        %v5138 = vpack.c.b16 %v3528, %v3518
        %v5139 = vpack.c.b16 %v3529, %v3519
        %v5140 = vpack.c.b16 %v3530, %v3520
        %v5141 = vpack.c.b16 %v3531, %v3521
        %v5142 = vpack.c.b16 %v3542, %v3532
        %v5143 = vpack.c.b16 %v3543, %v3533
        %v5144 = vpack.c.b16 %v3544, %v3534
        %v5145 = vpack.c.b16 %v3545, %v3535
        %v5146 = vpack.c.b16 %v3546, %v3536
        %v5147 = vpack.c.b16 %v3547, %v3537
        %v5148 = vpack.c.b16 %v3548, %v3538
        %v5149 = vpack.c.b16 %v3549, %v3539
        %v5150 = vpack.c.b16 %v3550, %v3540
        %v5151 = vpack.c.b16 %v3551, %v3541
        %v5152 = vpack.c.b16 %v3562, %v3552
        %v5153 = vpack.c.b16 %v3563, %v3553
        %v5154 = vpack.c.b16 %v3564, %v3554
        %v5155 = vpack.c.b16 %v3565, %v3555
        %v5156 = vpack.c.b16 %v3566, %v3556
        %v5157 = vpack.c.b16 %v3567, %v3557
        %v5158 = vpack.c.b16 %v3568, %v3558
        %v5159 = vpack.c.b16 %v3569, %v3559
        %v5160 = vpack.c.b16 %v3570, %v3560
        %v5161 = vpack.c.b16 %v3571, %v3561
        %v5162 = vpack.c.b16 %v3582, %v3572
        %v5163 = vpack.c.b16 %v3583, %v3573
        %v5164 = vpack.c.b16 %v3584, %v3574
        %v5165 = vpack.c.b16 %v3585, %v3575
        %v5166 = vpack.c.b16 %v3586, %v3576
        %v5167 = vpack.c.b16 %v3587, %v3577
        %v5168 = vpack.c.b16 %v3588, %v3578
        %v5169 = vpack.c.b16 %v3589, %v3579
        %v5170 = vpack.c.b16 %v3590, %v3580
        %v5171 = vpack.c.b16 %v3591, %v3581
        %v5172 = vpack.c.b16 %v3602, %v3592
        %v5173 = vpack.c.b16 %v3603, %v3593
        %v5174 = vpack.c.b16 %v3604, %v3594
        %v5175 = vpack.c.b16 %v3605, %v3595
        %v5176 = vpack.c.b16 %v3606, %v3596
        %v5177 = vpack.c.b16 %v3607, %v3597
        %v5178 = vpack.c.b16 %v3608, %v3598
        %v5179 = vpack.c.b16 %v3609, %v3599
        %v5180 = vpack.c.b16 %v3610, %v3600
        %v5181 = vpack.c.b16 %v3611, %v3601
        %v5182 = vpack.c.b16 %v3622, %v3612
        %v5183 = vpack.c.b16 %v3623, %v3613
        %v5184 = vpack.c.b16 %v3624, %v3614
        %v5185 = vpack.c.b16 %v3625, %v3615
        %v5186 = vpack.c.b16 %v3626, %v3616
        %v5187 = vpack.c.b16 %v3627, %v3617
        %v5188 = vpack.c.b16 %v3628, %v3618
        %v5189 = vpack.c.b16 %v3629, %v3619
        %v5190 = vpack.c.b16 %v3630, %v3620
        %v5191 = vpack.c.b16 %v3631, %v3621
        %v5192 = vpack.c.b16 %v3642, %v3632
        %v5193 = vpack.c.b16 %v3643, %v3633
        %v5194 = vpack.c.b16 %v3644, %v3634
        %v5195 = vpack.c.b16 %v3645, %v3635
        %v5196 = vpack.c.b16 %v3646, %v3636
        %v5197 = vpack.c.b16 %v3647, %v3637
        %v5198 = vpack.c.b16 %v3648, %v3638
        %v5199 = vpack.c.b16 %v3649, %v3639
        %v5200 = vpack.c.b16 %v3650, %v3640
        %v5201 = vpack.c.b16 %v3651, %v3641
        %v5202 = vpack.c.b16 %v3662, %v3652
        %v5203 = vpack.c.b16 %v3663, %v3653
        %v5204 = vpack.c.b16 %v3664, %v3654
        %v5205 = vpack.c.b16 %v3665, %v3655
        %v5206 = vpack.c.b16 %v3666, %v3656
        %v5207 = vpack.c.b16 %v3667, %v3657
        %v5208 = vpack.c.b16 %v3668, %v3658
        %v5209 = vpack.c.b16 %v3669, %v3659
        %v5210 = vpack.c.b16 %v3670, %v3660
        %v5211 = vpack.c.b16 %v3671, %v3661
        %v5212 = vpack.c.b16 %v3682, %v3672
        %v5213 = vpack.c.b16 %v3683, %v3673
        %v5214 = vpack.c.b16 %v3684, %v3674
        %v5215 = vpack.c.b16 %v3685, %v3675
        %v5216 = vpack.c.b16 %v3686, %v3676
        %v5217 = vpack.c.b16 %v3687, %v3677
        %v5218 = vpack.c.b16 %v3688, %v3678
        %v5219 = vpack.c.b16 %v3689, %v3679
        %v5220 = vpack.c.b16 %v3690, %v3680
        %v5221 = vpack.c.b16 %v3691, %v3681
        %v5222 = vpack.c.b16 %v3702, %v3692
        %v5223 = vpack.c.b16 %v3703, %v3693
        %v5224 = vpack.c.b16 %v3704, %v3694
        %v5225 = vpack.c.b16 %v3705, %v3695
        %v5226 = vpack.c.b16 %v3706, %v3696
        %v5227 = vpack.c.b16 %v3707, %v3697
        %v5228 = vpack.c.b16 %v3708, %v3698
        %v5229 = vpack.c.b16 %v3709, %v3699
        %v5230 = vpack.c.b16 %v3710, %v3700
        %v5231 = vpack.c.b16 %v3711, %v3701
        %v5232 = vpack.c.b16 %v3722, %v3712
        %v5233 = vpack.c.b16 %v3723, %v3713
        %v5234 = vpack.c.b16 %v3724, %v3714
        %v5235 = vpack.c.b16 %v3725, %v3715
        %v5236 = vpack.c.b16 %v3726, %v3716
        %v5237 = vpack.c.b16 %v3727, %v3717
        %v5238 = vpack.c.b16 %v3728, %v3718
        %v5239 = vpack.c.b16 %v3729, %v3719
        %v5240 = vpack.c.b16 %v3730, %v3720
        %v5241 = vpack.c.b16 %v3731, %v3721
        %v5242 = vpack.c.b16 %v3742, %v3732
        %v5243 = vpack.c.b16 %v3743, %v3733
        %v5244 = vpack.c.b16 %v3744, %v3734
        %v5245 = vpack.c.b16 %v3745, %v3735
        %v5246 = vpack.c.b16 %v3746, %v3736
        %v5247 = vpack.c.b16 %v3747, %v3737
        %v5248 = vpack.c.b16 %v3748, %v3738
        %v5249 = vpack.c.b16 %v3749, %v3739
        %v5250 = vpack.c.b16 %v3750, %v3740
        %v5251 = vpack.c.b16 %v3751, %v3741
        %v5252 = vpack.c.b16 %v3762, %v3752
        %v5253 = vpack.c.b16 %v3763, %v3753
        %v5254 = vpack.c.b16 %v3764, %v3754
        %v5255 = vpack.c.b16 %v3765, %v3755
        %v5256 = vpack.c.b16 %v3766, %v3756
        %v5257 = vpack.c.b16 %v3767, %v3757
        %v5258 = vpack.c.b16 %v3768, %v3758
        %v5259 = vpack.c.b16 %v3769, %v3759
        %v5260 = vpack.c.b16 %v3770, %v3760
        %v5261 = vpack.c.b16 %v3771, %v3761
        %v5262 = vpack.c.b16 %v3782, %v3772
        %v5263 = vpack.c.b16 %v3783, %v3773
        %v5264 = vpack.c.b16 %v3784, %v3774
        %v5265 = vpack.c.b16 %v3785, %v3775
        %v5266 = vpack.c.b16 %v3786, %v3776
        %v5267 = vpack.c.b16 %v3787, %v3777
        %v5268 = vpack.c.b16 %v3788, %v3778
        %v5269 = vpack.c.b16 %v3789, %v3779
        %v5270 = vpack.c.b16 %v3790, %v3780
        %v5271 = vpack.c.b16 %v3791, %v3781
        %v5272 = vpack.c.b16 %v3802, %v3792
        %v5273 = vpack.c.b16 %v3803, %v3793
        %v5274 = vpack.c.b16 %v3804, %v3794
        %v5275 = vpack.c.b16 %v3805, %v3795
        %v5276 = vpack.c.b16 %v3806, %v3796
        %v5277 = vpack.c.b16 %v3807, %v3797
        %v5278 = vpack.c.b16 %v3808, %v3798
        %v5279 = vpack.c.b16 %v3809, %v3799
        %v5280 = vpack.c.b16 %v3810, %v3800
        %v5281 = vpack.c.b16 %v3811, %v3801
        %v5282 = vpack.c.b16 %v3822, %v3812
        %v5283 = vpack.c.b16 %v3823, %v3813
        %v5284 = vpack.c.b16 %v3824, %v3814
        %v5285 = vpack.c.b16 %v3825, %v3815
        %v5286 = vpack.c.b16 %v3826, %v3816
        %v5287 = vpack.c.b16 %v3827, %v3817
        %v5288 = vpack.c.b16 %v3828, %v3818
        %v5289 = vpack.c.b16 %v3829, %v3819
        %v5290 = vpack.c.b16 %v3830, %v3820
        %v5291 = vpack.c.b16 %v3831, %v3821
        %v5292 = vpack.c.b16 %v3842, %v3832
        %v5293 = vpack.c.b16 %v3843, %v3833
        %v5294 = vpack.c.b16 %v3844, %v3834
        %v5295 = vpack.c.b16 %v3845, %v3835
        %v5296 = vpack.c.b16 %v3846, %v3836
        %v5297 = vpack.c.b16 %v3847, %v3837
        %v5298 = vpack.c.b16 %v3848, %v3838
        %v5299 = vpack.c.b16 %v3849, %v3839
        %v5300 = vpack.c.b16 %v3850, %v3840
        %v5301 = vpack.c.b16 %v3851, %v3841
        %v5302 = vpack.c.b16 %v3862, %v3852
        %v5303 = vpack.c.b16 %v3863, %v3853
        %v5304 = vpack.c.b16 %v3864, %v3854
        %v5305 = vpack.c.b16 %v3865, %v3855
        %v5306 = vpack.c.b16 %v3866, %v3856
        %v5307 = vpack.c.b16 %v3867, %v3857
        %v5308 = vpack.c.b16 %v3868, %v3858
        %v5309 = vpack.c.b16 %v3869, %v3859
        %v5310 = vpack.c.b16 %v3870, %v3860
        %v5311 = vpack.c.b16 %v3871, %v3861
        %v5312 = vpack.c.b16 %v3882, %v3872
        %v5313 = vpack.c.b16 %v3883, %v3873
        %v5314 = vpack.c.b16 %v3884, %v3874
        %v5315 = vpack.c.b16 %v3885, %v3875
        %v5316 = vpack.c.b16 %v3886, %v3876
        %v5317 = vpack.c.b16 %v3887, %v3877
        %v5318 = vpack.c.b16 %v3888, %v3878
        %v5319 = vpack.c.b16 %v3889, %v3879
        %v5320 = vpack.c.b16 %v3890, %v3880
        %v5321 = vpack.c.b16 %v3891, %v3881
        %v5322 = vpack.c.b16 %v3902, %v3892
        %v5323 = vpack.c.b16 %v3903, %v3893
        %v5324 = vpack.c.b16 %v3904, %v3894
        %v5325 = vpack.c.b16 %v3905, %v3895
        %v5326 = vpack.c.b16 %v3906, %v3896
        %v5327 = vpack.c.b16 %v3907, %v3897
        %v5328 = vpack.c.b16 %v3908, %v3898
        %v5329 = vpack.c.b16 %v3909, %v3899
        %v5330 = vpack.c.b16 %v3910, %v3900
        %v5331 = vpack.c.b16 %v3911, %v3901
        %v5332 = vpack.c.b16 %v3922, %v3912
        %v5333 = vpack.c.b16 %v3923, %v3913
        %v5334 = vpack.c.b16 %v3924, %v3914
        %v5335 = vpack.c.b16 %v3925, %v3915
        %v5336 = vpack.c.b16 %v3926, %v3916
        %v5337 = vpack.c.b16 %v3927, %v3917
        %v5338 = vpack.c.b16 %v3928, %v3918
        %v5339 = vpack.c.b16 %v3929, %v3919
        %v5340 = vpack.c.b16 %v3930, %v3920
        %v5341 = vpack.c.b16 %v3931, %v3921
        %v5342 = vpack.c.b16 %v3942, %v3932
        %v5343 = vpack.c.b16 %v3943, %v3933
        %v5344 = vpack.c.b16 %v3944, %v3934
        %v5345 = vpack.c.b16 %v3945, %v3935
        %v5346 = vpack.c.b16 %v3946, %v3936
        %v5347 = vpack.c.b16 %v3947, %v3937
        %v5348 = vpack.c.b16 %v3948, %v3938
        %v5349 = vpack.c.b16 %v3949, %v3939
        %v5350 = vpack.c.b16 %v3950, %v3940
        %v5351 = vpack.c.b16 %v3951, %v3941
        %v5352 = vpack.c.b16 %v3962, %v3952
        %v5353 = vpack.c.b16 %v3963, %v3953
        %v5354 = vpack.c.b16 %v3964, %v3954
        %v5355 = vpack.c.b16 %v3965, %v3955
        %v5356 = vpack.c.b16 %v3966, %v3956
        %v5357 = vpack.c.b16 %v3967, %v3957
        %v5358 = vpack.c.b16 %v3968, %v3958
        %v5359 = vpack.c.b16 %v3969, %v3959
        %v5360 = vpack.c.b16 %v3970, %v3960
        %v5361 = vpack.c.b16 %v3971, %v3961
        %v5362 = vpack.c.b16 %v3982, %v3972
        %v5363 = vpack.c.b16 %v3983, %v3973
        %v5364 = vpack.c.b16 %v3984, %v3974
        %v5365 = vpack.c.b16 %v3985, %v3975
        %v5366 = vpack.c.b16 %v3986, %v3976
        %v5367 = vpack.c.b16 %v3987, %v3977
        %v5368 = vpack.c.b16 %v3988, %v3978
        %v5369 = vpack.c.b16 %v3989, %v3979
        %v5370 = vpack.c.b16 %v3990, %v3980
        %v5371 = vpack.c.b16 %v3991, %v3981
        %v5372 = vpack.c.b16 %v4002, %v3992
        %v5373 = vpack.c.b16 %v4003, %v3993
        %v5374 = vpack.c.b16 %v4004, %v3994
        %v5375 = vpack.c.b16 %v4005, %v3995
        %v5376 = vpack.c.b16 %v4006, %v3996
        %v5377 = vpack.c.b16 %v4007, %v3997
        %v5378 = vpack.c.b16 %v4008, %v3998
        %v5379 = vpack.c.b16 %v4009, %v3999
        %v5380 = vpack.c.b16 %v4010, %v4000
        %v5381 = vpack.c.b16 %v4011, %v4001
        %v5382 = vpack.c.b16 %v4022, %v4012
        %v5383 = vpack.c.b16 %v4023, %v4013
        %v5384 = vpack.c.b16 %v4024, %v4014
        %v5385 = vpack.c.b16 %v4025, %v4015
        %v5386 = vpack.c.b16 %v4026, %v4016
        %v5387 = vpack.c.b16 %v4027, %v4017
        %v5388 = vpack.c.b16 %v4028, %v4018
        %v5389 = vpack.c.b16 %v4029, %v4019
        %v5390 = vpack.c.b16 %v4030, %v4020
        %v5391 = vpack.c.b16 %v4031, %v4021
        %v5392 = vpack.c.b16 %v4042, %v4032
        %v5393 = vpack.c.b16 %v4043, %v4033
        %v5394 = vpack.c.b16 %v4044, %v4034
        %v5395 = vpack.c.b16 %v4045, %v4035
        %v5396 = vpack.c.b16 %v4046, %v4036
        %v5397 = vpack.c.b16 %v4047, %v4037
        %v5398 = vpack.c.b16 %v4048, %v4038
        %v5399 = vpack.c.b16 %v4049, %v4039
        %v5400 = vpack.c.b16 %v4050, %v4040
        %v5401 = vpack.c.b16 %v4051, %v4041
        %v5402 = vpack.c.b16 %v4062, %v4052
        %v5403 = vpack.c.b16 %v4063, %v4053
        %v5404 = vpack.c.b16 %v4064, %v4054
        %v5405 = vpack.c.b16 %v4065, %v4055
        %v5406 = vpack.c.b16 %v4066, %v4056
        %v5407 = vpack.c.b16 %v4067, %v4057
        %v5408 = vpack.c.b16 %v4068, %v4058
        %v5409 = vpack.c.b16 %v4069, %v4059
        %v5410 = vpack.c.b16 %v4070, %v4060
        %v5411 = vpack.c.b16 %v4071, %v4061
        %v5412 = vpack.c.b16 %v4082, %v4072
        %v5413 = vpack.c.b16 %v4083, %v4073
        %v5414 = vpack.c.b16 %v4084, %v4074
        %v5415 = vpack.c.b16 %v4085, %v4075
        %v5416 = vpack.c.b16 %v4086, %v4076
        %v5417 = vpack.c.b16 %v4087, %v4077
        %v5418 = vpack.c.b16 %v4088, %v4078
        %v5419 = vpack.c.b16 %v4089, %v4079
        %v5420 = vpack.c.b16 %v4090, %v4080
        %v5421 = vpack.c.b16 %v4091, %v4081
        %v5422 = vpack.c.b16 %v4102, %v4092
        %v5423 = vpack.c.b16 %v4103, %v4093
        %v5424 = vpack.c.b16 %v4104, %v4094
        %v5425 = vpack.c.b16 %v4105, %v4095
        %v5426 = vpack.c.b16 %v4106, %v4096
        %v5427 = vpack.c.b16 %v4107, %v4097
        %v5428 = vpack.c.b16 %v4108, %v4098
        %v5429 = vpack.c.b16 %v4109, %v4099
        %v5430 = vpack.c.b16 %v4110, %v4100
        %v5431 = vpack.c.b16 %v4111, %v4101
        %v5432 = vpack.c.b16 %v4122, %v4112
        %v5433 = vpack.c.b16 %v4123, %v4113
        %v5434 = vpack.c.b16 %v4124, %v4114
        %v5435 = vpack.c.b16 %v4125, %v4115
        %v5436 = vpack.c.b16 %v4126, %v4116
        %v5437 = vpack.c.b16 %v4127, %v4117
        %v5438 = vpack.c.b16 %v4128, %v4118
        %v5439 = vpack.c.b16 %v4129, %v4119
        %v5440 = vpack.c.b16 %v4130, %v4120
        %v5441 = vpack.c.b16 %v4131, %v4121
        %v5442 = vpack.c.b16 %v4142, %v4132
        %v5443 = vpack.c.b16 %v4143, %v4133
        %v5444 = vpack.c.b16 %v4144, %v4134
        %v5445 = vpack.c.b16 %v4145, %v4135
        %v5446 = vpack.c.b16 %v4146, %v4136
        %v5447 = vpack.c.b16 %v4147, %v4137
        %v5448 = vpack.c.b16 %v4148, %v4138
        %v5449 = vpack.c.b16 %v4149, %v4139
        %v5450 = vpack.c.b16 %v4150, %v4140
        %v5451 = vpack.c.b16 %v4151, %v4141
        %v5452 = vpack.c.b16 %v4162, %v4152
        %v5453 = vpack.c.b16 %v4163, %v4153
        %v5454 = vpack.c.b16 %v4164, %v4154
        %v5455 = vpack.c.b16 %v4165, %v4155
        %v5456 = vpack.c.b16 %v4166, %v4156
        %v5457 = vpack.c.b16 %v4167, %v4157
        %v5458 = vpack.c.b16 %v4168, %v4158
        %v5459 = vpack.c.b16 %v4169, %v4159
        %v5460 = vpack.c.b16 %v4170, %v4160
        %v5461 = vpack.c.b16 %v4171, %v4161
        %v5462 = vpack.c.b16 %v4182, %v4172
        %v5463 = vpack.c.b16 %v4183, %v4173
        %v5464 = vpack.c.b16 %v4184, %v4174
        %v5465 = vpack.c.b16 %v4185, %v4175
        %v5466 = vpack.c.b16 %v4186, %v4176
        %v5467 = vpack.c.b16 %v4187, %v4177
        %v5468 = vpack.c.b16 %v4188, %v4178
        %v5469 = vpack.c.b16 %v4189, %v4179
        %v5470 = vpack.c.b16 %v4190, %v4180
        %v5471 = vpack.c.b16 %v4191, %v4181
        %v5472 = vpack.c.b16 %v4202, %v4192
        %v5473 = vpack.c.b16 %v4203, %v4193
        %v5474 = vpack.c.b16 %v4204, %v4194
        %v5475 = vpack.c.b16 %v4205, %v4195
        %v5476 = vpack.c.b16 %v4206, %v4196
        %v5477 = vpack.c.b16 %v4207, %v4197
        %v5478 = vpack.c.b16 %v4208, %v4198
        %v5479 = vpack.c.b16 %v4209, %v4199
        %v5480 = vpack.c.b16 %v4210, %v4200
        %v5481 = vpack.c.b16 %v4211, %v4201
        %v5482 = vpack.c.b16 %v4222, %v4212
        %v5483 = vpack.c.b16 %v4223, %v4213
        %v5484 = vpack.c.b16 %v4224, %v4214
        %v5485 = vpack.c.b16 %v4225, %v4215
        %v5486 = vpack.c.b16 %v4226, %v4216
        %v5487 = vpack.c.b16 %v4227, %v4217
        %v5488 = vpack.c.b16 %v4228, %v4218
        %v5489 = vpack.c.b16 %v4229, %v4219
        %v5490 = vpack.c.b16 %v4230, %v4220
        %v5491 = vpack.c.b16 %v4231, %v4221
        %v5492 = vpack.c.b16 %v4242, %v4232
        %v5493 = vpack.c.b16 %v4243, %v4233
        %v5494 = vpack.c.b16 %v4244, %v4234
        %v5495 = vpack.c.b16 %v4245, %v4235
        %v5496 = vpack.c.b16 %v4246, %v4236
        %v5497 = vpack.c.b16 %v4247, %v4237
        %v5498 = vpack.c.b16 %v4248, %v4238
        %v5499 = vpack.c.b16 %v4249, %v4239
        %v5500 = vpack.c.b16 %v4250, %v4240
        %v5501 = vpack.c.b16 %v4251, %v4241
        %v5502 = vpack.c.b16 %v4262, %v4252
        %v5503 = vpack.c.b16 %v4263, %v4253
        %v5504 = vpack.c.b16 %v4264, %v4254
        %v5505 = vpack.c.b16 %v4265, %v4255
        %v5506 = vpack.c.b16 %v4266, %v4256
        %v5507 = vpack.c.b16 %v4267, %v4257
        %v5508 = vpack.c.b16 %v4268, %v4258
        %v5509 = vpack.c.b16 %v4269, %v4259
        %v5510 = vpack.c.b16 %v4270, %v4260
        %v5511 = vpack.c.b16 %v4271, %v4261
        %v5512 = vpack.c.b16 %v4282, %v4272
        %v5513 = vpack.c.b16 %v4283, %v4273
        %v5514 = vpack.c.b16 %v4284, %v4274
        %v5515 = vpack.c.b16 %v4285, %v4275
        %v5516 = vpack.c.b16 %v4286, %v4276
        %v5517 = vpack.c.b16 %v4287, %v4277
        %v5518 = vpack.c.b16 %v4288, %v4278
        %v5519 = vpack.c.b16 %v4289, %v4279
        %v5520 = vpack.c.b16 %v4290, %v4280
        %v5521 = vpack.c.b16 %v4291, %v4281
        %v5522 = vpack.c.b16 %v4302, %v4292
        %v5523 = vpack.c.b16 %v4303, %v4293
        %v5524 = vpack.c.b16 %v4304, %v4294
        %v5525 = vpack.c.b16 %v4305, %v4295
        %v5526 = vpack.c.b16 %v4306, %v4296
        %v5527 = vpack.c.b16 %v4307, %v4297
        %v5528 = vpack.c.b16 %v4308, %v4298
        %v5529 = vpack.c.b16 %v4309, %v4299
        %v5530 = vpack.c.b16 %v4310, %v4300
        %v5531 = vpack.c.b16 %v4311, %v4301
        %v5532 = vpack.c.b16 %v4322, %v4312
        %v5533 = vpack.c.b16 %v4323, %v4313
        %v5534 = vpack.c.b16 %v4324, %v4314
        %v5535 = vpack.c.b16 %v4325, %v4315
        %v5536 = vpack.c.b16 %v4326, %v4316
        %v5537 = vpack.c.b16 %v4327, %v4317
        %v5538 = vpack.c.b16 %v4328, %v4318
        %v5539 = vpack.c.b16 %v4329, %v4319
        %v5540 = vpack.c.b16 %v4330, %v4320
        %v5541 = vpack.c.b16 %v4331, %v4321
        %v5542 = vpack.c.b16 %v4342, %v4332
        %v5543 = vpack.c.b16 %v4343, %v4333
        %v5544 = vpack.c.b16 %v4344, %v4334
        %v5545 = vpack.c.b16 %v4345, %v4335
        %v5546 = vpack.c.b16 %v4346, %v4336
        %v5547 = vpack.c.b16 %v4347, %v4337
        %v5548 = vpack.c.b16 %v4348, %v4338
        %v5549 = vpack.c.b16 %v4349, %v4339
        %v5550 = vpack.c.b16 %v4350, %v4340
        %v5551 = vpack.c.b16 %v4351, %v4341
        %v5552 = vpack.c.b16 %v4362, %v4352
        %v5553 = vpack.c.b16 %v4363, %v4353
        %v5554 = vpack.c.b16 %v4364, %v4354
        %v5555 = vpack.c.b16 %v4365, %v4355
        %v5556 = vpack.c.b16 %v4366, %v4356
        %v5557 = vpack.c.b16 %v4367, %v4357
        %v5558 = vpack.c.b16 %v4368, %v4358
        %v5559 = vpack.c.b16 %v4369, %v4359
        %v5560 = vpack.c.b16 %v4370, %v4360
        %v5561 = vpack.c.b16 %v4371, %v4361
        %v5562 = vpack.c.b16 %v4382, %v4372
        %v5563 = vpack.c.b16 %v4383, %v4373
        %v5564 = vpack.c.b16 %v4384, %v4374
        %v5565 = vpack.c.b16 %v4385, %v4375
        %v5566 = vpack.c.b16 %v4386, %v4376
        %v5567 = vpack.c.b16 %v4387, %v4377
        %v5568 = vpack.c.b16 %v4388, %v4378
        %v5569 = vpack.c.b16 %v4389, %v4379
        %v5570 = vpack.c.b16 %v4390, %v4380
        %v5571 = vpack.c.b16 %v4391, %v4381
        %v5572 = vpack.c.b16 %v4402, %v4392
        %v5573 = vpack.c.b16 %v4403, %v4393
        %v5574 = vpack.c.b16 %v4404, %v4394
        %v5575 = vpack.c.b16 %v4405, %v4395
        %v5576 = vpack.c.b16 %v4406, %v4396
        %v5577 = vpack.c.b16 %v4407, %v4397
        %v5578 = vpack.c.b16 %v4408, %v4398
        %v5579 = vpack.c.b16 %v4409, %v4399
        %v5580 = vpack.c.b16 %v4410, %v4400
        %v5581 = vpack.c.b16 %v4411, %v4401
        %v5582 = vpack.c.b16 %v4422, %v4412
        %v5583 = vpack.c.b16 %v4423, %v4413
        %v5584 = vpack.c.b16 %v4424, %v4414
        %v5585 = vpack.c.b16 %v4425, %v4415
        %v5586 = vpack.c.b16 %v4426, %v4416
        %v5587 = vpack.c.b16 %v4427, %v4417
        %v5588 = vpack.c.b16 %v4428, %v4418
        %v5589 = vpack.c.b16 %v4429, %v4419
        %v5590 = vpack.c.b16 %v4430, %v4420
        %v5591 = vpack.c.b16 %v4431, %v4421
        %v5592 = vpack.c.b16 %v4442, %v4432
        %v5593 = vpack.c.b16 %v4443, %v4433
        %v5594 = vpack.c.b16 %v4444, %v4434
        %v5595 = vpack.c.b16 %v4445, %v4435
        %v5596 = vpack.c.b16 %v4446, %v4436
        %v5597 = vpack.c.b16 %v4447, %v4437
        %v5598 = vpack.c.b16 %v4448, %v4438
        %v5599 = vpack.c.b16 %v4449, %v4439
        %v5600 = vpack.c.b16 %v4450, %v4440
        %v5601 = vpack.c.b16 %v4451, %v4441
        %v5602 = vpack.c.b16 %v4462, %v4452
        %v5603 = vpack.c.b16 %v4463, %v4453
        %v5604 = vpack.c.b16 %v4464, %v4454
        %v5605 = vpack.c.b16 %v4465, %v4455
        %v5606 = vpack.c.b16 %v4466, %v4456
        %v5607 = vpack.c.b16 %v4467, %v4457
        %v5608 = vpack.c.b16 %v4468, %v4458
        %v5609 = vpack.c.b16 %v4469, %v4459
        %v5610 = vpack.c.b16 %v4470, %v4460
        %v5611 = vpack.c.b16 %v4471, %v4461
        %v5612 = vpack.c.b16 %v4482, %v4472
        %v5613 = vpack.c.b16 %v4483, %v4473
        %v5614 = vpack.c.b16 %v4484, %v4474
        %v5615 = vpack.c.b16 %v4485, %v4475
        %v5616 = vpack.c.b16 %v4486, %v4476
        %v5617 = vpack.c.b16 %v4487, %v4477
        %v5618 = vpack.c.b16 %v4488, %v4478
        %v5619 = vpack.c.b16 %v4489, %v4479
        %v5620 = vpack.c.b16 %v4490, %v4480
        %v5621 = vpack.c.b16 %v4491, %v4481
        %v5622 = vpack.c.b16 %v4502, %v4492
        %v5623 = vpack.c.b16 %v4503, %v4493
        %v5624 = vpack.c.b16 %v4504, %v4494
        %v5625 = vpack.c.b16 %v4505, %v4495
        %v5626 = vpack.c.b16 %v4506, %v4496
        %v5627 = vpack.c.b16 %v4507, %v4497
        %v5628 = vpack.c.b16 %v4508, %v4498
        %v5629 = vpack.c.b16 %v4509, %v4499
        %v5630 = vpack.c.b16 %v4510, %v4500
        %v5631 = vpack.c.b16 %v4511, %v4501
        %v5632 = vpack.c.b16 %v4522, %v4512
        %v5633 = vpack.c.b16 %v4523, %v4513
        %v5634 = vpack.c.b16 %v4524, %v4514
        %v5635 = vpack.c.b16 %v4525, %v4515
        %v5636 = vpack.c.b16 %v4526, %v4516
        %v5637 = vpack.c.b16 %v4527, %v4517
        %v5638 = vpack.c.b16 %v4528, %v4518
        %v5639 = vpack.c.b16 %v4529, %v4519
        %v5640 = vpack.c.b16 %v4530, %v4520
        %v5641 = vpack.c.b16 %v4531, %v4521
        %v5642 = vpack.c.b16 %v4542, %v4532
        %v5643 = vpack.c.b16 %v4543, %v4533
        %v5644 = vpack.c.b16 %v4544, %v4534
        %v5645 = vpack.c.b16 %v4545, %v4535
        %v5646 = vpack.c.b16 %v4546, %v4536
        %v5647 = vpack.c.b16 %v4547, %v4537
        %v5648 = vpack.c.b16 %v4548, %v4538
        %v5649 = vpack.c.b16 %v4549, %v4539
        %v5650 = vpack.c.b16 %v4550, %v4540
        %v5651 = vpack.c.b16 %v4551, %v4541
        %v5652 = vpack.c.b16 %v4562, %v4552
        %v5653 = vpack.c.b16 %v4563, %v4553
        %v5654 = vpack.c.b16 %v4564, %v4554
        %v5655 = vpack.c.b16 %v4565, %v4555
        %v5656 = vpack.c.b16 %v4566, %v4556
        %v5657 = vpack.c.b16 %v4567, %v4557
        %v5658 = vpack.c.b16 %v4568, %v4558
        %v5659 = vpack.c.b16 %v4569, %v4559
        %v5660 = vpack.c.b16 %v4570, %v4560
        %v5661 = vpack.c.b16 %v4571, %v4561
        %v5662 = vpack.c.b16 %v4582, %v4572
        %v5663 = vpack.c.b16 %v4583, %v4573
        %v5664 = vpack.c.b16 %v4584, %v4574
        %v5665 = vpack.c.b16 %v4585, %v4575
        %v5666 = vpack.c.b16 %v4586, %v4576
        %v5667 = vpack.c.b16 %v4587, %v4577
        %v5668 = vpack.c.b16 %v4588, %v4578
        %v5669 = vpack.c.b16 %v4589, %v4579
        %v5670 = vpack.c.b16 %v4590, %v4580
        %v5671 = vpack.c.b16 %v4591, %v4581
        %v5672 = vpack.c.b16 %v4602, %v4592
        %v5673 = vpack.c.b16 %v4603, %v4593
        %v5674 = vpack.c.b16 %v4604, %v4594
        %v5675 = vpack.c.b16 %v4605, %v4595
        %v5676 = vpack.c.b16 %v4606, %v4596
        %v5677 = vpack.c.b16 %v4607, %v4597
        %v5678 = vpack.c.b16 %v4608, %v4598
        %v5679 = vpack.c.b16 %v4609, %v4599
        %v5680 = vpack.c.b16 %v4610, %v4600
        %v5681 = vpack.c.b16 %v4611, %v4601
        %v5682 = vpack.c.b16 %v4622, %v4612
        %v5683 = vpack.c.b16 %v4623, %v4613
        %v5684 = vpack.c.b16 %v4624, %v4614
        %v5685 = vpack.c.b16 %v4625, %v4615
        %v5686 = vpack.c.b16 %v4626, %v4616
        %v5687 = vpack.c.b16 %v4627, %v4617
        %v5688 = vpack.c.b16 %v4628, %v4618
        %v5689 = vpack.c.b16 %v4629, %v4619
        %v5690 = vpack.c.b16 %v4630, %v4620
        %v5691 = vpack.c.b16 %v4631, %v4621
        %v5692 = vpack.c.b16 %v4642, %v4632
        %v5693 = vpack.c.b16 %v4643, %v4633
        %v5694 = vpack.c.b16 %v4644, %v4634
        %v5695 = vpack.c.b16 %v4645, %v4635
        %v5696 = vpack.c.b16 %v4646, %v4636
        %v5697 = vpack.c.b16 %v4647, %v4637
        %v5698 = vpack.c.b16 %v4648, %v4638
        %v5699 = vpack.c.b16 %v4649, %v4639
        %v5700 = vpack.c.b16 %v4650, %v4640
        %v5701 = vpack.c.b16 %v4651, %v4641
        %v5702 = vpack.c.b16 %v4662, %v4652
        %v5703 = vpack.c.b16 %v4663, %v4653
        %v5704 = vpack.c.b16 %v4664, %v4654
        %v5705 = vpack.c.b16 %v4665, %v4655
        %v5706 = vpack.c.b16 %v4666, %v4656
        %v5707 = vpack.c.b16 %v4667, %v4657
        %v5708 = vpack.c.b16 %v4668, %v4658
        %v5709 = vpack.c.b16 %v4669, %v4659
        %v5710 = vpack.c.b16 %v4670, %v4660
        %v5711 = vpack.c.b16 %v4671, %v4661
        %6752 = vmatprep.subr.bf16.mxu0 %v4673
        %6753 = vmatpush1.bf16.msra.mxu0 %v4672
        %6754 = vmatprep.subr.bf16.mxu0 %v4683
        %6755 = vmatpush1.bf16.msra.mxu0 %v4682
        %6756 = vmatprep.subr.bf16.mxu0 %v4693
        %6757 = vmatpush1.bf16.msra.mxu0 %v4692
        %6758 = vmatprep.subr.bf16.mxu0 %v4703
        %6759 = vmatpush1.bf16.msra.mxu0 %v4702
        %6760 = vmatprep.subr.bf16.mxu0 %v4713
        %6761 = vmatpush1.bf16.msra.mxu0 %v4712
        %6762 = vmatprep.subr.bf16.mxu0 %v4723
        %6763 = vmatpush1.bf16.msra.mxu0 %v4722
        %6764 = vmatprep.subr.bf16.mxu0 %v4733
        %6765 = vmatpush1.bf16.msra.mxu0 %v4732
        %6766 = vmatprep.subr.bf16.mxu0 %v4743
        %6767 = vmatpush1.bf16.msra.mxu0 %v4742
        %6768 = vmatprep.subr.bf16.mxu0 %v4753
        %6769 = vmatpush1.bf16.msra.mxu0 %v4752
        %6770 = vmatprep.subr.bf16.mxu0 %v4763
        %6771 = vmatpush1.bf16.msra.mxu0 %v4762
        %6772 = vmatprep.subr.bf16.mxu0 %v4773
        %6773 = vmatpush1.bf16.msra.mxu0 %v4772
        %6774 = vmatprep.subr.bf16.mxu0 %v4783
        %6775 = vmatpush1.bf16.msra.mxu0 %v4782
        %6776 = vmatprep.subr.bf16.mxu0 %v4793
        %6777 = vmatpush1.bf16.msra.mxu0 %v4792
        %6778 = vmatprep.subr.bf16.mxu0 %v4803
        %6779 = vmatpush1.bf16.msra.mxu0 %v4802
        %6780 = vmatprep.subr.bf16.mxu0 %v4813
        %6781 = vmatpush1.bf16.msra.mxu0 %v4812
        %6782 = vmatprep.subr.bf16.mxu0 %v4823
        %6783 = vmatpush1.bf16.msra.mxu0 %v4822
        %6784 = vmatprep.mubr.bf16.mxu0 %v1527
        %6785 = vmatmul.mubr.bf16.gmra.mrb[0].mxu0 %v1526
        %v6786 = vpop.f32.mrb[0].mxu0
        %v6787 = vadd.f32 0.0, %v6786
        %v6788 = vpop.f32.mrb[0].mxu0
        %v6789 = vadd.f32 0.0, %v6788
        %v6790 = vpop.f32.mrb[0].mxu0
        %v6791 = vadd.f32 0.0, %v6790
        %v6792 = vpop.f32.mrb[0].mxu0
        %v6793 = vadd.f32 0.0, %v6792
        %6794 = vdwg.mxu0
        %6795 = vmatprep.subr.bf16.mxu0 %v4833
        %6796 = vmatpush1.bf16.msra.mxu0 %v4832
        %6797 = vmatprep.subr.bf16.mxu0 %v4843
        %6798 = vmatpush1.bf16.msra.mxu0 %v4842
        %6799 = vmatprep.subr.bf16.mxu0 %v4853
        %6800 = vmatpush1.bf16.msra.mxu0 %v4852
        %6801 = vmatprep.subr.bf16.mxu0 %v4863
        %6802 = vmatpush1.bf16.msra.mxu0 %v4862
        %6803 = vmatprep.subr.bf16.mxu0 %v4873
        %6804 = vmatpush1.bf16.msra.mxu0 %v4872
        %6805 = vmatprep.subr.bf16.mxu0 %v4883
        %6806 = vmatpush1.bf16.msra.mxu0 %v4882
        %6807 = vmatprep.subr.bf16.mxu0 %v4893
        %6808 = vmatpush1.bf16.msra.mxu0 %v4892
        %6809 = vmatprep.subr.bf16.mxu0 %v4903
        %6810 = vmatpush1.bf16.msra.mxu0 %v4902
        %6811 = vmatprep.subr.bf16.mxu0 %v4913
        %6812 = vmatpush1.bf16.msra.mxu0 %v4912
        %6813 = vmatprep.subr.bf16.mxu0 %v4923
        %6814 = vmatpush1.bf16.msra.mxu0 %v4922
        %6815 = vmatprep.subr.bf16.mxu0 %v4933
        %6816 = vmatpush1.bf16.msra.mxu0 %v4932
        %6817 = vmatprep.subr.bf16.mxu0 %v4943
        %6818 = vmatpush1.bf16.msra.mxu0 %v4942
        %6819 = vmatprep.subr.bf16.mxu0 %v4953
        %6820 = vmatpush1.bf16.msra.mxu0 %v4952
        %6821 = vmatprep.subr.bf16.mxu0 %v4963
        %6822 = vmatpush1.bf16.msra.mxu0 %v4962
        %6823 = vmatprep.subr.bf16.mxu0 %v4973
        %6824 = vmatpush1.bf16.msra.mxu0 %v4972
        %6825 = vmatprep.subr.bf16.mxu0 %v4983
        %6826 = vmatpush1.bf16.msra.mxu0 %v4982
        %6827 = vmatprep.mubr.bf16.mxu0 %v1529
        %6828 = vmatmul.mubr.bf16.gmra.mrb[0].mxu0 %v1528
        %v6829 = vpop.f32.mrb[0].mxu0
        %v6830 = vadd.f32 %v6787, %v6829
        %v6831 = vpop.f32.mrb[0].mxu0
        %v6832 = vadd.f32 %v6789, %v6831
        %v6833 = vpop.f32.mrb[0].mxu0
        %v6834 = vadd.f32 %v6791, %v6833
        %v6835 = vpop.f32.mrb[0].mxu0
        %v6836 = vadd.f32 %v6793, %v6835
        %6837 = vdwg.mxu0
        %6838 = vmatprep.subr.bf16.mxu0 %v4993
        %6839 = vmatpush1.bf16.msra.mxu0 %v4992
        %6840 = vmatprep.subr.bf16.mxu0 %v5003
        %6841 = vmatpush1.bf16.msra.mxu0 %v5002
        %6842 = vmatprep.subr.bf16.mxu0 %v5013
        %6843 = vmatpush1.bf16.msra.mxu0 %v5012
        %6844 = vmatprep.subr.bf16.mxu0 %v5023
        %6845 = vmatpush1.bf16.msra.mxu0 %v5022
        %6846 = vmatprep.subr.bf16.mxu0 %v5033
        %6847 = vmatpush1.bf16.msra.mxu0 %v5032
        %6848 = vmatprep.subr.bf16.mxu0 %v5043
        %6849 = vmatpush1.bf16.msra.mxu0 %v5042
        %6850 = vmatprep.subr.bf16.mxu0 %v5053
        %6851 = vmatpush1.bf16.msra.mxu0 %v5052
        %6852 = vmatprep.subr.bf16.mxu0 %v5063
        %6853 = vmatpush1.bf16.msra.mxu0 %v5062
        %6854 = vmatprep.subr.bf16.mxu0 %v5073
        %6855 = vmatpush1.bf16.msra.mxu0 %v5072
        %6856 = vmatprep.subr.bf16.mxu0 %v5083
        %6857 = vmatpush1.bf16.msra.mxu0 %v5082
        %6858 = vmatprep.subr.bf16.mxu0 %v5093
        %6859 = vmatpush1.bf16.msra.mxu0 %v5092
        %6860 = vmatprep.subr.bf16.mxu0 %v5103
        %6861 = vmatpush1.bf16.msra.mxu0 %v5102
        %6862 = vmatprep.subr.bf16.mxu0 %v5113
        %6863 = vmatpush1.bf16.msra.mxu0 %v5112
        %6864 = vmatprep.subr.bf16.mxu0 %v5123
        %6865 = vmatpush1.bf16.msra.mxu0 %v5122
        %6866 = vmatprep.subr.bf16.mxu0 %v5133
        %6867 = vmatpush1.bf16.msra.mxu0 %v5132
        %6868 = vmatprep.subr.bf16.mxu0 %v5143
        %6869 = vmatpush1.bf16.msra.mxu0 %v5142
        %6870 = vmatprep.mubr.bf16.mxu0 %v1531
        %6871 = vmatmul.mubr.bf16.gmra.mrb[0].mxu0 %v1530
        %v6872 = vpop.f32.mrb[0].mxu0
        %v6873 = vadd.f32 %v6830, %v6872
        %v6874 = vpop.f32.mrb[0].mxu0
        %v6875 = vadd.f32 %v6832, %v6874
        %v6876 = vpop.f32.mrb[0].mxu0
        %v6877 = vadd.f32 %v6834, %v6876
        %v6878 = vpop.f32.mrb[0].mxu0
        %v6879 = vadd.f32 %v6836, %v6878
        %6880 = vdwg.mxu0
        %6881 = vmatprep.subr.bf16.mxu0 %v5153
        %6882 = vmatpush1.bf16.msra.mxu0 %v5152
        %6883 = vmatprep.subr.bf16.mxu0 %v5163
        %6884 = vmatpush1.bf16.msra.mxu0 %v5162
        %6885 = vmatprep.subr.bf16.mxu0 %v5173
        %6886 = vmatpush1.bf16.msra.mxu0 %v5172
        %6887 = vmatprep.subr.bf16.mxu0 %v5183
        %6888 = vmatpush1.bf16.msra.mxu0 %v5182
        %6889 = vmatprep.subr.bf16.mxu0 %v5193
        %6890 = vmatpush1.bf16.msra.mxu0 %v5192
        %6891 = vmatprep.subr.bf16.mxu0 %v5203
        %6892 = vmatpush1.bf16.msra.mxu0 %v5202
        %6893 = vmatprep.subr.bf16.mxu0 %v5213
        %6894 = vmatpush1.bf16.msra.mxu0 %v5212
        %6895 = vmatprep.subr.bf16.mxu0 %v5223
        %6896 = vmatpush1.bf16.msra.mxu0 %v5222
        %6897 = vmatprep.subr.bf16.mxu0 %v5233
        %6898 = vmatpush1.bf16.msra.mxu0 %v5232
        %6899 = vmatprep.subr.bf16.mxu0 %v5243
        %6900 = vmatpush1.bf16.msra.mxu0 %v5242
        %6901 = vmatprep.subr.bf16.mxu0 %v5253
        %6902 = vmatpush1.bf16.msra.mxu0 %v5252
        %6903 = vmatprep.subr.bf16.mxu0 %v5263
        %6904 = vmatpush1.bf16.msra.mxu0 %v5262
        %6905 = vmatprep.subr.bf16.mxu0 %v5273
        %6906 = vmatpush1.bf16.msra.mxu0 %v5272
        %6907 = vmatprep.subr.bf16.mxu0 %v5283
        %6908 = vmatpush1.bf16.msra.mxu0 %v5282
        %6909 = vmatprep.subr.bf16.mxu0 %v5293
        %6910 = vmatpush1.bf16.msra.mxu0 %v5292
        %6911 = vmatprep.subr.bf16.mxu0 %v5303
        %6912 = vmatpush1.bf16.msra.mxu0 %v5302
        %6913 = vmatprep.mubr.bf16.mxu0 %v1533
        %6914 = vmatmul.mubr.bf16.gmra.mrb[0].mxu0 %v1532
        %v6915 = vpop.f32.mrb[0].mxu0
        %v6916 = vadd.f32 %v6873, %v6915
        %v6917 = vpop.f32.mrb[0].mxu0
        %v6918 = vadd.f32 %v6875, %v6917
        %v6919 = vpop.f32.mrb[0].mxu0
        %v6920 = vadd.f32 %v6877, %v6919
        %v6921 = vpop.f32.mrb[0].mxu0
        %v6922 = vadd.f32 %v6879, %v6921
        %6923 = vdwg.mxu0
        %6924 = vmatprep.subr.bf16.mxu0 %v5313
        %6925 = vmatpush1.bf16.msra.mxu0 %v5312
        %6926 = vmatprep.subr.bf16.mxu0 %v5323
        %6927 = vmatpush1.bf16.msra.mxu0 %v5322
        %6928 = vmatprep.subr.bf16.mxu0 %v5333
        %6929 = vmatpush1.bf16.msra.mxu0 %v5332
        %6930 = vmatprep.subr.bf16.mxu0 %v5343
        %6931 = vmatpush1.bf16.msra.mxu0 %v5342
        %6932 = vmatprep.subr.bf16.mxu0 %v5353
        %6933 = vmatpush1.bf16.msra.mxu0 %v5352
        %6934 = vmatprep.subr.bf16.mxu0 %v5363
        %6935 = vmatpush1.bf16.msra.mxu0 %v5362
        %6936 = vmatprep.subr.bf16.mxu0 %v5373
        %6937 = vmatpush1.bf16.msra.mxu0 %v5372
        %6938 = vmatprep.subr.bf16.mxu0 %v5383
        %6939 = vmatpush1.bf16.msra.mxu0 %v5382
        %6940 = vmatprep.subr.bf16.mxu0 %v5393
        %6941 = vmatpush1.bf16.msra.mxu0 %v5392
        %6942 = vmatprep.subr.bf16.mxu0 %v5403
        %6943 = vmatpush1.bf16.msra.mxu0 %v5402
        %6944 = vmatprep.subr.bf16.mxu0 %v5413
        %6945 = vmatpush1.bf16.msra.mxu0 %v5412
        %6946 = vmatprep.subr.bf16.mxu0 %v5423
        %6947 = vmatpush1.bf16.msra.mxu0 %v5422
        %6948 = vmatprep.subr.bf16.mxu0 %v5433
        %6949 = vmatpush1.bf16.msra.mxu0 %v5432
        %6950 = vmatprep.subr.bf16.mxu0 %v5443
        %6951 = vmatpush1.bf16.msra.mxu0 %v5442
        %6952 = vmatprep.subr.bf16.mxu0 %v5453
        %6953 = vmatpush1.bf16.msra.mxu0 %v5452
        %6954 = vmatprep.subr.bf16.mxu0 %v5463
        %6955 = vmatpush1.bf16.msra.mxu0 %v5462
        %6956 = vmatprep.mubr.bf16.mxu0 %v1535
        %6957 = vmatmul.mubr.bf16.gmra.mrb[0].mxu0 %v1534
        %v6958 = vpop.f32.mrb[0].mxu0
        %v6959 = vadd.f32 %v6916, %v6958
        %v6960 = vpop.f32.mrb[0].mxu0
        %v6961 = vadd.f32 %v6918, %v6960
        %v6962 = vpop.f32.mrb[0].mxu0
        %v6963 = vadd.f32 %v6920, %v6962
        %v6964 = vpop.f32.mrb[0].mxu0
        %v6965 = vadd.f32 %v6922, %v6964
        %6966 = vdwg.mxu0
        %6967 = vmatprep.subr.bf16.mxu0 %v5473
        %6968 = vmatpush1.bf16.msra.mxu0 %v5472
        %6969 = vmatprep.subr.bf16.mxu0 %v5483
        %6970 = vmatpush1.bf16.msra.mxu0 %v5482
        %6971 = vmatprep.subr.bf16.mxu0 %v5493
        %6972 = vmatpush1.bf16.msra.mxu0 %v5492
        %6973 = vmatprep.subr.bf16.mxu0 %v5503
        %6974 = vmatpush1.bf16.msra.mxu0 %v5502
        %6975 = vmatprep.subr.bf16.mxu0 %v5513
        %6976 = vmatpush1.bf16.msra.mxu0 %v5512
        %6977 = vmatprep.subr.bf16.mxu0 %v5523
        %6978 = vmatpush1.bf16.msra.mxu0 %v5522
        %6979 = vmatprep.subr.bf16.mxu0 %v5533
        %6980 = vmatpush1.bf16.msra.mxu0 %v5532
        %6981 = vmatprep.subr.bf16.mxu0 %v5543
        %6982 = vmatpush1.bf16.msra.mxu0 %v5542
        %6983 = vmatprep.subr.bf16.mxu0 %v5553
        %6984 = vmatpush1.bf16.msra.mxu0 %v5552
        %6985 = vmatprep.subr.bf16.mxu0 %v5563
        %6986 = vmatpush1.bf16.msra.mxu0 %v5562
        %6987 = vmatprep.subr.bf16.mxu0 %v5573
        %6988 = vmatpush1.bf16.msra.mxu0 %v5572
        %6989 = vmatprep.subr.bf16.mxu0 %v5583
        %6990 = vmatpush1.bf16.msra.mxu0 %v5582
        %6991 = vmatprep.subr.bf16.mxu0 %v5593
        %6992 = vmatpush1.bf16.msra.mxu0 %v5592
        %6993 = vmatprep.subr.bf16.mxu0 %v5603
        %6994 = vmatpush1.bf16.msra.mxu0 %v5602
        %6995 = vmatprep.subr.bf16.mxu0 %v5613
        %6996 = vmatpush1.bf16.msra.mxu0 %v5612
        %6997 = vmatprep.subr.bf16.mxu0 %v5623
        %6998 = vmatpush1.bf16.msra.mxu0 %v5622
        %6999 = vmatprep.mubr.bf16.mxu0 %v1537
        %7000 = vmatmul.mubr.bf16.gmra.mrb[0].mxu0 %v1536
        %v7001 = vpop.f32.mrb[0].mxu0
        %v7002 = vadd.f32 %v6959, %v7001
        %v7003 = vpop.f32.mrb[0].mxu0
        %v7004 = vadd.f32 %v6961, %v7003
        %v7005 = vpop.f32.mrb[0].mxu0
        %v7006 = vadd.f32 %v6963, %v7005
        %v7007 = vpop.f32.mrb[0].mxu0
        %v7008 = vadd.f32 %v6965, %v7007
        %7009 = vdwg.mxu0
        %7010 = vmatprep.subr.bf16.mxu0 %v5633
        %7011 = vmatpush1.bf16.msra.mxu0 %v5632
        %7012 = vmatprep.subr.bf16.mxu0 %v5643
        %7013 = vmatpush1.bf16.msra.mxu0 %v5642
        %7014 = vmatprep.subr.bf16.mxu0 %v5653
        %7015 = vmatpush1.bf16.msra.mxu0 %v5652
        %7016 = vmatprep.subr.bf16.mxu0 %v5663
        %7017 = vmatpush1.bf16.msra.mxu0 %v5662
        %7018 = vmatprep.subr.bf16.mxu0 %v5673
        %7019 = vmatpush1.bf16.msra.mxu0 %v5672
        %7020 = vmatprep.subr.bf16.mxu0 %v5683
        %7021 = vmatpush1.bf16.msra.mxu0 %v5682
        %7022 = vmatprep.subr.bf16.mxu0 %v5693
        %7023 = vmatpush1.bf16.msra.mxu0 %v5692
        %7024 = vmatprep.subr.bf16.mxu0 %v5703
        %7025 = vmatpush1.bf16.msra.mxu0 %v5702
        %7026 = vmatprep.subr.bf16.mxu0 0
        %7027 = vmatpush1.bf16.msra.mxu0 0
        %7028 = vmatprep.subr.bf16.mxu0 0
        %7029 = vmatpush1.bf16.msra.mxu0 0
        %7030 = vmatprep.subr.bf16.mxu0 0
        %7031 = vmatpush1.bf16.msra.mxu0 0
        %7032 = vmatprep.subr.bf16.mxu0 0
        %7033 = vmatpush1.bf16.msra.mxu0 0
        %7034 = vmatprep.subr.bf16.mxu0 0
        %7035 = vmatpush1.bf16.msra.mxu0 0
        %7036 = vmatprep.subr.bf16.mxu0 0
        %7037 = vmatpush1.bf16.msra.mxu0 0
        %7038 = vmatprep.subr.bf16.mxu0 0
        %7039 = vmatpush1.bf16.msra.mxu0 0
        %7040 = vmatprep.subr.bf16.mxu0 0
        %7041 = vmatpush1.bf16.msra.mxu0 0
        %7042 = vmatprep.mubr.bf16.mxu0 0
        %7043 = vmatmul.mubr.bf16.gmra.mrb[0].mxu0 %v1538
        %v7044 = vpop.f32.mrb[0].mxu0
        %v7045 = vadd.f32 %v7002, %v7044
        %v7046 = vpop.f32.mrb[0].mxu0
        %v7047 = vadd.f32 %v7004, %v7046
        %v7048 = vpop.f32.mrb[0].mxu0
        %v7049 = vadd.f32 %v7006, %v7048
        %v7050 = vpop.f32.mrb[0].mxu0
        %v7051 = vadd.f32 %v7008, %v7050
        %7052 = vdwg.mxu0
        %7053 = vmatprep.subr.bf16.mxu0 %v4675
        %7054 = vmatpush1.bf16.msra.mxu0 %v4674
        %7055 = vmatprep.subr.bf16.mxu0 %v4685
        %7056 = vmatpush1.bf16.msra.mxu0 %v4684
        %7057 = vmatprep.subr.bf16.mxu0 %v4695
        %7058 = vmatpush1.bf16.msra.mxu0 %v4694
        %7059 = vmatprep.subr.bf16.mxu0 %v4705
        %7060 = vmatpush1.bf16.msra.mxu0 %v4704
        %7061 = vmatprep.subr.bf16.mxu0 %v4715
        %7062 = vmatpush1.bf16.msra.mxu0 %v4714
        %7063 = vmatprep.subr.bf16.mxu0 %v4725
        %7064 = vmatpush1.bf16.msra.mxu0 %v4724
        %7065 = vmatprep.subr.bf16.mxu0 %v4735
        %7066 = vmatpush1.bf16.msra.mxu0 %v4734
        %7067 = vmatprep.subr.bf16.mxu0 %v4745
        %7068 = vmatpush1.bf16.msra.mxu0 %v4744
        %7069 = vmatprep.subr.bf16.mxu0 %v4755
        %7070 = vmatpush1.bf16.msra.mxu0 %v4754
        %7071 = vmatprep.subr.bf16.mxu0 %v4765
        %7072 = vmatpush1.bf16.msra.mxu0 %v4764
        %7073 = vmatprep.subr.bf16.mxu0 %v4775
        %7074 = vmatpush1.bf16.msra.mxu0 %v4774
        %7075 = vmatprep.subr.bf16.mxu0 %v4785
        %7076 = vmatpush1.bf16.msra.mxu0 %v4784
        %7077 = vmatprep.subr.bf16.mxu0 %v4795
        %7078 = vmatpush1.bf16.msra.mxu0 %v4794
        %7079 = vmatprep.subr.bf16.mxu0 %v4805
        %7080 = vmatpush1.bf16.msra.mxu0 %v4804
        %7081 = vmatprep.subr.bf16.mxu0 %v4815
        %7082 = vmatpush1.bf16.msra.mxu0 %v4814
        %7083 = vmatprep.subr.bf16.mxu0 %v4825
        %7084 = vmatpush1.bf16.msra.mxu0 %v4824
        %7085 = vmatprep.mubr.bf16.mxu0 %v1527
        %7086 = vmatmul.mubr.bf16.gmra.mrb[0].mxu0 %v1526
        %v7087 = vpop.f32.mrb[0].mxu0
        %v7088 = vadd.f32 0.0, %v7087
        %v7089 = vpop.f32.mrb[0].mxu0
        %v7090 = vadd.f32 0.0, %v7089
        %v7091 = vpop.f32.mrb[0].mxu0
        %v7092 = vadd.f32 0.0, %v7091
        %v7093 = vpop.f32.mrb[0].mxu0
        %v7094 = vadd.f32 0.0, %v7093
        %7095 = vdwg.mxu0
        %7096 = vmatprep.subr.bf16.mxu0 %v4835
        %7097 = vmatpush1.bf16.msra.mxu0 %v4834
        %7098 = vmatprep.subr.bf16.mxu0 %v4845
        %7099 = vmatpush1.bf16.msra.mxu0 %v4844
        %7100 = vmatprep.subr.bf16.mxu0 %v4855
        %7101 = vmatpush1.bf16.msra.mxu0 %v4854
        %7102 = vmatprep.subr.bf16.mxu0 %v4865
        %7103 = vmatpush1.bf16.msra.mxu0 %v4864
        %7104 = vmatprep.subr.bf16.mxu0 %v4875
        %7105 = vmatpush1.bf16.msra.mxu0 %v4874
        %7106 = vmatprep.subr.bf16.mxu0 %v4885
        %7107 = vmatpush1.bf16.msra.mxu0 %v4884
        %7108 = vmatprep.subr.bf16.mxu0 %v4895
        %7109 = vmatpush1.bf16.msra.mxu0 %v4894
        %7110 = vmatprep.subr.bf16.mxu0 %v4905
        %7111 = vmatpush1.bf16.msra.mxu0 %v4904
        %7112 = vmatprep.subr.bf16.mxu0 %v4915
        %7113 = vmatpush1.bf16.msra.mxu0 %v4914
        %7114 = vmatprep.subr.bf16.mxu0 %v4925
        %7115 = vmatpush1.bf16.msra.mxu0 %v4924
        %7116 = vmatprep.subr.bf16.mxu0 %v4935
        %7117 = vmatpush1.bf16.msra.mxu0 %v4934
        %7118 = vmatprep.subr.bf16.mxu0 %v4945
        %7119 = vmatpush1.bf16.msra.mxu0 %v4944
        %7120 = vmatprep.subr.bf16.mxu0 %v4955
        %7121 = vmatpush1.bf16.msra.mxu0 %v4954
        %7122 = vmatprep.subr.bf16.mxu0 %v4965
        %7123 = vmatpush1.bf16.msra.mxu0 %v4964
        %7124 = vmatprep.subr.bf16.mxu0 %v4975
        %7125 = vmatpush1.bf16.msra.mxu0 %v4974
        %7126 = vmatprep.subr.bf16.mxu0 %v4985
        %7127 = vmatpush1.bf16.msra.mxu0 %v4984
        %7128 = vmatprep.mubr.bf16.mxu0 %v1529
        %7129 = vmatmul.mubr.bf16.gmra.mrb[0].mxu0 %v1528
        %v7130 = vpop.f32.mrb[0].mxu0
        %v7131 = vadd.f32 %v7088, %v7130
        %v7132 = vpop.f32.mrb[0].mxu0
        %v7133 = vadd.f32 %v7090, %v7132
        %v7134 = vpop.f32.mrb[0].mxu0
        %v7135 = vadd.f32 %v7092, %v7134
        %v7136 = vpop.f32.mrb[0].mxu0
        %v7137 = vadd.f32 %v7094, %v7136
        %7138 = vdwg.mxu0
        %7139 = vmatprep.subr.bf16.mxu0 %v4995
        %7140 = vmatpush1.bf16.msra.mxu0 %v4994
        %7141 = vmatprep.subr.bf16.mxu0 %v5005
        %7142 = vmatpush1.bf16.msra.mxu0 %v5004
        %7143 = vmatprep.subr.bf16.mxu0 %v5015
        %7144 = vmatpush1.bf16.msra.mxu0 %v5014
        %7145 = vmatprep.subr.bf16.mxu0 %v5025
        %7146 = vmatpush1.bf16.msra.mxu0 %v5024
        %7147 = vmatprep.subr.bf16.mxu0 %v5035
        %7148 = vmatpush1.bf16.msra.mxu0 %v5034
        %7149 = vmatprep.subr.bf16.mxu0 %v5045
        %7150 = vmatpush1.bf16.msra.mxu0 %v5044
        %7151 = vmatprep.subr.bf16.mxu0 %v5055
        %7152 = vmatpush1.bf16.msra.mxu0 %v5054
        %7153 = vmatprep.subr.bf16.mxu0 %v5065
        %7154 = vmatpush1.bf16.msra.mxu0 %v5064
        %7155 = vmatprep.subr.bf16.mxu0 %v5075
        %7156 = vmatpush1.bf16.msra.mxu0 %v5074
        %7157 = vmatprep.subr.bf16.mxu0 %v5085
        %7158 = vmatpush1.bf16.msra.mxu0 %v5084
        %7159 = vmatprep.subr.bf16.mxu0 %v5095
        %7160 = vmatpush1.bf16.msra.mxu0 %v5094
        %7161 = vmatprep.subr.bf16.mxu0 %v5105
        %7162 = vmatpush1.bf16.msra.mxu0 %v5104
        %7163 = vmatprep.subr.bf16.mxu0 %v5115
        %7164 = vmatpush1.bf16.msra.mxu0 %v5114
        %7165 = vmatprep.subr.bf16.mxu0 %v5125
        %7166 = vmatpush1.bf16.msra.mxu0 %v5124
        %7167 = vmatprep.subr.bf16.mxu0 %v5135
        %7168 = vmatpush1.bf16.msra.mxu0 %v5134
        %7169 = vmatprep.subr.bf16.mxu0 %v5145
        %7170 = vmatpush1.bf16.msra.mxu0 %v5144
        %7171 = vmatprep.mubr.bf16.mxu0 %v1531
        %7172 = vmatmul.mubr.bf16.gmra.mrb[0].mxu0 %v1530
        %v7173 = vpop.f32.mrb[0].mxu0
        %v7174 = vadd.f32 %v7131, %v7173
        %v7175 = vpop.f32.mrb[0].mxu0
        %v7176 = vadd.f32 %v7133, %v7175
        %v7177 = vpop.f32.mrb[0].mxu0
        %v7178 = vadd.f32 %v7135, %v7177
        %v7179 = vpop.f32.mrb[0].mxu0
        %v7180 = vadd.f32 %v7137, %v7179
        %7181 = vdwg.mxu0
        %7182 = vmatprep.subr.bf16.mxu0 %v5155
        %7183 = vmatpush1.bf16.msra.mxu0 %v5154
        %7184 = vmatprep.subr.bf16.mxu0 %v5165
        %7185 = vmatpush1.bf16.msra.mxu0 %v5164
        %7186 = vmatprep.subr.bf16.mxu0 %v5175
        %7187 = vmatpush1.bf16.msra.mxu0 %v5174
        %7188 = vmatprep.subr.bf16.mxu0 %v5185
        %7189 = vmatpush1.bf16.msra.mxu0 %v5184
        %7190 = vmatprep.subr.bf16.mxu0 %v5195
        %7191 = vmatpush1.bf16.msra.mxu0 %v5194
        %7192 = vmatprep.subr.bf16.mxu0 %v5205
        %7193 = vmatpush1.bf16.msra.mxu0 %v5204
        %7194 = vmatprep.subr.bf16.mxu0 %v5215
        %7195 = vmatpush1.bf16.msra.mxu0 %v5214
        %7196 = vmatprep.subr.bf16.mxu0 %v5225
        %7197 = vmatpush1.bf16.msra.mxu0 %v5224
        %7198 = vmatprep.subr.bf16.mxu0 %v5235
        %7199 = vmatpush1.bf16.msra.mxu0 %v5234
        %7200 = vmatprep.subr.bf16.mxu0 %v5245
        %7201 = vmatpush1.bf16.msra.mxu0 %v5244
        %7202 = vmatprep.subr.bf16.mxu0 %v5255
        %7203 = vmatpush1.bf16.msra.mxu0 %v5254
        %7204 = vmatprep.subr.bf16.mxu0 %v5265
        %7205 = vmatpush1.bf16.msra.mxu0 %v5264
        %7206 = vmatprep.subr.bf16.mxu0 %v5275
        %7207 = vmatpush1.bf16.msra.mxu0 %v5274
        %7208 = vmatprep.subr.bf16.mxu0 %v5285
        %7209 = vmatpush1.bf16.msra.mxu0 %v5284
        %7210 = vmatprep.subr.bf16.mxu0 %v5295
        %7211 = vmatpush1.bf16.msra.mxu0 %v5294
        %7212 = vmatprep.subr.bf16.mxu0 %v5305
        %7213 = vmatpush1.bf16.msra.mxu0 %v5304
        %7214 = vmatprep.mubr.bf16.mxu0 %v1533
        %7215 = vmatmul.mubr.bf16.gmra.mrb[0].mxu0 %v1532
        %v7216 = vpop.f32.mrb[0].mxu0
        %v7217 = vadd.f32 %v7174, %v7216
        %v7218 = vpop.f32.mrb[0].mxu0
        %v7219 = vadd.f32 %v7176, %v7218
        %v7220 = vpop.f32.mrb[0].mxu0
        %v7221 = vadd.f32 %v7178, %v7220
        %v7222 = vpop.f32.mrb[0].mxu0
        %v7223 = vadd.f32 %v7180, %v7222
        %7224 = vdwg.mxu0
        %7225 = vmatprep.subr.bf16.mxu0 %v5315
        %7226 = vmatpush1.bf16.msra.mxu0 %v5314
        %7227 = vmatprep.subr.bf16.mxu0 %v5325
        %7228 = vmatpush1.bf16.msra.mxu0 %v5324
        %7229 = vmatprep.subr.bf16.mxu0 %v5335
        %7230 = vmatpush1.bf16.msra.mxu0 %v5334
        %7231 = vmatprep.subr.bf16.mxu0 %v5345
        %7232 = vmatpush1.bf16.msra.mxu0 %v5344
        %7233 = vmatprep.subr.bf16.mxu0 %v5355
        %7234 = vmatpush1.bf16.msra.mxu0 %v5354
        %7235 = vmatprep.subr.bf16.mxu0 %v5365
        %7236 = vmatpush1.bf16.msra.mxu0 %v5364
        %7237 = vmatprep.subr.bf16.mxu0 %v5375
        %7238 = vmatpush1.bf16.msra.mxu0 %v5374
        %7239 = vmatprep.subr.bf16.mxu0 %v5385
        %7240 = vmatpush1.bf16.msra.mxu0 %v5384
        %7241 = vmatprep.subr.bf16.mxu0 %v5395
        %7242 = vmatpush1.bf16.msra.mxu0 %v5394
        %7243 = vmatprep.subr.bf16.mxu0 %v5405
        %7244 = vmatpush1.bf16.msra.mxu0 %v5404
        %7245 = vmatprep.subr.bf16.mxu0 %v5415
        %7246 = vmatpush1.bf16.msra.mxu0 %v5414
        %7247 = vmatprep.subr.bf16.mxu0 %v5425
        %7248 = vmatpush1.bf16.msra.mxu0 %v5424
        %7249 = vmatprep.subr.bf16.mxu0 %v5435
        %7250 = vmatpush1.bf16.msra.mxu0 %v5434
        %7251 = vmatprep.subr.bf16.mxu0 %v5445
        %7252 = vmatpush1.bf16.msra.mxu0 %v5444
        %7253 = vmatprep.subr.bf16.mxu0 %v5455
        %7254 = vmatpush1.bf16.msra.mxu0 %v5454
        %7255 = vmatprep.subr.bf16.mxu0 %v5465
        %7256 = vmatpush1.bf16.msra.mxu0 %v5464
        %7257 = vmatprep.mubr.bf16.mxu0 %v1535
        %7258 = vmatmul.mubr.bf16.gmra.mrb[0].mxu0 %v1534
        %v7259 = vpop.f32.mrb[0].mxu0
        %v7260 = vadd.f32 %v7217, %v7259
        %v7261 = vpop.f32.mrb[0].mxu0
        %v7262 = vadd.f32 %v7219, %v7261
        %v7263 = vpop.f32.mrb[0].mxu0
        %v7264 = vadd.f32 %v7221, %v7263
        %v7265 = vpop.f32.mrb[0].mxu0
        %v7266 = vadd.f32 %v7223, %v7265
        %7267 = vdwg.mxu0
        %7268 = vmatprep.subr.bf16.mxu0 %v5475
        %7269 = vmatpush1.bf16.msra.mxu0 %v5474
        %7270 = vmatprep.subr.bf16.mxu0 %v5485
        %7271 = vmatpush1.bf16.msra.mxu0 %v5484
        %7272 = vmatprep.subr.bf16.mxu0 %v5495
        %7273 = vmatpush1.bf16.msra.mxu0 %v5494
        %7274 = vmatprep.subr.bf16.mxu0 %v5505
        %7275 = vmatpush1.bf16.msra.mxu0 %v5504
        %7276 = vmatprep.subr.bf16.mxu0 %v5515
        %7277 = vmatpush1.bf16.msra.mxu0 %v5514
        %7278 = vmatprep.subr.bf16.mxu0 %v5525
        %7279 = vmatpush1.bf16.msra.mxu0 %v5524
        %7280 = vmatprep.subr.bf16.mxu0 %v5535
        %7281 = vmatpush1.bf16.msra.mxu0 %v5534
        %7282 = vmatprep.subr.bf16.mxu0 %v5545
        %7283 = vmatpush1.bf16.msra.mxu0 %v5544
        %7284 = vmatprep.subr.bf16.mxu0 %v5555
        %7285 = vmatpush1.bf16.msra.mxu0 %v5554
        %7286 = vmatprep.subr.bf16.mxu0 %v5565
        %7287 = vmatpush1.bf16.msra.mxu0 %v5564
        %7288 = vmatprep.subr.bf16.mxu0 %v5575
        %7289 = vmatpush1.bf16.msra.mxu0 %v5574
        %7290 = vmatprep.subr.bf16.mxu0 %v5585
        %7291 = vmatpush1.bf16.msra.mxu0 %v5584
        %7292 = vmatprep.subr.bf16.mxu0 %v5595
        %7293 = vmatpush1.bf16.msra.mxu0 %v5594
        %7294 = vmatprep.subr.bf16.mxu0 %v5605
        %7295 = vmatpush1.bf16.msra.mxu0 %v5604
        %7296 = vmatprep.subr.bf16.mxu0 %v5615
        %7297 = vmatpush1.bf16.msra.mxu0 %v5614
        %7298 = vmatprep.subr.bf16.mxu0 %v5625
        %7299 = vmatpush1.bf16.msra.mxu0 %v5624
        %7300 = vmatprep.mubr.bf16.mxu0 %v1537
        %7301 = vmatmul.mubr.bf16.gmra.mrb[0].mxu0 %v1536
        %v7302 = vpop.f32.mrb[0].mxu0
        %v7303 = vadd.f32 %v7260, %v7302
        %v7304 = vpop.f32.mrb[0].mxu0
        %v7305 = vadd.f32 %v7262, %v7304
        %v7306 = vpop.f32.mrb[0].mxu0
        %v7307 = vadd.f32 %v7264, %v7306
        %v7308 = vpop.f32.mrb[0].mxu0
        %v7309 = vadd.f32 %v7266, %v7308
        %7310 = vdwg.mxu0
        %7311 = vmatprep.subr.bf16.mxu0 %v5635
        %7312 = vmatpush1.bf16.msra.mxu0 %v5634
        %7313 = vmatprep.subr.bf16.mxu0 %v5645
        %7314 = vmatpush1.bf16.msra.mxu0 %v5644
        %7315 = vmatprep.subr.bf16.mxu0 %v5655
        %7316 = vmatpush1.bf16.msra.mxu0 %v5654
        %7317 = vmatprep.subr.bf16.mxu0 %v5665
        %7318 = vmatpush1.bf16.msra.mxu0 %v5664
        %7319 = vmatprep.subr.bf16.mxu0 %v5675
        %7320 = vmatpush1.bf16.msra.mxu0 %v5674
        %7321 = vmatprep.subr.bf16.mxu0 %v5685
        %7322 = vmatpush1.bf16.msra.mxu0 %v5684
        %7323 = vmatprep.subr.bf16.mxu0 %v5695
        %7324 = vmatpush1.bf16.msra.mxu0 %v5694
        %7325 = vmatprep.subr.bf16.mxu0 %v5705
        %7326 = vmatpush1.bf16.msra.mxu0 %v5704
        %7327 = vmatprep.subr.bf16.mxu0 0
        %7328 = vmatpush1.bf16.msra.mxu0 0
        %7329 = vmatprep.subr.bf16.mxu0 0
        %7330 = vmatpush1.bf16.msra.mxu0 0
        %7331 = vmatprep.subr.bf16.mxu0 0
        %7332 = vmatpush1.bf16.msra.mxu0 0
        %7333 = vmatprep.subr.bf16.mxu0 0
        %7334 = vmatpush1.bf16.msra.mxu0 0
        %7335 = vmatprep.subr.bf16.mxu0 0
        %7336 = vmatpush1.bf16.msra.mxu0 0
        %7337 = vmatprep.subr.bf16.mxu0 0
        %7338 = vmatpush1.bf16.msra.mxu0 0
        %7339 = vmatprep.subr.bf16.mxu0 0
        %7340 = vmatpush1.bf16.msra.mxu0 0
        %7341 = vmatprep.subr.bf16.mxu0 0
        %7342 = vmatpush1.bf16.msra.mxu0 0
        %7343 = vmatprep.mubr.bf16.mxu0 0
        %7344 = vmatmul.mubr.bf16.gmra.mrb[0].mxu0 %v1538
        %v7345 = vpop.f32.mrb[0].mxu0
        %v7346 = vadd.f32 %v7303, %v7345
        %v7347 = vpop.f32.mrb[0].mxu0
        %v7348 = vadd.f32 %v7305, %v7347
        %v7349 = vpop.f32.mrb[0].mxu0
        %v7350 = vadd.f32 %v7307, %v7349
        %v7351 = vpop.f32.mrb[0].mxu0
        %v7352 = vadd.f32 %v7309, %v7351
        %7353 = vdwg.mxu0
        %7354 = vmatprep.subr.bf16.mxu0 %v4677
        %7355 = vmatpush1.bf16.msra.mxu0 %v4676
        %7356 = vmatprep.subr.bf16.mxu0 %v4687
        %7357 = vmatpush1.bf16.msra.mxu0 %v4686
        %7358 = vmatprep.subr.bf16.mxu0 %v4697
        %7359 = vmatpush1.bf16.msra.mxu0 %v4696
        %7360 = vmatprep.subr.bf16.mxu0 %v4707
        %7361 = vmatpush1.bf16.msra.mxu0 %v4706
        %7362 = vmatprep.subr.bf16.mxu0 %v4717
        %7363 = vmatpush1.bf16.msra.mxu0 %v4716
        %7364 = vmatprep.subr.bf16.mxu0 %v4727
        %7365 = vmatpush1.bf16.msra.mxu0 %v4726
        %7366 = vmatprep.subr.bf16.mxu0 %v4737
        %7367 = vmatpush1.bf16.msra.mxu0 %v4736
        %7368 = vmatprep.subr.bf16.mxu0 %v4747
        %7369 = vmatpush1.bf16.msra.mxu0 %v4746
        %7370 = vmatprep.subr.bf16.mxu0 %v4757
        %7371 = vmatpush1.bf16.msra.mxu0 %v4756
        %7372 = vmatprep.subr.bf16.mxu0 %v4767
        %7373 = vmatpush1.bf16.msra.mxu0 %v4766
        %7374 = vmatprep.subr.bf16.mxu0 %v4777
        %7375 = vmatpush1.bf16.msra.mxu0 %v4776
        %7376 = vmatprep.subr.bf16.mxu0 %v4787
        %7377 = vmatpush1.bf16.msra.mxu0 %v4786
        %7378 = vmatprep.subr.bf16.mxu0 %v4797
        %7379 = vmatpush1.bf16.msra.mxu0 %v4796
        %7380 = vmatprep.subr.bf16.mxu0 %v4807
        %7381 = vmatpush1.bf16.msra.mxu0 %v4806
        %7382 = vmatprep.subr.bf16.mxu0 %v4817
        %7383 = vmatpush1.bf16.msra.mxu0 %v4816
        %7384 = vmatprep.subr.bf16.mxu0 %v4827
        %7385 = vmatpush1.bf16.msra.mxu0 %v4826
        %7386 = vmatprep.mubr.bf16.mxu0 %v1527
        %7387 = vmatmul.mubr.bf16.gmra.mrb[0].mxu0 %v1526
        %v7388 = vpop.f32.mrb[0].mxu0
        %v7389 = vadd.f32 0.0, %v7388
        %v7390 = vpop.f32.mrb[0].mxu0
        %v7391 = vadd.f32 0.0, %v7390
        %v7392 = vpop.f32.mrb[0].mxu0
        %v7393 = vadd.f32 0.0, %v7392
        %v7394 = vpop.f32.mrb[0].mxu0
        %v7395 = vadd.f32 0.0, %v7394
        %7396 = vdwg.mxu0
        %7397 = vmatprep.subr.bf16.mxu0 %v4837
        %7398 = vmatpush1.bf16.msra.mxu0 %v4836
        %7399 = vmatprep.subr.bf16.mxu0 %v4847
        %7400 = vmatpush1.bf16.msra.mxu0 %v4846
        %7401 = vmatprep.subr.bf16.mxu0 %v4857
        %7402 = vmatpush1.bf16.msra.mxu0 %v4856
        %7403 = vmatprep.subr.bf16.mxu0 %v4867
        %7404 = vmatpush1.bf16.msra.mxu0 %v4866
        %7405 = vmatprep.subr.bf16.mxu0 %v4877
        %7406 = vmatpush1.bf16.msra.mxu0 %v4876
        %7407 = vmatprep.subr.bf16.mxu0 %v4887
        %7408 = vmatpush1.bf16.msra.mxu0 %v4886
        %7409 = vmatprep.subr.bf16.mxu0 %v4897
        %7410 = vmatpush1.bf16.msra.mxu0 %v4896
        %7411 = vmatprep.subr.bf16.mxu0 %v4907
        %7412 = vmatpush1.bf16.msra.mxu0 %v4906
        %7413 = vmatprep.subr.bf16.mxu0 %v4917
        %7414 = vmatpush1.bf16.msra.mxu0 %v4916
        %7415 = vmatprep.subr.bf16.mxu0 %v4927
        %7416 = vmatpush1.bf16.msra.mxu0 %v4926
        %7417 = vmatprep.subr.bf16.mxu0 %v4937
        %7418 = vmatpush1.bf16.msra.mxu0 %v4936
        %7419 = vmatprep.subr.bf16.mxu0 %v4947
        %7420 = vmatpush1.bf16.msra.mxu0 %v4946
        %7421 = vmatprep.subr.bf16.mxu0 %v4957
        %7422 = vmatpush1.bf16.msra.mxu0 %v4956
        %7423 = vmatprep.subr.bf16.mxu0 %v4967
        %7424 = vmatpush1.bf16.msra.mxu0 %v4966
        %7425 = vmatprep.subr.bf16.mxu0 %v4977
        %7426 = vmatpush1.bf16.msra.mxu0 %v4976
        %7427 = vmatprep.subr.bf16.mxu0 %v4987
        %7428 = vmatpush1.bf16.msra.mxu0 %v4986
        %7429 = vmatprep.mubr.bf16.mxu0 %v1529
        %7430 = vmatmul.mubr.bf16.gmra.mrb[0].mxu0 %v1528
        %v7431 = vpop.f32.mrb[0].mxu0
        %v7432 = vadd.f32 %v7389, %v7431
        %v7433 = vpop.f32.mrb[0].mxu0
        %v7434 = vadd.f32 %v7391, %v7433
        %v7435 = vpop.f32.mrb[0].mxu0
        %v7436 = vadd.f32 %v7393, %v7435
        %v7437 = vpop.f32.mrb[0].mxu0
        %v7438 = vadd.f32 %v7395, %v7437
        %7439 = vdwg.mxu0
        %7440 = vmatprep.subr.bf16.mxu0 %v4997
        %7441 = vmatpush1.bf16.msra.mxu0 %v4996
        %7442 = vmatprep.subr.bf16.mxu0 %v5007
        %7443 = vmatpush1.bf16.msra.mxu0 %v5006
        %7444 = vmatprep.subr.bf16.mxu0 %v5017
        %7445 = vmatpush1.bf16.msra.mxu0 %v5016
        %7446 = vmatprep.subr.bf16.mxu0 %v5027
        %7447 = vmatpush1.bf16.msra.mxu0 %v5026
        %7448 = vmatprep.subr.bf16.mxu0 %v5037
        %7449 = vmatpush1.bf16.msra.mxu0 %v5036
        %7450 = vmatprep.subr.bf16.mxu0 %v5047
        %7451 = vmatpush1.bf16.msra.mxu0 %v5046
        %7452 = vmatprep.subr.bf16.mxu0 %v5057
        %7453 = vmatpush1.bf16.msra.mxu0 %v5056
        %7454 = vmatprep.subr.bf16.mxu0 %v5067
        %7455 = vmatpush1.bf16.msra.mxu0 %v5066
        %7456 = vmatprep.subr.bf16.mxu0 %v5077
        %7457 = vmatpush1.bf16.msra.mxu0 %v5076
        %7458 = vmatprep.subr.bf16.mxu0 %v5087
        %7459 = vmatpush1.bf16.msra.mxu0 %v5086
        %7460 = vmatprep.subr.bf16.mxu0 %v5097
        %7461 = vmatpush1.bf16.msra.mxu0 %v5096
        %7462 = vmatprep.subr.bf16.mxu0 %v5107
        %7463 = vmatpush1.bf16.msra.mxu0 %v5106
        %7464 = vmatprep.subr.bf16.mxu0 %v5117
        %7465 = vmatpush1.bf16.msra.mxu0 %v5116
        %7466 = vmatprep.subr.bf16.mxu0 %v5127
        %7467 = vmatpush1.bf16.msra.mxu0 %v5126
        %7468 = vmatprep.subr.bf16.mxu0 %v5137
        %7469 = vmatpush1.bf16.msra.mxu0 %v5136
        %7470 = vmatprep.subr.bf16.mxu0 %v5147
        %7471 = vmatpush1.bf16.msra.mxu0 %v5146
        %7472 = vmatprep.mubr.bf16.mxu0 %v1531
        %7473 = vmatmul.mubr.bf16.gmra.mrb[0].mxu0 %v1530
        %v7474 = vpop.f32.mrb[0].mxu0
        %v7475 = vadd.f32 %v7432, %v7474
        %v7476 = vpop.f32.mrb[0].mxu0
        %v7477 = vadd.f32 %v7434, %v7476
        %v7478 = vpop.f32.mrb[0].mxu0
        %v7479 = vadd.f32 %v7436, %v7478
        %v7480 = vpop.f32.mrb[0].mxu0
        %v7481 = vadd.f32 %v7438, %v7480
        %7482 = vdwg.mxu0
        %7483 = vmatprep.subr.bf16.mxu0 %v5157
        %7484 = vmatpush1.bf16.msra.mxu0 %v5156
        %7485 = vmatprep.subr.bf16.mxu0 %v5167
        %7486 = vmatpush1.bf16.msra.mxu0 %v5166
        %7487 = vmatprep.subr.bf16.mxu0 %v5177
        %7488 = vmatpush1.bf16.msra.mxu0 %v5176
        %7489 = vmatprep.subr.bf16.mxu0 %v5187
        %7490 = vmatpush1.bf16.msra.mxu0 %v5186
        %7491 = vmatprep.subr.bf16.mxu0 %v5197
        %7492 = vmatpush1.bf16.msra.mxu0 %v5196
        %7493 = vmatprep.subr.bf16.mxu0 %v5207
        %7494 = vmatpush1.bf16.msra.mxu0 %v5206
        %7495 = vmatprep.subr.bf16.mxu0 %v5217
        %7496 = vmatpush1.bf16.msra.mxu0 %v5216
        %7497 = vmatprep.subr.bf16.mxu0 %v5227
        %7498 = vmatpush1.bf16.msra.mxu0 %v5226
        %7499 = vmatprep.subr.bf16.mxu0 %v5237
        %7500 = vmatpush1.bf16.msra.mxu0 %v5236
        %7501 = vmatprep.subr.bf16.mxu0 %v5247
        %7502 = vmatpush1.bf16.msra.mxu0 %v5246
        %7503 = vmatprep.subr.bf16.mxu0 %v5257
        %7504 = vmatpush1.bf16.msra.mxu0 %v5256
        %7505 = vmatprep.subr.bf16.mxu0 %v5267
        %7506 = vmatpush1.bf16.msra.mxu0 %v5266
        %7507 = vmatprep.subr.bf16.mxu0 %v5277
        %7508 = vmatpush1.bf16.msra.mxu0 %v5276
        %7509 = vmatprep.subr.bf16.mxu0 %v5287
        %7510 = vmatpush1.bf16.msra.mxu0 %v5286
        %7511 = vmatprep.subr.bf16.mxu0 %v5297
        %7512 = vmatpush1.bf16.msra.mxu0 %v5296
        %7513 = vmatprep.subr.bf16.mxu0 %v5307
        %7514 = vmatpush1.bf16.msra.mxu0 %v5306
        %7515 = vmatprep.mubr.bf16.mxu0 %v1533
        %7516 = vmatmul.mubr.bf16.gmra.mrb[0].mxu0 %v1532
        %v7517 = vpop.f32.mrb[0].mxu0
        %v7518 = vadd.f32 %v7475, %v7517
        %v7519 = vpop.f32.mrb[0].mxu0
        %v7520 = vadd.f32 %v7477, %v7519
        %v7521 = vpop.f32.mrb[0].mxu0
        %v7522 = vadd.f32 %v7479, %v7521
        %v7523 = vpop.f32.mrb[0].mxu0
        %v7524 = vadd.f32 %v7481, %v7523
        %7525 = vdwg.mxu0
        %7526 = vmatprep.subr.bf16.mxu0 %v5317
        %7527 = vmatpush1.bf16.msra.mxu0 %v5316
        %7528 = vmatprep.subr.bf16.mxu0 %v5327
        %7529 = vmatpush1.bf16.msra.mxu0 %v5326
        %7530 = vmatprep.subr.bf16.mxu0 %v5337
        %7531 = vmatpush1.bf16.msra.mxu0 %v5336
        %7532 = vmatprep.subr.bf16.mxu0 %v5347
        %7533 = vmatpush1.bf16.msra.mxu0 %v5346
        %7534 = vmatprep.subr.bf16.mxu0 %v5357
        %7535 = vmatpush1.bf16.msra.mxu0 %v5356
        %7536 = vmatprep.subr.bf16.mxu0 %v5367
        %7537 = vmatpush1.bf16.msra.mxu0 %v5366
        %7538 = vmatprep.subr.bf16.mxu0 %v5377
        %7539 = vmatpush1.bf16.msra.mxu0 %v5376
        %7540 = vmatprep.subr.bf16.mxu0 %v5387
        %7541 = vmatpush1.bf16.msra.mxu0 %v5386
        %7542 = vmatprep.subr.bf16.mxu0 %v5397
        %7543 = vmatpush1.bf16.msra.mxu0 %v5396
        %7544 = vmatprep.subr.bf16.mxu0 %v5407
        %7545 = vmatpush1.bf16.msra.mxu0 %v5406
        %7546 = vmatprep.subr.bf16.mxu0 %v5417
        %7547 = vmatpush1.bf16.msra.mxu0 %v5416
        %7548 = vmatprep.subr.bf16.mxu0 %v5427
        %7549 = vmatpush1.bf16.msra.mxu0 %v5426
        %7550 = vmatprep.subr.bf16.mxu0 %v5437
        %7551 = vmatpush1.bf16.msra.mxu0 %v5436
        %7552 = vmatprep.subr.bf16.mxu0 %v5447
        %7553 = vmatpush1.bf16.msra.mxu0 %v5446
        %7554 = vmatprep.subr.bf16.mxu0 %v5457
        %7555 = vmatpush1.bf16.msra.mxu0 %v5456
        %7556 = vmatprep.subr.bf16.mxu0 %v5467
        %7557 = vmatpush1.bf16.msra.mxu0 %v5466
        %7558 = vmatprep.mubr.bf16.mxu0 %v1535
        %7559 = vmatmul.mubr.bf16.gmra.mrb[0].mxu0 %v1534
        %v7560 = vpop.f32.mrb[0].mxu0
        %v7561 = vadd.f32 %v7518, %v7560
        %v7562 = vpop.f32.mrb[0].mxu0
        %v7563 = vadd.f32 %v7520, %v7562
        %v7564 = vpop.f32.mrb[0].mxu0
        %v7565 = vadd.f32 %v7522, %v7564
        %v7566 = vpop.f32.mrb[0].mxu0
        %v7567 = vadd.f32 %v7524, %v7566
        %7568 = vdwg.mxu0
        %7569 = vmatprep.subr.bf16.mxu0 %v5477
        %7570 = vmatpush1.bf16.msra.mxu0 %v5476
        %7571 = vmatprep.subr.bf16.mxu0 %v5487
        %7572 = vmatpush1.bf16.msra.mxu0 %v5486
        %7573 = vmatprep.subr.bf16.mxu0 %v5497
        %7574 = vmatpush1.bf16.msra.mxu0 %v5496
        %7575 = vmatprep.subr.bf16.mxu0 %v5507
        %7576 = vmatpush1.bf16.msra.mxu0 %v5506
        %7577 = vmatprep.subr.bf16.mxu0 %v5517
        %7578 = vmatpush1.bf16.msra.mxu0 %v5516
        %7579 = vmatprep.subr.bf16.mxu0 %v5527
        %7580 = vmatpush1.bf16.msra.mxu0 %v5526
        %7581 = vmatprep.subr.bf16.mxu0 %v5537
        %7582 = vmatpush1.bf16.msra.mxu0 %v5536
        %7583 = vmatprep.subr.bf16.mxu0 %v5547
        %7584 = vmatpush1.bf16.msra.mxu0 %v5546
        %7585 = vmatprep.subr.bf16.mxu0 %v5557
        %7586 = vmatpush1.bf16.msra.mxu0 %v5556
        %7587 = vmatprep.subr.bf16.mxu0 %v5567
        %7588 = vmatpush1.bf16.msra.mxu0 %v5566
        %7589 = vmatprep.subr.bf16.mxu0 %v5577
        %7590 = vmatpush1.bf16.msra.mxu0 %v5576
        %7591 = vmatprep.subr.bf16.mxu0 %v5587
        %7592 = vmatpush1.bf16.msra.mxu0 %v5586
        %7593 = vmatprep.subr.bf16.mxu0 %v5597
        %7594 = vmatpush1.bf16.msra.mxu0 %v5596
        %7595 = vmatprep.subr.bf16.mxu0 %v5607
        %7596 = vmatpush1.bf16.msra.mxu0 %v5606
        %7597 = vmatprep.subr.bf16.mxu0 %v5617
        %7598 = vmatpush1.bf16.msra.mxu0 %v5616
        %7599 = vmatprep.subr.bf16.mxu0 %v5627
        %7600 = vmatpush1.bf16.msra.mxu0 %v5626
        %7601 = vmatprep.mubr.bf16.mxu0 %v1537
        %7602 = vmatmul.mubr.bf16.gmra.mrb[0].mxu0 %v1536
        %v7603 = vpop.f32.mrb[0].mxu0
        %v7604 = vadd.f32 %v7561, %v7603
        %v7605 = vpop.f32.mrb[0].mxu0
        %v7606 = vadd.f32 %v7563, %v7605
        %v7607 = vpop.f32.mrb[0].mxu0
        %v7608 = vadd.f32 %v7565, %v7607
        %v7609 = vpop.f32.mrb[0].mxu0
        %v7610 = vadd.f32 %v7567, %v7609
        %7611 = vdwg.mxu0
        %7612 = vmatprep.subr.bf16.mxu0 %v5637
        %7613 = vmatpush1.bf16.msra.mxu0 %v5636
        %7614 = vmatprep.subr.bf16.mxu0 %v5647
        %7615 = vmatpush1.bf16.msra.mxu0 %v5646
        %7616 = vmatprep.subr.bf16.mxu0 %v5657
        %7617 = vmatpush1.bf16.msra.mxu0 %v5656
        %7618 = vmatprep.subr.bf16.mxu0 %v5667
        %7619 = vmatpush1.bf16.msra.mxu0 %v5666
        %7620 = vmatprep.subr.bf16.mxu0 %v5677
        %7621 = vmatpush1.bf16.msra.mxu0 %v5676
        %7622 = vmatprep.subr.bf16.mxu0 %v5687
        %7623 = vmatpush1.bf16.msra.mxu0 %v5686
        %7624 = vmatprep.subr.bf16.mxu0 %v5697
        %7625 = vmatpush1.bf16.msra.mxu0 %v5696
        %7626 = vmatprep.subr.bf16.mxu0 %v5707
        %7627 = vmatpush1.bf16.msra.mxu0 %v5706
        %7628 = vmatprep.subr.bf16.mxu0 0
        %7629 = vmatpush1.bf16.msra.mxu0 0
        %7630 = vmatprep.subr.bf16.mxu0 0
        %7631 = vmatpush1.bf16.msra.mxu0 0
        %7632 = vmatprep.subr.bf16.mxu0 0
        %7633 = vmatpush1.bf16.msra.mxu0 0
        %7634 = vmatprep.subr.bf16.mxu0 0
        %7635 = vmatpush1.bf16.msra.mxu0 0
        %7636 = vmatprep.subr.bf16.mxu0 0
        %7637 = vmatpush1.bf16.msra.mxu0 0
        %7638 = vmatprep.subr.bf16.mxu0 0
        %7639 = vmatpush1.bf16.msra.mxu0 0
        %7640 = vmatprep.subr.bf16.mxu0 0
        %7641 = vmatpush1.bf16.msra.mxu0 0
        %7642 = vmatprep.subr.bf16.mxu0 0
        %7643 = vmatpush1.bf16.msra.mxu0 0
        %7644 = vmatprep.mubr.bf16.mxu0 0
        %7645 = vmatmul.mubr.bf16.gmra.mrb[0].mxu0 %v1538
        %v7646 = vpop.f32.mrb[0].mxu0
        %v7647 = vadd.f32 %v7604, %v7646
        %v7648 = vpop.f32.mrb[0].mxu0
        %v7649 = vadd.f32 %v7606, %v7648
        %v7650 = vpop.f32.mrb[0].mxu0
        %v7651 = vadd.f32 %v7608, %v7650
        %v7652 = vpop.f32.mrb[0].mxu0
        %v7653 = vadd.f32 %v7610, %v7652
        %7654 = vdwg.mxu0
        %7655 = vmatprep.subr.bf16.mxu0 %v4679
        %7656 = vmatpush1.bf16.msra.mxu0 %v4678
        %7657 = vmatprep.subr.bf16.mxu0 %v4689
        %7658 = vmatpush1.bf16.msra.mxu0 %v4688
        %7659 = vmatprep.subr.bf16.mxu0 %v4699
        %7660 = vmatpush1.bf16.msra.mxu0 %v4698
        %7661 = vmatprep.subr.bf16.mxu0 %v4709
        %7662 = vmatpush1.bf16.msra.mxu0 %v4708
        %7663 = vmatprep.subr.bf16.mxu0 %v4719
        %7664 = vmatpush1.bf16.msra.mxu0 %v4718
        %7665 = vmatprep.subr.bf16.mxu0 %v4729
        %7666 = vmatpush1.bf16.msra.mxu0 %v4728
        %7667 = vmatprep.subr.bf16.mxu0 %v4739
        %7668 = vmatpush1.bf16.msra.mxu0 %v4738
        %7669 = vmatprep.subr.bf16.mxu0 %v4749
        %7670 = vmatpush1.bf16.msra.mxu0 %v4748
        %7671 = vmatprep.subr.bf16.mxu0 %v4759
        %7672 = vmatpush1.bf16.msra.mxu0 %v4758
        %7673 = vmatprep.subr.bf16.mxu0 %v4769
        %7674 = vmatpush1.bf16.msra.mxu0 %v4768
        %7675 = vmatprep.subr.bf16.mxu0 %v4779
        %7676 = vmatpush1.bf16.msra.mxu0 %v4778
        %7677 = vmatprep.subr.bf16.mxu0 %v4789
        %7678 = vmatpush1.bf16.msra.mxu0 %v4788
        %7679 = vmatprep.subr.bf16.mxu0 %v4799
        %7680 = vmatpush1.bf16.msra.mxu0 %v4798
        %7681 = vmatprep.subr.bf16.mxu0 %v4809
        %7682 = vmatpush1.bf16.msra.mxu0 %v4808
        %7683 = vmatprep.subr.bf16.mxu0 %v4819
        %7684 = vmatpush1.bf16.msra.mxu0 %v4818
        %7685 = vmatprep.subr.bf16.mxu0 %v4829
        %7686 = vmatpush1.bf16.msra.mxu0 %v4828
        %7687 = vmatprep.mubr.bf16.mxu0 %v1527
        %7688 = vmatmul.mubr.bf16.gmra.mrb[0].mxu0 %v1526
        %v7689 = vpop.f32.mrb[0].mxu0
        %v7690 = vadd.f32 0.0, %v7689
        %v7691 = vpop.f32.mrb[0].mxu0
        %v7692 = vadd.f32 0.0, %v7691
        %v7693 = vpop.f32.mrb[0].mxu0
        %v7694 = vadd.f32 0.0, %v7693
        %v7695 = vpop.f32.mrb[0].mxu0
        %v7696 = vadd.f32 0.0, %v7695
        %7697 = vdwg.mxu0
        %7698 = vmatprep.subr.bf16.mxu0 %v4839
        %7699 = vmatpush1.bf16.msra.mxu0 %v4838
        %7700 = vmatprep.subr.bf16.mxu0 %v4849
        %7701 = vmatpush1.bf16.msra.mxu0 %v4848
        %7702 = vmatprep.subr.bf16.mxu0 %v4859
        %7703 = vmatpush1.bf16.msra.mxu0 %v4858
        %7704 = vmatprep.subr.bf16.mxu0 %v4869
        %7705 = vmatpush1.bf16.msra.mxu0 %v4868
        %7706 = vmatprep.subr.bf16.mxu0 %v4879
        %7707 = vmatpush1.bf16.msra.mxu0 %v4878
        %7708 = vmatprep.subr.bf16.mxu0 %v4889
        %7709 = vmatpush1.bf16.msra.mxu0 %v4888
        %7710 = vmatprep.subr.bf16.mxu0 %v4899
        %7711 = vmatpush1.bf16.msra.mxu0 %v4898
        %7712 = vmatprep.subr.bf16.mxu0 %v4909
        %7713 = vmatpush1.bf16.msra.mxu0 %v4908
        %7714 = vmatprep.subr.bf16.mxu0 %v4919
        %7715 = vmatpush1.bf16.msra.mxu0 %v4918
        %7716 = vmatprep.subr.bf16.mxu0 %v4929
        %7717 = vmatpush1.bf16.msra.mxu0 %v4928
        %7718 = vmatprep.subr.bf16.mxu0 %v4939
        %7719 = vmatpush1.bf16.msra.mxu0 %v4938
        %7720 = vmatprep.subr.bf16.mxu0 %v4949
        %7721 = vmatpush1.bf16.msra.mxu0 %v4948
        %7722 = vmatprep.subr.bf16.mxu0 %v4959
        %7723 = vmatpush1.bf16.msra.mxu0 %v4958
        %7724 = vmatprep.subr.bf16.mxu0 %v4969
        %7725 = vmatpush1.bf16.msra.mxu0 %v4968
        %7726 = vmatprep.subr.bf16.mxu0 %v4979
        %7727 = vmatpush1.bf16.msra.mxu0 %v4978
        %7728 = vmatprep.subr.bf16.mxu0 %v4989
        %7729 = vmatpush1.bf16.msra.mxu0 %v4988
        %7730 = vmatprep.mubr.bf16.mxu0 %v1529
        %7731 = vmatmul.mubr.bf16.gmra.mrb[0].mxu0 %v1528
        %v7732 = vpop.f32.mrb[0].mxu0
        %v7733 = vadd.f32 %v7690, %v7732
        %v7734 = vpop.f32.mrb[0].mxu0
        %v7735 = vadd.f32 %v7692, %v7734
        %v7736 = vpop.f32.mrb[0].mxu0
        %v7737 = vadd.f32 %v7694, %v7736
        %v7738 = vpop.f32.mrb[0].mxu0
        %v7739 = vadd.f32 %v7696, %v7738
        %7740 = vdwg.mxu0
        %7741 = vmatprep.subr.bf16.mxu0 %v4999
        %7742 = vmatpush1.bf16.msra.mxu0 %v4998
        %7743 = vmatprep.subr.bf16.mxu0 %v5009
        %7744 = vmatpush1.bf16.msra.mxu0 %v5008
        %7745 = vmatprep.subr.bf16.mxu0 %v5019
        %7746 = vmatpush1.bf16.msra.mxu0 %v5018
        %7747 = vmatprep.subr.bf16.mxu0 %v5029
        %7748 = vmatpush1.bf16.msra.mxu0 %v5028
        %7749 = vmatprep.subr.bf16.mxu0 %v5039
        %7750 = vmatpush1.bf16.msra.mxu0 %v5038
        %7751 = vmatprep.subr.bf16.mxu0 %v5049
        %7752 = vmatpush1.bf16.msra.mxu0 %v5048
        %7753 = vmatprep.subr.bf16.mxu0 %v5059
        %7754 = vmatpush1.bf16.msra.mxu0 %v5058
        %7755 = vmatprep.subr.bf16.mxu0 %v5069
        %7756 = vmatpush1.bf16.msra.mxu0 %v5068
        %7757 = vmatprep.subr.bf16.mxu0 %v5079
        %7758 = vmatpush1.bf16.msra.mxu0 %v5078
        %7759 = vmatprep.subr.bf16.mxu0 %v5089
        %7760 = vmatpush1.bf16.msra.mxu0 %v5088
        %7761 = vmatprep.subr.bf16.mxu0 %v5099
        %7762 = vmatpush1.bf16.msra.mxu0 %v5098
        %7763 = vmatprep.subr.bf16.mxu0 %v5109
        %7764 = vmatpush1.bf16.msra.mxu0 %v5108
        %7765 = vmatprep.subr.bf16.mxu0 %v5119
        %7766 = vmatpush1.bf16.msra.mxu0 %v5118
        %7767 = vmatprep.subr.bf16.mxu0 %v5129
        %7768 = vmatpush1.bf16.msra.mxu0 %v5128
        %7769 = vmatprep.subr.bf16.mxu0 %v5139
        %7770 = vmatpush1.bf16.msra.mxu0 %v5138
        %7771 = vmatprep.subr.bf16.mxu0 %v5149
        %7772 = vmatpush1.bf16.msra.mxu0 %v5148
        %7773 = vmatprep.mubr.bf16.mxu0 %v1531
        %7774 = vmatmul.mubr.bf16.gmra.mrb[0].mxu0 %v1530
        %v7775 = vpop.f32.mrb[0].mxu0
        %v7776 = vadd.f32 %v7733, %v7775
        %v7777 = vpop.f32.mrb[0].mxu0
        %v7778 = vadd.f32 %v7735, %v7777
        %v7779 = vpop.f32.mrb[0].mxu0
        %v7780 = vadd.f32 %v7737, %v7779
        %v7781 = vpop.f32.mrb[0].mxu0
        %v7782 = vadd.f32 %v7739, %v7781
        %7783 = vdwg.mxu0
        %7784 = vmatprep.subr.bf16.mxu0 %v5159
        %7785 = vmatpush1.bf16.msra.mxu0 %v5158
        %7786 = vmatprep.subr.bf16.mxu0 %v5169
        %7787 = vmatpush1.bf16.msra.mxu0 %v5168
        %7788 = vmatprep.subr.bf16.mxu0 %v5179
        %7789 = vmatpush1.bf16.msra.mxu0 %v5178
        %7790 = vmatprep.subr.bf16.mxu0 %v5189
        %7791 = vmatpush1.bf16.msra.mxu0 %v5188
        %7792 = vmatprep.subr.bf16.mxu0 %v5199
        %7793 = vmatpush1.bf16.msra.mxu0 %v5198
        %7794 = vmatprep.subr.bf16.mxu0 %v5209
        %7795 = vmatpush1.bf16.msra.mxu0 %v5208
        %7796 = vmatprep.subr.bf16.mxu0 %v5219
        %7797 = vmatpush1.bf16.msra.mxu0 %v5218
        %7798 = vmatprep.subr.bf16.mxu0 %v5229
        %7799 = vmatpush1.bf16.msra.mxu0 %v5228
        %7800 = vmatprep.subr.bf16.mxu0 %v5239
        %7801 = vmatpush1.bf16.msra.mxu0 %v5238
        %7802 = vmatprep.subr.bf16.mxu0 %v5249
        %7803 = vmatpush1.bf16.msra.mxu0 %v5248
        %7804 = vmatprep.subr.bf16.mxu0 %v5259
        %7805 = vmatpush1.bf16.msra.mxu0 %v5258
        %7806 = vmatprep.subr.bf16.mxu0 %v5269
        %7807 = vmatpush1.bf16.msra.mxu0 %v5268
        %7808 = vmatprep.subr.bf16.mxu0 %v5279
        %7809 = vmatpush1.bf16.msra.mxu0 %v5278
        %7810 = vmatprep.subr.bf16.mxu0 %v5289
        %7811 = vmatpush1.bf16.msra.mxu0 %v5288
        %7812 = vmatprep.subr.bf16.mxu0 %v5299
        %7813 = vmatpush1.bf16.msra.mxu0 %v5298
        %7814 = vmatprep.subr.bf16.mxu0 %v5309
        %7815 = vmatpush1.bf16.msra.mxu0 %v5308
        %7816 = vmatprep.mubr.bf16.mxu0 %v1533
        %7817 = vmatmul.mubr.bf16.gmra.mrb[0].mxu0 %v1532
        %v7818 = vpop.f32.mrb[0].mxu0
        %v7819 = vadd.f32 %v7776, %v7818
        %v7820 = vpop.f32.mrb[0].mxu0
        %v7821 = vadd.f32 %v7778, %v7820
        %v7822 = vpop.f32.mrb[0].mxu0
        %v7823 = vadd.f32 %v7780, %v7822
        %v7824 = vpop.f32.mrb[0].mxu0
        %v7825 = vadd.f32 %v7782, %v7824
        %7826 = vdwg.mxu0
        %7827 = vmatprep.subr.bf16.mxu0 %v5319
        %7828 = vmatpush1.bf16.msra.mxu0 %v5318
        %7829 = vmatprep.subr.bf16.mxu0 %v5329
        %7830 = vmatpush1.bf16.msra.mxu0 %v5328
        %7831 = vmatprep.subr.bf16.mxu0 %v5339
        %7832 = vmatpush1.bf16.msra.mxu0 %v5338
        %7833 = vmatprep.subr.bf16.mxu0 %v5349
        %7834 = vmatpush1.bf16.msra.mxu0 %v5348
        %7835 = vmatprep.subr.bf16.mxu0 %v5359
        %7836 = vmatpush1.bf16.msra.mxu0 %v5358
        %7837 = vmatprep.subr.bf16.mxu0 %v5369
        %7838 = vmatpush1.bf16.msra.mxu0 %v5368
        %7839 = vmatprep.subr.bf16.mxu0 %v5379
        %7840 = vmatpush1.bf16.msra.mxu0 %v5378
        %7841 = vmatprep.subr.bf16.mxu0 %v5389
        %7842 = vmatpush1.bf16.msra.mxu0 %v5388
        %7843 = vmatprep.subr.bf16.mxu0 %v5399
        %7844 = vmatpush1.bf16.msra.mxu0 %v5398
        %7845 = vmatprep.subr.bf16.mxu0 %v5409
        %7846 = vmatpush1.bf16.msra.mxu0 %v5408
        %7847 = vmatprep.subr.bf16.mxu0 %v5419
        %7848 = vmatpush1.bf16.msra.mxu0 %v5418
        %7849 = vmatprep.subr.bf16.mxu0 %v5429
        %7850 = vmatpush1.bf16.msra.mxu0 %v5428
        %7851 = vmatprep.subr.bf16.mxu0 %v5439
        %7852 = vmatpush1.bf16.msra.mxu0 %v5438
        %7853 = vmatprep.subr.bf16.mxu0 %v5449
        %7854 = vmatpush1.bf16.msra.mxu0 %v5448
        %7855 = vmatprep.subr.bf16.mxu0 %v5459
        %7856 = vmatpush1.bf16.msra.mxu0 %v5458
        %7857 = vmatprep.subr.bf16.mxu0 %v5469
        %7858 = vmatpush1.bf16.msra.mxu0 %v5468
        %7859 = vmatprep.mubr.bf16.mxu0 %v1535
        %7860 = vmatmul.mubr.bf16.gmra.mrb[0].mxu0 %v1534
        %v7861 = vpop.f32.mrb[0].mxu0
        %v7862 = vadd.f32 %v7819, %v7861
        %v7863 = vpop.f32.mrb[0].mxu0
        %v7864 = vadd.f32 %v7821, %v7863
        %v7865 = vpop.f32.mrb[0].mxu0
        %v7866 = vadd.f32 %v7823, %v7865
        %v7867 = vpop.f32.mrb[0].mxu0
        %v7868 = vadd.f32 %v7825, %v7867
        %7869 = vdwg.mxu0
        %7870 = vmatprep.subr.bf16.mxu0 %v5479
        %7871 = vmatpush1.bf16.msra.mxu0 %v5478
        %7872 = vmatprep.subr.bf16.mxu0 %v5489
        %7873 = vmatpush1.bf16.msra.mxu0 %v5488
        %7874 = vmatprep.subr.bf16.mxu0 %v5499
        %7875 = vmatpush1.bf16.msra.mxu0 %v5498
        %7876 = vmatprep.subr.bf16.mxu0 %v5509
        %7877 = vmatpush1.bf16.msra.mxu0 %v5508
        %7878 = vmatprep.subr.bf16.mxu0 %v5519
        %7879 = vmatpush1.bf16.msra.mxu0 %v5518
        %7880 = vmatprep.subr.bf16.mxu0 %v5529
        %7881 = vmatpush1.bf16.msra.mxu0 %v5528
        %7882 = vmatprep.subr.bf16.mxu0 %v5539
        %7883 = vmatpush1.bf16.msra.mxu0 %v5538
        %7884 = vmatprep.subr.bf16.mxu0 %v5549
        %7885 = vmatpush1.bf16.msra.mxu0 %v5548
        %7886 = vmatprep.subr.bf16.mxu0 %v5559
        %7887 = vmatpush1.bf16.msra.mxu0 %v5558
        %7888 = vmatprep.subr.bf16.mxu0 %v5569
        %7889 = vmatpush1.bf16.msra.mxu0 %v5568
        %7890 = vmatprep.subr.bf16.mxu0 %v5579
        %7891 = vmatpush1.bf16.msra.mxu0 %v5578
        %7892 = vmatprep.subr.bf16.mxu0 %v5589
        %7893 = vmatpush1.bf16.msra.mxu0 %v5588
        %7894 = vmatprep.subr.bf16.mxu0 %v5599
        %7895 = vmatpush1.bf16.msra.mxu0 %v5598
        %7896 = vmatprep.subr.bf16.mxu0 %v5609
        %7897 = vmatpush1.bf16.msra.mxu0 %v5608
        %7898 = vmatprep.subr.bf16.mxu0 %v5619
        %7899 = vmatpush1.bf16.msra.mxu0 %v5618
        %7900 = vmatprep.subr.bf16.mxu0 %v5629
        %7901 = vmatpush1.bf16.msra.mxu0 %v5628
        %7902 = vmatprep.mubr.bf16.mxu0 %v1537
        %7903 = vmatmul.mubr.bf16.gmra.mrb[0].mxu0 %v1536
        %v7904 = vpop.f32.mrb[0].mxu0
        %v7905 = vadd.f32 %v7862, %v7904
        %v7906 = vpop.f32.mrb[0].mxu0
        %v7907 = vadd.f32 %v7864, %v7906
        %v7908 = vpop.f32.mrb[0].mxu0
        %v7909 = vadd.f32 %v7866, %v7908
        %v7910 = vpop.f32.mrb[0].mxu0
        %v7911 = vadd.f32 %v7868, %v7910
        %7912 = vdwg.mxu0
        %7913 = vmatprep.subr.bf16.mxu0 %v5639
        %7914 = vmatpush1.bf16.msra.mxu0 %v5638
        %7915 = vmatprep.subr.bf16.mxu0 %v5649
        %7916 = vmatpush1.bf16.msra.mxu0 %v5648
        %7917 = vmatprep.subr.bf16.mxu0 %v5659
        %7918 = vmatpush1.bf16.msra.mxu0 %v5658
        %7919 = vmatprep.subr.bf16.mxu0 %v5669
        %7920 = vmatpush1.bf16.msra.mxu0 %v5668
        %7921 = vmatprep.subr.bf16.mxu0 %v5679
        %7922 = vmatpush1.bf16.msra.mxu0 %v5678
        %7923 = vmatprep.subr.bf16.mxu0 %v5689
        %7924 = vmatpush1.bf16.msra.mxu0 %v5688
        %7925 = vmatprep.subr.bf16.mxu0 %v5699
        %7926 = vmatpush1.bf16.msra.mxu0 %v5698
        %7927 = vmatprep.subr.bf16.mxu0 %v5709
        %7928 = vmatpush1.bf16.msra.mxu0 %v5708
        %7929 = vmatprep.subr.bf16.mxu0 0
        %7930 = vmatpush1.bf16.msra.mxu0 0
        %7931 = vmatprep.subr.bf16.mxu0 0
        %7932 = vmatpush1.bf16.msra.mxu0 0
        %7933 = vmatprep.subr.bf16.mxu0 0
        %7934 = vmatpush1.bf16.msra.mxu0 0
        %7935 = vmatprep.subr.bf16.mxu0 0
        %7936 = vmatpush1.bf16.msra.mxu0 0
        %7937 = vmatprep.subr.bf16.mxu0 0
        %7938 = vmatpush1.bf16.msra.mxu0 0
        %7939 = vmatprep.subr.bf16.mxu0 0
        %7940 = vmatpush1.bf16.msra.mxu0 0
        %7941 = vmatprep.subr.bf16.mxu0 0
        %7942 = vmatpush1.bf16.msra.mxu0 0
        %7943 = vmatprep.subr.bf16.mxu0 0
        %7944 = vmatpush1.bf16.msra.mxu0 0
        %7945 = vmatprep.mubr.bf16.mxu0 0
        %7946 = vmatmul.mubr.bf16.gmra.mrb[0].mxu0 %v1538
        %v7947 = vpop.f32.mrb[0].mxu0
        %v7948 = vadd.f32 %v7905, %v7947
        %v7949 = vpop.f32.mrb[0].mxu0
        %v7950 = vadd.f32 %v7907, %v7949
        %v7951 = vpop.f32.mrb[0].mxu0
        %v7952 = vadd.f32 %v7909, %v7951
        %v7953 = vpop.f32.mrb[0].mxu0
        %v7954 = vadd.f32 %v7911, %v7953
        %7955 = vdwg.mxu0
        %7956 = vmatprep.subr.bf16.mxu0 %v4681
        %7957 = vmatpush1.bf16.msra.mxu0 %v4680
        %7958 = vmatprep.subr.bf16.mxu0 %v4691
        %7959 = vmatpush1.bf16.msra.mxu0 %v4690
        %7960 = vmatprep.subr.bf16.mxu0 %v4701
        %7961 = vmatpush1.bf16.msra.mxu0 %v4700
        %7962 = vmatprep.subr.bf16.mxu0 %v4711
        %7963 = vmatpush1.bf16.msra.mxu0 %v4710
        %7964 = vmatprep.subr.bf16.mxu0 %v4721
        %7965 = vmatpush1.bf16.msra.mxu0 %v4720
        %7966 = vmatprep.subr.bf16.mxu0 %v4731
        %7967 = vmatpush1.bf16.msra.mxu0 %v4730
        %7968 = vmatprep.subr.bf16.mxu0 %v4741
        %7969 = vmatpush1.bf16.msra.mxu0 %v4740
        %7970 = vmatprep.subr.bf16.mxu0 %v4751
        %7971 = vmatpush1.bf16.msra.mxu0 %v4750
        %7972 = vmatprep.subr.bf16.mxu0 %v4761
        %7973 = vmatpush1.bf16.msra.mxu0 %v4760
        %7974 = vmatprep.subr.bf16.mxu0 %v4771
        %7975 = vmatpush1.bf16.msra.mxu0 %v4770
        %7976 = vmatprep.subr.bf16.mxu0 %v4781
        %7977 = vmatpush1.bf16.msra.mxu0 %v4780
        %7978 = vmatprep.subr.bf16.mxu0 %v4791
        %7979 = vmatpush1.bf16.msra.mxu0 %v4790
        %7980 = vmatprep.subr.bf16.mxu0 %v4801
        %7981 = vmatpush1.bf16.msra.mxu0 %v4800
        %7982 = vmatprep.subr.bf16.mxu0 %v4811
        %7983 = vmatpush1.bf16.msra.mxu0 %v4810
        %7984 = vmatprep.subr.bf16.mxu0 %v4821
        %7985 = vmatpush1.bf16.msra.mxu0 %v4820
        %7986 = vmatprep.subr.bf16.mxu0 %v4831
        %7987 = vmatpush1.bf16.msra.mxu0 %v4830
        %7988 = vmatprep.mubr.bf16.mxu0 %v1527
        %7989 = vmatmul.mubr.bf16.gmra.mrb[0].mxu0 %v1526
        %v7990 = vpop.f32.mrb[0].mxu0
        %v7991 = vadd.f32 0.0, %v7990
        %v7992 = vpop.f32.mrb[0].mxu0
        %v7993 = vadd.f32 0.0, %v7992
        %v7994 = vpop.f32.mrb[0].mxu0
        %v7995 = vadd.f32 0.0, %v7994
        %v7996 = vpop.f32.mrb[0].mxu0
        %v7997 = vadd.f32 0.0, %v7996
        %7998 = vdwg.mxu0
        %7999 = vmatprep.subr.bf16.mxu0 %v4841
        %8000 = vmatpush1.bf16.msra.mxu0 %v4840
        %8001 = vmatprep.subr.bf16.mxu0 %v4851
        %8002 = vmatpush1.bf16.msra.mxu0 %v4850
        %8003 = vmatprep.subr.bf16.mxu0 %v4861
        %8004 = vmatpush1.bf16.msra.mxu0 %v4860
        %8005 = vmatprep.subr.bf16.mxu0 %v4871
        %8006 = vmatpush1.bf16.msra.mxu0 %v4870
        %8007 = vmatprep.subr.bf16.mxu0 %v4881
        %8008 = vmatpush1.bf16.msra.mxu0 %v4880
        %8009 = vmatprep.subr.bf16.mxu0 %v4891
        %8010 = vmatpush1.bf16.msra.mxu0 %v4890
        %8011 = vmatprep.subr.bf16.mxu0 %v4901
        %8012 = vmatpush1.bf16.msra.mxu0 %v4900
        %8013 = vmatprep.subr.bf16.mxu0 %v4911
        %8014 = vmatpush1.bf16.msra.mxu0 %v4910
        %8015 = vmatprep.subr.bf16.mxu0 %v4921
        %8016 = vmatpush1.bf16.msra.mxu0 %v4920
        %8017 = vmatprep.subr.bf16.mxu0 %v4931
        %8018 = vmatpush1.bf16.msra.mxu0 %v4930
        %8019 = vmatprep.subr.bf16.mxu0 %v4941
        %8020 = vmatpush1.bf16.msra.mxu0 %v4940
        %8021 = vmatprep.subr.bf16.mxu0 %v4951
        %8022 = vmatpush1.bf16.msra.mxu0 %v4950
        %8023 = vmatprep.subr.bf16.mxu0 %v4961
        %8024 = vmatpush1.bf16.msra.mxu0 %v4960
        %8025 = vmatprep.subr.bf16.mxu0 %v4971
        %8026 = vmatpush1.bf16.msra.mxu0 %v4970
        %8027 = vmatprep.subr.bf16.mxu0 %v4981
        %8028 = vmatpush1.bf16.msra.mxu0 %v4980
        %8029 = vmatprep.subr.bf16.mxu0 %v4991
        %8030 = vmatpush1.bf16.msra.mxu0 %v4990
        %8031 = vmatprep.mubr.bf16.mxu0 %v1529
        %8032 = vmatmul.mubr.bf16.gmra.mrb[0].mxu0 %v1528
        %v8033 = vpop.f32.mrb[0].mxu0
        %v8034 = vadd.f32 %v7991, %v8033
        %v8035 = vpop.f32.mrb[0].mxu0
        %v8036 = vadd.f32 %v7993, %v8035
        %v8037 = vpop.f32.mrb[0].mxu0
        %v8038 = vadd.f32 %v7995, %v8037
        %v8039 = vpop.f32.mrb[0].mxu0
        %v8040 = vadd.f32 %v7997, %v8039
        %8041 = vdwg.mxu0
        %8042 = vmatprep.subr.bf16.mxu0 %v5001
        %8043 = vmatpush1.bf16.msra.mxu0 %v5000
        %8044 = vmatprep.subr.bf16.mxu0 %v5011
        %8045 = vmatpush1.bf16.msra.mxu0 %v5010
        %8046 = vmatprep.subr.bf16.mxu0 %v5021
        %8047 = vmatpush1.bf16.msra.mxu0 %v5020
        %8048 = vmatprep.subr.bf16.mxu0 %v5031
        %8049 = vmatpush1.bf16.msra.mxu0 %v5030
        %8050 = vmatprep.subr.bf16.mxu0 %v5041
        %8051 = vmatpush1.bf16.msra.mxu0 %v5040
        %8052 = vmatprep.subr.bf16.mxu0 %v5051
        %8053 = vmatpush1.bf16.msra.mxu0 %v5050
        %8054 = vmatprep.subr.bf16.mxu0 %v5061
        %8055 = vmatpush1.bf16.msra.mxu0 %v5060
        %8056 = vmatprep.subr.bf16.mxu0 %v5071
        %8057 = vmatpush1.bf16.msra.mxu0 %v5070
        %8058 = vmatprep.subr.bf16.mxu0 %v5081
        %8059 = vmatpush1.bf16.msra.mxu0 %v5080
        %8060 = vmatprep.subr.bf16.mxu0 %v5091
        %8061 = vmatpush1.bf16.msra.mxu0 %v5090
        %8062 = vmatprep.subr.bf16.mxu0 %v5101
        %8063 = vmatpush1.bf16.msra.mxu0 %v5100
        %8064 = vmatprep.subr.bf16.mxu0 %v5111
        %8065 = vmatpush1.bf16.msra.mxu0 %v5110
        %8066 = vmatprep.subr.bf16.mxu0 %v5121
        %8067 = vmatpush1.bf16.msra.mxu0 %v5120
        %8068 = vmatprep.subr.bf16.mxu0 %v5131
        %8069 = vmatpush1.bf16.msra.mxu0 %v5130
        %8070 = vmatprep.subr.bf16.mxu0 %v5141
        %8071 = vmatpush1.bf16.msra.mxu0 %v5140
        %8072 = vmatprep.subr.bf16.mxu0 %v5151
        %8073 = vmatpush1.bf16.msra.mxu0 %v5150
        %8074 = vmatprep.mubr.bf16.mxu0 %v1531
        %8075 = vmatmul.mubr.bf16.gmra.mrb[0].mxu0 %v1530
        %v8076 = vpop.f32.mrb[0].mxu0
        %v8077 = vadd.f32 %v8034, %v8076
        %v8078 = vpop.f32.mrb[0].mxu0
        %v8079 = vadd.f32 %v8036, %v8078
        %v8080 = vpop.f32.mrb[0].mxu0
        %v8081 = vadd.f32 %v8038, %v8080
        %v8082 = vpop.f32.mrb[0].mxu0
        %v8083 = vadd.f32 %v8040, %v8082
        %8084 = vdwg.mxu0
        %8085 = vmatprep.subr.bf16.mxu0 %v5161
        %8086 = vmatpush1.bf16.msra.mxu0 %v5160
        %8087 = vmatprep.subr.bf16.mxu0 %v5171
        %8088 = vmatpush1.bf16.msra.mxu0 %v5170
        %8089 = vmatprep.subr.bf16.mxu0 %v5181
        %8090 = vmatpush1.bf16.msra.mxu0 %v5180
        %8091 = vmatprep.subr.bf16.mxu0 %v5191
        %8092 = vmatpush1.bf16.msra.mxu0 %v5190
        %8093 = vmatprep.subr.bf16.mxu0 %v5201
        %8094 = vmatpush1.bf16.msra.mxu0 %v5200
        %8095 = vmatprep.subr.bf16.mxu0 %v5211
        %8096 = vmatpush1.bf16.msra.mxu0 %v5210
        %8097 = vmatprep.subr.bf16.mxu0 %v5221
        %8098 = vmatpush1.bf16.msra.mxu0 %v5220
        %8099 = vmatprep.subr.bf16.mxu0 %v5231
        %8100 = vmatpush1.bf16.msra.mxu0 %v5230
        %8101 = vmatprep.subr.bf16.mxu0 %v5241
        %8102 = vmatpush1.bf16.msra.mxu0 %v5240
        %8103 = vmatprep.subr.bf16.mxu0 %v5251
        %8104 = vmatpush1.bf16.msra.mxu0 %v5250
        %8105 = vmatprep.subr.bf16.mxu0 %v5261
        %8106 = vmatpush1.bf16.msra.mxu0 %v5260
        %8107 = vmatprep.subr.bf16.mxu0 %v5271
        %8108 = vmatpush1.bf16.msra.mxu0 %v5270
        %8109 = vmatprep.subr.bf16.mxu0 %v5281
        %8110 = vmatpush1.bf16.msra.mxu0 %v5280
        %8111 = vmatprep.subr.bf16.mxu0 %v5291
        %8112 = vmatpush1.bf16.msra.mxu0 %v5290
        %8113 = vmatprep.subr.bf16.mxu0 %v5301
        %8114 = vmatpush1.bf16.msra.mxu0 %v5300
        %8115 = vmatprep.subr.bf16.mxu0 %v5311
        %8116 = vmatpush1.bf16.msra.mxu0 %v5310
        %8117 = vmatprep.mubr.bf16.mxu0 %v1533
        %8118 = vmatmul.mubr.bf16.gmra.mrb[0].mxu0 %v1532
        %v8119 = vpop.f32.mrb[0].mxu0
        %v8120 = vadd.f32 %v8077, %v8119
        %v8121 = vpop.f32.mrb[0].mxu0
        %v8122 = vadd.f32 %v8079, %v8121
        %v8123 = vpop.f32.mrb[0].mxu0
        %v8124 = vadd.f32 %v8081, %v8123
        %v8125 = vpop.f32.mrb[0].mxu0
        %v8126 = vadd.f32 %v8083, %v8125
        %8127 = vdwg.mxu0
        %8128 = vmatprep.subr.bf16.mxu0 %v5321
        %8129 = vmatpush1.bf16.msra.mxu0 %v5320
        %8130 = vmatprep.subr.bf16.mxu0 %v5331
        %8131 = vmatpush1.bf16.msra.mxu0 %v5330
        %8132 = vmatprep.subr.bf16.mxu0 %v5341
        %8133 = vmatpush1.bf16.msra.mxu0 %v5340
        %8134 = vmatprep.subr.bf16.mxu0 %v5351
        %8135 = vmatpush1.bf16.msra.mxu0 %v5350
        %8136 = vmatprep.subr.bf16.mxu0 %v5361
        %8137 = vmatpush1.bf16.msra.mxu0 %v5360
        %8138 = vmatprep.subr.bf16.mxu0 %v5371
        %8139 = vmatpush1.bf16.msra.mxu0 %v5370
        %8140 = vmatprep.subr.bf16.mxu0 %v5381
        %8141 = vmatpush1.bf16.msra.mxu0 %v5380
        %8142 = vmatprep.subr.bf16.mxu0 %v5391
        %8143 = vmatpush1.bf16.msra.mxu0 %v5390
        %8144 = vmatprep.subr.bf16.mxu0 %v5401
        %8145 = vmatpush1.bf16.msra.mxu0 %v5400
        %8146 = vmatprep.subr.bf16.mxu0 %v5411
        %8147 = vmatpush1.bf16.msra.mxu0 %v5410
        %8148 = vmatprep.subr.bf16.mxu0 %v5421
        %8149 = vmatpush1.bf16.msra.mxu0 %v5420
        %8150 = vmatprep.subr.bf16.mxu0 %v5431
        %8151 = vmatpush1.bf16.msra.mxu0 %v5430
        %8152 = vmatprep.subr.bf16.mxu0 %v5441
        %8153 = vmatpush1.bf16.msra.mxu0 %v5440
        %8154 = vmatprep.subr.bf16.mxu0 %v5451
        %8155 = vmatpush1.bf16.msra.mxu0 %v5450
        %8156 = vmatprep.subr.bf16.mxu0 %v5461
        %8157 = vmatpush1.bf16.msra.mxu0 %v5460
        %8158 = vmatprep.subr.bf16.mxu0 %v5471
        %8159 = vmatpush1.bf16.msra.mxu0 %v5470
        %8160 = vmatprep.mubr.bf16.mxu0 %v1535
        %8161 = vmatmul.mubr.bf16.gmra.mrb[0].mxu0 %v1534
        %v8162 = vpop.f32.mrb[0].mxu0
        %v8163 = vadd.f32 %v8120, %v8162
        %v8164 = vpop.f32.mrb[0].mxu0
        %v8165 = vadd.f32 %v8122, %v8164
        %v8166 = vpop.f32.mrb[0].mxu0
        %v8167 = vadd.f32 %v8124, %v8166
        %v8168 = vpop.f32.mrb[0].mxu0
        %v8169 = vadd.f32 %v8126, %v8168
        %8170 = vdwg.mxu0
        %8171 = vmatprep.subr.bf16.mxu0 %v5481
        %8172 = vmatpush1.bf16.msra.mxu0 %v5480
        %8173 = vmatprep.subr.bf16.mxu0 %v5491
        %8174 = vmatpush1.bf16.msra.mxu0 %v5490
        %8175 = vmatprep.subr.bf16.mxu0 %v5501
        %8176 = vmatpush1.bf16.msra.mxu0 %v5500
        %8177 = vmatprep.subr.bf16.mxu0 %v5511
        %8178 = vmatpush1.bf16.msra.mxu0 %v5510
        %8179 = vmatprep.subr.bf16.mxu0 %v5521
        %8180 = vmatpush1.bf16.msra.mxu0 %v5520
        %8181 = vmatprep.subr.bf16.mxu0 %v5531
        %8182 = vmatpush1.bf16.msra.mxu0 %v5530
        %8183 = vmatprep.subr.bf16.mxu0 %v5541
        %8184 = vmatpush1.bf16.msra.mxu0 %v5540
        %8185 = vmatprep.subr.bf16.mxu0 %v5551
        %8186 = vmatpush1.bf16.msra.mxu0 %v5550
        %8187 = vmatprep.subr.bf16.mxu0 %v5561
        %8188 = vmatpush1.bf16.msra.mxu0 %v5560
        %8189 = vmatprep.subr.bf16.mxu0 %v5571
        %8190 = vmatpush1.bf16.msra.mxu0 %v5570
        %8191 = vmatprep.subr.bf16.mxu0 %v5581
        %8192 = vmatpush1.bf16.msra.mxu0 %v5580
        %8193 = vmatprep.subr.bf16.mxu0 %v5591
        %8194 = vmatpush1.bf16.msra.mxu0 %v5590
        %8195 = vmatprep.subr.bf16.mxu0 %v5601
        %8196 = vmatpush1.bf16.msra.mxu0 %v5600
        %8197 = vmatprep.subr.bf16.mxu0 %v5611
        %8198 = vmatpush1.bf16.msra.mxu0 %v5610
        %8199 = vmatprep.subr.bf16.mxu0 %v5621
        %8200 = vmatpush1.bf16.msra.mxu0 %v5620
        %8201 = vmatprep.subr.bf16.mxu0 %v5631
        %8202 = vmatpush1.bf16.msra.mxu0 %v5630
        %8203 = vmatprep.mubr.bf16.mxu0 %v1537
        %8204 = vmatmul.mubr.bf16.gmra.mrb[0].mxu0 %v1536
        %v8205 = vpop.f32.mrb[0].mxu0
        %v8206 = vadd.f32 %v8163, %v8205
        %v8207 = vpop.f32.mrb[0].mxu0
        %v8208 = vadd.f32 %v8165, %v8207
        %v8209 = vpop.f32.mrb[0].mxu0
        %v8210 = vadd.f32 %v8167, %v8209
        %v8211 = vpop.f32.mrb[0].mxu0
        %v8212 = vadd.f32 %v8169, %v8211
        %8213 = vdwg.mxu0
        %8214 = vmatprep.subr.bf16.mxu0 %v5641
        %8215 = vmatpush1.bf16.msra.mxu0 %v5640
        %8216 = vmatprep.subr.bf16.mxu0 %v5651
        %8217 = vmatpush1.bf16.msra.mxu0 %v5650
        %8218 = vmatprep.subr.bf16.mxu0 %v5661
        %8219 = vmatpush1.bf16.msra.mxu0 %v5660
        %8220 = vmatprep.subr.bf16.mxu0 %v5671
        %8221 = vmatpush1.bf16.msra.mxu0 %v5670
        %8222 = vmatprep.subr.bf16.mxu0 %v5681
        %8223 = vmatpush1.bf16.msra.mxu0 %v5680
        %8224 = vmatprep.subr.bf16.mxu0 %v5691
        %8225 = vmatpush1.bf16.msra.mxu0 %v5690
        %8226 = vmatprep.subr.bf16.mxu0 %v5701
        %8227 = vmatpush1.bf16.msra.mxu0 %v5700
        %8228 = vmatprep.subr.bf16.mxu0 %v5711
        %8229 = vmatpush1.bf16.msra.mxu0 %v5710
        %8230 = vmatprep.subr.bf16.mxu0 0
        %8231 = vmatpush1.bf16.msra.mxu0 0
        %8232 = vmatprep.subr.bf16.mxu0 0
        %8233 = vmatpush1.bf16.msra.mxu0 0
        %8234 = vmatprep.subr.bf16.mxu0 0
        %8235 = vmatpush1.bf16.msra.mxu0 0
        %8236 = vmatprep.subr.bf16.mxu0 0
        %8237 = vmatpush1.bf16.msra.mxu0 0
        %8238 = vmatprep.subr.bf16.mxu0 0
        %8239 = vmatpush1.bf16.msra.mxu0 0
        %8240 = vmatprep.subr.bf16.mxu0 0
        %8241 = vmatpush1.bf16.msra.mxu0 0
        %8242 = vmatprep.subr.bf16.mxu0 0
        %8243 = vmatpush1.bf16.msra.mxu0 0
        %8244 = vmatprep.subr.bf16.mxu0 0
        %8245 = vmatpush1.bf16.msra.mxu0 0
        %8246 = vmatprep.mubr.bf16.mxu0 0
        %8247 = vmatmul.mubr.bf16.gmra.mrb[0].mxu0 %v1538
        %v8248 = vpop.f32.mrb[0].mxu0
        %v8249 = vadd.f32 %v8206, %v8248
        %v8250 = vpop.f32.mrb[0].mxu0
        %v8251 = vadd.f32 %v8208, %v8250
        %v8252 = vpop.f32.mrb[0].mxu0
        %v8253 = vadd.f32 %v8210, %v8252
        %v8254 = vpop.f32.mrb[0].mxu0
        %v8255 = vadd.f32 %v8212, %v8254
        %8256 = vdwg.mxu0
        %v8257 = vadd.f32 %v412, %v7045
        %v8258 = vadd.f32 %v413, %v7047
        %v8259 = vadd.f32 %v414, %v7346
        %v8260 = vadd.f32 %v415, %v7348
        %v8261 = vadd.f32 %v416, %v7647
        %v8262 = vadd.f32 %v417, %v7649
        %v8263 = vadd.f32 %v418, %v7948
        %v8264 = vadd.f32 %v419, %v7950
        %v8265 = vadd.f32 %v420, %v8249
        %v8266 = vadd.f32 %v421, %v8251
        %v8267 = vadd.f32 %v422, %v7049
        %v8268 = vadd.f32 %v423, %v7051
        %v8269 = vadd.f32 %v424, %v7350
        %v8270 = vadd.f32 %v425, %v7352
        %v8271 = vadd.f32 %v426, %v7651
        %v8272 = vadd.f32 %v427, %v7653
        %v8273 = vadd.f32 %v428, %v7952
        %v8274 = vadd.f32 %v429, %v7954
        %v8275 = vadd.f32 %v430, %v8253
        %v8276 = vadd.f32 %v431, %v8255
        %8277 = vst [vmem:[#allocation2] sm:$0xff] %v8257
        %8278 = vst [vmem:[#allocation2 + $0x8] sm:$0xff] %v8258
        %8279 = vst [vmem:[#allocation2 + $0x10] sm:$0xff] %v8259
        %8280 = vst [vmem:[#allocation2 + $0x18] sm:$0xff] %v8260
        %8281 = vst [vmem:[#allocation2 + $0x20] sm:$0xff] %v8261
        %8282 = vst [vmem:[#allocation2 + $0x28] sm:$0xff] %v8262
        %8283 = vst [vmem:[#allocation2 + $0x30] sm:$0xff] %v8263
        %8284 = vst [vmem:[#allocation2 + $0x38] sm:$0xff] %v8264
        %8285 = vst [vmem:[#allocation2 + $0x40] sm:$0xff] %v8265
        %8286 = vst [vmem:[#allocation2 + $0x48] sm:$0xff] %v8266
        %8287 = vst [vmem:[#allocation2 + $0x50] sm:$0xff] %v8267
        %8288 = vst [vmem:[#allocation2 + $0x58] sm:$0xff] %v8268
        %8289 = vst [vmem:[#allocation2 + $0x60] sm:$0xff] %v8269
        %8290 = vst [vmem:[#allocation2 + $0x68] sm:$0xff] %v8270
        %8291 = vst [vmem:[#allocation2 + $0x70] sm:$0xff] %v8271
        %8292 = vst [vmem:[#allocation2 + $0x78] sm:$0xff] %v8272
        %8293 = vst [vmem:[#allocation2 + $0x80] sm:$0xff] %v8273
        %8294 = vst [vmem:[#allocation2 + $0x88] sm:$0xff] %v8274
        %8295 = vst [vmem:[#allocation2 + $0x90] sm:$0xff] %v8275
        %8296 = vst [vmem:[#allocation2 + $0x98] sm:$0xff] %v8276
        %p8297 = scmp.eq.s32.totalorder %s26, 6
        // Predicated region
        $region79: #{baseline_model2_forward.1} parent=57 // pred_check
          %p8298 = pneg %p8297
        $region80: #{baseline_model2_forward.1} parent=57 // pred_check_branch
          %8300 = sbr.rel (%p8298) target = $region82
        $region81: #{baseline_model2_forward.1} parent=57 // pred_region
          %v8301 = vld [vmem:[#allocation2] sm:$0xff]
          %v8302 = vld [vmem:[#allocation2 + $0x8] sm:$0xff]
          %v8303 = vld [vmem:[#allocation2 + $0x10] sm:$0xff]
          %v8304 = vld [vmem:[#allocation2 + $0x18] sm:$0xff]
          %v8305 = vld [vmem:[#allocation2 + $0x20] sm:$0xff]
          %v8306 = vld [vmem:[#allocation2 + $0x28] sm:$0xff]
          %v8307 = vld [vmem:[#allocation2 + $0x30] sm:$0xff]
          %v8308 = vld [vmem:[#allocation2 + $0x38] sm:$0xff]
          %v8309 = vld [vmem:[#allocation2 + $0x40] sm:$0xff]
          %v8310 = vld [vmem:[#allocation2 + $0x48] sm:$0xff]
          %v8311 = vld [vmem:[#allocation2 + $0x50] sm:$0xff]
          %v8312 = vld [vmem:[#allocation2 + $0x58] sm:$0xff]
          %v8313 = vld [vmem:[#allocation2 + $0x60] sm:$0xff]
          %v8314 = vld [vmem:[#allocation2 + $0x68] sm:$0xff]
          %v8315 = vld [vmem:[#allocation2 + $0x70] sm:$0xff]
          %v8316 = vld [vmem:[#allocation2 + $0x78] sm:$0xff]
          %v8317 = vld [vmem:[#allocation2 + $0x80] sm:$0xff]
          %v8318 = vld [vmem:[#allocation2 + $0x88] sm:$0xff]
          %v8319 = vld [vmem:[#allocation2 + $0x90] sm:$0xff]
          %v8320 = vld [vmem:[#allocation2 + $0x98] sm:$0xff]
          %v8321 = vld [vmem:[%s332] sm:$0xff]
          %v8322 = vld [vmem:[%s332 + $0x8] sm:$0x3]
          %v8325 = vlaneseq
          %v8326 = vshrl.u32 %v8325, 7
          %v8327 = vsub.s32 0, %v8326
          %v8328 = vrot.slane %v8321, %v8327
          %v8329 = vlaneseq
          %v8330 = vshrl.u32 %v8329, 7
          %v8331 = vsub.s32 1, %v8330
          %v8332 = vrot.slane %v8321, %v8331
          %v8333 = vlaneseq
          %v8334 = vshrl.u32 %v8333, 7
          %v8335 = vsub.s32 2, %v8334
          %v8336 = vrot.slane %v8321, %v8335
          %v8337 = vlaneseq
          %v8338 = vshrl.u32 %v8337, 7
          %v8339 = vsub.s32 3, %v8338
          %v8340 = vrot.slane %v8321, %v8339
          %v8341 = vlaneseq
          %v8342 = vshrl.u32 %v8341, 7
          %v8343 = vsub.s32 4, %v8342
          %v8344 = vrot.slane %v8321, %v8343
          %v8345 = vlaneseq
          %v8346 = vshrl.u32 %v8345, 7
          %v8347 = vsub.s32 5, %v8346
          %v8348 = vrot.slane %v8321, %v8347
          %v8349 = vlaneseq
          %v8350 = vshrl.u32 %v8349, 7
          %v8351 = vsub.s32 6, %v8350
          %v8352 = vrot.slane %v8321, %v8351
          %v8353 = vlaneseq
          %v8354 = vshrl.u32 %v8353, 7
          %v8355 = vsub.s32 7, %v8354
          %v8356 = vrot.slane %v8321, %v8355
          %v8357 = vlaneseq
          %v8358 = vshrl.u32 %v8357, 7
          %v8359 = vsub.s32 0, %v8358
          %v8360 = vrot.slane %v8322, %v8359
          %v8361 = vlaneseq
          %v8362 = vshrl.u32 %v8361, 7
          %v8363 = vsub.s32 1, %v8362
          %v8364 = vrot.slane %v8322, %v8363
          %v8375 = vadd.f32 %v8301, %v8328
          %v8376 = vadd.f32 %v8302, %v8332
          %v8377 = vadd.f32 %v8303, %v8336
          %v8378 = vadd.f32 %v8304, %v8340
          %v8379 = vadd.f32 %v8305, %v8344
          %v8380 = vadd.f32 %v8306, %v8348
          %v8381 = vadd.f32 %v8307, %v8352
          %v8382 = vadd.f32 %v8308, %v8356
          %v8383 = vadd.f32 %v8309, %v8360
          %v8384 = vadd.f32 %v8310, %v8364
          %v8385 = vadd.f32 %v8311, %v8328
          %v8386 = vadd.f32 %v8312, %v8332
          %v8387 = vadd.f32 %v8313, %v8336
          %v8388 = vadd.f32 %v8314, %v8340
          %v8389 = vadd.f32 %v8315, %v8344
          %v8390 = vadd.f32 %v8316, %v8348
          %v8391 = vadd.f32 %v8317, %v8352
          %v8392 = vadd.f32 %v8318, %v8356
          %v8393 = vadd.f32 %v8319, %v8360
          %v8394 = vadd.f32 %v8320, %v8364
          %v8395 = vmax.f32 %v8375, 0.0
          %v8396 = vmax.f32 %v8376, 0.0
          %v8397 = vmax.f32 %v8377, 0.0
          %v8398 = vmax.f32 %v8378, 0.0
          %v8399 = vmax.f32 %v8379, 0.0
          %v8400 = vmax.f32 %v8380, 0.0
          %v8401 = vmax.f32 %v8381, 0.0
          %v8402 = vmax.f32 %v8382, 0.0
          %v8403 = vmax.f32 %v8383, 0.0
          %v8404 = vmax.f32 %v8384, 0.0
          %v8405 = vmax.f32 %v8385, 0.0
          %v8406 = vmax.f32 %v8386, 0.0
          %v8407 = vmax.f32 %v8387, 0.0
          %v8408 = vmax.f32 %v8388, 0.0
          %v8409 = vmax.f32 %v8389, 0.0
          %v8410 = vmax.f32 %v8390, 0.0
          %v8411 = vmax.f32 %v8391, 0.0
          %v8412 = vmax.f32 %v8392, 0.0
          %v8413 = vmax.f32 %v8393, 0.0
          %v8414 = vmax.f32 %v8394, 0.0
          %v8415 = vld [vmem:[%s341] sm:$0xff]
          %v8416 = vld [vmem:[%s341 + $0x8] sm:$0xff]
          %v8417 = vld [vmem:[%s341 + $0x10] sm:$0xff]
          %v8418 = vld [vmem:[%s341 + $0x18] sm:$0xff]
          %v8419 = vld [vmem:[%s341 + $0x20] sm:$0xff]
          %v8420 = vld [vmem:[%s341 + $0x28] sm:$0xff]
          %v8421 = vld [vmem:[%s341 + $0x30] sm:$0xff]
          %v8422 = vld [vmem:[%s341 + $0x38] sm:$0xff]
          %v8423 = vld [vmem:[%s341 + $0x40] sm:$0xff]
          %v8424 = vld [vmem:[%s341 + $0x48] sm:$0xff]
          %v8425 = vld [vmem:[%s341 + $0x50] sm:$0xff]
          %v8426 = vld [vmem:[%s341 + $0x58] sm:$0xff]
          %v8427 = vld [vmem:[%s341 + $0x60] sm:$0xff]
          %v8428 = vld [vmem:[%s341 + $0x68] sm:$0xff]
          %v8429 = vld [vmem:[%s341 + $0x70] sm:$0xff]
          %v8430 = vld [vmem:[%s341 + $0x78] sm:$0xff]
          %v8431 = vld [vmem:[%s341 + $0x80] sm:$0xff]
          %v8432 = vld [vmem:[%s341 + $0x88] sm:$0xff]
          %v8433 = vld [vmem:[%s341 + $0x90] sm:$0xff]
          %v8434 = vld [vmem:[%s341 + $0x98] sm:$0xff]
          %v8435 = vld [vmem:[%s341 + $0xa0] sm:$0xff]
          %v8436 = vld [vmem:[%s341 + $0xa8] sm:$0xff]
          %v8437 = vld [vmem:[%s341 + $0xb0] sm:$0xff]
          %v8438 = vld [vmem:[%s341 + $0xb8] sm:$0xff]
          %v8439 = vld [vmem:[%s341 + $0xc0] sm:$0xff]
          %v8440 = vld [vmem:[%s341 + $0xc8] sm:$0xff]
          %v8441 = vld [vmem:[%s341 + $0xd0] sm:$0xff]
          %v8442 = vld [vmem:[%s341 + $0xd8] sm:$0xff]
          %v8443 = vld [vmem:[%s341 + $0xe0] sm:$0xff]
          %v8444 = vld [vmem:[%s341 + $0xe8] sm:$0xff]
          %v8445 = vld [vmem:[%s341 + $0xf0] sm:$0xff]
          %v8446 = vld [vmem:[%s341 + $0xf8] sm:$0xff]
          %v8447 = vld [vmem:[%s341 + $0x100] sm:$0xff]
          %v8448 = vld [vmem:[%s341 + $0x108] sm:$0xff]
          %v8449 = vld [vmem:[%s341 + $0x110] sm:$0xff]
          %v8450 = vld [vmem:[%s341 + $0x118] sm:$0xff]
          %v8451 = vld [vmem:[%s341 + $0x120] sm:$0xff]
          %v8452 = vld [vmem:[%s341 + $0x128] sm:$0xff]
          %v8453 = vld [vmem:[%s341 + $0x130] sm:$0xff]
          %v8454 = vld [vmem:[%s341 + $0x138] sm:$0xff]
          %v8455 = vld [vmem:[%s341 + $0x140] sm:$0xff]
          %v8456 = vld [vmem:[%s341 + $0x148] sm:$0xff]
          %v8457 = vld [vmem:[%s341 + $0x150] sm:$0xff]
          %v8458 = vld [vmem:[%s341 + $0x158] sm:$0xff]
          %v8459 = vld [vmem:[%s341 + $0x160] sm:$0xff]
          %v8460 = vld [vmem:[%s341 + $0x168] sm:$0xff]
          %v8461 = vld [vmem:[%s341 + $0x170] sm:$0xff]
          %v8462 = vld [vmem:[%s341 + $0x178] sm:$0xff]
          %v8463 = vld [vmem:[%s341 + $0x180] sm:$0xff]
          %v8464 = vld [vmem:[%s341 + $0x188] sm:$0xff]
          %v8465 = vld [vmem:[%s341 + $0x190] sm:$0xff]
          %v8466 = vld [vmem:[%s341 + $0x198] sm:$0xff]
          %v8467 = vld [vmem:[%s341 + $0x1a0] sm:$0xff]
          %v8468 = vld [vmem:[%s341 + $0x1a8] sm:$0xff]
          %v8469 = vld [vmem:[%s341 + $0x1b0] sm:$0xff]
          %v8470 = vld [vmem:[%s341 + $0x1b8] sm:$0xff]
          %v8471 = vld [vmem:[%s341 + $0x1c0] sm:$0xff]
          %v8472 = vld [vmem:[%s341 + $0x1c8] sm:$0xff]
          %v8473 = vld [vmem:[%s341 + $0x1d0] sm:$0xff]
          %v8474 = vld [vmem:[%s341 + $0x1d8] sm:$0xff]
          %v8475 = vld [vmem:[%s341 + $0x1e0] sm:$0xff]
          %v8476 = vld [vmem:[%s341 + $0x1e8] sm:$0xff]
          %v8477 = vld [vmem:[%s341 + $0x1f0] sm:$0xff]
          %v8478 = vld [vmem:[%s341 + $0x1f8] sm:$0xff]
          %v8479 = vld [vmem:[%s341 + $0x200] sm:$0xff]
          %v8480 = vld [vmem:[%s341 + $0x208] sm:$0xff]
          %v8481 = vld [vmem:[%s341 + $0x210] sm:$0xff]
          %v8482 = vld [vmem:[%s341 + $0x218] sm:$0xff]
          %v8483 = vld [vmem:[%s341 + $0x220] sm:$0xff]
          %v8484 = vld [vmem:[%s341 + $0x228] sm:$0xff]
          %v8485 = vld [vmem:[%s341 + $0x230] sm:$0xff]
          %v8486 = vld [vmem:[%s341 + $0x238] sm:$0xff]
          %v8487 = vld [vmem:[%s341 + $0x240] sm:$0xff]
          %v8488 = vld [vmem:[%s341 + $0x248] sm:$0xff]
          %v8489 = vld [vmem:[%s341 + $0x250] sm:$0xff]
          %v8490 = vld [vmem:[%s341 + $0x258] sm:$0xff]
          %v8491 = vld [vmem:[%s341 + $0x260] sm:$0xff]
          %v8492 = vld [vmem:[%s341 + $0x268] sm:$0xff]
          %v8493 = vld [vmem:[%s341 + $0x270] sm:$0xff]
          %v8494 = vld [vmem:[%s341 + $0x278] sm:$0xff]
          %v8495 = vld [vmem:[%s341 + $0x280] sm:$0xff]
          %v8496 = vld [vmem:[%s341 + $0x288] sm:$0xff]
          %v8497 = vld [vmem:[%s341 + $0x290] sm:$0xff]
          %v8498 = vld [vmem:[%s341 + $0x298] sm:$0xff]
          %v8499 = vld [vmem:[%s341 + $0x2a0] sm:$0xff]
          %v8500 = vld [vmem:[%s341 + $0x2a8] sm:$0xff]
          %v8501 = vld [vmem:[%s341 + $0x2b0] sm:$0xff]
          %v8502 = vld [vmem:[%s341 + $0x2b8] sm:$0xff]
          %v8503 = vld [vmem:[%s341 + $0x2c0] sm:$0xff]
          %v8504 = vld [vmem:[%s341 + $0x2c8] sm:$0xff]
          %v8505 = vld [vmem:[%s341 + $0x2d0] sm:$0xff]
          %v8506 = vld [vmem:[%s341 + $0x2d8] sm:$0xff]
          %v8507 = vld [vmem:[%s341 + $0x2e0] sm:$0xff]
          %v8508 = vld [vmem:[%s341 + $0x2e8] sm:$0xff]
          %v8509 = vld [vmem:[%s341 + $0x2f0] sm:$0xff]
          %v8510 = vld [vmem:[%s341 + $0x2f8] sm:$0xff]
          %v8511 = vld [vmem:[%s341 + $0x300] sm:$0xff]
          %v8512 = vld [vmem:[%s341 + $0x308] sm:$0xff]
          %v8513 = vld [vmem:[%s341 + $0x310] sm:$0xff]
          %v8514 = vld [vmem:[%s341 + $0x318] sm:$0xff]
          %v8515 = vld [vmem:[%s341 + $0x320] sm:$0xff]
          %v8516 = vld [vmem:[%s341 + $0x328] sm:$0xff]
          %v8517 = vld [vmem:[%s341 + $0x330] sm:$0xff]
          %v8518 = vld [vmem:[%s341 + $0x338] sm:$0xff]
          %v8519 = vld [vmem:[%s341 + $0x340] sm:$0xff]
          %v8520 = vld [vmem:[%s341 + $0x348] sm:$0xff]
          %v8521 = vld [vmem:[%s341 + $0x350] sm:$0xff]
          %v8522 = vld [vmem:[%s341 + $0x358] sm:$0xff]
          %v8523 = vld [vmem:[%s341 + $0x360] sm:$0xff]
          %v8524 = vld [vmem:[%s341 + $0x368] sm:$0xff]
          %v8525 = vld [vmem:[%s341 + $0x370] sm:$0xff]
          %v8526 = vld [vmem:[%s341 + $0x378] sm:$0xff]
          %v8527 = vld [vmem:[%s341 + $0x380] sm:$0xff]
          %v8528 = vld [vmem:[%s341 + $0x388] sm:$0xff]
          %v8529 = vld [vmem:[%s341 + $0x390] sm:$0xff]
          %v8530 = vld [vmem:[%s341 + $0x398] sm:$0xff]
          %v8531 = vld [vmem:[%s341 + $0x3a0] sm:$0xff]
          %v8532 = vld [vmem:[%s341 + $0x3a8] sm:$0xff]
          %v8533 = vld [vmem:[%s341 + $0x3b0] sm:$0xff]
          %v8534 = vld [vmem:[%s341 + $0x3b8] sm:$0xff]
          %v8535 = vld [vmem:[%s341 + $0x3c0] sm:$0xff]
          %v8536 = vld [vmem:[%s341 + $0x3c8] sm:$0xff]
          %v8537 = vld [vmem:[%s341 + $0x3d0] sm:$0xff]
          %v8538 = vld [vmem:[%s341 + $0x3d8] sm:$0xff]
          %v8539 = vld [vmem:[%s341 + $0x3e0] sm:$0xff]
          %v8540 = vld [vmem:[%s341 + $0x3e8] sm:$0xff]
          %v8541 = vld [vmem:[%s341 + $0x3f0] sm:$0xff]
          %v8542 = vld [vmem:[%s341 + $0x3f8] sm:$0xff]
          %v8543 = vld [vmem:[%s341 + $0x400] sm:$0xff]
          %v8544 = vld [vmem:[%s341 + $0x408] sm:$0xff]
          %v8545 = vld [vmem:[%s341 + $0x410] sm:$0xff]
          %v8546 = vld [vmem:[%s341 + $0x418] sm:$0xff]
          %v8547 = vld [vmem:[%s341 + $0x420] sm:$0xff]
          %v8548 = vld [vmem:[%s341 + $0x428] sm:$0xff]
          %v8549 = vld [vmem:[%s341 + $0x430] sm:$0xff]
          %v8550 = vld [vmem:[%s341 + $0x438] sm:$0xff]
          %v8551 = vld [vmem:[%s341 + $0x440] sm:$0xff]
          %v8552 = vld [vmem:[%s341 + $0x448] sm:$0xff]
          %v8553 = vld [vmem:[%s341 + $0x450] sm:$0xff]
          %v8554 = vld [vmem:[%s341 + $0x458] sm:$0xff]
          %v8555 = vld [vmem:[%s341 + $0x460] sm:$0xff]
          %v8556 = vld [vmem:[%s341 + $0x468] sm:$0xff]
          %v8557 = vld [vmem:[%s341 + $0x470] sm:$0xff]
          %v8558 = vld [vmem:[%s341 + $0x478] sm:$0xff]
          %v8559 = vld [vmem:[%s341 + $0x480] sm:$0xff]
          %v8560 = vld [vmem:[%s341 + $0x488] sm:$0xff]
          %v8561 = vld [vmem:[%s341 + $0x490] sm:$0xff]
          %v8562 = vld [vmem:[%s341 + $0x498] sm:$0xff]
          %v8563 = vld [vmem:[%s341 + $0x4a0] sm:$0xff]
          %v8564 = vld [vmem:[%s341 + $0x4a8] sm:$0xff]
          %v8565 = vld [vmem:[%s341 + $0x4b0] sm:$0xff]
          %v8566 = vld [vmem:[%s341 + $0x4b8] sm:$0xff]
          %v8567 = vld [vmem:[%s341 + $0x4c0] sm:$0xff]
          %v8568 = vld [vmem:[%s341 + $0x4c8] sm:$0xff]
          %v8569 = vld [vmem:[%s341 + $0x4d0] sm:$0xff]
          %v8570 = vld [vmem:[%s341 + $0x4d8] sm:$0xff]
          %v8571 = vld [vmem:[%s341 + $0x4e0] sm:$0xff]
          %v8572 = vld [vmem:[%s341 + $0x4e8] sm:$0xff]
          %v8573 = vld [vmem:[%s341 + $0x4f0] sm:$0xff]
          %v8574 = vld [vmem:[%s341 + $0x4f8] sm:$0xff]
          %8575 = vmatprep.subr.mxu0 0.0
          %8576 = vmatpush1.msra.mxu0 %v8415
          %8577 = vmatprep.subr.mxu0 0.0
          %8578 = vmatpush1.msra.mxu0 %v8416
          %8579 = vmatprep.subr.mxu0 0.0
          %8580 = vmatpush1.msra.mxu0 %v8417
          %8581 = vmatprep.subr.mxu0 0.0
          %8582 = vmatpush1.msra.mxu0 %v8418
          %8583 = vmatprep.subr.mxu0 0.0
          %8584 = vmatpush1.msra.mxu0 %v8419
          %8585 = vmatprep.subr.mxu0 0.0
          %8586 = vmatpush1.msra.mxu0 %v8420
          %8587 = vmatprep.subr.mxu0 0.0
          %8588 = vmatpush1.msra.mxu0 %v8421
          %8589 = vmatprep.subr.mxu0 0.0
          %8590 = vmatpush1.msra.mxu0 %v8422
          %8591 = vmatprep.subr.mxu0 0.0
          %8592 = vmatpush1.msra.mxu0 %v8423
          %8593 = vmatprep.subr.mxu0 0.0
          %8594 = vmatpush1.msra.mxu0 %v8424
          %8595 = vmatprep.subr.mxu0 0.0
          %8596 = vmatpush1.msra.mxu0 %v8425
          %8597 = vmatprep.subr.mxu0 0.0
          %8598 = vmatpush1.msra.mxu0 %v8426
          %8599 = vmatprep.subr.mxu0 0.0
          %8600 = vmatpush1.msra.mxu0 %v8427
          %8601 = vmatprep.subr.mxu0 0.0
          %8602 = vmatpush1.msra.mxu0 %v8428
          %8603 = vmatprep.subr.mxu0 0.0
          %8604 = vmatpush1.msra.mxu0 %v8429
          %8605 = vmatprep.subr.mxu0 0.0
          %8606 = vmatpush1.msra.mxu0 %v8430
          %8607 = vmatprep.subr.mxu0 0.0
          %8608 = vmatpush1.msra.mxu0 %v8431
          %8609 = vmatprep.subr.mxu0 0.0
          %8610 = vmatpush1.msra.mxu0 %v8432
          %8611 = vmatprep.subr.mxu0 0.0
          %8612 = vmatpush1.msra.mxu0 %v8433
          %8613 = vmatprep.subr.mxu0 0.0
          %8614 = vmatpush1.msra.mxu0 %v8434
          %8615 = vmatprep.subr.mxu0 0.0
          %8616 = vmatpush1.msra.mxu0 %v8435
          %8617 = vmatprep.subr.mxu0 0.0
          %8618 = vmatpush1.msra.mxu0 %v8436
          %8619 = vmatprep.subr.mxu0 0.0
          %8620 = vmatpush1.msra.mxu0 %v8437
          %8621 = vmatprep.subr.mxu0 0.0
          %8622 = vmatpush1.msra.mxu0 %v8438
          %8623 = vmatprep.subr.mxu0 0.0
          %8624 = vmatpush1.msra.mxu0 %v8439
          %8625 = vmatprep.subr.mxu0 0.0
          %8626 = vmatpush1.msra.mxu0 %v8440
          %8627 = vmatprep.subr.mxu0 0.0
          %8628 = vmatpush1.msra.mxu0 %v8441
          %8629 = vmatprep.subr.mxu0 0.0
          %8630 = vmatpush1.msra.mxu0 %v8442
          %8631 = vmatprep.subr.mxu0 0.0
          %8632 = vmatpush1.msra.mxu0 %v8443
          %8633 = vmatprep.subr.mxu0 0.0
          %8634 = vmatpush1.msra.mxu0 %v8444
          %8635 = vmatprep.subr.mxu0 0.0
          %8636 = vmatpush1.msra.mxu0 %v8445
          %8637 = vmatprep.subr.mxu0 0.0
          %8638 = vmatpush1.msra.mxu0 %v8446
          %8639 = vmatprep.mubr.f32.mxu0 %v8396
          %8640 = vmatmul.mubr.f32.gmra.mrb[0].mxu0 %v8395
          %v8641 = vpop.f32.mrb[0].mxu0
          %v8642 = vadd.f32 0.0, %v8641
          %v8643 = vpop.f32.mrb[0].mxu0
          %8644 = vmatprep.mubr.f32.mxu0 %v8406
          %8645 = vmatmul.mubr.f32.gmra.mrb[0].mxu0 %v8405
          %v8646 = vpop.f32.mrb[0].mxu0
          %v8647 = vadd.f32 0.0, %v8646
          %v8648 = vpop.f32.mrb[0].mxu0
          %8649 = vdwg.mxu0
          %8650 = vmatprep.subr.mxu0 0.0
          %8651 = vmatpush1.msra.mxu0 %v8447
          %8652 = vmatprep.subr.mxu0 0.0
          %8653 = vmatpush1.msra.mxu0 %v8448
          %8654 = vmatprep.subr.mxu0 0.0
          %8655 = vmatpush1.msra.mxu0 %v8449
          %8656 = vmatprep.subr.mxu0 0.0
          %8657 = vmatpush1.msra.mxu0 %v8450
          %8658 = vmatprep.subr.mxu0 0.0
          %8659 = vmatpush1.msra.mxu0 %v8451
          %8660 = vmatprep.subr.mxu0 0.0
          %8661 = vmatpush1.msra.mxu0 %v8452
          %8662 = vmatprep.subr.mxu0 0.0
          %8663 = vmatpush1.msra.mxu0 %v8453
          %8664 = vmatprep.subr.mxu0 0.0
          %8665 = vmatpush1.msra.mxu0 %v8454
          %8666 = vmatprep.subr.mxu0 0.0
          %8667 = vmatpush1.msra.mxu0 %v8455
          %8668 = vmatprep.subr.mxu0 0.0
          %8669 = vmatpush1.msra.mxu0 %v8456
          %8670 = vmatprep.subr.mxu0 0.0
          %8671 = vmatpush1.msra.mxu0 %v8457
          %8672 = vmatprep.subr.mxu0 0.0
          %8673 = vmatpush1.msra.mxu0 %v8458
          %8674 = vmatprep.subr.mxu0 0.0
          %8675 = vmatpush1.msra.mxu0 %v8459
          %8676 = vmatprep.subr.mxu0 0.0
          %8677 = vmatpush1.msra.mxu0 %v8460
          %8678 = vmatprep.subr.mxu0 0.0
          %8679 = vmatpush1.msra.mxu0 %v8461
          %8680 = vmatprep.subr.mxu0 0.0
          %8681 = vmatpush1.msra.mxu0 %v8462
          %8682 = vmatprep.subr.mxu0 0.0
          %8683 = vmatpush1.msra.mxu0 %v8463
          %8684 = vmatprep.subr.mxu0 0.0
          %8685 = vmatpush1.msra.mxu0 %v8464
          %8686 = vmatprep.subr.mxu0 0.0
          %8687 = vmatpush1.msra.mxu0 %v8465
          %8688 = vmatprep.subr.mxu0 0.0
          %8689 = vmatpush1.msra.mxu0 %v8466
          %8690 = vmatprep.subr.mxu0 0.0
          %8691 = vmatpush1.msra.mxu0 %v8467
          %8692 = vmatprep.subr.mxu0 0.0
          %8693 = vmatpush1.msra.mxu0 %v8468
          %8694 = vmatprep.subr.mxu0 0.0
          %8695 = vmatpush1.msra.mxu0 %v8469
          %8696 = vmatprep.subr.mxu0 0.0
          %8697 = vmatpush1.msra.mxu0 %v8470
          %8698 = vmatprep.subr.mxu0 0.0
          %8699 = vmatpush1.msra.mxu0 %v8471
          %8700 = vmatprep.subr.mxu0 0.0
          %8701 = vmatpush1.msra.mxu0 %v8472
          %8702 = vmatprep.subr.mxu0 0.0
          %8703 = vmatpush1.msra.mxu0 %v8473
          %8704 = vmatprep.subr.mxu0 0.0
          %8705 = vmatpush1.msra.mxu0 %v8474
          %8706 = vmatprep.subr.mxu0 0.0
          %8707 = vmatpush1.msra.mxu0 %v8475
          %8708 = vmatprep.subr.mxu0 0.0
          %8709 = vmatpush1.msra.mxu0 %v8476
          %8710 = vmatprep.subr.mxu0 0.0
          %8711 = vmatpush1.msra.mxu0 %v8477
          %8712 = vmatprep.subr.mxu0 0.0
          %8713 = vmatpush1.msra.mxu0 %v8478
          %8714 = vmatprep.mubr.f32.mxu0 %v8398
          %8715 = vmatmul.mubr.f32.gmra.mrb[0].mxu0 %v8397
          %v8716 = vpop.f32.mrb[0].mxu0
          %v8717 = vadd.f32 %v8642, %v8716
          %v8718 = vpop.f32.mrb[0].mxu0
          %8719 = vmatprep.mubr.f32.mxu0 %v8408
          %8720 = vmatmul.mubr.f32.gmra.mrb[0].mxu0 %v8407
          %v8721 = vpop.f32.mrb[0].mxu0
          %v8722 = vadd.f32 %v8647, %v8721
          %v8723 = vpop.f32.mrb[0].mxu0
          %8724 = vdwg.mxu0
          %8725 = vmatprep.subr.mxu0 0.0
          %8726 = vmatpush1.msra.mxu0 %v8479
          %8727 = vmatprep.subr.mxu0 0.0
          %8728 = vmatpush1.msra.mxu0 %v8480
          %8729 = vmatprep.subr.mxu0 0.0
          %8730 = vmatpush1.msra.mxu0 %v8481
          %8731 = vmatprep.subr.mxu0 0.0
          %8732 = vmatpush1.msra.mxu0 %v8482
          %8733 = vmatprep.subr.mxu0 0.0
          %8734 = vmatpush1.msra.mxu0 %v8483
          %8735 = vmatprep.subr.mxu0 0.0
          %8736 = vmatpush1.msra.mxu0 %v8484
          %8737 = vmatprep.subr.mxu0 0.0
          %8738 = vmatpush1.msra.mxu0 %v8485
          %8739 = vmatprep.subr.mxu0 0.0
          %8740 = vmatpush1.msra.mxu0 %v8486
          %8741 = vmatprep.subr.mxu0 0.0
          %8742 = vmatpush1.msra.mxu0 %v8487
          %8743 = vmatprep.subr.mxu0 0.0
          %8744 = vmatpush1.msra.mxu0 %v8488
          %8745 = vmatprep.subr.mxu0 0.0
          %8746 = vmatpush1.msra.mxu0 %v8489
          %8747 = vmatprep.subr.mxu0 0.0
          %8748 = vmatpush1.msra.mxu0 %v8490
          %8749 = vmatprep.subr.mxu0 0.0
          %8750 = vmatpush1.msra.mxu0 %v8491
          %8751 = vmatprep.subr.mxu0 0.0
          %8752 = vmatpush1.msra.mxu0 %v8492
          %8753 = vmatprep.subr.mxu0 0.0
          %8754 = vmatpush1.msra.mxu0 %v8493
          %8755 = vmatprep.subr.mxu0 0.0
          %8756 = vmatpush1.msra.mxu0 %v8494
          %8757 = vmatprep.subr.mxu0 0.0
          %8758 = vmatpush1.msra.mxu0 %v8495
          %8759 = vmatprep.subr.mxu0 0.0
          %8760 = vmatpush1.msra.mxu0 %v8496
          %8761 = vmatprep.subr.mxu0 0.0
          %8762 = vmatpush1.msra.mxu0 %v8497
          %8763 = vmatprep.subr.mxu0 0.0
          %8764 = vmatpush1.msra.mxu0 %v8498
          %8765 = vmatprep.subr.mxu0 0.0
          %8766 = vmatpush1.msra.mxu0 %v8499
          %8767 = vmatprep.subr.mxu0 0.0
          %8768 = vmatpush1.msra.mxu0 %v8500
          %8769 = vmatprep.subr.mxu0 0.0
          %8770 = vmatpush1.msra.mxu0 %v8501
          %8771 = vmatprep.subr.mxu0 0.0
          %8772 = vmatpush1.msra.mxu0 %v8502
          %8773 = vmatprep.subr.mxu0 0.0
          %8774 = vmatpush1.msra.mxu0 %v8503
          %8775 = vmatprep.subr.mxu0 0.0
          %8776 = vmatpush1.msra.mxu0 %v8504
          %8777 = vmatprep.subr.mxu0 0.0
          %8778 = vmatpush1.msra.mxu0 %v8505
          %8779 = vmatprep.subr.mxu0 0.0
          %8780 = vmatpush1.msra.mxu0 %v8506
          %8781 = vmatprep.subr.mxu0 0.0
          %8782 = vmatpush1.msra.mxu0 %v8507
          %8783 = vmatprep.subr.mxu0 0.0
          %8784 = vmatpush1.msra.mxu0 %v8508
          %8785 = vmatprep.subr.mxu0 0.0
          %8786 = vmatpush1.msra.mxu0 %v8509
          %8787 = vmatprep.subr.mxu0 0.0
          %8788 = vmatpush1.msra.mxu0 %v8510
          %8789 = vmatprep.mubr.f32.mxu0 %v8400
          %8790 = vmatmul.mubr.f32.gmra.mrb[0].mxu0 %v8399
          %v8791 = vpop.f32.mrb[0].mxu0
          %v8792 = vadd.f32 %v8717, %v8791
          %v8793 = vpop.f32.mrb[0].mxu0
          %8794 = vmatprep.mubr.f32.mxu0 %v8410
          %8795 = vmatmul.mubr.f32.gmra.mrb[0].mxu0 %v8409
          %v8796 = vpop.f32.mrb[0].mxu0
          %v8797 = vadd.f32 %v8722, %v8796
          %v8798 = vpop.f32.mrb[0].mxu0
          %8799 = vdwg.mxu0
          %8800 = vmatprep.subr.mxu0 0.0
          %8801 = vmatpush1.msra.mxu0 %v8511
          %8802 = vmatprep.subr.mxu0 0.0
          %8803 = vmatpush1.msra.mxu0 %v8512
          %8804 = vmatprep.subr.mxu0 0.0
          %8805 = vmatpush1.msra.mxu0 %v8513
          %8806 = vmatprep.subr.mxu0 0.0
          %8807 = vmatpush1.msra.mxu0 %v8514
          %8808 = vmatprep.subr.mxu0 0.0
          %8809 = vmatpush1.msra.mxu0 %v8515
          %8810 = vmatprep.subr.mxu0 0.0
          %8811 = vmatpush1.msra.mxu0 %v8516
          %8812 = vmatprep.subr.mxu0 0.0
          %8813 = vmatpush1.msra.mxu0 %v8517
          %8814 = vmatprep.subr.mxu0 0.0
          %8815 = vmatpush1.msra.mxu0 %v8518
          %8816 = vmatprep.subr.mxu0 0.0
          %8817 = vmatpush1.msra.mxu0 %v8519
          %8818 = vmatprep.subr.mxu0 0.0
          %8819 = vmatpush1.msra.mxu0 %v8520
          %8820 = vmatprep.subr.mxu0 0.0
          %8821 = vmatpush1.msra.mxu0 %v8521
          %8822 = vmatprep.subr.mxu0 0.0
          %8823 = vmatpush1.msra.mxu0 %v8522
          %8824 = vmatprep.subr.mxu0 0.0
          %8825 = vmatpush1.msra.mxu0 %v8523
          %8826 = vmatprep.subr.mxu0 0.0
          %8827 = vmatpush1.msra.mxu0 %v8524
          %8828 = vmatprep.subr.mxu0 0.0
          %8829 = vmatpush1.msra.mxu0 %v8525
          %8830 = vmatprep.subr.mxu0 0.0
          %8831 = vmatpush1.msra.mxu0 %v8526
          %8832 = vmatprep.subr.mxu0 0.0
          %8833 = vmatpush1.msra.mxu0 %v8527
          %8834 = vmatprep.subr.mxu0 0.0
          %8835 = vmatpush1.msra.mxu0 %v8528
          %8836 = vmatprep.subr.mxu0 0.0
          %8837 = vmatpush1.msra.mxu0 %v8529
          %8838 = vmatprep.subr.mxu0 0.0
          %8839 = vmatpush1.msra.mxu0 %v8530
          %8840 = vmatprep.subr.mxu0 0.0
          %8841 = vmatpush1.msra.mxu0 %v8531
          %8842 = vmatprep.subr.mxu0 0.0
          %8843 = vmatpush1.msra.mxu0 %v8532
          %8844 = vmatprep.subr.mxu0 0.0
          %8845 = vmatpush1.msra.mxu0 %v8533
          %8846 = vmatprep.subr.mxu0 0.0
          %8847 = vmatpush1.msra.mxu0 %v8534
          %8848 = vmatprep.subr.mxu0 0.0
          %8849 = vmatpush1.msra.mxu0 %v8535
          %8850 = vmatprep.subr.mxu0 0.0
          %8851 = vmatpush1.msra.mxu0 %v8536
          %8852 = vmatprep.subr.mxu0 0.0
          %8853 = vmatpush1.msra.mxu0 %v8537
          %8854 = vmatprep.subr.mxu0 0.0
          %8855 = vmatpush1.msra.mxu0 %v8538
          %8856 = vmatprep.subr.mxu0 0.0
          %8857 = vmatpush1.msra.mxu0 %v8539
          %8858 = vmatprep.subr.mxu0 0.0
          %8859 = vmatpush1.msra.mxu0 %v8540
          %8860 = vmatprep.subr.mxu0 0.0
          %8861 = vmatpush1.msra.mxu0 %v8541
          %8862 = vmatprep.subr.mxu0 0.0
          %8863 = vmatpush1.msra.mxu0 %v8542
          %8864 = vmatprep.mubr.f32.mxu0 %v8402
          %8865 = vmatmul.mubr.f32.gmra.mrb[0].mxu0 %v8401
          %v8866 = vpop.f32.mrb[0].mxu0
          %v8867 = vadd.f32 %v8792, %v8866
          %v8868 = vpop.f32.mrb[0].mxu0
          %8869 = vmatprep.mubr.f32.mxu0 %v8412
          %8870 = vmatmul.mubr.f32.gmra.mrb[0].mxu0 %v8411
          %v8871 = vpop.f32.mrb[0].mxu0
          %v8872 = vadd.f32 %v8797, %v8871
          %v8873 = vpop.f32.mrb[0].mxu0
          %8874 = vdwg.mxu0
          %8875 = vmatprep.subr.mxu0 0.0
          %8876 = vmatpush1.msra.mxu0 %v8543
          %8877 = vmatprep.subr.mxu0 0.0
          %8878 = vmatpush1.msra.mxu0 %v8544
          %8879 = vmatprep.subr.mxu0 0.0
          %8880 = vmatpush1.msra.mxu0 %v8545
          %8881 = vmatprep.subr.mxu0 0.0
          %8882 = vmatpush1.msra.mxu0 %v8546
          %8883 = vmatprep.subr.mxu0 0.0
          %8884 = vmatpush1.msra.mxu0 %v8547
          %8885 = vmatprep.subr.mxu0 0.0
          %8886 = vmatpush1.msra.mxu0 %v8548
          %8887 = vmatprep.subr.mxu0 0.0
          %8888 = vmatpush1.msra.mxu0 %v8549
          %8889 = vmatprep.subr.mxu0 0.0
          %8890 = vmatpush1.msra.mxu0 %v8550
          %8891 = vmatprep.subr.mxu0 0.0
          %8892 = vmatpush1.msra.mxu0 %v8551
          %8893 = vmatprep.subr.mxu0 0.0
          %8894 = vmatpush1.msra.mxu0 %v8552
          %8895 = vmatprep.subr.mxu0 0.0
          %8896 = vmatpush1.msra.mxu0 %v8553
          %8897 = vmatprep.subr.mxu0 0.0
          %8898 = vmatpush1.msra.mxu0 %v8554
          %8899 = vmatprep.subr.mxu0 0.0
          %8900 = vmatpush1.msra.mxu0 %v8555
          %8901 = vmatprep.subr.mxu0 0.0
          %8902 = vmatpush1.msra.mxu0 %v8556
          %8903 = vmatprep.subr.mxu0 0.0
          %8904 = vmatpush1.msra.mxu0 %v8557
          %8905 = vmatprep.subr.mxu0 0.0
          %8906 = vmatpush1.msra.mxu0 %v8558
          %8907 = vmatprep.subr.mxu0 0.0
          %8908 = vmatpush1.msra.mxu0 %v8559
          %8909 = vmatprep.subr.mxu0 0.0
          %8910 = vmatpush1.msra.mxu0 %v8560
          %8911 = vmatprep.subr.mxu0 0.0
          %8912 = vmatpush1.msra.mxu0 %v8561
          %8913 = vmatprep.subr.mxu0 0.0
          %8914 = vmatpush1.msra.mxu0 %v8562
          %8915 = vmatprep.subr.mxu0 0.0
          %8916 = vmatpush1.msra.mxu0 %v8563
          %8917 = vmatprep.subr.mxu0 0.0
          %8918 = vmatpush1.msra.mxu0 %v8564
          %8919 = vmatprep.subr.mxu0 0.0
          %8920 = vmatpush1.msra.mxu0 %v8565
          %8921 = vmatprep.subr.mxu0 0.0
          %8922 = vmatpush1.msra.mxu0 %v8566
          %8923 = vmatprep.subr.mxu0 0.0
          %8924 = vmatpush1.msra.mxu0 %v8567
          %8925 = vmatprep.subr.mxu0 0.0
          %8926 = vmatpush1.msra.mxu0 %v8568
          %8927 = vmatprep.subr.mxu0 0.0
          %8928 = vmatpush1.msra.mxu0 %v8569
          %8929 = vmatprep.subr.mxu0 0.0
          %8930 = vmatpush1.msra.mxu0 %v8570
          %8931 = vmatprep.subr.mxu0 0.0
          %8932 = vmatpush1.msra.mxu0 %v8571
          %8933 = vmatprep.subr.mxu0 0.0
          %8934 = vmatpush1.msra.mxu0 %v8572
          %8935 = vmatprep.subr.mxu0 0.0
          %8936 = vmatpush1.msra.mxu0 %v8573
          %8937 = vmatprep.subr.mxu0 0.0
          %8938 = vmatpush1.msra.mxu0 %v8574
          %8939 = vmatprep.mubr.f32.mxu0 %v8404
          %8940 = vmatmul.mubr.f32.gmra.mrb[0].mxu0 %v8403
          %v8941 = vpop.f32.mrb[0].mxu0
          %v8942 = vadd.f32 %v8867, %v8941
          %v8943 = vpop.f32.mrb[0].mxu0
          %8944 = vmatprep.mubr.f32.mxu0 %v8414
          %8945 = vmatmul.mubr.f32.gmra.mrb[0].mxu0 %v8413
          %v8946 = vpop.f32.mrb[0].mxu0
          %v8947 = vadd.f32 %v8872, %v8946
          %v8948 = vpop.f32.mrb[0].mxu0
          %8949 = vdwg.mxu0
          %8950 = vst [vmem:[%s386] sm:$0xff] %v8942
          %8951 = vst [vmem:[%s386 + $0x8] sm:$0xff] %v8947
        $region82: #{baseline_model2_forward.1} parent=57 // pred_fallthru
          _
        %p8952 = scmp.lt.s32.totalorder %s25, 1
        %s8953 = scalar_select %p8952, %s25, 1
        %s8954 = smul.addr %s8953, 2
        %s8955 = smul.addr %s8954, 8
        %s8956 = scalar_lea.vmem %s4, %s8955
        // Predicated region
        $region83: #{baseline_model2_forward.1} parent=57 // pred_check
          %p8957 = pneg %p157
        $region84: #{baseline_model2_forward.1} parent=57 // pred_check_branch
          %8959 = sbr.rel (%p8957) target = $region86
        $region85: #{baseline_model2_forward.1} parent=57 // pred_region
          _
        $region86: #{baseline_model2_forward.1} parent=57 // pred_fallthru
          _
      $region58: #{baseline_model2_forward.1} parent=5 // pred_fallthru
        _
      %p8960 = scmp.le.s32.totalorder 2, %s16
      // Predicated region
      $region87: #{baseline_model2_forward.1} parent=5 // pred_check
        %p8961 = pneg %p8960
      $region88: #{baseline_model2_forward.1} parent=5 // pred_check_branch
        %8963 = sbr.rel (%p8961) target = $region90
      $region89: #{baseline_model2_forward.1} parent=5 // pred_region
        %s8964 = ssub.s32 %s16, 2
        // Predicated region
        $region91: #{baseline_model2_forward.1} parent=89 // pred_check
          %p8965 = pneg %p163
        $region92: #{baseline_model2_forward.1} parent=89 // pred_check_branch
          %8967 = sbr.rel (%p8965) target = $region94
        $region93: #{baseline_model2_forward.1} parent=89 // pred_region
          %p8968 = scmp.lt.s32.totalorder %s27, 1
          %s8969 = scalar_select %p8968, %s27, 1
          %s8970 = smul.addr %s8969, 2
          %s8971 = smul.addr %s8970, 8
          %s8972 = scalar_lea.vmem %s4, %s8971
        $region94: #{baseline_model2_forward.1} parent=89 // pred_fallthru
          _
      $region90: #{baseline_model2_forward.1} parent=5 // pred_fallthru
        _
    $region6: #{baseline_model2_forward.1} parent=1 // loop_footer
      %s20 = sadd.s32 1, %s16
    $region7: #{baseline_model2_forward.1} parent=1 // loop_footer_branch
      %15 = sbr.rel target = $region3
    $region8: #{baseline_model2_forward.1} parent=1 // loop_exit
      _
    %8973 = vsyncpa [#allocation5], 1
    %s8974 = scalar_lea.sflag [#allocation5], 1
    %8975 = vsyncpa %s8974, 1
    %8976 = vsyncpa [#allocation7], 1
    %s8977 = scalar_lea.sflag [#allocation7], 1
    %8978 = vsyncpa %s8977, 1

</llo_original>
